<compile_context>
chip_gen: v6e
topology: v6e:2x2x1
jax: 0.10.0
libtpu: 0.0.40
codegen_flags: <defaults>
</compile_context>

<pallas_src>
import math
from functools import partial

import jax
import jax.numpy as jnp
from jax.experimental import pallas as pl
from jax.experimental.pallas import tpu as pltpu

BERT_DIM = 768          # multiple of 128
NER_DIM = 10
NER_PAD = 128           # NER logits / softmax padded to one lane-dense block
NED_DIM = 300
NED_PAD = 384           # 3 * 128
HT_DIM = 128
RE_DIM = 128
G_TILE_N = 8192         # 2 N-tiles over the (128, 16384) bilinear weight
TI = 8                  # i-rows per bilinear grid step


# ----------------------------- Pallas kernels ------------------------------

def _ner_kernel(s0, x_ref, w_ref, b_ref, ner_ref, sm_ref, keep_ref):
    """NER linear + masked softmax + keep-mask (argmax over 10 classes != 9)."""
    x = x_ref[...]                                              # (S, 768) f32
    logits = (jnp.dot(x, w_ref[...], preferred_element_type=jnp.float32)
              + b_ref[...])                                     # (S, 128) f32
    ner_ref[...] = logits
    col = jax.lax.broadcasted_iota(jnp.int32, logits.shape, 1)
    valid = col < NER_DIM
    masked = jnp.where(valid, logits, -1e30)
    m10 = jnp.max(masked, axis=1, keepdims=True)                # (S, 1)
    e = jnp.where(valid, jnp.exp(masked - m10), 0.0)
    sm_ref[...] = e / jnp.sum(e, axis=1, keepdims=True)         # pad lanes stay 0
    # keep row  <=>  argmax over the 10 classes != NER_DIM-1
    #           <=>  max(logits[:NER_DIM-1]) >= max(logits[:NER_DIM])
    masked9 = jnp.where(col < NER_DIM - 1, logits, -1e30)
    m9 = jnp.max(masked9, axis=1, keepdims=True)                # (S, 1)
    rowid = jax.lax.broadcasted_iota(jnp.int32, m9.shape, 0)
    keep_ref[...] = jnp.where((m9 >= m10) & (rowid < s0), 1.0, 0.0)


def _encode_kernel(xf_ref, smf_ref, nedwx_ref, nedwn_ref, nedb_ref,
                   htwx_ref, htws_ref, htwn_ref, htb_ref,
                   relhw_ref, reltw_ref,
                   ned_ref, h_ref, t_ref, linh_ref, lint_ref):
    """Fused NED linear + head/tail projections + relation-linear terms."""
    xf = xf_ref[...].astype(jnp.bfloat16)                       # (S, 768)
    smf = smf_ref[...].astype(jnp.bfloat16)                     # (S, 128)
    ned = (jnp.dot(xf, nedwx_ref[...], preferred_element_type=jnp.float32)
           + jnp.dot(smf, nedwn_ref[...], preferred_element_type=jnp.float32)
           + nedb_ref[...])                                     # (S, 384) f32
    ned_ref[...] = ned
    ned_bf = ned.astype(jnp.bfloat16)
    # head/tail: [x | sm | ned] @ [Wx ; Ws ; Wn]  (concat avoided by splitting W)
    ht = (jnp.dot(xf, htwx_ref[...], preferred_element_type=jnp.float32)
          + jnp.dot(smf, htws_ref[...], preferred_element_type=jnp.float32)
          + jnp.dot(ned_bf, htwn_ref[...], preferred_element_type=jnp.float32)
          + htb_ref[...])                                       # (S, 256) f32
    h_bf = ht[:, :HT_DIM].astype(jnp.bfloat16)
    t_bf = ht[:, HT_DIM:].astype(jnp.bfloat16)
    h_ref[...] = h_bf
    t_ref[...] = t_bf
    # bias-free relation linear, split into head / tail halves
    linh_ref[...] = jnp.dot(h_bf, relhw_ref[...], preferred_element_type=jnp.float32)
    lint_ref[...] = jnp.dot(t_bf, reltw_ref[...], preferred_element_type=jnp.float32)


def _g_matmul_kernel(h_ref, wa_ref, g_ref):
    """G = h @ w_a  with w_a[a, b*RE_DIM + o] = W_bil[o, a, b]; bf16 output."""
    g_ref[...] = jnp.dot(h_ref[...], wa_ref[...],
                         preferred_element_type=jnp.float32).astype(jnp.bfloat16)


def _bilinear_kernel(g_ref, t_ref, linh_ref, lint_ref, bb_ref, o_ref):
    """re[i, j, :] = t[j] @ G_i + lin_h[i] + lin_t[j] + bil_b, TI rows per step."""
    t = t_ref[...]                                              # (S, 128) bf16
    lint = lint_ref[...]                                        # (S, 128) f32
    bb = bb_ref[...]                                            # (1, 128) f32
    for k in range(TI):                                         # unrolled statically
        g_k = g_ref[k * HT_DIM:(k + 1) * HT_DIM, :]             # (128, 128) bf16
        bil = jnp.dot(t, g_k, preferred_element_type=jnp.float32)   # (S, 128) f32
        o_ref[k] = bil + linh_ref[k:k + 1, :] + lint + bb


# ------------------------------- wrappers -----------------------------------

def _full_spec(shape):
    return pl.BlockSpec(shape, lambda *_: (0,) * len(shape))


def ner_forward(x, p, s0):
    S = x.shape[0]
    outs = (jax.ShapeDtypeStruct((S, NER_PAD), jnp.float32),   # logits (padded)
            jax.ShapeDtypeStruct((S, NER_PAD), jnp.float32),   # softmax (padded)
            jax.ShapeDtypeStruct((S, 1), jnp.float32))         # keep mask column
    return pl.pallas_call(
        partial(_ner_kernel, s0),
        out_shape=outs,
        grid=(1,),
        in_specs=[_full_spec((S, BERT_DIM)),
                  _full_spec((BERT_DIM, NER_PAD)),
                  _full_spec((1, NER_PAD))],
        out_specs=tuple(_full_spec(o.shape) for o in outs),
        compiler_params=pltpu.CompilerParams(
            dimension_semantics=("arbitrary",)),
    )(x, p["ner_w"], p["ner_b"])


def encode(xf, smf, p):
    S = xf.shape[0]
    outs = (jax.ShapeDtypeStruct((S, NED_PAD), jnp.float32),   # ned (padded)
            jax.ShapeDtypeStruct((S, HT_DIM), jnp.bfloat16),   # h (bf16)
            jax.ShapeDtypeStruct((S, HT_DIM), jnp.bfloat16),   # t (bf16)
            jax.ShapeDtypeStruct((S, RE_DIM), jnp.float32),    # lin_h
            jax.ShapeDtypeStruct((S, RE_DIM), jnp.float32))    # lin_t
    return pl.pallas_call(
        _encode_kernel,
        out_shape=outs,
        grid=(1,),
        in_specs=[_full_spec((S, BERT_DIM)), _full_spec((S, NER_PAD)),
                  _full_spec((BERT_DIM, NED_PAD)), _full_spec((NER_PAD, NED_PAD)),
                  _full_spec((1, NED_PAD)),
                  _full_spec((BERT_DIM, 2 * HT_DIM)), _full_spec((NER_PAD, 2 * HT_DIM)),
                  _full_spec((NED_PAD, 2 * HT_DIM)), _full_spec((1, 2 * HT_DIM)),
                  _full_spec((HT_DIM, RE_DIM)), _full_spec((HT_DIM, RE_DIM))],
        out_specs=tuple(_full_spec(o.shape) for o in outs),
        compiler_params=pltpu.CompilerParams(
            dimension_semantics=("arbitrary",)),
    )(xf, smf, p["ned_wx"], p["ned_wn"], p["ned_b"],
      p["htw_x"], p["htw_s"], p["htw_n"], p["ht_b"],
      p["relh_w"], p["relt_w"])


def g_matmul(h_bf, wa):
    S = h_bf.shape[0]
    n_total = wa.shape[1]                         # 128 * 128 = 16384
    grid = (n_total // G_TILE_N,)                 # 2 tiles (v7x megacore: 1 per TC)
    return pl.pallas_call(
        _g_matmul_kernel,
        out_shape=jax.ShapeDtypeStruct((S, n_total), jnp.bfloat16),
        grid=grid,
        in_specs=[pl.BlockSpec((S, HT_DIM), lambda j: (0, 0)),
                  pl.BlockSpec((HT_DIM, G_TILE_N), lambda j: (0, j))],
        out_specs=pl.BlockSpec((S, G_TILE_N), lambda j: (0, j)),
        compiler_params=pltpu.CompilerParams(
            dimension_semantics=("parallel",)),
    )(h_bf, wa)


def bilinear_combine(g2, t_bf, linh, lint, bil_b):
    S = t_bf.shape[0]
    grid = (S // TI,)                             # TI i-rows per grid step
    return pl.pallas_call(
        _bilinear_kernel,
        out_shape=jax.ShapeDtypeStruct((S, S, RE_DIM), jnp.float32),
        grid=grid,
        in_specs=[pl.BlockSpec((TI * HT_DIM, RE_DIM), lambda i: (i, 0)),
                  pl.BlockSpec((S, HT_DIM), lambda i: (0, 0)),
                  pl.BlockSpec((TI, RE_DIM), lambda i: (i, 0)),
                  pl.BlockSpec((S, RE_DIM), lambda i: (0, 0)),
                  pl.BlockSpec((1, RE_DIM), lambda i: (0, 0))],
        out_specs=pl.BlockSpec((TI, S, RE_DIM), lambda i: (i, 0, 0)),
        compiler_params=pltpu.CompilerParams(
            dimension_semantics=("parallel",)),
    )(g2, t_bf, linh, lint, bil_b)


# ----------------------------- parameter init ------------------------------

def init_params(key):
    """PyTorch-style init, then one-time pre-layout / padding / bf16 cast."""
    ks = jax.random.split(key, 12)

    def lin(kw, kb, out_d, in_d):
        bound = 1.0 / math.sqrt(in_d)
        W = jax.random.uniform(kw, (out_d, in_d), jnp.float32, -bound, bound)
        b = jax.random.uniform(kb, (out_d,), jnp.float32, -bound, bound)
        return W, b

    ner_w, ner_b = lin(ks[0], ks[1], NER_DIM, BERT_DIM)
    ned_w, ned_b = lin(ks[2], ks[3], NED_DIM, BERT_DIM + NER_DIM)
    h_w, h_b = lin(ks[4], ks[5], HT_DIM, BERT_DIM + NER_DIM + NED_DIM)
    t_w, t_b = lin(ks[6], ks[7], HT_DIM, BERT_DIM + NER_DIM + NED_DIM)
    bound = 1.0 / math.sqrt(HT_DIM)
    bil_w = jax.random.uniform(ks[8], (RE_DIM, HT_DIM, HT_DIM),
                               jnp.float32, -bound, bound)
    bil_b = jax.random.uniform(ks[9], (RE_DIM,), jnp.float32, -bound, bound)
    bound2 = 1.0 / math.sqrt(2 * HT_DIM)
    rel_w = jax.random.uniform(ks[10], (RE_DIM, 2 * HT_DIM),
                               jnp.float32, -bound2, bound2)     # bias-free Linear

    p = {}
    # NER (kept f32: it decides the entity filter), logits padded 10 -> 128.
    p["ner_w"] = jnp.zeros((BERT_DIM, NER_PAD), jnp.float32).at[:, :NER_DIM].set(ner_w.T)
    p["ner_b"] = jnp.zeros((1, NER_PAD), jnp.float32).at[0, :NER_DIM].set(ner_b)

    # NED: input [x(768)] and [sm(10) -> 128 pad] handled by two weight slabs.
    ned_wt = ned_w.T                                              # (778, 300)
    ned_wx = jnp.zeros((BERT_DIM, NED_PAD), jnp.float32).at[:, :NED_DIM].set(ned_wt[:BERT_DIM])
    ned_wn = jnp.zeros((NER_PAD, NED_PAD), jnp.float32).at[:NER_DIM, :NED_DIM].set(ned_wt[BERT_DIM:])
    p["ned_wx"] = ned_wx.astype(jnp.bfloat16)
    p["ned_wn"] = ned_wn.astype(jnp.bfloat16)
    p["ned_b"] = jnp.zeros((1, NED_PAD), jnp.float32).at[0, :NED_DIM].set(ned_b)

    # Head/tail: combined (1078, 256) weight split into x / softmax / ned parts.
    htw = jnp.concatenate([h_w.T, t_w.T], axis=1)                 # (1078, 256)
    htw_x = htw[:BERT_DIM]                                        # (768, 256)
    htw_s = jnp.zeros((NER_PAD, 2 * HT_DIM), jnp.float32).at[:NER_DIM].set(
        htw[BERT_DIM:BERT_DIM + NER_DIM])
    htw_n = jnp.zeros((NED_PAD, 2 * HT_DIM), jnp.float32).at[:NED_DIM].set(
        htw[BERT_DIM + NER_DIM:])
    p["htw_x"] = htw_x.astype(jnp.bfloat16)
    p["htw_s"] = htw_s.astype(jnp.bfloat16)
    p["htw_n"] = htw_n.astype(jnp.bfloat16)
    p["ht_b"] = jnp.concatenate([h_b, t_b]).reshape(1, 2 * HT_DIM)

    # Relation linear (bias-free), pre-transposed head / tail halves.
    p["relh_w"] = rel_w[:, :HT_DIM].T.astype(jnp.bfloat16)        # (128, 128)
    p["relt_w"] = rel_w[:, HT_DIM:].T.astype(jnp.bfloat16)        # (128, 128)

    # Bilinear weight, re-laid out once:  w_a[a, b*RE_DIM + o] = W[o, a, b]
    p["bil_wa"] = bil_w.transpose(1, 2, 0).reshape(
        HT_DIM, HT_DIM * RE_DIM).astype(jnp.bfloat16)             # (128, 16384)
    p["bil_b"] = bil_b.reshape(1, RE_DIM)
    return p


# ------------------------------- forward -----------------------------------

def _pipeline_core(x, p):
    """Shape-static part of the forward pass (jitted; no host syncs)."""
    S0 = x.shape[0]
    S = max(8, ((S0 + 7) // 8) * 8)             # sublane-align the token count
    if S != S0:
        x = jnp.pad(x, ((0, S - S0), (0, 0)))

    # NER + masked softmax + keep-mask (fused kernel).
    ner_pad, sm, keep_col = ner_forward(x, p, S0)     # (S,128),(S,128),(S,1)

    # Entity filter: stable compaction into a fixed S-row buffer via a
    # cumsum-based permutation + scatter (kept rows first, original order;
    # dropped / pad rows zeroed at the back).  No sort, no host sync.
    keep = keep_col[:, 0] > 0.5
    ki = keep.astype(jnp.int32)
    csum = jnp.cumsum(ki)
    num_keep = csum[-1]
    ar = jnp.arange(S, dtype=jnp.int32)
    dest = jnp.where(keep, csum - 1, num_keep + ar - csum)
    keepf = keep.astype(jnp.float32)[:, None]
    xf = jnp.zeros_like(x).at[dest].set(x * keepf)
    smf = jnp.zeros_like(sm).at[dest].set(sm * keepf)

    # NED + head/tail + relation-linear terms (fused kernel; h/t out in bf16).
    ned_pad, h_bf, t_bf, linh, lint = encode(xf, smf, p)

    # Bilinear term, lane-dense in RE_DIM, G kept in bf16.
    G = g_matmul(h_bf, p["bil_wa"])                    # (S, 16384): [i, b*128+o]
    g2 = G.reshape(S * HT_DIM, RE_DIM)                 # free row-major reshape
    re3 = bilinear_combine(g2, t_bf, linh, lint, p["bil_b"])   # (S, S, 128) f32

    return ner_pad[:S0, :NER_DIM], ned_pad, re3, num_keep


_pipeline_core_jit = jax.jit(_pipeline_core)


def pipeline_forward(x, p):
    """x : (S, 768) BERT encoding (tokenizer / BERT step not translatable)."""
    core = jax.block_until_ready(_pipeline_core_jit(x, p))
    ner, ned_pad, re3, num_keep = jax.device_get(core)   # host numpy; no recompiles
    E = int(num_keep)
    ned = ned_pad[:E, :NED_DIM]                          # (E, 300)
    re = re3[:E, :E, :].reshape(E * E, RE_DIM)           # pair k = i*E + j
    return ner, ned, re


# --------------------------------- main -------------------------------------

if __name__ == "__main__":
    key = jax.random.PRNGKey(0)
    k_params, k_x = jax.random.split(key)
    params = init_params(k_params)

    S = 16  # number of (wordpiece) tokens after stripping [CLS]/[SEP]
    x = jax.random.normal(k_x, (S, BERT_DIM), dtype=jnp.float32)

    ner, ned, re = pipeline_forward(x, params)
    jax.block_until_ready((jnp.asarray(ner), jnp.asarray(ned), jnp.asarray(re)))
    assert ner.shape == (S, NER_DIM)
    assert ned.shape[1] == NED_DIM
    assert re.shape == (ned.shape[0] ** 2, RE_DIM)
    print("KERNEL_OK")
</pallas_src>

<mosaic_0001>
module attributes {stable_mosaic.version = 11 : i64} {
  func.func @_ner_kernel(%arg0: i32, %arg1: memref<16x768xf32, #tpu.memory_space<vmem>>, %arg2: memref<768x128xf32, #tpu.memory_space<vmem>>, %arg3: memref<1x128xf32, #tpu.memory_space<vmem>>, %arg4: memref<16x128xf32, #tpu.memory_space<vmem>>, %arg5: memref<16x128xf32, #tpu.memory_space<vmem>>, %arg6: memref<16x1xf32, #tpu.memory_space<vmem>>) attributes {dimension_semantics = [#tpu.dimension_semantics<arbitrary>], iteration_bounds = array<i64: 1>, scalar_prefetch = 0 : i64, scratch_operands = 0 : i64, tpu.core_type = #tpu.core_type<tc>, window_params = [{pipeline_mode = #tpu.pipeline_mode<synchronous>, transform_indices = @transform_0, window_bounds = array<i64: 16, 768>}, {pipeline_mode = #tpu.pipeline_mode<synchronous>, transform_indices = @transform_1, window_bounds = array<i64: 768, 128>}, {pipeline_mode = #tpu.pipeline_mode<synchronous>, transform_indices = @transform_2, window_bounds = array<i64: 1, 128>}, {pipeline_mode = #tpu.pipeline_mode<synchronous>, transform_indices = @transform_3, window_bounds = array<i64: 16, 128>}, {pipeline_mode = #tpu.pipeline_mode<synchronous>, transform_indices = @transform_4, window_bounds = array<i64: 16, 128>}, {pipeline_mode = #tpu.pipeline_mode<synchronous>, transform_indices = @transform_5, window_bounds = array<i64: 16, 1>}]} {
    %c0 = arith.constant 0 : index
    %c0_0 = arith.constant 0 : index
    %0 = vector.load %arg1[%c0, %c0_0] : memref<16x768xf32, #tpu.memory_space<vmem>>, vector<16x768xf32>
    %c0_1 = arith.constant 0 : index
    %c0_2 = arith.constant 0 : index
    %1 = vector.load %arg2[%c0_1, %c0_2] : memref<768x128xf32, #tpu.memory_space<vmem>>, vector<768x128xf32>
    %cst = arith.constant dense<0.000000e+00> : vector<16x128xf32>
    %2 = tpu.matmul %0, %1, %cst {dimension_numbers = #tpu.dot_dimension_numbers<[1], [0], [0], [1], [0, 0, 1, 1], [], []>} : vector<16x768xf32>, vector<768x128xf32>, vector<16x128xf32> -> vector<16x128xf32>
    %c0_3 = arith.constant 0 : index
    %c0_4 = arith.constant 0 : index
    %3 = vector.load %arg3[%c0_3, %c0_4] : memref<1x128xf32, #tpu.memory_space<vmem>>, vector<1x128xf32>
    %4 = vector.broadcast %3 : vector<1x128xf32> to vector<16x128xf32>
    %5 = arith.addf %2, %4 : vector<16x128xf32>
    %c0_5 = arith.constant 0 : index
    %c0_6 = arith.constant 0 : index
    %6 = vector.load %arg4[%c0_5, %c0_6] : memref<16x128xf32, #tpu.memory_space<vmem>>, vector<16x128xf32>
    tpu.vector_store %arg4[%c0_5, %c0_6], %5 {strides = array<i32>} : memref<16x128xf32, #tpu.memory_space<vmem>>, vector<16x128xf32>,
    %7 = tpu.iota {dimensions = array<i32: 1>} : vector<16x128xi32>
    %c10_i32 = arith.constant 10 : i32
    %8 = vector.broadcast %c10_i32 : i32 to vector<16x128xi32>
    %9 = arith.cmpi slt, %7, %8 : vector<16x128xi32>
    %cst_7 = arith.constant -1.000000e+30 : f32
    %10 = vector.broadcast %cst_7 : f32 to vector<16x128xf32>
    %11 = arith.select %9, %5, %10 : vector<16x128xi1>, vector<16x128xf32>
    %cst_8 = arith.constant dense<0xFF800000> : vector<16xf32>
    %12 = vector.multi_reduction <maximumf>, %11, %cst_8 [1] : vector<16x128xf32> to vector<16xf32>
    %13 = vector.shape_cast %12 : vector<16xf32> to vector<16x1xf32>
    %14 = vector.broadcast %13 : vector<16x1xf32> to vector<16x128xf32>
    %15 = arith.subf %11, %14 : vector<16x128xf32>
    %16 = math.exp %15 : vector<16x128xf32>
    %cst_9 = arith.constant 0.000000e+00 : f32
    %17 = vector.broadcast %cst_9 : f32 to vector<16x128xf32>
    %18 = arith.select %9, %16, %17 : vector<16x128xi1>, vector<16x128xf32>
    %cst_10 = arith.constant dense<0.000000e+00> : vector<16xf32>
    %19 = vector.multi_reduction <add>, %18, %cst_10 [1] : vector<16x128xf32> to vector<16xf32>
    %20 = vector.shape_cast %19 : vector<16xf32> to vector<16x1xf32>
    %21 = vector.broadcast %20 : vector<16x1xf32> to vector<16x128xf32>
    %22 = arith.divf %18, %21 : vector<16x128xf32>
    %c0_11 = arith.constant 0 : index
    %c0_12 = arith.constant 0 : index
    %23 = vector.load %arg5[%c0_11, %c0_12] : memref<16x128xf32, #tpu.memory_space<vmem>>, vector<16x128xf32>
    tpu.vector_store %arg5[%c0_11, %c0_12], %22 {strides = array<i32>} : memref<16x128xf32, #tpu.memory_space<vmem>>, vector<16x128xf32>,
    %c9_i32 = arith.constant 9 : i32
    %24 = vector.broadcast %c9_i32 : i32 to vector<16x128xi32>
    %25 = arith.cmpi slt, %7, %24 : vector<16x128xi32>
    %cst_13 = arith.constant -1.000000e+30 : f32
    %26 = vector.broadcast %cst_13 : f32 to vector<16x128xf32>
    %27 = arith.select %25, %5, %26 : vector<16x128xi1>, vector<16x128xf32>
    %cst_14 = arith.constant dense<0xFF800000> : vector<16xf32>
    %28 = vector.multi_reduction <maximumf>, %27, %cst_14 [1] : vector<16x128xf32> to vector<16xf32>
    %29 = vector.shape_cast %28 : vector<16xf32> to vector<16x1xf32>
    %30 = tpu.iota {dimensions = array<i32: 0>} : vector<16x1xi32>
    %31 = arith.cmpf oge, %29, %13 : vector<16x1xf32>
    %c16_i32 = arith.constant 16 : i32
    %32 = vector.broadcast %c16_i32 : i32 to vector<16x1xi32>
    %33 = arith.cmpi slt, %30, %32 : vector<16x1xi32>
    %34 = arith.andi %31, %33 : vector<16x1xi1>
    %cst_15 = arith.constant 1.000000e+00 : f32
    %cst_16 = arith.constant 0.000000e+00 : f32
    %35 = vector.broadcast %cst_15 : f32 to vector<16x1xf32>
    %36 = vector.broadcast %cst_16 : f32 to vector<16x1xf32>
    %37 = arith.select %34, %35, %36 : vector<16x1xi1>, vector<16x1xf32>
    %c0_17 = arith.constant 0 : index
    %c0_18 = arith.constant 0 : index
    %38 = vector.load %arg6[%c0_17, %c0_18] : memref<16x1xf32, #tpu.memory_space<vmem>>, vector<16x1xf32>
    tpu.vector_store %arg6[%c0_17, %c0_18], %37 {strides = array<i32>} : memref<16x1xf32, #tpu.memory_space<vmem>>, vector<16x1xf32>,
    return
  }
  func.func @transform_0(%arg0: i32) -> (i32, i32) {
    %c0_i32 = arith.constant 0 : i32
    %c0_i32_0 = arith.constant 0 : i32
    %c0_i32_1 = arith.constant 0 : i32
    return %c0_i32, %c0_i32_0 : i32, i32
  }
  func.func @transform_1(%arg0: i32) -> (i32, i32) {
    %c0_i32 = arith.constant 0 : i32
    %c0_i32_0 = arith.constant 0 : i32
    %c0_i32_1 = arith.constant 0 : i32
    return %c0_i32, %c0_i32_0 : i32, i32
  }
  func.func @transform_2(%arg0: i32) -> (i32, i32) {
    %c0_i32 = arith.constant 0 : i32
    %c0_i32_0 = arith.constant 0 : i32
    %c0_i32_1 = arith.constant 0 : i32
    return %c0_i32, %c0_i32_0 : i32, i32
  }
  func.func @transform_3(%arg0: i32) -> (i32, i32) {
    %c0_i32 = arith.constant 0 : i32
    %c0_i32_0 = arith.constant 0 : i32
    %c0_i32_1 = arith.constant 0 : i32
    return %c0_i32, %c0_i32_0 : i32, i32
  }
  func.func @transform_4(%arg0: i32) -> (i32, i32) {
    %c0_i32 = arith.constant 0 : i32
    %c0_i32_0 = arith.constant 0 : i32
    %c0_i32_1 = arith.constant 0 : i32
    return %c0_i32, %c0_i32_0 : i32, i32
  }
  func.func @transform_5(%arg0: i32) -> (i32, i32) {
    %c0_i32 = arith.constant 0 : i32
    %c0_i32_0 = arith.constant 0 : i32
    %c0_i32_1 = arith.constant 0 : i32
    return %c0_i32, %c0_i32_0 : i32, i32
  }
}

module attributes {stable_mosaic.version = 11 : i64} {
  func.func @_g_matmul_kernel(%arg0: i32, %arg1: memref<16x128xbf16, #tpu.memory_space<vmem>>, %arg2: memref<128x8192xbf16, #tpu.memory_space<vmem>>, %arg3: memref<16x8192xbf16, #tpu.memory_space<vmem>>) attributes {dimension_semantics = [#tpu.dimension_semantics<parallel>], iteration_bounds = array<i64: 2>, scalar_prefetch = 0 : i64, scratch_operands = 0 : i64, tpu.core_type = #tpu.core_type<tc>, window_params = [{pipeline_mode = #tpu.pipeline_mode<synchronous>, transform_indices = @transform_0, window_bounds = array<i64: 16, 128>}, {transform_indices = @transform_1, window_bounds = array<i64: 128, 8192>}, {transform_indices = @transform_2, window_bounds = array<i64: 16, 8192>}]} {
    %c0 = arith.constant 0 : index
    %c0_0 = arith.constant 0 : index
    %0 = vector.load %arg1[%c0, %c0_0] : memref<16x128xbf16, #tpu.memory_space<vmem>>, vector<16x128xbf16>
    %c0_1 = arith.constant 0 : index
    %c0_2 = arith.constant 0 : index
    %1 = vector.load %arg2[%c0_1, %c0_2] : memref<128x8192xbf16, #tpu.memory_space<vmem>>, vector<128x8192xbf16>
    %cst = arith.constant dense<0.000000e+00> : vector<16x8192xf32>
    %2 = tpu.matmul %0, %1, %cst {dimension_numbers = #tpu.dot_dimension_numbers<[1], [0], [0], [1], [0, 0, 1, 1], [], []>} : vector<16x128xbf16>, vector<128x8192xbf16>, vector<16x8192xf32> -> vector<16x8192xf32>
    %3 = arith.truncf %2 : vector<16x8192xf32> to vector<16x8192xbf16>
    %c0_3 = arith.constant 0 : index
    %c0_4 = arith.constant 0 : index
    %4 = vector.load %arg3[%c0_3, %c0_4] : memref<16x8192xbf16, #tpu.memory_space<vmem>>, vector<16x8192xbf16>
    tpu.vector_store %arg3[%c0_3, %c0_4], %3 {strides = array<i32>} : memref<16x8192xbf16, #tpu.memory_space<vmem>>, vector<16x8192xbf16>,
    return
  }
  func.func @transform_0(%arg0: i32) -> (i32, i32) {
    %c0_i32 = arith.constant 0 : i32
    %c0_i32_0 = arith.constant 0 : i32
    %c0_i32_1 = arith.constant 0 : i32
    return %c0_i32, %c0_i32_0 : i32, i32
  }
  func.func @transform_1(%arg0: i32) -> (i32, i32) {
    %c0_i32 = arith.constant 0 : i32
    %c0_i32_0 = arith.constant 0 : i32
    return %c0_i32, %arg0 : i32, i32
  }
  func.func @transform_2(%arg0: i32) -> (i32, i32) {
    %c0_i32 = arith.constant 0 : i32
    %c0_i32_0 = arith.constant 0 : i32
    return %c0_i32, %arg0 : i32, i32
  }
}

module attributes {stable_mosaic.version = 11 : i64} {
  func.func @_encode_kernel(%arg0: i32, %arg1: memref<16x768xf32, #tpu.memory_space<vmem>>, %arg2: memref<16x128xf32, #tpu.memory_space<vmem>>, %arg3: memref<768x384xbf16, #tpu.memory_space<vmem>>, %arg4: memref<128x384xbf16, #tpu.memory_space<vmem>>, %arg5: memref<1x384xf32, #tpu.memory_space<vmem>>, %arg6: memref<768x256xbf16, #tpu.memory_space<vmem>>, %arg7: memref<128x256xbf16, #tpu.memory_space<vmem>>, %arg8: memref<384x256xbf16, #tpu.memory_space<vmem>>, %arg9: memref<1x256xf32, #tpu.memory_space<vmem>>, %arg10: memref<128x128xbf16, #tpu.memory_space<vmem>>, %arg11: memref<128x128xbf16, #tpu.memory_space<vmem>>, %arg12: memref<16x384xf32, #tpu.memory_space<vmem>>, %arg13: memref<16x128xbf16, #tpu.memory_space<vmem>>, %arg14: memref<16x128xbf16, #tpu.memory_space<vmem>>, %arg15: memref<16x128xf32, #tpu.memory_space<vmem>>, %arg16: memref<16x128xf32, #tpu.memory_space<vmem>>) attributes {dimension_semantics = [#tpu.dimension_semantics<arbitrary>], iteration_bounds = array<i64: 1>, scalar_prefetch = 0 : i64, scratch_operands = 0 : i64, tpu.core_type = #tpu.core_type<tc>, window_params = [{pipeline_mode = #tpu.pipeline_mode<synchronous>, transform_indices = @transform_0, window_bounds = array<i64: 16, 768>}, {pipeline_mode = #tpu.pipeline_mode<synchronous>, transform_indices = @transform_1, window_bounds = array<i64: 16, 128>}, {pipeline_mode = #tpu.pipeline_mode<synchronous>, transform_indices = @transform_2, window_bounds = array<i64: 768, 384>}, {pipeline_mode = #tpu.pipeline_mode<synchronous>, transform_indices = @transform_3, window_bounds = array<i64: 128, 384>}, {pipeline_mode = #tpu.pipeline_mode<synchronous>, transform_indices = @transform_4, window_bounds = array<i64: 1, 384>}, {pipeline_mode = #tpu.pipeline_mode<synchronous>, transform_indices = @transform_5, window_bounds = array<i64: 768, 256>}, {pipeline_mode = #tpu.pipeline_mode<synchronous>, transform_indices = @transform_6, window_bounds = array<i64: 128, 256>}, {pipeline_mode = #tpu.pipeline_mode<synchronous>, transform_indices = @transform_7, window_bounds = array<i64: 384, 256>}, {pipeline_mode = #tpu.pipeline_mode<synchronous>, transform_indices = @transform_8, window_bounds = array<i64: 1, 256>}, {pipeline_mode = #tpu.pipeline_mode<synchronous>, transform_indices = @transform_9, window_bounds = array<i64: 128, 128>}, {pipeline_mode = #tpu.pipeline_mode<synchronous>, transform_indices = @transform_10, window_bounds = array<i64: 128, 128>}, {pipeline_mode = #tpu.pipeline_mode<synchronous>, transform_indices = @transform_11, window_bounds = array<i64: 16, 384>}, {pipeline_mode = #tpu.pipeline_mode<synchronous>, transform_indices = @transform_12, window_bounds = array<i64: 16, 128>}, {pipeline_mode = #tpu.pipeline_mode<synchronous>, transform_indices = @transform_13, window_bounds = array<i64: 16, 128>}, {pipeline_mode = #tpu.pipeline_mode<synchronous>, transform_indices = @transform_14, window_bounds = array<i64: 16, 128>}, {pipeline_mode = #tpu.pipeline_mode<synchronous>, transform_indices = @transform_15, window_bounds = array<i64: 16, 128>}]} {
    %c0 = arith.constant 0 : index
    %c0_0 = arith.constant 0 : index
    %0 = vector.load %arg1[%c0, %c0_0] : memref<16x768xf32, #tpu.memory_space<vmem>>, vector<16x768xf32>
    %1 = arith.truncf %0 : vector<16x768xf32> to vector<16x768xbf16>
    %c0_1 = arith.constant 0 : index
    %c0_2 = arith.constant 0 : index
    %2 = vector.load %arg2[%c0_1, %c0_2] : memref<16x128xf32, #tpu.memory_space<vmem>>, vector<16x128xf32>
    %3 = arith.truncf %2 : vector<16x128xf32> to vector<16x128xbf16>
    %c0_3 = arith.constant 0 : index
    %c0_4 = arith.constant 0 : index
    %4 = vector.load %arg3[%c0_3, %c0_4] : memref<768x384xbf16, #tpu.memory_space<vmem>>, vector<768x384xbf16>
    %cst = arith.constant dense<0.000000e+00> : vector<16x384xf32>
    %5 = tpu.matmul %1, %4, %cst {dimension_numbers = #tpu.dot_dimension_numbers<[1], [0], [0], [1], [0, 0, 1, 1], [], []>} : vector<16x768xbf16>, vector<768x384xbf16>, vector<16x384xf32> -> vector<16x384xf32>
    %c0_5 = arith.constant 0 : index
    %c0_6 = arith.constant 0 : index
    %6 = vector.load %arg4[%c0_5, %c0_6] : memref<128x384xbf16, #tpu.memory_space<vmem>>, vector<128x384xbf16>
    %cst_7 = arith.constant dense<0.000000e+00> : vector<16x384xf32>
    %7 = tpu.matmul %3, %6, %cst_7 {dimension_numbers = #tpu.dot_dimension_numbers<[1], [0], [0], [1], [0, 0, 1, 1], [], []>} : vector<16x128xbf16>, vector<128x384xbf16>, vector<16x384xf32> -> vector<16x384xf32>
    %8 = arith.addf %5, %7 : vector<16x384xf32>
    %c0_8 = arith.constant 0 : index
    %c0_9 = arith.constant 0 : index
    %9 = vector.load %arg5[%c0_8, %c0_9] : memref<1x384xf32, #tpu.memory_space<vmem>>, vector<1x384xf32>
    %10 = vector.broadcast %9 : vector<1x384xf32> to vector<16x384xf32>
    %11 = arith.addf %8, %10 : vector<16x384xf32>
    %c0_10 = arith.constant 0 : index
    %c0_11 = arith.constant 0 : index
    %12 = vector.load %arg12[%c0_10, %c0_11] : memref<16x384xf32, #tpu.memory_space<vmem>>, vector<16x384xf32>
    tpu.vector_store %arg12[%c0_10, %c0_11], %11 {strides = array<i32>} : memref<16x384xf32, #tpu.memory_space<vmem>>, vector<16x384xf32>,
    %13 = arith.truncf %11 : vector<16x384xf32> to vector<16x384xbf16>
    %c0_12 = arith.constant 0 : index
    %c0_13 = arith.constant 0 : index
    %14 = vector.load %arg6[%c0_12, %c0_13] : memref<768x256xbf16, #tpu.memory_space<vmem>>, vector<768x256xbf16>
    %cst_14 = arith.constant dense<0.000000e+00> : vector<16x256xf32>
    %15 = tpu.matmul %1, %14, %cst_14 {dimension_numbers = #tpu.dot_dimension_numbers<[1], [0], [0], [1], [0, 0, 1, 1], [], []>} : vector<16x768xbf16>, vector<768x256xbf16>, vector<16x256xf32> -> vector<16x256xf32>
    %c0_15 = arith.constant 0 : index
    %c0_16 = arith.constant 0 : index
    %16 = vector.load %arg7[%c0_15, %c0_16] : memref<128x256xbf16, #tpu.memory_space<vmem>>, vector<128x256xbf16>
    %cst_17 = arith.constant dense<0.000000e+00> : vector<16x256xf32>
    %17 = tpu.matmul %3, %16, %cst_17 {dimension_numbers = #tpu.dot_dimension_numbers<[1], [0], [0], [1], [0, 0, 1, 1], [], []>} : vector<16x128xbf16>, vector<128x256xbf16>, vector<16x256xf32> -> vector<16x256xf32>
    %18 = arith.addf %15, %17 : vector<16x256xf32>
    %c0_18 = arith.constant 0 : index
    %c0_19 = arith.constant 0 : index
    %19 = vector.load %arg8[%c0_18, %c0_19] : memref<384x256xbf16, #tpu.memory_space<vmem>>, vector<384x256xbf16>
    %cst_20 = arith.constant dense<0.000000e+00> : vector<16x256xf32>
    %20 = tpu.matmul %13, %19, %cst_20 {dimension_numbers = #tpu.dot_dimension_numbers<[1], [0], [0], [1], [0, 0, 1, 1], [], []>} : vector<16x384xbf16>, vector<384x256xbf16>, vector<16x256xf32> -> vector<16x256xf32>
    %21 = arith.addf %18, %20 : vector<16x256xf32>
    %c0_21 = arith.constant 0 : index
    %c0_22 = arith.constant 0 : index
    %22 = vector.load %arg9[%c0_21, %c0_22] : memref<1x256xf32, #tpu.memory_space<vmem>>, vector<1x256xf32>
    %23 = vector.broadcast %22 : vector<1x256xf32> to vector<16x256xf32>
    %24 = arith.addf %21, %23 : vector<16x256xf32>
    %25 = vector.extract_strided_slice %24 {offsets = [0, 0], sizes = [16, 128], strides = [1, 1]} : vector<16x256xf32> to vector<16x128xf32>
    %26 = arith.truncf %25 : vector<16x128xf32> to vector<16x128xbf16>
    %27 = vector.extract_strided_slice %24 {offsets = [0, 128], sizes = [16, 128], strides = [1, 1]} : vector<16x256xf32> to vector<16x128xf32>
    %28 = arith.truncf %27 : vector<16x128xf32> to vector<16x128xbf16>
    %c0_23 = arith.constant 0 : index
    %c0_24 = arith.constant 0 : index
    %29 = vector.load %arg13[%c0_23, %c0_24] : memref<16x128xbf16, #tpu.memory_space<vmem>>, vector<16x128xbf16>
    tpu.vector_store %arg13[%c0_23, %c0_24], %26 {strides = array<i32>} : memref<16x128xbf16, #tpu.memory_space<vmem>>, vector<16x128xbf16>,
    %c0_25 = arith.constant 0 : index
    %c0_26 = arith.constant 0 : index
    %30 = vector.load %arg14[%c0_25, %c0_26] : memref<16x128xbf16, #tpu.memory_space<vmem>>, vector<16x128xbf16>
    tpu.vector_store %arg14[%c0_25, %c0_26], %28 {strides = array<i32>} : memref<16x128xbf16, #tpu.memory_space<vmem>>, vector<16x128xbf16>,
    %c0_27 = arith.constant 0 : index
    %c0_28 = arith.constant 0 : index
    %31 = vector.load %arg10[%c0_27, %c0_28] : memref<128x128xbf16, #tpu.memory_space<vmem>>, vector<128x128xbf16>
    %cst_29 = arith.constant dense<0.000000e+00> : vector<16x128xf32>
    %32 = tpu.matmul %26, %31, %cst_29 {dimension_numbers = #tpu.dot_dimension_numbers<[1], [0], [0], [1], [0, 0, 1, 1], [], []>} : vector<16x128xbf16>, vector<128x128xbf16>, vector<16x128xf32> -> vector<16x128xf32>
    %c0_30 = arith.constant 0 : index
    %c0_31 = arith.constant 0 : index
    %33 = vector.load %arg15[%c0_30, %c0_31] : memref<16x128xf32, #tpu.memory_space<vmem>>, vector<16x128xf32>
    tpu.vector_store %arg15[%c0_30, %c0_31], %32 {strides = array<i32>} : memref<16x128xf32, #tpu.memory_space<vmem>>, vector<16x128xf32>,
    %c0_32 = arith.constant 0 : index
    %c0_33 = arith.constant 0 : index
    %34 = vector.load %arg11[%c0_32, %c0_33] : memref<128x128xbf16, #tpu.memory_space<vmem>>, vector<128x128xbf16>
    %cst_34 = arith.constant dense<0.000000e+00> : vector<16x128xf32>
    %35 = tpu.matmul %28, %34, %cst_34 {dimension_numbers = #tpu.dot_dimension_numbers<[1], [0], [0], [1], [0, 0, 1, 1], [], []>} : vector<16x128xbf16>, vector<128x128xbf16>, vector<16x128xf32> -> vector<16x128xf32>
    %c0_35 = arith.constant 0 : index
    %c0_36 = arith.constant 0 : index
    %36 = vector.load %arg16[%c0_35, %c0_36] : memref<16x128xf32, #tpu.memory_space<vmem>>, vector<16x128xf32>
    tpu.vector_store %arg16[%c0_35, %c0_36], %35 {strides = array<i32>} : memref<16x128xf32, #tpu.memory_space<vmem>>, vector<16x128xf32>,
    return
  }
  func.func @transform_0(%arg0: i32) -> (i32, i32) {
    %c0_i32 = arith.constant 0 : i32
    %c0_i32_0 = arith.constant 0 : i32
    %c0_i32_1 = arith.constant 0 : i32
    return %c0_i32, %c0_i32_0 : i32, i32
  }
  func.func @transform_1(%arg0: i32) -> (i32, i32) {
    %c0_i32 = arith.constant 0 : i32
    %c0_i32_0 = arith.constant 0 : i32
    %c0_i32_1 = arith.constant 0 : i32
    return %c0_i32, %c0_i32_0 : i32, i32
  }
  func.func @transform_2(%arg0: i32) -> (i32, i32) {
    %c0_i32 = arith.constant 0 : i32
    %c0_i32_0 = arith.constant 0 : i32
    %c0_i32_1 = arith.constant 0 : i32
    return %c0_i32, %c0_i32_0 : i32, i32
  }
  func.func @transform_3(%arg0: i32) -> (i32, i32) {
    %c0_i32 = arith.constant 0 : i32
    %c0_i32_0 = arith.constant 0 : i32
    %c0_i32_1 = arith.constant 0 : i32
    return %c0_i32, %c0_i32_0 : i32, i32
  }
  func.func @transform_4(%arg0: i32) -> (i32, i32) {
    %c0_i32 = arith.constant 0 : i32
    %c0_i32_0 = arith.constant 0 : i32
    %c0_i32_1 = arith.constant 0 : i32
    return %c0_i32, %c0_i32_0 : i32, i32
  }
  func.func @transform_5(%arg0: i32) -> (i32, i32) {
    %c0_i32 = arith.constant 0 : i32
    %c0_i32_0 = arith.constant 0 : i32
    %c0_i32_1 = arith.constant 0 : i32
    return %c0_i32, %c0_i32_0 : i32, i32
  }
  func.func @transform_6(%arg0: i32) -> (i32, i32) {
    %c0_i32 = arith.constant 0 : i32
    %c0_i32_0 = arith.constant 0 : i32
    %c0_i32_1 = arith.constant 0 : i32
    return %c0_i32, %c0_i32_0 : i32, i32
  }
  func.func @transform_7(%arg0: i32) -> (i32, i32) {
    %c0_i32 = arith.constant 0 : i32
    %c0_i32_0 = arith.constant 0 : i32
    %c0_i32_1 = arith.constant 0 : i32
    return %c0_i32, %c0_i32_0 : i32, i32
  }
  func.func @transform_8(%arg0: i32) -> (i32, i32) {
    %c0_i32 = arith.constant 0 : i32
    %c0_i32_0 = arith.constant 0 : i32
    %c0_i32_1 = arith.constant 0 : i32
    return %c0_i32, %c0_i32_0 : i32, i32
  }
  func.func @transform_9(%arg0: i32) -> (i32, i32) {
    %c0_i32 = arith.constant 0 : i32
    %c0_i32_0 = arith.constant 0 : i32
    %c0_i32_1 = arith.constant 0 : i32
    return %c0_i32, %c0_i32_0 : i32, i32
  }
  func.func @transform_10(%arg0: i32) -> (i32, i32) {
    %c0_i32 = arith.constant 0 : i32
    %c0_i32_0 = arith.constant 0 : i32
    %c0_i32_1 = arith.constant 0 : i32
    return %c0_i32, %c0_i32_0 : i32, i32
  }
  func.func @transform_11(%arg0: i32) -> (i32, i32) {
    %c0_i32 = arith.constant 0 : i32
    %c0_i32_0 = arith.constant 0 : i32
    %c0_i32_1 = arith.constant 0 : i32
    return %c0_i32, %c0_i32_0 : i32, i32
  }
  func.func @transform_12(%arg0: i32) -> (i32, i32) {
    %c0_i32 = arith.constant 0 : i32
    %c0_i32_0 = arith.constant 0 : i32
    %c0_i32_1 = arith.constant 0 : i32
    return %c0_i32, %c0_i32_0 : i32, i32
  }
  func.func @transform_13(%arg0: i32) -> (i32, i32) {
    %c0_i32 = arith.constant 0 : i32
    %c0_i32_0 = arith.constant 0 : i32
    %c0_i32_1 = arith.constant 0 : i32
    return %c0_i32, %c0_i32_0 : i32, i32
  }
  func.func @transform_14(%arg0: i32) -> (i32, i32) {
    %c0_i32 = arith.constant 0 : i32
    %c0_i32_0 = arith.constant 0 : i32
    %c0_i32_1 = arith.constant 0 : i32
    return %c0_i32, %c0_i32_0 : i32, i32
  }
  func.func @transform_15(%arg0: i32) -> (i32, i32) {
    %c0_i32 = arith.constant 0 : i32
    %c0_i32_0 = arith.constant 0 : i32
    %c0_i32_1 = arith.constant 0 : i32
    return %c0_i32, %c0_i32_0 : i32, i32
  }
}

module attributes {stable_mosaic.version = 11 : i64} {
  func.func @_bilinear_kernel(%arg0: i32, %arg1: memref<1024x128xbf16, #tpu.memory_space<vmem>>, %arg2: memref<16x128xbf16, #tpu.memory_space<vmem>>, %arg3: memref<8x128xf32, #tpu.memory_space<vmem>>, %arg4: memref<16x128xf32, #tpu.memory_space<vmem>>, %arg5: memref<1x128xf32, #tpu.memory_space<vmem>>, %arg6: memref<8x16x128xf32, #tpu.memory_space<vmem>>) attributes {dimension_semantics = [#tpu.dimension_semantics<parallel>], iteration_bounds = array<i64: 2>, scalar_prefetch = 0 : i64, scratch_operands = 0 : i64, tpu.core_type = #tpu.core_type<tc>, window_params = [{transform_indices = @transform_0, window_bounds = array<i64: 1024, 128>}, {pipeline_mode = #tpu.pipeline_mode<synchronous>, transform_indices = @transform_1, window_bounds = array<i64: 16, 128>}, {transform_indices = @transform_2, window_bounds = array<i64: 8, 128>}, {pipeline_mode = #tpu.pipeline_mode<synchronous>, transform_indices = @transform_3, window_bounds = array<i64: 16, 128>}, {pipeline_mode = #tpu.pipeline_mode<synchronous>, transform_indices = @transform_4, window_bounds = array<i64: 1, 128>}, {transform_indices = @transform_5, window_bounds = array<i64: 8, 16, 128>}]} {
    %c0 = arith.constant 0 : index
    %c0_0 = arith.constant 0 : index
    %0 = vector.load %arg2[%c0, %c0_0] : memref<16x128xbf16, #tpu.memory_space<vmem>>, vector<16x128xbf16>
    %c0_1 = arith.constant 0 : index
    %c0_2 = arith.constant 0 : index
    %1 = vector.load %arg4[%c0_1, %c0_2] : memref<16x128xf32, #tpu.memory_space<vmem>>, vector<16x128xf32>
    %c0_3 = arith.constant 0 : index
    %c0_4 = arith.constant 0 : index
    %2 = vector.load %arg5[%c0_3, %c0_4] : memref<1x128xf32, #tpu.memory_space<vmem>>, vector<1x128xf32>
    %c0_5 = arith.constant 0 : index
    %c0_6 = arith.constant 0 : index
    %3 = vector.load %arg1[%c0_5, %c0_6] : memref<1024x128xbf16, #tpu.memory_space<vmem>>, vector<128x128xbf16>
    %cst = arith.constant dense<0.000000e+00> : vector<16x128xf32>
    %4 = tpu.matmul %0, %3, %cst {dimension_numbers = #tpu.dot_dimension_numbers<[1], [0], [0], [1], [0, 0, 1, 1], [], []>} : vector<16x128xbf16>, vector<128x128xbf16>, vector<16x128xf32> -> vector<16x128xf32>
    %c0_7 = arith.constant 0 : index
    %c0_8 = arith.constant 0 : index
    %5 = vector.load %arg3[%c0_7, %c0_8] : memref<8x128xf32, #tpu.memory_space<vmem>>, vector<1x128xf32>
    %6 = vector.broadcast %5 : vector<1x128xf32> to vector<16x128xf32>
    %7 = arith.addf %4, %6 : vector<16x128xf32>
    %8 = arith.addf %7, %1 : vector<16x128xf32>
    %9 = vector.broadcast %2 : vector<1x128xf32> to vector<16x128xf32>
    %10 = arith.addf %8, %9 : vector<16x128xf32>
    %c0_9 = arith.constant 0 : index
    %c0_10 = arith.constant 0 : index
    %c0_11 = arith.constant 0 : index
    %11 = vector.load %arg6[%c0_9, %c0_10, %c0_11] : memref<8x16x128xf32, #tpu.memory_space<vmem>>, vector<1x16x128xf32>
    %12 = vector.shape_cast %11 : vector<1x16x128xf32> to vector<16x128xf32>
    %13 = vector.shape_cast %10 : vector<16x128xf32> to vector<1x16x128xf32>
    tpu.vector_store %arg6[%c0_9, %c0_10, %c0_11], %13 {strides = array<i32>} : memref<8x16x128xf32, #tpu.memory_space<vmem>>, vector<1x16x128xf32>,
    %c128 = arith.constant 128 : index
    %c0_12 = arith.constant 0 : index
    %14 = vector.load %arg1[%c128, %c0_12] : memref<1024x128xbf16, #tpu.memory_space<vmem>>, vector<128x128xbf16>
    %cst_13 = arith.constant dense<0.000000e+00> : vector<16x128xf32>
    %15 = tpu.matmul %0, %14, %cst_13 {dimension_numbers = #tpu.dot_dimension_numbers<[1], [0], [0], [1], [0, 0, 1, 1], [], []>} : vector<16x128xbf16>, vector<128x128xbf16>, vector<16x128xf32> -> vector<16x128xf32>
    %c1 = arith.constant 1 : index
    %c0_14 = arith.constant 0 : index
    %16 = vector.load %arg3[%c1, %c0_14] : memref<8x128xf32, #tpu.memory_space<vmem>>, vector<1x128xf32>
    %17 = vector.broadcast %16 : vector<1x128xf32> to vector<16x128xf32>
    %18 = arith.addf %15, %17 : vector<16x128xf32>
    %19 = arith.addf %18, %1 : vector<16x128xf32>
    %20 = vector.broadcast %2 : vector<1x128xf32> to vector<16x128xf32>
    %21 = arith.addf %19, %20 : vector<16x128xf32>
    %c1_15 = arith.constant 1 : index
    %c0_16 = arith.constant 0 : index
    %c0_17 = arith.constant 0 : index
    %22 = vector.load %arg6[%c1_15, %c0_16, %c0_17] : memref<8x16x128xf32, #tpu.memory_space<vmem>>, vector<1x16x128xf32>
    %23 = vector.shape_cast %22 : vector<1x16x128xf32> to vector<16x128xf32>
    %24 = vector.shape_cast %21 : vector<16x128xf32> to vector<1x16x128xf32>
    tpu.vector_store %arg6[%c1_15, %c0_16, %c0_17], %24 {strides = array<i32>} : memref<8x16x128xf32, #tpu.memory_space<vmem>>, vector<1x16x128xf32>,
    %c256 = arith.constant 256 : index
    %c0_18 = arith.constant 0 : index
    %25 = vector.load %arg1[%c256, %c0_18] : memref<1024x128xbf16, #tpu.memory_space<vmem>>, vector<128x128xbf16>
    %cst_19 = arith.constant dense<0.000000e+00> : vector<16x128xf32>
    %26 = tpu.matmul %0, %25, %cst_19 {dimension_numbers = #tpu.dot_dimension_numbers<[1], [0], [0], [1], [0, 0, 1, 1], [], []>} : vector<16x128xbf16>, vector<128x128xbf16>, vector<16x128xf32> -> vector<16x128xf32>
    %c2 = arith.constant 2 : index
    %c0_20 = arith.constant 0 : index
    %27 = vector.load %arg3[%c2, %c0_20] : memref<8x128xf32, #tpu.memory_space<vmem>>, vector<1x128xf32>
    %28 = vector.broadcast %27 : vector<1x128xf32> to vector<16x128xf32>
    %29 = arith.addf %26, %28 : vector<16x128xf32>
    %30 = arith.addf %29, %1 : vector<16x128xf32>
    %31 = vector.broadcast %2 : vector<1x128xf32> to vector<16x128xf32>
    %32 = arith.addf %30, %31 : vector<16x128xf32>
    %c2_21 = arith.constant 2 : index
    %c0_22 = arith.constant 0 : index
    %c0_23 = arith.constant 0 : index
    %33 = vector.load %arg6[%c2_21, %c0_22, %c0_23] : memref<8x16x128xf32, #tpu.memory_space<vmem>>, vector<1x16x128xf32>
    %34 = vector.shape_cast %33 : vector<1x16x128xf32> to vector<16x128xf32>
    %35 = vector.shape_cast %32 : vector<16x128xf32> to vector<1x16x128xf32>
    tpu.vector_store %arg6[%c2_21, %c0_22, %c0_23], %35 {strides = array<i32>} : memref<8x16x128xf32, #tpu.memory_space<vmem>>, vector<1x16x128xf32>,
    %c384 = arith.constant 384 : index
    %c0_24 = arith.constant 0 : index
    %36 = vector.load %arg1[%c384, %c0_24] : memref<1024x128xbf16, #tpu.memory_space<vmem>>, vector<128x128xbf16>
    %cst_25 = arith.constant dense<0.000000e+00> : vector<16x128xf32>
    %37 = tpu.matmul %0, %36, %cst_25 {dimension_numbers = #tpu.dot_dimension_numbers<[1], [0], [0], [1], [0, 0, 1, 1], [], []>} : vector<16x128xbf16>, vector<128x128xbf16>, vector<16x128xf32> -> vector<16x128xf32>
    %c3 = arith.constant 3 : index
    %c0_26 = arith.constant 0 : index
    %38 = vector.load %arg3[%c3, %c0_26] : memref<8x128xf32, #tpu.memory_space<vmem>>, vector<1x128xf32>
    %39 = vector.broadcast %38 : vector<1x128xf32> to vector<16x128xf32>
    %40 = arith.addf %37, %39 : vector<16x128xf32>
    %41 = arith.addf %40, %1 : vector<16x128xf32>
    %42 = vector.broadcast %2 : vector<1x128xf32> to vector<16x128xf32>
    %43 = arith.addf %41, %42 : vector<16x128xf32>
    %c3_27 = arith.constant 3 : index
    %c0_28 = arith.constant 0 : index
    %c0_29 = arith.constant 0 : index
    %44 = vector.load %arg6[%c3_27, %c0_28, %c0_29] : memref<8x16x128xf32, #tpu.memory_space<vmem>>, vector<1x16x128xf32>
    %45 = vector.shape_cast %44 : vector<1x16x128xf32> to vector<16x128xf32>
    %46 = vector.shape_cast %43 : vector<16x128xf32> to vector<1x16x128xf32>
    tpu.vector_store %arg6[%c3_27, %c0_28, %c0_29], %46 {strides = array<i32>} : memref<8x16x128xf32, #tpu.memory_space<vmem>>, vector<1x16x128xf32>,
    %c512 = arith.constant 512 : index
    %c0_30 = arith.constant 0 : index
    %47 = vector.load %arg1[%c512, %c0_30] : memref<1024x128xbf16, #tpu.memory_space<vmem>>, vector<128x128xbf16>
    %cst_31 = arith.constant dense<0.000000e+00> : vector<16x128xf32>
    %48 = tpu.matmul %0, %47, %cst_31 {dimension_numbers = #tpu.dot_dimension_numbers<[1], [0], [0], [1], [0, 0, 1, 1], [], []>} : vector<16x128xbf16>, vector<128x128xbf16>, vector<16x128xf32> -> vector<16x128xf32>
    %c4 = arith.constant 4 : index
    %c0_32 = arith.constant 0 : index
    %49 = vector.load %arg3[%c4, %c0_32] : memref<8x128xf32, #tpu.memory_space<vmem>>, vector<1x128xf32>
    %50 = vector.broadcast %49 : vector<1x128xf32> to vector<16x128xf32>
    %51 = arith.addf %48, %50 : vector<16x128xf32>
    %52 = arith.addf %51, %1 : vector<16x128xf32>
    %53 = vector.broadcast %2 : vector<1x128xf32> to vector<16x128xf32>
    %54 = arith.addf %52, %53 : vector<16x128xf32>
    %c4_33 = arith.constant 4 : index
    %c0_34 = arith.constant 0 : index
    %c0_35 = arith.constant 0 : index
    %55 = vector.load %arg6[%c4_33, %c0_34, %c0_35] : memref<8x16x128xf32, #tpu.memory_space<vmem>>, vector<1x16x128xf32>
    %56 = vector.shape_cast %55 : vector<1x16x128xf32> to vector<16x128xf32>
    %57 = vector.shape_cast %54 : vector<16x128xf32> to vector<1x16x128xf32>
    tpu.vector_store %arg6[%c4_33, %c0_34, %c0_35], %57 {strides = array<i32>} : memref<8x16x128xf32, #tpu.memory_space<vmem>>, vector<1x16x128xf32>,
    %c640 = arith.constant 640 : index
    %c0_36 = arith.constant 0 : index
    %58 = vector.load %arg1[%c640, %c0_36] : memref<1024x128xbf16, #tpu.memory_space<vmem>>, vector<128x128xbf16>
    %cst_37 = arith.constant dense<0.000000e+00> : vector<16x128xf32>
    %59 = tpu.matmul %0, %58, %cst_37 {dimension_numbers = #tpu.dot_dimension_numbers<[1], [0], [0], [1], [0, 0, 1, 1], [], []>} : vector<16x128xbf16>, vector<128x128xbf16>, vector<16x128xf32> -> vector<16x128xf32>
    %c5 = arith.constant 5 : index
    %c0_38 = arith.constant 0 : index
    %60 = vector.load %arg3[%c5, %c0_38] : memref<8x128xf32, #tpu.memory_space<vmem>>, vector<1x128xf32>
    %61 = vector.broadcast %60 : vector<1x128xf32> to vector<16x128xf32>
    %62 = arith.addf %59, %61 : vector<16x128xf32>
    %63 = arith.addf %62, %1 : vector<16x128xf32>
    %64 = vector.broadcast %2 : vector<1x128xf32> to vector<16x128xf32>
    %65 = arith.addf %63, %64 : vector<16x128xf32>
    %c5_39 = arith.constant 5 : index
    %c0_40 = arith.constant 0 : index
    %c0_41 = arith.constant 0 : index
    %66 = vector.load %arg6[%c5_39, %c0_40, %c0_41] : memref<8x16x128xf32, #tpu.memory_space<vmem>>, vector<1x16x128xf32>
    %67 = vector.shape_cast %66 : vector<1x16x128xf32> to vector<16x128xf32>
    %68 = vector.shape_cast %65 : vector<16x128xf32> to vector<1x16x128xf32>
    tpu.vector_store %arg6[%c5_39, %c0_40, %c0_41], %68 {strides = array<i32>} : memref<8x16x128xf32, #tpu.memory_space<vmem>>, vector<1x16x128xf32>,
    %c768 = arith.constant 768 : index
    %c0_42 = arith.constant 0 : index
    %69 = vector.load %arg1[%c768, %c0_42] : memref<1024x128xbf16, #tpu.memory_space<vmem>>, vector<128x128xbf16>
    %cst_43 = arith.constant dense<0.000000e+00> : vector<16x128xf32>
    %70 = tpu.matmul %0, %69, %cst_43 {dimension_numbers = #tpu.dot_dimension_numbers<[1], [0], [0], [1], [0, 0, 1, 1], [], []>} : vector<16x128xbf16>, vector<128x128xbf16>, vector<16x128xf32> -> vector<16x128xf32>
    %c6 = arith.constant 6 : index
    %c0_44 = arith.constant 0 : index
    %71 = vector.load %arg3[%c6, %c0_44] : memref<8x128xf32, #tpu.memory_space<vmem>>, vector<1x128xf32>
    %72 = vector.broadcast %71 : vector<1x128xf32> to vector<16x128xf32>
    %73 = arith.addf %70, %72 : vector<16x128xf32>
    %74 = arith.addf %73, %1 : vector<16x128xf32>
    %75 = vector.broadcast %2 : vector<1x128xf32> to vector<16x128xf32>
    %76 = arith.addf %74, %75 : vector<16x128xf32>
    %c6_45 = arith.constant 6 : index
    %c0_46 = arith.constant 0 : index
    %c0_47 = arith.constant 0 : index
    %77 = vector.load %arg6[%c6_45, %c0_46, %c0_47] : memref<8x16x128xf32, #tpu.memory_space<vmem>>, vector<1x16x128xf32>
    %78 = vector.shape_cast %77 : vector<1x16x128xf32> to vector<16x128xf32>
    %79 = vector.shape_cast %76 : vector<16x128xf32> to vector<1x16x128xf32>
    tpu.vector_store %arg6[%c6_45, %c0_46, %c0_47], %79 {strides = array<i32>} : memref<8x16x128xf32, #tpu.memory_space<vmem>>, vector<1x16x128xf32>,
    %c896 = arith.constant 896 : index
    %c0_48 = arith.constant 0 : index
    %80 = vector.load %arg1[%c896, %c0_48] : memref<1024x128xbf16, #tpu.memory_space<vmem>>, vector<128x128xbf16>
    %cst_49 = arith.constant dense<0.000000e+00> : vector<16x128xf32>
    %81 = tpu.matmul %0, %80, %cst_49 {dimension_numbers = #tpu.dot_dimension_numbers<[1], [0], [0], [1], [0, 0, 1, 1], [], []>} : vector<16x128xbf16>, vector<128x128xbf16>, vector<16x128xf32> -> vector<16x128xf32>
    %c7 = arith.constant 7 : index
    %c0_50 = arith.constant 0 : index
    %82 = vector.load %arg3[%c7, %c0_50] : memref<8x128xf32, #tpu.memory_space<vmem>>, vector<1x128xf32>
    %83 = vector.broadcast %82 : vector<1x128xf32> to vector<16x128xf32>
    %84 = arith.addf %81, %83 : vector<16x128xf32>
    %85 = arith.addf %84, %1 : vector<16x128xf32>
    %86 = vector.broadcast %2 : vector<1x128xf32> to vector<16x128xf32>
    %87 = arith.addf %85, %86 : vector<16x128xf32>
    %c7_51 = arith.constant 7 : index
    %c0_52 = arith.constant 0 : index
    %c0_53 = arith.constant 0 : index
    %88 = vector.load %arg6[%c7_51, %c0_52, %c0_53] : memref<8x16x128xf32, #tpu.memory_space<vmem>>, vector<1x16x128xf32>
    %89 = vector.shape_cast %88 : vector<1x16x128xf32> to vector<16x128xf32>
    %90 = vector.shape_cast %87 : vector<16x128xf32> to vector<1x16x128xf32>
    tpu.vector_store %arg6[%c7_51, %c0_52, %c0_53], %90 {strides = array<i32>} : memref<8x16x128xf32, #tpu.memory_space<vmem>>, vector<1x16x128xf32>,
    return
  }
  func.func @transform_0(%arg0: i32) -> (i32, i32) {
    %c0_i32 = arith.constant 0 : i32
    %c0_i32_0 = arith.constant 0 : i32
    return %arg0, %c0_i32 : i32, i32
  }
  func.func @transform_1(%arg0: i32) -> (i32, i32) {
    %c0_i32 = arith.constant 0 : i32
    %c0_i32_0 = arith.constant 0 : i32
    %c0_i32_1 = arith.constant 0 : i32
    return %c0_i32, %c0_i32_0 : i32, i32
  }
  func.func @transform_2(%arg0: i32) -> (i32, i32) {
    %c0_i32 = arith.constant 0 : i32
    %c0_i32_0 = arith.constant 0 : i32
    return %arg0, %c0_i32 : i32, i32
  }
  func.func @transform_3(%arg0: i32) -> (i32, i32) {
    %c0_i32 = arith.constant 0 : i32
    %c0_i32_0 = arith.constant 0 : i32
    %c0_i32_1 = arith.constant 0 : i32
    return %c0_i32, %c0_i32_0 : i32, i32
  }
  func.func @transform_4(%arg0: i32) -> (i32, i32) {
    %c0_i32 = arith.constant 0 : i32
    %c0_i32_0 = arith.constant 0 : i32
    %c0_i32_1 = arith.constant 0 : i32
    return %c0_i32, %c0_i32_0 : i32, i32
  }
  func.func @transform_5(%arg0: i32) -> (i32, i32, i32) {
    %c0_i32 = arith.constant 0 : i32
    %c0_i32_0 = arith.constant 0 : i32
    %c0_i32_1 = arith.constant 0 : i32
    return %arg0, %c0_i32, %c0_i32_0 : i32, i32, i32
  }
}

</mosaic_0001>

<llo_original>
// kernel: _pipeline_core.4
$region0: #{_pipeline_core.4}
  #allocation0 [shape = 'u32[]', space=smem, size = 0x4, offset = 0x4, fixed_abs, tag = 'smem constant byte address 0x4 - core index']
  #allocation1 [shape = 'u32[144,128]{1,0:T(1,128)}', space=vmem, size = 0x12000, scoped, tag = 'internal scratch']
  %s0 = inlined_call_operand.hbm [shape: f32[16,768], index: 0, kind: input, shape index: {}]
  %s1 = inlined_call_operand.hbm [shape: f32[768,128], index: 1, kind: input, shape index: {}]
  %s2 = inlined_call_operand.hbm [shape: f32[1,128], index: 2, kind: input, shape index: {}]
  %s3 = inlined_call_operand.hbm [shape: f32[16,128], index: 3, kind: output, shape index: {0}]
  %s4 = inlined_call_operand.vmem [shape: f32[16,128], index: 4, kind: output, shape index: {1}]
  %s5 = inlined_call_operand.vmem [shape: f32[16,1], index: 5, kind: output, shape index: {2}]
  %6 = xla_tuple %s3, %s4, %s5
  %s7 = sld [smem:[#allocation0]]
  $region50: #{_pipeline_core.4} parent=0
    _
  %s9 = ssub.s32 1, %s7
  %s10 = scalar_select 0, %s9, %s7
  $region1: #{_pipeline_core.4} parent=0
    #allocation2 [shape = 'u8[49152]{0}', space=vmem, size = 0xc000, scoped, tag = 'input window, operand 0, single buffered']
    #allocation3 [shape = 's32[1]{0}', space=sflag, size = 0x4, scoped, tag = 'scoped memory for _pipeline_core.4']
    #allocation4 [shape = 's32[1]{0}', space=sflag, size = 0x4, scoped, tag = 'scoped memory for _pipeline_core.4']
    #allocation5 [shape = 'u8[393216]{0}', space=vmem, size = 0x60000, scoped, tag = 'input window, operand 1, single buffered']
    #allocation6 [shape = 's32[1]{0}', space=sflag, size = 0x4, scoped, tag = 'scoped memory for _pipeline_core.4']
    #allocation7 [shape = 'u8[512]{0}', space=vmem, size = 0x400, scoped, tag = 'input window, operand 2, single buffered']
    #allocation8 [shape = 'u8[8192]{0}', space=vmem, size = 0x2000, scoped, tag = 'output window, operand 0, single buffered']
    %11 = vsyncpa [#allocation3], 0
    %12 = vsyncpa [#allocation6], 0
    %13 = vsyncpa [#allocation4], 0
    // Predicated region
    $region2: #{_pipeline_core.4} parent=1 // pred_check
      _
    $region3: #{_pipeline_core.4} parent=1 // pred_check_branch
      %15 = sbr.rel (0) target = $region5
    $region4: #{_pipeline_core.4} parent=1 // pred_region
      %s17 = ssub.s32 1536, 1536
      %18 = vsyncadd [#allocation3], %s17
      %s19 = sshll.u32 [#allocation2], 4
      %s20 = int_to_ptr.vmem [resolvable:$true] %s19
      %25 = dma.hbm_to_vmem [thread:$0]  %s0, 1536, %s20, [#allocation3], 768, 768, 48
    $region5: #{_pipeline_core.4} parent=1 // pred_fallthru
      _
    // Predicated region
    $region6: #{_pipeline_core.4} parent=1 // pred_check
      _
    $region7: #{_pipeline_core.4} parent=1 // pred_check_branch
      %27 = sbr.rel (0) target = $region9
    $region8: #{_pipeline_core.4} parent=1 // pred_region
      %s29 = ssub.s32 12288, 12288
      %30 = vsyncadd [#allocation6], %s29
      %s31 = sshll.u32 [#allocation5], 4
      %s32 = int_to_ptr.vmem [resolvable:$true] %s31
      %37 = dma.hbm_to_vmem [thread:$0]  %s1, 12288, %s32, [#allocation6], 128, 128, 8
    $region9: #{_pipeline_core.4} parent=1 // pred_fallthru
      _
    // Predicated region
    $region10: #{_pipeline_core.4} parent=1 // pred_check
      _
    $region11: #{_pipeline_core.4} parent=1 // pred_check_branch
      %39 = sbr.rel (0) target = $region13
    $region12: #{_pipeline_core.4} parent=1 // pred_region
      %s41 = ssub.s32 16, 16
      %42 = vsyncadd [#allocation6], %s41
      %s44 = sshll.u32 [#allocation7], 4
      %s45 = int_to_ptr.vmem [resolvable:$true] %s44
      %47 = dma.hbm_to_vmem [thread:$0]  %s2, 16, %s45, [#allocation6]
    $region13: #{_pipeline_core.4} parent=1 // pred_fallthru
      _
    // Predicated region
    $region14: #{_pipeline_core.4} parent=1 // pred_check
      _
    $region15: #{_pipeline_core.4} parent=1 // pred_check_branch
      %49 = sbr.rel (0) target = $region17
    $region16: #{_pipeline_core.4} parent=1 // pred_region
      %50 = dma.done [#allocation3], 1536
    $region17: #{_pipeline_core.4} parent=1 // pred_fallthru
      _
    // Predicated region
    $region18: #{_pipeline_core.4} parent=1 // pred_check
      _
    $region19: #{_pipeline_core.4} parent=1 // pred_check_branch
      %52 = sbr.rel (0) target = $region21
    $region20: #{_pipeline_core.4} parent=1 // pred_region
      %53 = dma.done [#allocation6], 12288
    $region21: #{_pipeline_core.4} parent=1 // pred_fallthru
      _
    // Predicated region
    $region22: #{_pipeline_core.4} parent=1 // pred_check
      _
    $region23: #{_pipeline_core.4} parent=1 // pred_check_branch
      %55 = sbr.rel (0) target = $region25
    $region24: #{_pipeline_core.4} parent=1 // pred_region
      %56 = dma.done [#allocation6], 16
    $region25: #{_pipeline_core.4} parent=1 // pred_fallthru
      _
    %v57 = vld [vmem:[#allocation2] sm:$0xff]
    %v58 = vld [vmem:[#allocation2 + $0x8] sm:$0xff]
    %v59 = vld [vmem:[#allocation2 + $0x10] sm:$0xff]
    %v60 = vld [vmem:[#allocation2 + $0x18] sm:$0xff]
    %v61 = vld [vmem:[#allocation2 + $0x20] sm:$0xff]
    %v62 = vld [vmem:[#allocation2 + $0x28] sm:$0xff]
    %v63 = vld [vmem:[#allocation2 + $0x30] sm:$0xff]
    %v64 = vld [vmem:[#allocation2 + $0x38] sm:$0xff]
    %v65 = vld [vmem:[#allocation2 + $0x40] sm:$0xff]
    %v66 = vld [vmem:[#allocation2 + $0x48] sm:$0xff]
    %v67 = vld [vmem:[#allocation2 + $0x50] sm:$0xff]
    %v68 = vld [vmem:[#allocation2 + $0x58] sm:$0xff]
    %v69 = vld [vmem:[#allocation5] sm:$0xff]
    %v70 = vld [vmem:[#allocation5 + $0x8] sm:$0xff]
    %v71 = vld [vmem:[#allocation5 + $0x10] sm:$0xff]
    %v72 = vld [vmem:[#allocation5 + $0x18] sm:$0xff]
    %v73 = vld [vmem:[#allocation5 + $0x20] sm:$0xff]
    %v74 = vld [vmem:[#allocation5 + $0x28] sm:$0xff]
    %v75 = vld [vmem:[#allocation5 + $0x30] sm:$0xff]
    %v76 = vld [vmem:[#allocation5 + $0x38] sm:$0xff]
    %v77 = vld [vmem:[#allocation5 + $0x40] sm:$0xff]
    %v78 = vld [vmem:[#allocation5 + $0x48] sm:$0xff]
    %v79 = vld [vmem:[#allocation5 + $0x50] sm:$0xff]
    %v80 = vld [vmem:[#allocation5 + $0x58] sm:$0xff]
    %v81 = vld [vmem:[#allocation5 + $0x60] sm:$0xff]
    %v82 = vld [vmem:[#allocation5 + $0x68] sm:$0xff]
    %v83 = vld [vmem:[#allocation5 + $0x70] sm:$0xff]
    %v84 = vld [vmem:[#allocation5 + $0x78] sm:$0xff]
    %v85 = vld [vmem:[#allocation5 + $0x80] sm:$0xff]
    %v86 = vld [vmem:[#allocation5 + $0x88] sm:$0xff]
    %v87 = vld [vmem:[#allocation5 + $0x90] sm:$0xff]
    %v88 = vld [vmem:[#allocation5 + $0x98] sm:$0xff]
    %v89 = vld [vmem:[#allocation5 + $0xa0] sm:$0xff]
    %v90 = vld [vmem:[#allocation5 + $0xa8] sm:$0xff]
    %v91 = vld [vmem:[#allocation5 + $0xb0] sm:$0xff]
    %v92 = vld [vmem:[#allocation5 + $0xb8] sm:$0xff]
    %v93 = vld [vmem:[#allocation5 + $0xc0] sm:$0xff]
    %v94 = vld [vmem:[#allocation5 + $0xc8] sm:$0xff]
    %v95 = vld [vmem:[#allocation5 + $0xd0] sm:$0xff]
    %v96 = vld [vmem:[#allocation5 + $0xd8] sm:$0xff]
    %v97 = vld [vmem:[#allocation5 + $0xe0] sm:$0xff]
    %v98 = vld [vmem:[#allocation5 + $0xe8] sm:$0xff]
    %v99 = vld [vmem:[#allocation5 + $0xf0] sm:$0xff]
    %v100 = vld [vmem:[#allocation5 + $0xf8] sm:$0xff]
    %v101 = vld [vmem:[#allocation5 + $0x100] sm:$0xff]
    %v102 = vld [vmem:[#allocation5 + $0x108] sm:$0xff]
    %v103 = vld [vmem:[#allocation5 + $0x110] sm:$0xff]
    %v104 = vld [vmem:[#allocation5 + $0x118] sm:$0xff]
    %v105 = vld [vmem:[#allocation5 + $0x120] sm:$0xff]
    %v106 = vld [vmem:[#allocation5 + $0x128] sm:$0xff]
    %v107 = vld [vmem:[#allocation5 + $0x130] sm:$0xff]
    %v108 = vld [vmem:[#allocation5 + $0x138] sm:$0xff]
    %v109 = vld [vmem:[#allocation5 + $0x140] sm:$0xff]
    %v110 = vld [vmem:[#allocation5 + $0x148] sm:$0xff]
    %v111 = vld [vmem:[#allocation5 + $0x150] sm:$0xff]
    %v112 = vld [vmem:[#allocation5 + $0x158] sm:$0xff]
    %v113 = vld [vmem:[#allocation5 + $0x160] sm:$0xff]
    %v114 = vld [vmem:[#allocation5 + $0x168] sm:$0xff]
    %v115 = vld [vmem:[#allocation5 + $0x170] sm:$0xff]
    %v116 = vld [vmem:[#allocation5 + $0x178] sm:$0xff]
    %v117 = vld [vmem:[#allocation5 + $0x180] sm:$0xff]
    %v118 = vld [vmem:[#allocation5 + $0x188] sm:$0xff]
    %v119 = vld [vmem:[#allocation5 + $0x190] sm:$0xff]
    %v120 = vld [vmem:[#allocation5 + $0x198] sm:$0xff]
    %v121 = vld [vmem:[#allocation5 + $0x1a0] sm:$0xff]
    %v122 = vld [vmem:[#allocation5 + $0x1a8] sm:$0xff]
    %v123 = vld [vmem:[#allocation5 + $0x1b0] sm:$0xff]
    %v124 = vld [vmem:[#allocation5 + $0x1b8] sm:$0xff]
    %v125 = vld [vmem:[#allocation5 + $0x1c0] sm:$0xff]
    %v126 = vld [vmem:[#allocation5 + $0x1c8] sm:$0xff]
    %v127 = vld [vmem:[#allocation5 + $0x1d0] sm:$0xff]
    %v128 = vld [vmem:[#allocation5 + $0x1d8] sm:$0xff]
    %v129 = vld [vmem:[#allocation5 + $0x1e0] sm:$0xff]
    %v130 = vld [vmem:[#allocation5 + $0x1e8] sm:$0xff]
    %v131 = vld [vmem:[#allocation5 + $0x1f0] sm:$0xff]
    %v132 = vld [vmem:[#allocation5 + $0x1f8] sm:$0xff]
    %v133 = vld [vmem:[#allocation5 + $0x200] sm:$0xff]
    %v134 = vld [vmem:[#allocation5 + $0x208] sm:$0xff]
    %v135 = vld [vmem:[#allocation5 + $0x210] sm:$0xff]
    %v136 = vld [vmem:[#allocation5 + $0x218] sm:$0xff]
    %v137 = vld [vmem:[#allocation5 + $0x220] sm:$0xff]
    %v138 = vld [vmem:[#allocation5 + $0x228] sm:$0xff]
    %v139 = vld [vmem:[#allocation5 + $0x230] sm:$0xff]
    %v140 = vld [vmem:[#allocation5 + $0x238] sm:$0xff]
    %v141 = vld [vmem:[#allocation5 + $0x240] sm:$0xff]
    %v142 = vld [vmem:[#allocation5 + $0x248] sm:$0xff]
    %v143 = vld [vmem:[#allocation5 + $0x250] sm:$0xff]
    %v144 = vld [vmem:[#allocation5 + $0x258] sm:$0xff]
    %v145 = vld [vmem:[#allocation5 + $0x260] sm:$0xff]
    %v146 = vld [vmem:[#allocation5 + $0x268] sm:$0xff]
    %v147 = vld [vmem:[#allocation5 + $0x270] sm:$0xff]
    %v148 = vld [vmem:[#allocation5 + $0x278] sm:$0xff]
    %v149 = vld [vmem:[#allocation5 + $0x280] sm:$0xff]
    %v150 = vld [vmem:[#allocation5 + $0x288] sm:$0xff]
    %v151 = vld [vmem:[#allocation5 + $0x290] sm:$0xff]
    %v152 = vld [vmem:[#allocation5 + $0x298] sm:$0xff]
    %v153 = vld [vmem:[#allocation5 + $0x2a0] sm:$0xff]
    %v154 = vld [vmem:[#allocation5 + $0x2a8] sm:$0xff]
    %v155 = vld [vmem:[#allocation5 + $0x2b0] sm:$0xff]
    %v156 = vld [vmem:[#allocation5 + $0x2b8] sm:$0xff]
    %v157 = vld [vmem:[#allocation5 + $0x2c0] sm:$0xff]
    %v158 = vld [vmem:[#allocation5 + $0x2c8] sm:$0xff]
    %v159 = vld [vmem:[#allocation5 + $0x2d0] sm:$0xff]
    %v160 = vld [vmem:[#allocation5 + $0x2d8] sm:$0xff]
    %v161 = vld [vmem:[#allocation5 + $0x2e0] sm:$0xff]
    %v162 = vld [vmem:[#allocation5 + $0x2e8] sm:$0xff]
    %v163 = vld [vmem:[#allocation5 + $0x2f0] sm:$0xff]
    %v164 = vld [vmem:[#allocation5 + $0x2f8] sm:$0xff]
    %v165 = vld [vmem:[#allocation7] sm:$0x1]
    %v167 = vlaneseq
    %v168 = vshrl.u32 %v167, 7
    %v169 = vsub.s32 0, %v168
    %v170 = vrot.slane %v165, %v169
    %172 = vmatprep.subr.mxu0 0.0
    %173 = vmatpush1.msra.mxu0 %v84
    %174 = vmatprep.subr.mxu0 0.0
    %175 = vmatpush1.msra.mxu0 %v83
    %176 = vmatprep.subr.mxu0 0.0
    %177 = vmatpush1.msra.mxu0 %v82
    %178 = vmatprep.subr.mxu0 0.0
    %179 = vmatpush1.msra.mxu0 %v81
    %180 = vmatprep.subr.mxu0 0.0
    %181 = vmatpush1.msra.mxu0 %v80
    %182 = vmatprep.subr.mxu0 0.0
    %183 = vmatpush1.msra.mxu0 %v79
    %184 = vmatprep.subr.mxu0 0.0
    %185 = vmatpush1.msra.mxu0 %v78
    %186 = vmatprep.subr.mxu0 0.0
    %187 = vmatpush1.msra.mxu0 %v77
    %188 = vmatprep.subr.mxu0 0.0
    %189 = vmatpush1.msra.mxu0 %v76
    %190 = vmatprep.subr.mxu0 0.0
    %191 = vmatpush1.msra.mxu0 %v75
    %192 = vmatprep.subr.mxu0 0.0
    %193 = vmatpush1.msra.mxu0 %v74
    %194 = vmatprep.subr.mxu0 0.0
    %195 = vmatpush1.msra.mxu0 %v73
    %196 = vmatprep.subr.mxu0 0.0
    %197 = vmatpush1.msra.mxu0 %v72
    %198 = vmatprep.subr.mxu0 0.0
    %199 = vmatpush1.msra.mxu0 %v71
    %200 = vmatprep.subr.mxu0 0.0
    %201 = vmatpush1.msra.mxu0 %v70
    %202 = vmatprep.subr.mxu0 0.0
    %203 = vmatpush1.msra.mxu0 %v69
    %204 = vmatprep.subr.mxu0 0.0
    %205 = vmatpush2.msra.mxu0 %v100
    %206 = vmatprep.subr.mxu0 0.0
    %207 = vmatpush2.msra.mxu0 %v99
    %208 = vmatprep.subr.mxu0 0.0
    %209 = vmatpush2.msra.mxu0 %v98
    %210 = vmatprep.subr.mxu0 0.0
    %211 = vmatpush2.msra.mxu0 %v97
    %212 = vmatprep.subr.mxu0 0.0
    %213 = vmatpush2.msra.mxu0 %v96
    %214 = vmatprep.subr.mxu0 0.0
    %215 = vmatpush2.msra.mxu0 %v95
    %216 = vmatprep.subr.mxu0 0.0
    %217 = vmatpush2.msra.mxu0 %v94
    %218 = vmatprep.subr.mxu0 0.0
    %219 = vmatpush2.msra.mxu0 %v93
    %220 = vmatprep.subr.mxu0 0.0
    %221 = vmatpush2.msra.mxu0 %v92
    %222 = vmatprep.subr.mxu0 0.0
    %223 = vmatpush2.msra.mxu0 %v91
    %224 = vmatprep.subr.mxu0 0.0
    %225 = vmatpush2.msra.mxu0 %v90
    %226 = vmatprep.subr.mxu0 0.0
    %227 = vmatpush2.msra.mxu0 %v89
    %228 = vmatprep.subr.mxu0 0.0
    %229 = vmatpush2.msra.mxu0 %v88
    %230 = vmatprep.subr.mxu0 0.0
    %231 = vmatpush2.msra.mxu0 %v87
    %232 = vmatprep.subr.mxu0 0.0
    %233 = vmatpush2.msra.mxu0 %v86
    %234 = vmatprep.subr.mxu0 0.0
    %235 = vmatpush2.msra.mxu0 %v85
    %236 = vmatprep.mubr.f32.mxu0 %v58
    %237 = vmatmul.mubr.f32.gmra.mxu0 %v57
    %v238 = vpop.f32.mrf.mxu0
    %v239 = vadd.f32 %v170, %v238
    %v240 = vpop.f32.mrf.mxu0
    %241 = vmatprep.mubr.f32.mxu0 %v64
    %242 = vmatmul.mubr.f32.gmra.mxu0 %v63
    %v243 = vpop.f32.mrf.mxu0
    %v244 = vadd.f32 %v170, %v243
    %v245 = vpop.f32.mrf.mxu0
    %246 = vdwg.mxu0
    %247 = vmatprep.subr.mxu0 0.0
    %248 = vmatpush1.msra.mxu0 %v116
    %249 = vmatprep.subr.mxu0 0.0
    %250 = vmatpush1.msra.mxu0 %v115
    %251 = vmatprep.subr.mxu0 0.0
    %252 = vmatpush1.msra.mxu0 %v114
    %253 = vmatprep.subr.mxu0 0.0
    %254 = vmatpush1.msra.mxu0 %v113
    %255 = vmatprep.subr.mxu0 0.0
    %256 = vmatpush1.msra.mxu0 %v112
    %257 = vmatprep.subr.mxu0 0.0
    %258 = vmatpush1.msra.mxu0 %v111
    %259 = vmatprep.subr.mxu0 0.0
    %260 = vmatpush1.msra.mxu0 %v110
    %261 = vmatprep.subr.mxu0 0.0
    %262 = vmatpush1.msra.mxu0 %v109
    %263 = vmatprep.subr.mxu0 0.0
    %264 = vmatpush1.msra.mxu0 %v108
    %265 = vmatprep.subr.mxu0 0.0
    %266 = vmatpush1.msra.mxu0 %v107
    %267 = vmatprep.subr.mxu0 0.0
    %268 = vmatpush1.msra.mxu0 %v106
    %269 = vmatprep.subr.mxu0 0.0
    %270 = vmatpush1.msra.mxu0 %v105
    %271 = vmatprep.subr.mxu0 0.0
    %272 = vmatpush1.msra.mxu0 %v104
    %273 = vmatprep.subr.mxu0 0.0
    %274 = vmatpush1.msra.mxu0 %v103
    %275 = vmatprep.subr.mxu0 0.0
    %276 = vmatpush1.msra.mxu0 %v102
    %277 = vmatprep.subr.mxu0 0.0
    %278 = vmatpush1.msra.mxu0 %v101
    %279 = vmatprep.subr.mxu0 0.0
    %280 = vmatpush2.msra.mxu0 %v132
    %281 = vmatprep.subr.mxu0 0.0
    %282 = vmatpush2.msra.mxu0 %v131
    %283 = vmatprep.subr.mxu0 0.0
    %284 = vmatpush2.msra.mxu0 %v130
    %285 = vmatprep.subr.mxu0 0.0
    %286 = vmatpush2.msra.mxu0 %v129
    %287 = vmatprep.subr.mxu0 0.0
    %288 = vmatpush2.msra.mxu0 %v128
    %289 = vmatprep.subr.mxu0 0.0
    %290 = vmatpush2.msra.mxu0 %v127
    %291 = vmatprep.subr.mxu0 0.0
    %292 = vmatpush2.msra.mxu0 %v126
    %293 = vmatprep.subr.mxu0 0.0
    %294 = vmatpush2.msra.mxu0 %v125
    %295 = vmatprep.subr.mxu0 0.0
    %296 = vmatpush2.msra.mxu0 %v124
    %297 = vmatprep.subr.mxu0 0.0
    %298 = vmatpush2.msra.mxu0 %v123
    %299 = vmatprep.subr.mxu0 0.0
    %300 = vmatpush2.msra.mxu0 %v122
    %301 = vmatprep.subr.mxu0 0.0
    %302 = vmatpush2.msra.mxu0 %v121
    %303 = vmatprep.subr.mxu0 0.0
    %304 = vmatpush2.msra.mxu0 %v120
    %305 = vmatprep.subr.mxu0 0.0
    %306 = vmatpush2.msra.mxu0 %v119
    %307 = vmatprep.subr.mxu0 0.0
    %308 = vmatpush2.msra.mxu0 %v118
    %309 = vmatprep.subr.mxu0 0.0
    %310 = vmatpush2.msra.mxu0 %v117
    %311 = vmatprep.mubr.f32.mxu0 %v60
    %312 = vmatmul.mubr.f32.gmra.mxu0 %v59
    %v313 = vpop.f32.mrf.mxu0
    %v314 = vadd.f32 %v239, %v313
    %v315 = vpop.f32.mrf.mxu0
    %316 = vmatprep.mubr.f32.mxu0 %v66
    %317 = vmatmul.mubr.f32.gmra.mxu0 %v65
    %v318 = vpop.f32.mrf.mxu0
    %v319 = vadd.f32 %v244, %v318
    %v320 = vpop.f32.mrf.mxu0
    %321 = vdwg.mxu0
    %322 = vmatprep.subr.mxu0 0.0
    %323 = vmatpush1.msra.mxu0 %v148
    %324 = vmatprep.subr.mxu0 0.0
    %325 = vmatpush1.msra.mxu0 %v147
    %326 = vmatprep.subr.mxu0 0.0
    %327 = vmatpush1.msra.mxu0 %v146
    %328 = vmatprep.subr.mxu0 0.0
    %329 = vmatpush1.msra.mxu0 %v145
    %330 = vmatprep.subr.mxu0 0.0
    %331 = vmatpush1.msra.mxu0 %v144
    %332 = vmatprep.subr.mxu0 0.0
    %333 = vmatpush1.msra.mxu0 %v143
    %334 = vmatprep.subr.mxu0 0.0
    %335 = vmatpush1.msra.mxu0 %v142
    %336 = vmatprep.subr.mxu0 0.0
    %337 = vmatpush1.msra.mxu0 %v141
    %338 = vmatprep.subr.mxu0 0.0
    %339 = vmatpush1.msra.mxu0 %v140
    %340 = vmatprep.subr.mxu0 0.0
    %341 = vmatpush1.msra.mxu0 %v139
    %342 = vmatprep.subr.mxu0 0.0
    %343 = vmatpush1.msra.mxu0 %v138
    %344 = vmatprep.subr.mxu0 0.0
    %345 = vmatpush1.msra.mxu0 %v137
    %346 = vmatprep.subr.mxu0 0.0
    %347 = vmatpush1.msra.mxu0 %v136
    %348 = vmatprep.subr.mxu0 0.0
    %349 = vmatpush1.msra.mxu0 %v135
    %350 = vmatprep.subr.mxu0 0.0
    %351 = vmatpush1.msra.mxu0 %v134
    %352 = vmatprep.subr.mxu0 0.0
    %353 = vmatpush1.msra.mxu0 %v133
    %354 = vmatprep.subr.mxu0 0.0
    %355 = vmatpush2.msra.mxu0 %v164
    %356 = vmatprep.subr.mxu0 0.0
    %357 = vmatpush2.msra.mxu0 %v163
    %358 = vmatprep.subr.mxu0 0.0
    %359 = vmatpush2.msra.mxu0 %v162
    %360 = vmatprep.subr.mxu0 0.0
    %361 = vmatpush2.msra.mxu0 %v161
    %362 = vmatprep.subr.mxu0 0.0
    %363 = vmatpush2.msra.mxu0 %v160
    %364 = vmatprep.subr.mxu0 0.0
    %365 = vmatpush2.msra.mxu0 %v159
    %366 = vmatprep.subr.mxu0 0.0
    %367 = vmatpush2.msra.mxu0 %v158
    %368 = vmatprep.subr.mxu0 0.0
    %369 = vmatpush2.msra.mxu0 %v157
    %370 = vmatprep.subr.mxu0 0.0
    %371 = vmatpush2.msra.mxu0 %v156
    %372 = vmatprep.subr.mxu0 0.0
    %373 = vmatpush2.msra.mxu0 %v155
    %374 = vmatprep.subr.mxu0 0.0
    %375 = vmatpush2.msra.mxu0 %v154
    %376 = vmatprep.subr.mxu0 0.0
    %377 = vmatpush2.msra.mxu0 %v153
    %378 = vmatprep.subr.mxu0 0.0
    %379 = vmatpush2.msra.mxu0 %v152
    %380 = vmatprep.subr.mxu0 0.0
    %381 = vmatpush2.msra.mxu0 %v151
    %382 = vmatprep.subr.mxu0 0.0
    %383 = vmatpush2.msra.mxu0 %v150
    %384 = vmatprep.subr.mxu0 0.0
    %385 = vmatpush2.msra.mxu0 %v149
    %386 = vmatprep.mubr.f32.mxu0 %v62
    %387 = vmatmul.mubr.f32.gmra.mxu0 %v61
    %v388 = vpop.f32.mrf.mxu0
    %v389 = vadd.f32 %v314, %v388
    %v390 = vpop.f32.mrf.mxu0
    %391 = vmatprep.mubr.f32.mxu0 %v68
    %392 = vmatmul.mubr.f32.gmra.mxu0 %v67
    %v393 = vpop.f32.mrf.mxu0
    %v394 = vadd.f32 %v319, %v393
    %v395 = vpop.f32.mrf.mxu0
    %396 = vdwg.mxu0
    %397 = vst [vmem:[#allocation8] sm:$0xff] %v389
    %398 = vst [vmem:[#allocation8 + $0x8] sm:$0xff] %v394
    %v399 = vlaneseq
    %v400 = vand.u32 %v399, 127
    %vm401 = vcmp.lt.s32.totalorder %v400, 10
    %v402 = vsel %vm401, %v389, -1e+30
    %v403 = vsel %vm401, %v394, -1e+30
    %404 = vmax.xlane.f32.xlu0 %v402
    %v405 = vpop.xlane.xlu0 %404
    %406 = vmax.xlane.f32.xlu0 %v403
    %v407 = vpop.xlane.xlu0 %406
    %v408 = vsub.f32 %v402, %v405
    %v409 = vsub.f32 %v403, %v407
    %v410 = vmul.f32 %v408, 1.442695
    %v411 = vpow.pop %v410
    %v412 = vmul.f32 %v409, 1.442695
    %v413 = vpow.pop %v412
    %v414 = vsel %vm401, %v411, 0.0
    %v415 = vsel %vm401, %v413, 0.0
    %416 = vadd.xlane.f32.xlu0 %v414
    %v417 = vpop.xlane.xlu0 %416
    %418 = vadd.xlane.f32.xlu0 %v415
    %v419 = vpop.xlane.xlu0 %418
    %v420 = vrcp.pop %v417
    %v421 = vmul.f32 %v414, %v420
    %v422 = vrcp.pop %v419
    %v423 = vmul.f32 %v415, %v422
    %424 = vst [vmem:[%s4] sm:$0xff] %v421
    %425 = vst [vmem:[%s4 + $0x8] sm:$0xff] %v423
    %vm426 = vcmp.lt.s32.totalorder %v400, 9
    %v427 = vsel %vm426, %v389, -1e+30
    %v428 = vsel %vm426, %v394, -1e+30
    %429 = vmax.xlane.f32.xlu0 %v427
    %v430 = vpop.xlane.xlu0 %429
    %431 = vmax.xlane.f32.xlu0 %v428
    %v432 = vpop.xlane.xlu0 %431
    %v433 = vlaneseq
    %v434 = vshrl.u32 %v433, 7
    %v435 = vadd.s32 %v434, 8
    %vm436 = vcmp.ge.f32.partialorder %v430, %v405
    %vm437 = vcmp.ge.f32.partialorder %v432, %v407
    %vm438 = vcmp.lt.s32.totalorder %v434, 16
    %vm439 = vcmp.lt.s32.totalorder %v435, 16
    %vm440 = vmand %vm436, %vm438
    %vm441 = vmand %vm437, %vm439
    %v442 = vsel %vm440, 1.0, 0.0
    %v443 = vsel %vm441, 1.0, 0.0
    %vm444 = vcmask 7168
    %445 = vst.msk [vmem:[%s5] sm:$0xff] %vm444, %v442
    %446 = vst.msk [vmem:[%s5 + $0x8] sm:$0xff] %vm444, %v443
    // Predicated region
    $region26: #{_pipeline_core.4} parent=1 // pred_check
      _
    $region27: #{_pipeline_core.4} parent=1 // pred_check_branch
      %448 = sbr.rel (0) target = $region29
    $region28: #{_pipeline_core.4} parent=1 // pred_region
      %s450 = ssub.s32 256, 256
      %451 = vsyncadd [#allocation4], %s450
      %s452 = sshll.u32 [#allocation8], 4
      %s453 = int_to_ptr.vmem [resolvable:$true] %s452
      %458 = dma.vmem_to_hbm [thread:$0]  %s453, 256, %s3, [#allocation4], 128, 128, 8
    $region29: #{_pipeline_core.4} parent=1 // pred_fallthru
      _
    // Predicated region
    $region30: #{_pipeline_core.4} parent=1 // pred_check
      _
    $region31: #{_pipeline_core.4} parent=1 // pred_check_branch
      %460 = sbr.rel (0) target = $region33
    $region32: #{_pipeline_core.4} parent=1 // pred_region
      _
    $region33: #{_pipeline_core.4} parent=1 // pred_fallthru
      _
    // Predicated region
    $region34: #{_pipeline_core.4} parent=1 // pred_check
      _
    $region35: #{_pipeline_core.4} parent=1 // pred_check_branch
      %462 = sbr.rel (0) target = $region37
    $region36: #{_pipeline_core.4} parent=1 // pred_region
      _
    $region37: #{_pipeline_core.4} parent=1 // pred_fallthru
      _
    // Predicated region
    $region38: #{_pipeline_core.4} parent=1 // pred_check
      _
    $region39: #{_pipeline_core.4} parent=1 // pred_check_branch
      %464 = sbr.rel (0) target = $region41
    $region40: #{_pipeline_core.4} parent=1 // pred_region
      %465 = dma.done [#allocation4], 256
    $region41: #{_pipeline_core.4} parent=1 // pred_fallthru
      _
    // Predicated region
    $region42: #{_pipeline_core.4} parent=1 // pred_check
      _
    $region43: #{_pipeline_core.4} parent=1 // pred_check_branch
      %467 = sbr.rel (0) target = $region45
    $region44: #{_pipeline_core.4} parent=1 // pred_region
      _
    $region45: #{_pipeline_core.4} parent=1 // pred_fallthru
      _
    // Predicated region
    $region46: #{_pipeline_core.4} parent=1 // pred_check
      _
    $region47: #{_pipeline_core.4} parent=1 // pred_check_branch
      %469 = sbr.rel (0) target = $region49
    $region48: #{_pipeline_core.4} parent=1 // pred_region
      _
    $region49: #{_pipeline_core.4} parent=1 // pred_fallthru
      _
    %470 = vsyncpa [#allocation3], 1
    %471 = vsyncpa [#allocation6], 1
    %472 = vsyncpa [#allocation4], 1

// kernel: _pipeline_core.5
$region0: #{_pipeline_core.5}
  #allocation0 [shape = 'u32[]', space=smem, size = 0x4, offset = 0x4, fixed_abs, tag = 'smem constant byte address 0x4 - core index']
  #allocation1 [shape = 'u32[144,128]{1,0:T(1,128)}', space=vmem, size = 0x12000, scoped, tag = 'internal scratch']
  %s0 = inlined_call_operand.vmem [shape: f32[16,768], index: 0, kind: input, shape index: {}]
  %s1 = inlined_call_operand.vmem [shape: f32[16,128], index: 1, kind: input, shape index: {}]
  %s2 = inlined_call_operand.hbm [shape: bf16[768,384], index: 2, kind: input, shape index: {}]
  %s3 = inlined_call_operand.hbm [shape: bf16[128,384], index: 3, kind: input, shape index: {}]
  %s4 = inlined_call_operand.hbm [shape: f32[1,384], index: 4, kind: input, shape index: {}]
  %s5 = inlined_call_operand.hbm [shape: bf16[768,256], index: 5, kind: input, shape index: {}]
  %s6 = inlined_call_operand.hbm [shape: bf16[128,256], index: 6, kind: input, shape index: {}]
  %s7 = inlined_call_operand.hbm [shape: bf16[384,256], index: 7, kind: input, shape index: {}]
  %s8 = inlined_call_operand.hbm [shape: f32[1,256], index: 8, kind: input, shape index: {}]
  %s9 = inlined_call_operand.hbm [shape: bf16[128,128], index: 9, kind: input, shape index: {}]
  %s10 = inlined_call_operand.hbm [shape: bf16[128,128], index: 10, kind: input, shape index: {}]
  %s11 = inlined_call_operand.hbm [shape: f32[16,384], index: 11, kind: output, shape index: {0}]
  %s12 = inlined_call_operand.vmem [shape: bf16[16,128], index: 12, kind: output, shape index: {1}]
  %s13 = inlined_call_operand.vmem [shape: bf16[16,128], index: 13, kind: output, shape index: {2}]
  %s14 = inlined_call_operand.vmem [shape: f32[16,128], index: 14, kind: output, shape index: {3}]
  %s15 = inlined_call_operand.vmem [shape: f32[16,128], index: 15, kind: output, shape index: {4}]
  %16 = xla_tuple %s11, %s12, %s13, %s14, %s15
  %s17 = sld [smem:[#allocation0]]
  $region122: #{_pipeline_core.5} parent=0
    _
  %s19 = ssub.s32 1, %s17
  %s20 = scalar_select 0, %s19, %s17
  $region1: #{_pipeline_core.5} parent=0
    #allocation2 [shape = 'u8[589824]{0}', space=vmem, size = 0x90000, scoped, tag = 'input window, operand 2, single buffered']
    #allocation3 [shape = 's32[1]{0}', space=sflag, size = 0x4, scoped, tag = 'scoped memory for _pipeline_core.5']
    #allocation4 [shape = 's32[1]{0}', space=sflag, size = 0x4, scoped, tag = 'scoped memory for _pipeline_core.5']
    #allocation5 [shape = 'u8[98304]{0}', space=vmem, size = 0x18000, scoped, tag = 'input window, operand 3, single buffered']
    #allocation6 [shape = 's32[1]{0}', space=sflag, size = 0x4, scoped, tag = 'scoped memory for _pipeline_core.5']
    #allocation7 [shape = 'u8[1536]{0}', space=vmem, size = 0x800, scoped, tag = 'input window, operand 4, single buffered']
    #allocation8 [shape = 'u8[393216]{0}', space=vmem, size = 0x60000, scoped, tag = 'input window, operand 5, single buffered']
    #allocation9 [shape = 's32[1]{0}', space=sflag, size = 0x4, scoped, tag = 'scoped memory for _pipeline_core.5']
    #allocation10 [shape = 'u8[65536]{0}', space=vmem, size = 0x10000, scoped, tag = 'input window, operand 6, single buffered']
    #allocation11 [shape = 'u8[196608]{0}', space=vmem, size = 0x30000, scoped, tag = 'input window, operand 7, single buffered']
    #allocation12 [shape = 's32[1]{0}', space=sflag, size = 0x4, scoped, tag = 'scoped memory for _pipeline_core.5']
    #allocation13 [shape = 'u8[1024]{0}', space=vmem, size = 0x400, scoped, tag = 'input window, operand 8, single buffered']
    #allocation14 [shape = 'u8[32768]{0}', space=vmem, size = 0x8000, scoped, tag = 'input window, operand 9, single buffered']
    #allocation15 [shape = 's32[1]{0}', space=sflag, size = 0x4, scoped, tag = 'scoped memory for _pipeline_core.5']
    #allocation16 [shape = 'u8[32768]{0}', space=vmem, size = 0x8000, scoped, tag = 'input window, operand 10, single buffered']
    #allocation17 [shape = 'u8[24576]{0}', space=vmem, size = 0x6000, scoped, tag = 'output window, operand 0, single buffered']
    %21 = vsyncpa [#allocation3], 0
    %22 = vsyncpa [#allocation6], 0
    %23 = vsyncpa [#allocation9], 0
    %24 = vsyncpa [#allocation12], 0
    %25 = vsyncpa [#allocation15], 0
    %26 = vsyncpa [#allocation4], 0
    // Predicated region
    $region2: #{_pipeline_core.5} parent=1 // pred_check
      _
    $region3: #{_pipeline_core.5} parent=1 // pred_check_branch
      %28 = sbr.rel (0) target = $region5
    $region4: #{_pipeline_core.5} parent=1 // pred_region
      _
    $region5: #{_pipeline_core.5} parent=1 // pred_fallthru
      _
    // Predicated region
    $region6: #{_pipeline_core.5} parent=1 // pred_check
      _
    $region7: #{_pipeline_core.5} parent=1 // pred_check_branch
      %30 = sbr.rel (0) target = $region9
    $region8: #{_pipeline_core.5} parent=1 // pred_region
      _
    $region9: #{_pipeline_core.5} parent=1 // pred_fallthru
      _
    // Predicated region
    $region10: #{_pipeline_core.5} parent=1 // pred_check
      _
    $region11: #{_pipeline_core.5} parent=1 // pred_check_branch
      %32 = sbr.rel (0) target = $region13
    $region12: #{_pipeline_core.5} parent=1 // pred_region
      %s34 = ssub.s32 18432, 18432
      %35 = vsyncadd [#allocation3], %s34
      %s36 = sshll.u32 [#allocation2], 4
      %s37 = int_to_ptr.vmem [resolvable:$true] %s36
      %42 = dma.hbm_to_vmem [thread:$0]  %s2, 18432, %s37, [#allocation3], 192, 192, 12
    $region13: #{_pipeline_core.5} parent=1 // pred_fallthru
      _
    // Predicated region
    $region14: #{_pipeline_core.5} parent=1 // pred_check
      _
    $region15: #{_pipeline_core.5} parent=1 // pred_check_branch
      %44 = sbr.rel (0) target = $region17
    $region16: #{_pipeline_core.5} parent=1 // pred_region
      %s46 = ssub.s32 3072, 3072
      %47 = vsyncadd [#allocation6], %s46
      %s48 = sshll.u32 [#allocation5], 4
      %s49 = int_to_ptr.vmem [resolvable:$true] %s48
      %54 = dma.hbm_to_vmem [thread:$0]  %s3, 3072, %s49, [#allocation6], 192, 192, 12
    $region17: #{_pipeline_core.5} parent=1 // pred_fallthru
      _
    // Predicated region
    $region18: #{_pipeline_core.5} parent=1 // pred_check
      _
    $region19: #{_pipeline_core.5} parent=1 // pred_check_branch
      %56 = sbr.rel (0) target = $region21
    $region20: #{_pipeline_core.5} parent=1 // pred_region
      %s58 = ssub.s32 48, 48
      %59 = vsyncadd [#allocation6], %s58
      %s61 = sshll.u32 [#allocation7], 4
      %s62 = int_to_ptr.vmem [resolvable:$true] %s61
      %64 = dma.hbm_to_vmem [thread:$0]  %s4, 48, %s62, [#allocation6]
    $region21: #{_pipeline_core.5} parent=1 // pred_fallthru
      _
    // Predicated region
    $region22: #{_pipeline_core.5} parent=1 // pred_check
      _
    $region23: #{_pipeline_core.5} parent=1 // pred_check_branch
      %66 = sbr.rel (0) target = $region25
    $region24: #{_pipeline_core.5} parent=1 // pred_region
      %s68 = ssub.s32 12288, 12288
      %69 = vsyncadd [#allocation9], %s68
      %s70 = sshll.u32 [#allocation8], 4
      %s71 = int_to_ptr.vmem [resolvable:$true] %s70
      %76 = dma.hbm_to_vmem [thread:$0]  %s5, 12288, %s71, [#allocation9], 128, 128, 8
    $region25: #{_pipeline_core.5} parent=1 // pred_fallthru
      _
    // Predicated region
    $region26: #{_pipeline_core.5} parent=1 // pred_check
      _
    $region27: #{_pipeline_core.5} parent=1 // pred_check_branch
      %78 = sbr.rel (0) target = $region29
    $region28: #{_pipeline_core.5} parent=1 // pred_region
      %s80 = ssub.s32 2048, 2048
      %81 = vsyncadd [#allocation9], %s80
      %s82 = sshll.u32 [#allocation10], 4
      %s83 = int_to_ptr.vmem [resolvable:$true] %s82
      %88 = dma.hbm_to_vmem [thread:$0]  %s6, 2048, %s83, [#allocation9], 128, 128, 8
    $region29: #{_pipeline_core.5} parent=1 // pred_fallthru
      _
    // Predicated region
    $region30: #{_pipeline_core.5} parent=1 // pred_check
      _
    $region31: #{_pipeline_core.5} parent=1 // pred_check_branch
      %90 = sbr.rel (0) target = $region33
    $region32: #{_pipeline_core.5} parent=1 // pred_region
      %s92 = ssub.s32 6144, 6144
      %93 = vsyncadd [#allocation12], %s92
      %s94 = sshll.u32 [#allocation11], 4
      %s95 = int_to_ptr.vmem [resolvable:$true] %s94
      %100 = dma.hbm_to_vmem [thread:$0]  %s7, 6144, %s95, [#allocation12], 128, 128, 8
    $region33: #{_pipeline_core.5} parent=1 // pred_fallthru
      _
    // Predicated region
    $region34: #{_pipeline_core.5} parent=1 // pred_check
      _
    $region35: #{_pipeline_core.5} parent=1 // pred_check_branch
      %102 = sbr.rel (0) target = $region37
    $region36: #{_pipeline_core.5} parent=1 // pred_region
      %s104 = ssub.s32 32, 32
      %105 = vsyncadd [#allocation12], %s104
      %s107 = sshll.u32 [#allocation13], 4
      %s108 = int_to_ptr.vmem [resolvable:$true] %s107
      %110 = dma.hbm_to_vmem [thread:$0]  %s8, 32, %s108, [#allocation12]
    $region37: #{_pipeline_core.5} parent=1 // pred_fallthru
      _
    // Predicated region
    $region38: #{_pipeline_core.5} parent=1 // pred_check
      _
    $region39: #{_pipeline_core.5} parent=1 // pred_check_branch
      %112 = sbr.rel (0) target = $region41
    $region40: #{_pipeline_core.5} parent=1 // pred_region
      %s114 = ssub.s32 1024, 1024
      %115 = vsyncadd [#allocation15], %s114
      %s116 = sshll.u32 [#allocation14], 4
      %s117 = int_to_ptr.vmem [resolvable:$true] %s116
      %122 = dma.hbm_to_vmem [thread:$0]  %s9, 1024, %s117, [#allocation15], 64, 64, 4
    $region41: #{_pipeline_core.5} parent=1 // pred_fallthru
      _
    // Predicated region
    $region42: #{_pipeline_core.5} parent=1 // pred_check
      _
    $region43: #{_pipeline_core.5} parent=1 // pred_check_branch
      %124 = sbr.rel (0) target = $region45
    $region44: #{_pipeline_core.5} parent=1 // pred_region
      %s126 = ssub.s32 1024, 1024
      %127 = vsyncadd [#allocation15], %s126
      %s128 = sshll.u32 [#allocation16], 4
      %s129 = int_to_ptr.vmem [resolvable:$true] %s128
      %134 = dma.hbm_to_vmem [thread:$0]  %s10, 1024, %s129, [#allocation15], 64, 64, 4
    $region45: #{_pipeline_core.5} parent=1 // pred_fallthru
      _
    // Predicated region
    $region46: #{_pipeline_core.5} parent=1 // pred_check
      _
    $region47: #{_pipeline_core.5} parent=1 // pred_check_branch
      %136 = sbr.rel (0) target = $region49
    $region48: #{_pipeline_core.5} parent=1 // pred_region
      %137 = dma.done [#allocation3], 18432
    $region49: #{_pipeline_core.5} parent=1 // pred_fallthru
      _
    // Predicated region
    $region50: #{_pipeline_core.5} parent=1 // pred_check
      _
    $region51: #{_pipeline_core.5} parent=1 // pred_check_branch
      %139 = sbr.rel (0) target = $region53
    $region52: #{_pipeline_core.5} parent=1 // pred_region
      %140 = dma.done [#allocation6], 3072
    $region53: #{_pipeline_core.5} parent=1 // pred_fallthru
      _
    // Predicated region
    $region54: #{_pipeline_core.5} parent=1 // pred_check
      _
    $region55: #{_pipeline_core.5} parent=1 // pred_check_branch
      %142 = sbr.rel (0) target = $region57
    $region56: #{_pipeline_core.5} parent=1 // pred_region
      %143 = dma.done [#allocation6], 48
    $region57: #{_pipeline_core.5} parent=1 // pred_fallthru
      _
    // Predicated region
    $region58: #{_pipeline_core.5} parent=1 // pred_check
      _
    $region59: #{_pipeline_core.5} parent=1 // pred_check_branch
      %145 = sbr.rel (0) target = $region61
    $region60: #{_pipeline_core.5} parent=1 // pred_region
      %146 = dma.done [#allocation9], 12288
    $region61: #{_pipeline_core.5} parent=1 // pred_fallthru
      _
    // Predicated region
    $region62: #{_pipeline_core.5} parent=1 // pred_check
      _
    $region63: #{_pipeline_core.5} parent=1 // pred_check_branch
      %148 = sbr.rel (0) target = $region65
    $region64: #{_pipeline_core.5} parent=1 // pred_region
      %149 = dma.done [#allocation9], 2048
    $region65: #{_pipeline_core.5} parent=1 // pred_fallthru
      _
    // Predicated region
    $region66: #{_pipeline_core.5} parent=1 // pred_check
      _
    $region67: #{_pipeline_core.5} parent=1 // pred_check_branch
      %151 = sbr.rel (0) target = $region69
    $region68: #{_pipeline_core.5} parent=1 // pred_region
      %152 = dma.done [#allocation12], 6144
    $region69: #{_pipeline_core.5} parent=1 // pred_fallthru
      _
    // Predicated region
    $region70: #{_pipeline_core.5} parent=1 // pred_check
      _
    $region71: #{_pipeline_core.5} parent=1 // pred_check_branch
      %154 = sbr.rel (0) target = $region73
    $region72: #{_pipeline_core.5} parent=1 // pred_region
      %155 = dma.done [#allocation12], 32
    $region73: #{_pipeline_core.5} parent=1 // pred_fallthru
      _
    // Predicated region
    $region74: #{_pipeline_core.5} parent=1 // pred_check
      _
    $region75: #{_pipeline_core.5} parent=1 // pred_check_branch
      %157 = sbr.rel (0) target = $region77
    $region76: #{_pipeline_core.5} parent=1 // pred_region
      %158 = dma.done [#allocation15], 1024
    $region77: #{_pipeline_core.5} parent=1 // pred_fallthru
      _
    // Predicated region
    $region78: #{_pipeline_core.5} parent=1 // pred_check
      _
    $region79: #{_pipeline_core.5} parent=1 // pred_check_branch
      %160 = sbr.rel (0) target = $region81
    $region80: #{_pipeline_core.5} parent=1 // pred_region
      %161 = dma.done [#allocation15], 1024
    $region81: #{_pipeline_core.5} parent=1 // pred_fallthru
      _
    %v163 = vld [vmem:[%s0] sm:$0xff]
    %v164 = vld [vmem:[%s0 + $0x8] sm:$0xff]
    %v165 = vld [vmem:[%s0 + $0x10] sm:$0xff]
    %v166 = vld [vmem:[%s0 + $0x18] sm:$0xff]
    %v167 = vld [vmem:[%s0 + $0x20] sm:$0xff]
    %v168 = vld [vmem:[%s0 + $0x28] sm:$0xff]
    %v169 = vld [vmem:[%s0 + $0x30] sm:$0xff]
    %v170 = vld [vmem:[%s0 + $0x38] sm:$0xff]
    %v171 = vld [vmem:[%s0 + $0x40] sm:$0xff]
    %v172 = vld [vmem:[%s0 + $0x48] sm:$0xff]
    %v173 = vld [vmem:[%s0 + $0x50] sm:$0xff]
    %v174 = vld [vmem:[%s0 + $0x58] sm:$0xff]
    %v175 = vpack.c.bf16 %v169, %v163
    %v176 = vpack.c.bf16 %v170, %v164
    %v177 = vpack.c.bf16 %v171, %v165
    %v178 = vpack.c.bf16 %v172, %v166
    %v179 = vpack.c.bf16 %v173, %v167
    %v180 = vpack.c.bf16 %v174, %v168
    %v181 = vld [vmem:[%s1] sm:$0xff]
    %v182 = vld [vmem:[%s1 + $0x8] sm:$0xff]
    %v183 = vpack.c.bf16 %v182, %v181
    %v184 = vld [vmem:[#allocation2] sm:$0xff]
    %v185 = vld [vmem:[#allocation2 + $0x8] sm:$0xf]
    %v186 = vld [vmem:[#allocation2 + $0xc] sm:$0xff]
    %v187 = vld [vmem:[#allocation2 + $0x14] sm:$0xf]
    %v188 = vld [vmem:[#allocation2 + $0x18] sm:$0xff]
    %v189 = vld [vmem:[#allocation2 + $0x20] sm:$0xf]
    %v190 = vld [vmem:[#allocation2 + $0x24] sm:$0xff]
    %v191 = vld [vmem:[#allocation2 + $0x2c] sm:$0xf]
    %v192 = vld [vmem:[#allocation2 + $0x30] sm:$0xff]
    %v193 = vld [vmem:[#allocation2 + $0x38] sm:$0xf]
    %v194 = vld [vmem:[#allocation2 + $0x3c] sm:$0xff]
    %v195 = vld [vmem:[#allocation2 + $0x44] sm:$0xf]
    %v196 = vld [vmem:[#allocation2 + $0x48] sm:$0xff]
    %v197 = vld [vmem:[#allocation2 + $0x50] sm:$0xf]
    %v198 = vld [vmem:[#allocation2 + $0x54] sm:$0xff]
    %v199 = vld [vmem:[#allocation2 + $0x5c] sm:$0xf]
    %v200 = vld [vmem:[#allocation2 + $0x60] sm:$0xff]
    %v201 = vld [vmem:[#allocation2 + $0x68] sm:$0xf]
    %v202 = vld [vmem:[#allocation2 + $0x6c] sm:$0xff]
    %v203 = vld [vmem:[#allocation2 + $0x74] sm:$0xf]
    %v204 = vld [vmem:[#allocation2 + $0x78] sm:$0xff]
    %v205 = vld [vmem:[#allocation2 + $0x80] sm:$0xf]
    %v206 = vld [vmem:[#allocation2 + $0x84] sm:$0xff]
    %v207 = vld [vmem:[#allocation2 + $0x8c] sm:$0xf]
    %v208 = vld [vmem:[#allocation2 + $0x90] sm:$0xff]
    %v209 = vld [vmem:[#allocation2 + $0x98] sm:$0xf]
    %v210 = vld [vmem:[#allocation2 + $0x9c] sm:$0xff]
    %v211 = vld [vmem:[#allocation2 + $0xa4] sm:$0xf]
    %v212 = vld [vmem:[#allocation2 + $0xa8] sm:$0xff]
    %v213 = vld [vmem:[#allocation2 + $0xb0] sm:$0xf]
    %v214 = vld [vmem:[#allocation2 + $0xb4] sm:$0xff]
    %v215 = vld [vmem:[#allocation2 + $0xbc] sm:$0xf]
    %v216 = vld [vmem:[#allocation2 + $0xc0] sm:$0xff]
    %v217 = vld [vmem:[#allocation2 + $0xc8] sm:$0xf]
    %v218 = vld [vmem:[#allocation2 + $0xcc] sm:$0xff]
    %v219 = vld [vmem:[#allocation2 + $0xd4] sm:$0xf]
    %v220 = vld [vmem:[#allocation2 + $0xd8] sm:$0xff]
    %v221 = vld [vmem:[#allocation2 + $0xe0] sm:$0xf]
    %v222 = vld [vmem:[#allocation2 + $0xe4] sm:$0xff]
    %v223 = vld [vmem:[#allocation2 + $0xec] sm:$0xf]
    %v224 = vld [vmem:[#allocation2 + $0xf0] sm:$0xff]
    %v225 = vld [vmem:[#allocation2 + $0xf8] sm:$0xf]
    %v226 = vld [vmem:[#allocation2 + $0xfc] sm:$0xff]
    %v227 = vld [vmem:[#allocation2 + $0x104] sm:$0xf]
    %v228 = vld [vmem:[#allocation2 + $0x108] sm:$0xff]
    %v229 = vld [vmem:[#allocation2 + $0x110] sm:$0xf]
    %v230 = vld [vmem:[#allocation2 + $0x114] sm:$0xff]
    %v231 = vld [vmem:[#allocation2 + $0x11c] sm:$0xf]
    %v232 = vld [vmem:[#allocation2 + $0x120] sm:$0xff]
    %v233 = vld [vmem:[#allocation2 + $0x128] sm:$0xf]
    %v234 = vld [vmem:[#allocation2 + $0x12c] sm:$0xff]
    %v235 = vld [vmem:[#allocation2 + $0x134] sm:$0xf]
    %v236 = vld [vmem:[#allocation2 + $0x138] sm:$0xff]
    %v237 = vld [vmem:[#allocation2 + $0x140] sm:$0xf]
    %v238 = vld [vmem:[#allocation2 + $0x144] sm:$0xff]
    %v239 = vld [vmem:[#allocation2 + $0x14c] sm:$0xf]
    %v240 = vld [vmem:[#allocation2 + $0x150] sm:$0xff]
    %v241 = vld [vmem:[#allocation2 + $0x158] sm:$0xf]
    %v242 = vld [vmem:[#allocation2 + $0x15c] sm:$0xff]
    %v243 = vld [vmem:[#allocation2 + $0x164] sm:$0xf]
    %v244 = vld [vmem:[#allocation2 + $0x168] sm:$0xff]
    %v245 = vld [vmem:[#allocation2 + $0x170] sm:$0xf]
    %v246 = vld [vmem:[#allocation2 + $0x174] sm:$0xff]
    %v247 = vld [vmem:[#allocation2 + $0x17c] sm:$0xf]
    %v248 = vld [vmem:[#allocation2 + $0x180] sm:$0xff]
    %v249 = vld [vmem:[#allocation2 + $0x188] sm:$0xf]
    %v250 = vld [vmem:[#allocation2 + $0x18c] sm:$0xff]
    %v251 = vld [vmem:[#allocation2 + $0x194] sm:$0xf]
    %v252 = vld [vmem:[#allocation2 + $0x198] sm:$0xff]
    %v253 = vld [vmem:[#allocation2 + $0x1a0] sm:$0xf]
    %v254 = vld [vmem:[#allocation2 + $0x1a4] sm:$0xff]
    %v255 = vld [vmem:[#allocation2 + $0x1ac] sm:$0xf]
    %v256 = vld [vmem:[#allocation2 + $0x1b0] sm:$0xff]
    %v257 = vld [vmem:[#allocation2 + $0x1b8] sm:$0xf]
    %v258 = vld [vmem:[#allocation2 + $0x1bc] sm:$0xff]
    %v259 = vld [vmem:[#allocation2 + $0x1c4] sm:$0xf]
    %v260 = vld [vmem:[#allocation2 + $0x1c8] sm:$0xff]
    %v261 = vld [vmem:[#allocation2 + $0x1d0] sm:$0xf]
    %v262 = vld [vmem:[#allocation2 + $0x1d4] sm:$0xff]
    %v263 = vld [vmem:[#allocation2 + $0x1dc] sm:$0xf]
    %v264 = vld [vmem:[#allocation2 + $0x1e0] sm:$0xff]
    %v265 = vld [vmem:[#allocation2 + $0x1e8] sm:$0xf]
    %v266 = vld [vmem:[#allocation2 + $0x1ec] sm:$0xff]
    %v267 = vld [vmem:[#allocation2 + $0x1f4] sm:$0xf]
    %v268 = vld [vmem:[#allocation2 + $0x1f8] sm:$0xff]
    %v269 = vld [vmem:[#allocation2 + $0x200] sm:$0xf]
    %v270 = vld [vmem:[#allocation2 + $0x204] sm:$0xff]
    %v271 = vld [vmem:[#allocation2 + $0x20c] sm:$0xf]
    %v272 = vld [vmem:[#allocation2 + $0x210] sm:$0xff]
    %v273 = vld [vmem:[#allocation2 + $0x218] sm:$0xf]
    %v274 = vld [vmem:[#allocation2 + $0x21c] sm:$0xff]
    %v275 = vld [vmem:[#allocation2 + $0x224] sm:$0xf]
    %v276 = vld [vmem:[#allocation2 + $0x228] sm:$0xff]
    %v277 = vld [vmem:[#allocation2 + $0x230] sm:$0xf]
    %v278 = vld [vmem:[#allocation2 + $0x234] sm:$0xff]
    %v279 = vld [vmem:[#allocation2 + $0x23c] sm:$0xf]
    %v280 = vld [vmem:[#allocation2 + $0x240] sm:$0xff]
    %v281 = vld [vmem:[#allocation2 + $0x248] sm:$0xf]
    %v282 = vld [vmem:[#allocation2 + $0x24c] sm:$0xff]
    %v283 = vld [vmem:[#allocation2 + $0x254] sm:$0xf]
    %v284 = vld [vmem:[#allocation2 + $0x258] sm:$0xff]
    %v285 = vld [vmem:[#allocation2 + $0x260] sm:$0xf]
    %v286 = vld [vmem:[#allocation2 + $0x264] sm:$0xff]
    %v287 = vld [vmem:[#allocation2 + $0x26c] sm:$0xf]
    %v288 = vld [vmem:[#allocation2 + $0x270] sm:$0xff]
    %v289 = vld [vmem:[#allocation2 + $0x278] sm:$0xf]
    %v290 = vld [vmem:[#allocation2 + $0x27c] sm:$0xff]
    %v291 = vld [vmem:[#allocation2 + $0x284] sm:$0xf]
    %v292 = vld [vmem:[#allocation2 + $0x288] sm:$0xff]
    %v293 = vld [vmem:[#allocation2 + $0x290] sm:$0xf]
    %v294 = vld [vmem:[#allocation2 + $0x294] sm:$0xff]
    %v295 = vld [vmem:[#allocation2 + $0x29c] sm:$0xf]
    %v296 = vld [vmem:[#allocation2 + $0x2a0] sm:$0xff]
    %v297 = vld [vmem:[#allocation2 + $0x2a8] sm:$0xf]
    %v298 = vld [vmem:[#allocation2 + $0x2ac] sm:$0xff]
    %v299 = vld [vmem:[#allocation2 + $0x2b4] sm:$0xf]
    %v300 = vld [vmem:[#allocation2 + $0x2b8] sm:$0xff]
    %v301 = vld [vmem:[#allocation2 + $0x2c0] sm:$0xf]
    %v302 = vld [vmem:[#allocation2 + $0x2c4] sm:$0xff]
    %v303 = vld [vmem:[#allocation2 + $0x2cc] sm:$0xf]
    %v304 = vld [vmem:[#allocation2 + $0x2d0] sm:$0xff]
    %v305 = vld [vmem:[#allocation2 + $0x2d8] sm:$0xf]
    %v306 = vld [vmem:[#allocation2 + $0x2dc] sm:$0xff]
    %v307 = vld [vmem:[#allocation2 + $0x2e4] sm:$0xf]
    %v308 = vld [vmem:[#allocation2 + $0x2e8] sm:$0xff]
    %v309 = vld [vmem:[#allocation2 + $0x2f0] sm:$0xf]
    %v310 = vld [vmem:[#allocation2 + $0x2f4] sm:$0xff]
    %v311 = vld [vmem:[#allocation2 + $0x2fc] sm:$0xf]
    %v312 = vld [vmem:[#allocation2 + $0x300] sm:$0xff]
    %v313 = vld [vmem:[#allocation2 + $0x308] sm:$0xf]
    %v314 = vld [vmem:[#allocation2 + $0x30c] sm:$0xff]
    %v315 = vld [vmem:[#allocation2 + $0x314] sm:$0xf]
    %v316 = vld [vmem:[#allocation2 + $0x318] sm:$0xff]
    %v317 = vld [vmem:[#allocation2 + $0x320] sm:$0xf]
    %v318 = vld [vmem:[#allocation2 + $0x324] sm:$0xff]
    %v319 = vld [vmem:[#allocation2 + $0x32c] sm:$0xf]
    %v320 = vld [vmem:[#allocation2 + $0x330] sm:$0xff]
    %v321 = vld [vmem:[#allocation2 + $0x338] sm:$0xf]
    %v322 = vld [vmem:[#allocation2 + $0x33c] sm:$0xff]
    %v323 = vld [vmem:[#allocation2 + $0x344] sm:$0xf]
    %v324 = vld [vmem:[#allocation2 + $0x348] sm:$0xff]
    %v325 = vld [vmem:[#allocation2 + $0x350] sm:$0xf]
    %v326 = vld [vmem:[#allocation2 + $0x354] sm:$0xff]
    %v327 = vld [vmem:[#allocation2 + $0x35c] sm:$0xf]
    %v328 = vld [vmem:[#allocation2 + $0x360] sm:$0xff]
    %v329 = vld [vmem:[#allocation2 + $0x368] sm:$0xf]
    %v330 = vld [vmem:[#allocation2 + $0x36c] sm:$0xff]
    %v331 = vld [vmem:[#allocation2 + $0x374] sm:$0xf]
    %v332 = vld [vmem:[#allocation2 + $0x378] sm:$0xff]
    %v333 = vld [vmem:[#allocation2 + $0x380] sm:$0xf]
    %v334 = vld [vmem:[#allocation2 + $0x384] sm:$0xff]
    %v335 = vld [vmem:[#allocation2 + $0x38c] sm:$0xf]
    %v336 = vld [vmem:[#allocation2 + $0x390] sm:$0xff]
    %v337 = vld [vmem:[#allocation2 + $0x398] sm:$0xf]
    %v338 = vld [vmem:[#allocation2 + $0x39c] sm:$0xff]
    %v339 = vld [vmem:[#allocation2 + $0x3a4] sm:$0xf]
    %v340 = vld [vmem:[#allocation2 + $0x3a8] sm:$0xff]
    %v341 = vld [vmem:[#allocation2 + $0x3b0] sm:$0xf]
    %v342 = vld [vmem:[#allocation2 + $0x3b4] sm:$0xff]
    %v343 = vld [vmem:[#allocation2 + $0x3bc] sm:$0xf]
    %v344 = vld [vmem:[#allocation2 + $0x3c0] sm:$0xff]
    %v345 = vld [vmem:[#allocation2 + $0x3c8] sm:$0xf]
    %v346 = vld [vmem:[#allocation2 + $0x3cc] sm:$0xff]
    %v347 = vld [vmem:[#allocation2 + $0x3d4] sm:$0xf]
    %v348 = vld [vmem:[#allocation2 + $0x3d8] sm:$0xff]
    %v349 = vld [vmem:[#allocation2 + $0x3e0] sm:$0xf]
    %v350 = vld [vmem:[#allocation2 + $0x3e4] sm:$0xff]
    %v351 = vld [vmem:[#allocation2 + $0x3ec] sm:$0xf]
    %v352 = vld [vmem:[#allocation2 + $0x3f0] sm:$0xff]
    %v353 = vld [vmem:[#allocation2 + $0x3f8] sm:$0xf]
    %v354 = vld [vmem:[#allocation2 + $0x3fc] sm:$0xff]
    %v355 = vld [vmem:[#allocation2 + $0x404] sm:$0xf]
    %v356 = vld [vmem:[#allocation2 + $0x408] sm:$0xff]
    %v357 = vld [vmem:[#allocation2 + $0x410] sm:$0xf]
    %v358 = vld [vmem:[#allocation2 + $0x414] sm:$0xff]
    %v359 = vld [vmem:[#allocation2 + $0x41c] sm:$0xf]
    %v360 = vld [vmem:[#allocation2 + $0x420] sm:$0xff]
    %v361 = vld [vmem:[#allocation2 + $0x428] sm:$0xf]
    %v362 = vld [vmem:[#allocation2 + $0x42c] sm:$0xff]
    %v363 = vld [vmem:[#allocation2 + $0x434] sm:$0xf]
    %v364 = vld [vmem:[#allocation2 + $0x438] sm:$0xff]
    %v365 = vld [vmem:[#allocation2 + $0x440] sm:$0xf]
    %v366 = vld [vmem:[#allocation2 + $0x444] sm:$0xff]
    %v367 = vld [vmem:[#allocation2 + $0x44c] sm:$0xf]
    %v368 = vld [vmem:[#allocation2 + $0x450] sm:$0xff]
    %v369 = vld [vmem:[#allocation2 + $0x458] sm:$0xf]
    %v370 = vld [vmem:[#allocation2 + $0x45c] sm:$0xff]
    %v371 = vld [vmem:[#allocation2 + $0x464] sm:$0xf]
    %v372 = vld [vmem:[#allocation2 + $0x468] sm:$0xff]
    %v373 = vld [vmem:[#allocation2 + $0x470] sm:$0xf]
    %v374 = vld [vmem:[#allocation2 + $0x474] sm:$0xff]
    %v375 = vld [vmem:[#allocation2 + $0x47c] sm:$0xf]
    %v376 = vld [vmem:[#allocation5] sm:$0xff]
    %v377 = vld [vmem:[#allocation5 + $0x8] sm:$0xf]
    %v378 = vld [vmem:[#allocation5 + $0xc] sm:$0xff]
    %v379 = vld [vmem:[#allocation5 + $0x14] sm:$0xf]
    %v380 = vld [vmem:[#allocation5 + $0x18] sm:$0xff]
    %v381 = vld [vmem:[#allocation5 + $0x20] sm:$0xf]
    %v382 = vld [vmem:[#allocation5 + $0x24] sm:$0xff]
    %v383 = vld [vmem:[#allocation5 + $0x2c] sm:$0xf]
    %v384 = vld [vmem:[#allocation5 + $0x30] sm:$0xff]
    %v385 = vld [vmem:[#allocation5 + $0x38] sm:$0xf]
    %v386 = vld [vmem:[#allocation5 + $0x3c] sm:$0xff]
    %v387 = vld [vmem:[#allocation5 + $0x44] sm:$0xf]
    %v388 = vld [vmem:[#allocation5 + $0x48] sm:$0xff]
    %v389 = vld [vmem:[#allocation5 + $0x50] sm:$0xf]
    %v390 = vld [vmem:[#allocation5 + $0x54] sm:$0xff]
    %v391 = vld [vmem:[#allocation5 + $0x5c] sm:$0xf]
    %v392 = vld [vmem:[#allocation5 + $0x60] sm:$0xff]
    %v393 = vld [vmem:[#allocation5 + $0x68] sm:$0xf]
    %v394 = vld [vmem:[#allocation5 + $0x6c] sm:$0xff]
    %v395 = vld [vmem:[#allocation5 + $0x74] sm:$0xf]
    %v396 = vld [vmem:[#allocation5 + $0x78] sm:$0xff]
    %v397 = vld [vmem:[#allocation5 + $0x80] sm:$0xf]
    %v398 = vld [vmem:[#allocation5 + $0x84] sm:$0xff]
    %v399 = vld [vmem:[#allocation5 + $0x8c] sm:$0xf]
    %v400 = vld [vmem:[#allocation5 + $0x90] sm:$0xff]
    %v401 = vld [vmem:[#allocation5 + $0x98] sm:$0xf]
    %v402 = vld [vmem:[#allocation5 + $0x9c] sm:$0xff]
    %v403 = vld [vmem:[#allocation5 + $0xa4] sm:$0xf]
    %v404 = vld [vmem:[#allocation5 + $0xa8] sm:$0xff]
    %v405 = vld [vmem:[#allocation5 + $0xb0] sm:$0xf]
    %v406 = vld [vmem:[#allocation5 + $0xb4] sm:$0xff]
    %v407 = vld [vmem:[#allocation5 + $0xbc] sm:$0xf]
    %v440 = vunpack.c.l.b16 %v376
    %v441 = vunpack.c.h.b16 %v376
    %v442 = vunpack.c.l.b16 %v377
    %v443 = vunpack.c.l.b16 %v378
    %v444 = vunpack.c.h.b16 %v378
    %v445 = vunpack.c.l.b16 %v379
    %v446 = vunpack.c.l.b16 %v380
    %v447 = vunpack.c.h.b16 %v380
    %v448 = vunpack.c.l.b16 %v381
    %v449 = vunpack.c.l.b16 %v382
    %v450 = vunpack.c.h.b16 %v382
    %v451 = vunpack.c.l.b16 %v383
    %v452 = vunpack.c.l.b16 %v384
    %v453 = vunpack.c.h.b16 %v384
    %v454 = vunpack.c.l.b16 %v385
    %v455 = vunpack.c.l.b16 %v386
    %v456 = vunpack.c.h.b16 %v386
    %v457 = vunpack.c.l.b16 %v387
    %v458 = vunpack.c.l.b16 %v388
    %v459 = vunpack.c.h.b16 %v388
    %v460 = vunpack.c.l.b16 %v389
    %v461 = vunpack.c.l.b16 %v390
    %v462 = vunpack.c.h.b16 %v390
    %v463 = vunpack.c.l.b16 %v391
    %v464 = vunpack.c.l.b16 %v392
    %v465 = vunpack.c.h.b16 %v392
    %v466 = vunpack.c.l.b16 %v393
    %v467 = vunpack.c.l.b16 %v394
    %v468 = vunpack.c.h.b16 %v394
    %v469 = vunpack.c.l.b16 %v395
    %v470 = vunpack.c.l.b16 %v396
    %v471 = vunpack.c.h.b16 %v396
    %v472 = vunpack.c.l.b16 %v397
    %v473 = vunpack.c.l.b16 %v398
    %v474 = vunpack.c.h.b16 %v398
    %v475 = vunpack.c.l.b16 %v399
    %v476 = vunpack.c.l.b16 %v400
    %v477 = vunpack.c.h.b16 %v400
    %v478 = vunpack.c.l.b16 %v401
    %v479 = vunpack.c.l.b16 %v402
    %v480 = vunpack.c.h.b16 %v402
    %v481 = vunpack.c.l.b16 %v403
    %v482 = vunpack.c.l.b16 %v404
    %v483 = vunpack.c.h.b16 %v404
    %v484 = vunpack.c.l.b16 %v405
    %v485 = vunpack.c.l.b16 %v406
    %v486 = vunpack.c.h.b16 %v406
    %v487 = vunpack.c.l.b16 %v407
    %v488 = vpack.c.b16 %v443, %v440
    %v489 = vpack.c.b16 %v444, %v441
    %v490 = vpack.c.b16 %v445, %v442
    %v491 = vpack.c.b16 %v449, %v446
    %v492 = vpack.c.b16 %v450, %v447
    %v493 = vpack.c.b16 %v451, %v448
    %v494 = vpack.c.b16 %v455, %v452
    %v495 = vpack.c.b16 %v456, %v453
    %v496 = vpack.c.b16 %v457, %v454
    %v497 = vpack.c.b16 %v461, %v458
    %v498 = vpack.c.b16 %v462, %v459
    %v499 = vpack.c.b16 %v463, %v460
    %v500 = vpack.c.b16 %v467, %v464
    %v501 = vpack.c.b16 %v468, %v465
    %v502 = vpack.c.b16 %v469, %v466
    %v503 = vpack.c.b16 %v473, %v470
    %v504 = vpack.c.b16 %v474, %v471
    %v505 = vpack.c.b16 %v475, %v472
    %v506 = vpack.c.b16 %v479, %v476
    %v507 = vpack.c.b16 %v480, %v477
    %v508 = vpack.c.b16 %v481, %v478
    %v509 = vpack.c.b16 %v485, %v482
    %v510 = vpack.c.b16 %v486, %v483
    %v511 = vpack.c.b16 %v487, %v484
    %536 = vmatprep.subr.bf16.mxu0 %v510
    %537 = vmatpush1.bf16.msra.mxu0 %v509
    %538 = vmatprep.subr.bf16.mxu0 %v507
    %539 = vmatpush1.bf16.msra.mxu0 %v506
    %540 = vmatprep.subr.bf16.mxu0 %v504
    %541 = vmatpush1.bf16.msra.mxu0 %v503
    %542 = vmatprep.subr.bf16.mxu0 %v501
    %543 = vmatpush1.bf16.msra.mxu0 %v500
    %544 = vmatprep.subr.bf16.mxu0 %v498
    %545 = vmatpush1.bf16.msra.mxu0 %v497
    %546 = vmatprep.subr.bf16.mxu0 %v495
    %547 = vmatpush1.bf16.msra.mxu0 %v494
    %548 = vmatprep.subr.bf16.mxu0 %v492
    %549 = vmatpush1.bf16.msra.mxu0 %v491
    %550 = vmatprep.subr.bf16.mxu0 %v489
    %551 = vmatpush1.bf16.msra.mxu0 %v488
    %552 = vmatprep.subr.bf16.mxu0 0
    %553 = vmatpush2.bf16.msra.mxu0 0
    %554 = vmatprep.subr.bf16.mxu0 0
    %555 = vmatpush2.bf16.msra.mxu0 0
    %556 = vmatprep.subr.bf16.mxu0 0
    %557 = vmatpush2.bf16.msra.mxu0 0
    %558 = vmatprep.subr.bf16.mxu0 0
    %559 = vmatpush2.bf16.msra.mxu0 0
    %560 = vmatprep.subr.bf16.mxu0 0
    %561 = vmatpush2.bf16.msra.mxu0 0
    %562 = vmatprep.subr.bf16.mxu0 0
    %563 = vmatpush2.bf16.msra.mxu0 0
    %564 = vmatprep.subr.bf16.mxu0 0
    %565 = vmatpush2.bf16.msra.mxu0 0
    %566 = vmatprep.subr.bf16.mxu0 0
    %567 = vmatpush2.bf16.msra.mxu0 0
    %568 = vmatprep.mubr.bf16.mxu0 0
    %569 = vmatmul.mubr.bf16.gmra.mxu0 %v183
    %v570 = vpop.f32.mrf.mxu0
    %v571 = vadd.f32 0.0, %v570
    %v572 = vpop.f32.mrf.mxu0
    %v573 = vadd.f32 0.0, %v572
    %v574 = vpop.f32.mrf.mxu0
    %v575 = vadd.f32 0.0, %v574
    %v576 = vpop.f32.mrf.mxu0
    %v577 = vadd.f32 0.0, %v576
    %578 = vdwg.mxu0
    %579 = vmatprep.subr.bf16.mxu0 0
    %580 = vmatpush1.bf16.msra.mxu0 %v511
    %581 = vmatprep.subr.bf16.mxu0 0
    %582 = vmatpush1.bf16.msra.mxu0 %v508
    %583 = vmatprep.subr.bf16.mxu0 0
    %584 = vmatpush1.bf16.msra.mxu0 %v505
    %585 = vmatprep.subr.bf16.mxu0 0
    %586 = vmatpush1.bf16.msra.mxu0 %v502
    %587 = vmatprep.subr.bf16.mxu0 0
    %588 = vmatpush1.bf16.msra.mxu0 %v499
    %589 = vmatprep.subr.bf16.mxu0 0
    %590 = vmatpush1.bf16.msra.mxu0 %v496
    %591 = vmatprep.subr.bf16.mxu0 0
    %592 = vmatpush1.bf16.msra.mxu0 %v493
    %593 = vmatprep.subr.bf16.mxu0 0
    %594 = vmatpush1.bf16.msra.mxu0 %v490
    %595 = vmatprep.subr.bf16.mxu0 0
    %596 = vmatpush2.bf16.msra.mxu0 0
    %597 = vmatprep.subr.bf16.mxu0 0
    %598 = vmatpush2.bf16.msra.mxu0 0
    %599 = vmatprep.subr.bf16.mxu0 0
    %600 = vmatpush2.bf16.msra.mxu0 0
    %601 = vmatprep.subr.bf16.mxu0 0
    %602 = vmatpush2.bf16.msra.mxu0 0
    %603 = vmatprep.subr.bf16.mxu0 0
    %604 = vmatpush2.bf16.msra.mxu0 0
    %605 = vmatprep.subr.bf16.mxu0 0
    %606 = vmatpush2.bf16.msra.mxu0 0
    %607 = vmatprep.subr.bf16.mxu0 0
    %608 = vmatpush2.bf16.msra.mxu0 0
    %609 = vmatprep.subr.bf16.mxu0 0
    %610 = vmatpush2.bf16.msra.mxu0 0
    %611 = vmatprep.mubr.bf16.mxu0 0
    %612 = vmatmul.mubr.bf16.gmra.mxu0 %v183
    %v613 = vpop.f32.mrf.mxu0
    %v614 = vadd.f32 0.0, %v613
    %v615 = vpop.f32.mrf.mxu0
    %v616 = vpop.f32.mrf.mxu0
    %v617 = vadd.f32 0.0, %v616
    %v618 = vpop.f32.mrf.mxu0
    %619 = vdwg.mxu0
    %v812 = vunpack.c.l.b16 %v184
    %v813 = vunpack.c.h.b16 %v184
    %v814 = vunpack.c.l.b16 %v185
    %v815 = vunpack.c.l.b16 %v186
    %v816 = vunpack.c.h.b16 %v186
    %v817 = vunpack.c.l.b16 %v187
    %v818 = vunpack.c.l.b16 %v188
    %v819 = vunpack.c.h.b16 %v188
    %v820 = vunpack.c.l.b16 %v189
    %v821 = vunpack.c.l.b16 %v190
    %v822 = vunpack.c.h.b16 %v190
    %v823 = vunpack.c.l.b16 %v191
    %v824 = vunpack.c.l.b16 %v192
    %v825 = vunpack.c.h.b16 %v192
    %v826 = vunpack.c.l.b16 %v193
    %v827 = vunpack.c.l.b16 %v194
    %v828 = vunpack.c.h.b16 %v194
    %v829 = vunpack.c.l.b16 %v195
    %v830 = vunpack.c.l.b16 %v196
    %v831 = vunpack.c.h.b16 %v196
    %v832 = vunpack.c.l.b16 %v197
    %v833 = vunpack.c.l.b16 %v198
    %v834 = vunpack.c.h.b16 %v198
    %v835 = vunpack.c.l.b16 %v199
    %v836 = vunpack.c.l.b16 %v200
    %v837 = vunpack.c.h.b16 %v200
    %v838 = vunpack.c.l.b16 %v201
    %v839 = vunpack.c.l.b16 %v202
    %v840 = vunpack.c.h.b16 %v202
    %v841 = vunpack.c.l.b16 %v203
    %v842 = vunpack.c.l.b16 %v204
    %v843 = vunpack.c.h.b16 %v204
    %v844 = vunpack.c.l.b16 %v205
    %v845 = vunpack.c.l.b16 %v206
    %v846 = vunpack.c.h.b16 %v206
    %v847 = vunpack.c.l.b16 %v207
    %v848 = vunpack.c.l.b16 %v208
    %v849 = vunpack.c.h.b16 %v208
    %v850 = vunpack.c.l.b16 %v209
    %v851 = vunpack.c.l.b16 %v210
    %v852 = vunpack.c.h.b16 %v210
    %v853 = vunpack.c.l.b16 %v211
    %v854 = vunpack.c.l.b16 %v212
    %v855 = vunpack.c.h.b16 %v212
    %v856 = vunpack.c.l.b16 %v213
    %v857 = vunpack.c.l.b16 %v214
    %v858 = vunpack.c.h.b16 %v214
    %v859 = vunpack.c.l.b16 %v215
    %v860 = vunpack.c.l.b16 %v216
    %v861 = vunpack.c.h.b16 %v216
    %v862 = vunpack.c.l.b16 %v217
    %v863 = vunpack.c.l.b16 %v218
    %v864 = vunpack.c.h.b16 %v218
    %v865 = vunpack.c.l.b16 %v219
    %v866 = vunpack.c.l.b16 %v220
    %v867 = vunpack.c.h.b16 %v220
    %v868 = vunpack.c.l.b16 %v221
    %v869 = vunpack.c.l.b16 %v222
    %v870 = vunpack.c.h.b16 %v222
    %v871 = vunpack.c.l.b16 %v223
    %v872 = vunpack.c.l.b16 %v224
    %v873 = vunpack.c.h.b16 %v224
    %v874 = vunpack.c.l.b16 %v225
    %v875 = vunpack.c.l.b16 %v226
    %v876 = vunpack.c.h.b16 %v226
    %v877 = vunpack.c.l.b16 %v227
    %v878 = vunpack.c.l.b16 %v228
    %v879 = vunpack.c.h.b16 %v228
    %v880 = vunpack.c.l.b16 %v229
    %v881 = vunpack.c.l.b16 %v230
    %v882 = vunpack.c.h.b16 %v230
    %v883 = vunpack.c.l.b16 %v231
    %v884 = vunpack.c.l.b16 %v232
    %v885 = vunpack.c.h.b16 %v232
    %v886 = vunpack.c.l.b16 %v233
    %v887 = vunpack.c.l.b16 %v234
    %v888 = vunpack.c.h.b16 %v234
    %v889 = vunpack.c.l.b16 %v235
    %v890 = vunpack.c.l.b16 %v236
    %v891 = vunpack.c.h.b16 %v236
    %v892 = vunpack.c.l.b16 %v237
    %v893 = vunpack.c.l.b16 %v238
    %v894 = vunpack.c.h.b16 %v238
    %v895 = vunpack.c.l.b16 %v239
    %v896 = vunpack.c.l.b16 %v240
    %v897 = vunpack.c.h.b16 %v240
    %v898 = vunpack.c.l.b16 %v241
    %v899 = vunpack.c.l.b16 %v242
    %v900 = vunpack.c.h.b16 %v242
    %v901 = vunpack.c.l.b16 %v243
    %v902 = vunpack.c.l.b16 %v244
    %v903 = vunpack.c.h.b16 %v244
    %v904 = vunpack.c.l.b16 %v245
    %v905 = vunpack.c.l.b16 %v246
    %v906 = vunpack.c.h.b16 %v246
    %v907 = vunpack.c.l.b16 %v247
    %v908 = vunpack.c.l.b16 %v248
    %v909 = vunpack.c.h.b16 %v248
    %v910 = vunpack.c.l.b16 %v249
    %v911 = vunpack.c.l.b16 %v250
    %v912 = vunpack.c.h.b16 %v250
    %v913 = vunpack.c.l.b16 %v251
    %v914 = vunpack.c.l.b16 %v252
    %v915 = vunpack.c.h.b16 %v252
    %v916 = vunpack.c.l.b16 %v253
    %v917 = vunpack.c.l.b16 %v254
    %v918 = vunpack.c.h.b16 %v254
    %v919 = vunpack.c.l.b16 %v255
    %v920 = vunpack.c.l.b16 %v256
    %v921 = vunpack.c.h.b16 %v256
    %v922 = vunpack.c.l.b16 %v257
    %v923 = vunpack.c.l.b16 %v258
    %v924 = vunpack.c.h.b16 %v258
    %v925 = vunpack.c.l.b16 %v259
    %v926 = vunpack.c.l.b16 %v260
    %v927 = vunpack.c.h.b16 %v260
    %v928 = vunpack.c.l.b16 %v261
    %v929 = vunpack.c.l.b16 %v262
    %v930 = vunpack.c.h.b16 %v262
    %v931 = vunpack.c.l.b16 %v263
    %v932 = vunpack.c.l.b16 %v264
    %v933 = vunpack.c.h.b16 %v264
    %v934 = vunpack.c.l.b16 %v265
    %v935 = vunpack.c.l.b16 %v266
    %v936 = vunpack.c.h.b16 %v266
    %v937 = vunpack.c.l.b16 %v267
    %v938 = vunpack.c.l.b16 %v268
    %v939 = vunpack.c.h.b16 %v268
    %v940 = vunpack.c.l.b16 %v269
    %v941 = vunpack.c.l.b16 %v270
    %v942 = vunpack.c.h.b16 %v270
    %v943 = vunpack.c.l.b16 %v271
    %v944 = vunpack.c.l.b16 %v272
    %v945 = vunpack.c.h.b16 %v272
    %v946 = vunpack.c.l.b16 %v273
    %v947 = vunpack.c.l.b16 %v274
    %v948 = vunpack.c.h.b16 %v274
    %v949 = vunpack.c.l.b16 %v275
    %v950 = vunpack.c.l.b16 %v276
    %v951 = vunpack.c.h.b16 %v276
    %v952 = vunpack.c.l.b16 %v277
    %v953 = vunpack.c.l.b16 %v278
    %v954 = vunpack.c.h.b16 %v278
    %v955 = vunpack.c.l.b16 %v279
    %v956 = vunpack.c.l.b16 %v280
    %v957 = vunpack.c.h.b16 %v280
    %v958 = vunpack.c.l.b16 %v281
    %v959 = vunpack.c.l.b16 %v282
    %v960 = vunpack.c.h.b16 %v282
    %v961 = vunpack.c.l.b16 %v283
    %v962 = vunpack.c.l.b16 %v284
    %v963 = vunpack.c.h.b16 %v284
    %v964 = vunpack.c.l.b16 %v285
    %v965 = vunpack.c.l.b16 %v286
    %v966 = vunpack.c.h.b16 %v286
    %v967 = vunpack.c.l.b16 %v287
    %v968 = vunpack.c.l.b16 %v288
    %v969 = vunpack.c.h.b16 %v288
    %v970 = vunpack.c.l.b16 %v289
    %v971 = vunpack.c.l.b16 %v290
    %v972 = vunpack.c.h.b16 %v290
    %v973 = vunpack.c.l.b16 %v291
    %v974 = vunpack.c.l.b16 %v292
    %v975 = vunpack.c.h.b16 %v292
    %v976 = vunpack.c.l.b16 %v293
    %v977 = vunpack.c.l.b16 %v294
    %v978 = vunpack.c.h.b16 %v294
    %v979 = vunpack.c.l.b16 %v295
    %v980 = vunpack.c.l.b16 %v296
    %v981 = vunpack.c.h.b16 %v296
    %v982 = vunpack.c.l.b16 %v297
    %v983 = vunpack.c.l.b16 %v298
    %v984 = vunpack.c.h.b16 %v298
    %v985 = vunpack.c.l.b16 %v299
    %v986 = vunpack.c.l.b16 %v300
    %v987 = vunpack.c.h.b16 %v300
    %v988 = vunpack.c.l.b16 %v301
    %v989 = vunpack.c.l.b16 %v302
    %v990 = vunpack.c.h.b16 %v302
    %v991 = vunpack.c.l.b16 %v303
    %v992 = vunpack.c.l.b16 %v304
    %v993 = vunpack.c.h.b16 %v304
    %v994 = vunpack.c.l.b16 %v305
    %v995 = vunpack.c.l.b16 %v306
    %v996 = vunpack.c.h.b16 %v306
    %v997 = vunpack.c.l.b16 %v307
    %v998 = vunpack.c.l.b16 %v308
    %v999 = vunpack.c.h.b16 %v308
    %v1000 = vunpack.c.l.b16 %v309
    %v1001 = vunpack.c.l.b16 %v310
    %v1002 = vunpack.c.h.b16 %v310
    %v1003 = vunpack.c.l.b16 %v311
    %v1004 = vunpack.c.l.b16 %v312
    %v1005 = vunpack.c.h.b16 %v312
    %v1006 = vunpack.c.l.b16 %v313
    %v1007 = vunpack.c.l.b16 %v314
    %v1008 = vunpack.c.h.b16 %v314
    %v1009 = vunpack.c.l.b16 %v315
    %v1010 = vunpack.c.l.b16 %v316
    %v1011 = vunpack.c.h.b16 %v316
    %v1012 = vunpack.c.l.b16 %v317
    %v1013 = vunpack.c.l.b16 %v318
    %v1014 = vunpack.c.h.b16 %v318
    %v1015 = vunpack.c.l.b16 %v319
    %v1016 = vunpack.c.l.b16 %v320
    %v1017 = vunpack.c.h.b16 %v320
    %v1018 = vunpack.c.l.b16 %v321
    %v1019 = vunpack.c.l.b16 %v322
    %v1020 = vunpack.c.h.b16 %v322
    %v1021 = vunpack.c.l.b16 %v323
    %v1022 = vunpack.c.l.b16 %v324
    %v1023 = vunpack.c.h.b16 %v324
    %v1024 = vunpack.c.l.b16 %v325
    %v1025 = vunpack.c.l.b16 %v326
    %v1026 = vunpack.c.h.b16 %v326
    %v1027 = vunpack.c.l.b16 %v327
    %v1028 = vunpack.c.l.b16 %v328
    %v1029 = vunpack.c.h.b16 %v328
    %v1030 = vunpack.c.l.b16 %v329
    %v1031 = vunpack.c.l.b16 %v330
    %v1032 = vunpack.c.h.b16 %v330
    %v1033 = vunpack.c.l.b16 %v331
    %v1034 = vunpack.c.l.b16 %v332
    %v1035 = vunpack.c.h.b16 %v332
    %v1036 = vunpack.c.l.b16 %v333
    %v1037 = vunpack.c.l.b16 %v334
    %v1038 = vunpack.c.h.b16 %v334
    %v1039 = vunpack.c.l.b16 %v335
    %v1040 = vunpack.c.l.b16 %v336
    %v1041 = vunpack.c.h.b16 %v336
    %v1042 = vunpack.c.l.b16 %v337
    %v1043 = vunpack.c.l.b16 %v338
    %v1044 = vunpack.c.h.b16 %v338
    %v1045 = vunpack.c.l.b16 %v339
    %v1046 = vunpack.c.l.b16 %v340
    %v1047 = vunpack.c.h.b16 %v340
    %v1048 = vunpack.c.l.b16 %v341
    %v1049 = vunpack.c.l.b16 %v342
    %v1050 = vunpack.c.h.b16 %v342
    %v1051 = vunpack.c.l.b16 %v343
    %v1052 = vunpack.c.l.b16 %v344
    %v1053 = vunpack.c.h.b16 %v344
    %v1054 = vunpack.c.l.b16 %v345
    %v1055 = vunpack.c.l.b16 %v346
    %v1056 = vunpack.c.h.b16 %v346
    %v1057 = vunpack.c.l.b16 %v347
    %v1058 = vunpack.c.l.b16 %v348
    %v1059 = vunpack.c.h.b16 %v348
    %v1060 = vunpack.c.l.b16 %v349
    %v1061 = vunpack.c.l.b16 %v350
    %v1062 = vunpack.c.h.b16 %v350
    %v1063 = vunpack.c.l.b16 %v351
    %v1064 = vunpack.c.l.b16 %v352
    %v1065 = vunpack.c.h.b16 %v352
    %v1066 = vunpack.c.l.b16 %v353
    %v1067 = vunpack.c.l.b16 %v354
    %v1068 = vunpack.c.h.b16 %v354
    %v1069 = vunpack.c.l.b16 %v355
    %v1070 = vunpack.c.l.b16 %v356
    %v1071 = vunpack.c.h.b16 %v356
    %v1072 = vunpack.c.l.b16 %v357
    %v1073 = vunpack.c.l.b16 %v358
    %v1074 = vunpack.c.h.b16 %v358
    %v1075 = vunpack.c.l.b16 %v359
    %v1076 = vunpack.c.l.b16 %v360
    %v1077 = vunpack.c.h.b16 %v360
    %v1078 = vunpack.c.l.b16 %v361
    %v1079 = vunpack.c.l.b16 %v362
    %v1080 = vunpack.c.h.b16 %v362
    %v1081 = vunpack.c.l.b16 %v363
    %v1082 = vunpack.c.l.b16 %v364
    %v1083 = vunpack.c.h.b16 %v364
    %v1084 = vunpack.c.l.b16 %v365
    %v1085 = vunpack.c.l.b16 %v366
    %v1086 = vunpack.c.h.b16 %v366
    %v1087 = vunpack.c.l.b16 %v367
    %v1088 = vunpack.c.l.b16 %v368
    %v1089 = vunpack.c.h.b16 %v368
    %v1090 = vunpack.c.l.b16 %v369
    %v1091 = vunpack.c.l.b16 %v370
    %v1092 = vunpack.c.h.b16 %v370
    %v1093 = vunpack.c.l.b16 %v371
    %v1094 = vunpack.c.l.b16 %v372
    %v1095 = vunpack.c.h.b16 %v372
    %v1096 = vunpack.c.l.b16 %v373
    %v1097 = vunpack.c.l.b16 %v374
    %v1098 = vunpack.c.h.b16 %v374
    %v1099 = vunpack.c.l.b16 %v375
    %v1100 = vpack.c.b16 %v815, %v812
    %v1101 = vpack.c.b16 %v816, %v813
    %v1102 = vpack.c.b16 %v817, %v814
    %v1103 = vpack.c.b16 %v821, %v818
    %v1104 = vpack.c.b16 %v822, %v819
    %v1105 = vpack.c.b16 %v823, %v820
    %v1106 = vpack.c.b16 %v827, %v824
    %v1107 = vpack.c.b16 %v828, %v825
    %v1108 = vpack.c.b16 %v829, %v826
    %v1109 = vpack.c.b16 %v833, %v830
    %v1110 = vpack.c.b16 %v834, %v831
    %v1111 = vpack.c.b16 %v835, %v832
    %v1112 = vpack.c.b16 %v839, %v836
    %v1113 = vpack.c.b16 %v840, %v837
    %v1114 = vpack.c.b16 %v841, %v838
    %v1115 = vpack.c.b16 %v845, %v842
    %v1116 = vpack.c.b16 %v846, %v843
    %v1117 = vpack.c.b16 %v847, %v844
    %v1118 = vpack.c.b16 %v851, %v848
    %v1119 = vpack.c.b16 %v852, %v849
    %v1120 = vpack.c.b16 %v853, %v850
    %v1121 = vpack.c.b16 %v857, %v854
    %v1122 = vpack.c.b16 %v858, %v855
    %v1123 = vpack.c.b16 %v859, %v856
    %v1124 = vpack.c.b16 %v863, %v860
    %v1125 = vpack.c.b16 %v864, %v861
    %v1126 = vpack.c.b16 %v865, %v862
    %v1127 = vpack.c.b16 %v869, %v866
    %v1128 = vpack.c.b16 %v870, %v867
    %v1129 = vpack.c.b16 %v871, %v868
    %v1130 = vpack.c.b16 %v875, %v872
    %v1131 = vpack.c.b16 %v876, %v873
    %v1132 = vpack.c.b16 %v877, %v874
    %v1133 = vpack.c.b16 %v881, %v878
    %v1134 = vpack.c.b16 %v882, %v879
    %v1135 = vpack.c.b16 %v883, %v880
    %v1136 = vpack.c.b16 %v887, %v884
    %v1137 = vpack.c.b16 %v888, %v885
    %v1138 = vpack.c.b16 %v889, %v886
    %v1139 = vpack.c.b16 %v893, %v890
    %v1140 = vpack.c.b16 %v894, %v891
    %v1141 = vpack.c.b16 %v895, %v892
    %v1142 = vpack.c.b16 %v899, %v896
    %v1143 = vpack.c.b16 %v900, %v897
    %v1144 = vpack.c.b16 %v901, %v898
    %v1145 = vpack.c.b16 %v905, %v902
    %v1146 = vpack.c.b16 %v906, %v903
    %v1147 = vpack.c.b16 %v907, %v904
    %v1148 = vpack.c.b16 %v911, %v908
    %v1149 = vpack.c.b16 %v912, %v909
    %v1150 = vpack.c.b16 %v913, %v910
    %v1151 = vpack.c.b16 %v917, %v914
    %v1152 = vpack.c.b16 %v918, %v915
    %v1153 = vpack.c.b16 %v919, %v916
    %v1154 = vpack.c.b16 %v923, %v920
    %v1155 = vpack.c.b16 %v924, %v921
    %v1156 = vpack.c.b16 %v925, %v922
    %v1157 = vpack.c.b16 %v929, %v926
    %v1158 = vpack.c.b16 %v930, %v927
    %v1159 = vpack.c.b16 %v931, %v928
    %v1160 = vpack.c.b16 %v935, %v932
    %v1161 = vpack.c.b16 %v936, %v933
    %v1162 = vpack.c.b16 %v937, %v934
    %v1163 = vpack.c.b16 %v941, %v938
    %v1164 = vpack.c.b16 %v942, %v939
    %v1165 = vpack.c.b16 %v943, %v940
    %v1166 = vpack.c.b16 %v947, %v944
    %v1167 = vpack.c.b16 %v948, %v945
    %v1168 = vpack.c.b16 %v949, %v946
    %v1169 = vpack.c.b16 %v953, %v950
    %v1170 = vpack.c.b16 %v954, %v951
    %v1171 = vpack.c.b16 %v955, %v952
    %v1172 = vpack.c.b16 %v959, %v956
    %v1173 = vpack.c.b16 %v960, %v957
    %v1174 = vpack.c.b16 %v961, %v958
    %v1175 = vpack.c.b16 %v965, %v962
    %v1176 = vpack.c.b16 %v966, %v963
    %v1177 = vpack.c.b16 %v967, %v964
    %v1178 = vpack.c.b16 %v971, %v968
    %v1179 = vpack.c.b16 %v972, %v969
    %v1180 = vpack.c.b16 %v973, %v970
    %v1181 = vpack.c.b16 %v977, %v974
    %v1182 = vpack.c.b16 %v978, %v975
    %v1183 = vpack.c.b16 %v979, %v976
    %v1184 = vpack.c.b16 %v983, %v980
    %v1185 = vpack.c.b16 %v984, %v981
    %v1186 = vpack.c.b16 %v985, %v982
    %v1187 = vpack.c.b16 %v989, %v986
    %v1188 = vpack.c.b16 %v990, %v987
    %v1189 = vpack.c.b16 %v991, %v988
    %v1190 = vpack.c.b16 %v995, %v992
    %v1191 = vpack.c.b16 %v996, %v993
    %v1192 = vpack.c.b16 %v997, %v994
    %v1193 = vpack.c.b16 %v1001, %v998
    %v1194 = vpack.c.b16 %v1002, %v999
    %v1195 = vpack.c.b16 %v1003, %v1000
    %v1196 = vpack.c.b16 %v1007, %v1004
    %v1197 = vpack.c.b16 %v1008, %v1005
    %v1198 = vpack.c.b16 %v1009, %v1006
    %v1199 = vpack.c.b16 %v1013, %v1010
    %v1200 = vpack.c.b16 %v1014, %v1011
    %v1201 = vpack.c.b16 %v1015, %v1012
    %v1202 = vpack.c.b16 %v1019, %v1016
    %v1203 = vpack.c.b16 %v1020, %v1017
    %v1204 = vpack.c.b16 %v1021, %v1018
    %v1205 = vpack.c.b16 %v1025, %v1022
    %v1206 = vpack.c.b16 %v1026, %v1023
    %v1207 = vpack.c.b16 %v1027, %v1024
    %v1208 = vpack.c.b16 %v1031, %v1028
    %v1209 = vpack.c.b16 %v1032, %v1029
    %v1210 = vpack.c.b16 %v1033, %v1030
    %v1211 = vpack.c.b16 %v1037, %v1034
    %v1212 = vpack.c.b16 %v1038, %v1035
    %v1213 = vpack.c.b16 %v1039, %v1036
    %v1214 = vpack.c.b16 %v1043, %v1040
    %v1215 = vpack.c.b16 %v1044, %v1041
    %v1216 = vpack.c.b16 %v1045, %v1042
    %v1217 = vpack.c.b16 %v1049, %v1046
    %v1218 = vpack.c.b16 %v1050, %v1047
    %v1219 = vpack.c.b16 %v1051, %v1048
    %v1220 = vpack.c.b16 %v1055, %v1052
    %v1221 = vpack.c.b16 %v1056, %v1053
    %v1222 = vpack.c.b16 %v1057, %v1054
    %v1223 = vpack.c.b16 %v1061, %v1058
    %v1224 = vpack.c.b16 %v1062, %v1059
    %v1225 = vpack.c.b16 %v1063, %v1060
    %v1226 = vpack.c.b16 %v1067, %v1064
    %v1227 = vpack.c.b16 %v1068, %v1065
    %v1228 = vpack.c.b16 %v1069, %v1066
    %v1229 = vpack.c.b16 %v1073, %v1070
    %v1230 = vpack.c.b16 %v1074, %v1071
    %v1231 = vpack.c.b16 %v1075, %v1072
    %v1232 = vpack.c.b16 %v1079, %v1076
    %v1233 = vpack.c.b16 %v1080, %v1077
    %v1234 = vpack.c.b16 %v1081, %v1078
    %v1235 = vpack.c.b16 %v1085, %v1082
    %v1236 = vpack.c.b16 %v1086, %v1083
    %v1237 = vpack.c.b16 %v1087, %v1084
    %v1238 = vpack.c.b16 %v1091, %v1088
    %v1239 = vpack.c.b16 %v1092, %v1089
    %v1240 = vpack.c.b16 %v1093, %v1090
    %v1241 = vpack.c.b16 %v1097, %v1094
    %v1242 = vpack.c.b16 %v1098, %v1095
    %v1243 = vpack.c.b16 %v1099, %v1096
    %1388 = vmatprep.subr.bf16.mxu0 %v1122
    %1389 = vmatpush1.bf16.msra.mxu0 %v1121
    %1390 = vmatprep.subr.bf16.mxu0 %v1119
    %1391 = vmatpush1.bf16.msra.mxu0 %v1118
    %1392 = vmatprep.subr.bf16.mxu0 %v1116
    %1393 = vmatpush1.bf16.msra.mxu0 %v1115
    %1394 = vmatprep.subr.bf16.mxu0 %v1113
    %1395 = vmatpush1.bf16.msra.mxu0 %v1112
    %1396 = vmatprep.subr.bf16.mxu0 %v1110
    %1397 = vmatpush1.bf16.msra.mxu0 %v1109
    %1398 = vmatprep.subr.bf16.mxu0 %v1107
    %1399 = vmatpush1.bf16.msra.mxu0 %v1106
    %1400 = vmatprep.subr.bf16.mxu0 %v1104
    %1401 = vmatpush1.bf16.msra.mxu0 %v1103
    %1402 = vmatprep.subr.bf16.mxu0 %v1101
    %1403 = vmatpush1.bf16.msra.mxu0 %v1100
    %1404 = vmatprep.subr.bf16.mxu0 %v1146
    %1405 = vmatpush2.bf16.msra.mxu0 %v1145
    %1406 = vmatprep.subr.bf16.mxu0 %v1143
    %1407 = vmatpush2.bf16.msra.mxu0 %v1142
    %1408 = vmatprep.subr.bf16.mxu0 %v1140
    %1409 = vmatpush2.bf16.msra.mxu0 %v1139
    %1410 = vmatprep.subr.bf16.mxu0 %v1137
    %1411 = vmatpush2.bf16.msra.mxu0 %v1136
    %1412 = vmatprep.subr.bf16.mxu0 %v1134
    %1413 = vmatpush2.bf16.msra.mxu0 %v1133
    %1414 = vmatprep.subr.bf16.mxu0 %v1131
    %1415 = vmatpush2.bf16.msra.mxu0 %v1130
    %1416 = vmatprep.subr.bf16.mxu0 %v1128
    %1417 = vmatpush2.bf16.msra.mxu0 %v1127
    %1418 = vmatprep.subr.bf16.mxu0 %v1125
    %1419 = vmatpush2.bf16.msra.mxu0 %v1124
    %1420 = vmatprep.mubr.bf16.mxu0 %v176
    %1421 = vmatmul.mubr.bf16.gmra.mxu0 %v175
    %v1422 = vpop.f32.mrf.mxu0
    %v1423 = vadd.f32 %v571, %v1422
    %v1424 = vpop.f32.mrf.mxu0
    %v1425 = vadd.f32 %v573, %v1424
    %v1426 = vpop.f32.mrf.mxu0
    %v1427 = vadd.f32 %v575, %v1426
    %v1428 = vpop.f32.mrf.mxu0
    %v1429 = vadd.f32 %v577, %v1428
    %1430 = vdwg.mxu0
    %1431 = vmatprep.subr.bf16.mxu0 %v1170
    %1432 = vmatpush1.bf16.msra.mxu0 %v1169
    %1433 = vmatprep.subr.bf16.mxu0 %v1167
    %1434 = vmatpush1.bf16.msra.mxu0 %v1166
    %1435 = vmatprep.subr.bf16.mxu0 %v1164
    %1436 = vmatpush1.bf16.msra.mxu0 %v1163
    %1437 = vmatprep.subr.bf16.mxu0 %v1161
    %1438 = vmatpush1.bf16.msra.mxu0 %v1160
    %1439 = vmatprep.subr.bf16.mxu0 %v1158
    %1440 = vmatpush1.bf16.msra.mxu0 %v1157
    %1441 = vmatprep.subr.bf16.mxu0 %v1155
    %1442 = vmatpush1.bf16.msra.mxu0 %v1154
    %1443 = vmatprep.subr.bf16.mxu0 %v1152
    %1444 = vmatpush1.bf16.msra.mxu0 %v1151
    %1445 = vmatprep.subr.bf16.mxu0 %v1149
    %1446 = vmatpush1.bf16.msra.mxu0 %v1148
    %1447 = vmatprep.subr.bf16.mxu0 %v1194
    %1448 = vmatpush2.bf16.msra.mxu0 %v1193
    %1449 = vmatprep.subr.bf16.mxu0 %v1191
    %1450 = vmatpush2.bf16.msra.mxu0 %v1190
    %1451 = vmatprep.subr.bf16.mxu0 %v1188
    %1452 = vmatpush2.bf16.msra.mxu0 %v1187
    %1453 = vmatprep.subr.bf16.mxu0 %v1185
    %1454 = vmatpush2.bf16.msra.mxu0 %v1184
    %1455 = vmatprep.subr.bf16.mxu0 %v1182
    %1456 = vmatpush2.bf16.msra.mxu0 %v1181
    %1457 = vmatprep.subr.bf16.mxu0 %v1179
    %1458 = vmatpush2.bf16.msra.mxu0 %v1178
    %1459 = vmatprep.subr.bf16.mxu0 %v1176
    %1460 = vmatpush2.bf16.msra.mxu0 %v1175
    %1461 = vmatprep.subr.bf16.mxu0 %v1173
    %1462 = vmatpush2.bf16.msra.mxu0 %v1172
    %1463 = vmatprep.mubr.bf16.mxu0 %v178
    %1464 = vmatmul.mubr.bf16.gmra.mxu0 %v177
    %v1465 = vpop.f32.mrf.mxu0
    %v1466 = vadd.f32 %v1423, %v1465
    %v1467 = vpop.f32.mrf.mxu0
    %v1468 = vadd.f32 %v1425, %v1467
    %v1469 = vpop.f32.mrf.mxu0
    %v1470 = vadd.f32 %v1427, %v1469
    %v1471 = vpop.f32.mrf.mxu0
    %v1472 = vadd.f32 %v1429, %v1471
    %1473 = vdwg.mxu0
    %1474 = vmatprep.subr.bf16.mxu0 %v1218
    %1475 = vmatpush1.bf16.msra.mxu0 %v1217
    %1476 = vmatprep.subr.bf16.mxu0 %v1215
    %1477 = vmatpush1.bf16.msra.mxu0 %v1214
    %1478 = vmatprep.subr.bf16.mxu0 %v1212
    %1479 = vmatpush1.bf16.msra.mxu0 %v1211
    %1480 = vmatprep.subr.bf16.mxu0 %v1209
    %1481 = vmatpush1.bf16.msra.mxu0 %v1208
    %1482 = vmatprep.subr.bf16.mxu0 %v1206
    %1483 = vmatpush1.bf16.msra.mxu0 %v1205
    %1484 = vmatprep.subr.bf16.mxu0 %v1203
    %1485 = vmatpush1.bf16.msra.mxu0 %v1202
    %1486 = vmatprep.subr.bf16.mxu0 %v1200
    %1487 = vmatpush1.bf16.msra.mxu0 %v1199
    %1488 = vmatprep.subr.bf16.mxu0 %v1197
    %1489 = vmatpush1.bf16.msra.mxu0 %v1196
    %1490 = vmatprep.subr.bf16.mxu0 %v1242
    %1491 = vmatpush2.bf16.msra.mxu0 %v1241
    %1492 = vmatprep.subr.bf16.mxu0 %v1239
    %1493 = vmatpush2.bf16.msra.mxu0 %v1238
    %1494 = vmatprep.subr.bf16.mxu0 %v1236
    %1495 = vmatpush2.bf16.msra.mxu0 %v1235
    %1496 = vmatprep.subr.bf16.mxu0 %v1233
    %1497 = vmatpush2.bf16.msra.mxu0 %v1232
    %1498 = vmatprep.subr.bf16.mxu0 %v1230
    %1499 = vmatpush2.bf16.msra.mxu0 %v1229
    %1500 = vmatprep.subr.bf16.mxu0 %v1227
    %1501 = vmatpush2.bf16.msra.mxu0 %v1226
    %1502 = vmatprep.subr.bf16.mxu0 %v1224
    %1503 = vmatpush2.bf16.msra.mxu0 %v1223
    %1504 = vmatprep.subr.bf16.mxu0 %v1221
    %1505 = vmatpush2.bf16.msra.mxu0 %v1220
    %1506 = vmatprep.mubr.bf16.mxu0 %v180
    %1507 = vmatmul.mubr.bf16.gmra.mxu0 %v179
    %v1508 = vpop.f32.mrf.mxu0
    %v1509 = vadd.f32 %v1466, %v1508
    %v1510 = vpop.f32.mrf.mxu0
    %v1511 = vadd.f32 %v1468, %v1510
    %v1512 = vpop.f32.mrf.mxu0
    %v1513 = vadd.f32 %v1470, %v1512
    %v1514 = vpop.f32.mrf.mxu0
    %v1515 = vadd.f32 %v1472, %v1514
    %1516 = vdwg.mxu0
    %1517 = vmatprep.subr.bf16.mxu0 0
    %1518 = vmatpush1.bf16.msra.mxu0 %v1123
    %1519 = vmatprep.subr.bf16.mxu0 0
    %1520 = vmatpush1.bf16.msra.mxu0 %v1120
    %1521 = vmatprep.subr.bf16.mxu0 0
    %1522 = vmatpush1.bf16.msra.mxu0 %v1117
    %1523 = vmatprep.subr.bf16.mxu0 0
    %1524 = vmatpush1.bf16.msra.mxu0 %v1114
    %1525 = vmatprep.subr.bf16.mxu0 0
    %1526 = vmatpush1.bf16.msra.mxu0 %v1111
    %1527 = vmatprep.subr.bf16.mxu0 0
    %1528 = vmatpush1.bf16.msra.mxu0 %v1108
    %1529 = vmatprep.subr.bf16.mxu0 0
    %1530 = vmatpush1.bf16.msra.mxu0 %v1105
    %1531 = vmatprep.subr.bf16.mxu0 0
    %1532 = vmatpush1.bf16.msra.mxu0 %v1102
    %1533 = vmatprep.subr.bf16.mxu0 0
    %1534 = vmatpush2.bf16.msra.mxu0 %v1147
    %1535 = vmatprep.subr.bf16.mxu0 0
    %1536 = vmatpush2.bf16.msra.mxu0 %v1144
    %1537 = vmatprep.subr.bf16.mxu0 0
    %1538 = vmatpush2.bf16.msra.mxu0 %v1141
    %1539 = vmatprep.subr.bf16.mxu0 0
    %1540 = vmatpush2.bf16.msra.mxu0 %v1138
    %1541 = vmatprep.subr.bf16.mxu0 0
    %1542 = vmatpush2.bf16.msra.mxu0 %v1135
    %1543 = vmatprep.subr.bf16.mxu0 0
    %1544 = vmatpush2.bf16.msra.mxu0 %v1132
    %1545 = vmatprep.subr.bf16.mxu0 0
    %1546 = vmatpush2.bf16.msra.mxu0 %v1129
    %1547 = vmatprep.subr.bf16.mxu0 0
    %1548 = vmatpush2.bf16.msra.mxu0 %v1126
    %1549 = vmatprep.mubr.bf16.mxu0 %v176
    %1550 = vmatmul.mubr.bf16.gmra.mxu0 %v175
    %v1551 = vpop.f32.mrf.mxu0
    %v1552 = vadd.f32 %v614, %v1551
    %v1553 = vpop.f32.mrf.mxu0
    %v1554 = vpop.f32.mrf.mxu0
    %v1555 = vadd.f32 %v617, %v1554
    %v1556 = vpop.f32.mrf.mxu0
    %1557 = vdwg.mxu0
    %1558 = vmatprep.subr.bf16.mxu0 0
    %1559 = vmatpush1.bf16.msra.mxu0 %v1171
    %1560 = vmatprep.subr.bf16.mxu0 0
    %1561 = vmatpush1.bf16.msra.mxu0 %v1168
    %1562 = vmatprep.subr.bf16.mxu0 0
    %1563 = vmatpush1.bf16.msra.mxu0 %v1165
    %1564 = vmatprep.subr.bf16.mxu0 0
    %1565 = vmatpush1.bf16.msra.mxu0 %v1162
    %1566 = vmatprep.subr.bf16.mxu0 0
    %1567 = vmatpush1.bf16.msra.mxu0 %v1159
    %1568 = vmatprep.subr.bf16.mxu0 0
    %1569 = vmatpush1.bf16.msra.mxu0 %v1156
    %1570 = vmatprep.subr.bf16.mxu0 0
    %1571 = vmatpush1.bf16.msra.mxu0 %v1153
    %1572 = vmatprep.subr.bf16.mxu0 0
    %1573 = vmatpush1.bf16.msra.mxu0 %v1150
    %1574 = vmatprep.subr.bf16.mxu0 0
    %1575 = vmatpush2.bf16.msra.mxu0 %v1195
    %1576 = vmatprep.subr.bf16.mxu0 0
    %1577 = vmatpush2.bf16.msra.mxu0 %v1192
    %1578 = vmatprep.subr.bf16.mxu0 0
    %1579 = vmatpush2.bf16.msra.mxu0 %v1189
    %1580 = vmatprep.subr.bf16.mxu0 0
    %1581 = vmatpush2.bf16.msra.mxu0 %v1186
    %1582 = vmatprep.subr.bf16.mxu0 0
    %1583 = vmatpush2.bf16.msra.mxu0 %v1183
    %1584 = vmatprep.subr.bf16.mxu0 0
    %1585 = vmatpush2.bf16.msra.mxu0 %v1180
    %1586 = vmatprep.subr.bf16.mxu0 0
    %1587 = vmatpush2.bf16.msra.mxu0 %v1177
    %1588 = vmatprep.subr.bf16.mxu0 0
    %1589 = vmatpush2.bf16.msra.mxu0 %v1174
    %1590 = vmatprep.mubr.bf16.mxu0 %v178
    %1591 = vmatmul.mubr.bf16.gmra.mxu0 %v177
    %v1592 = vpop.f32.mrf.mxu0
    %v1593 = vadd.f32 %v1552, %v1592
    %v1594 = vpop.f32.mrf.mxu0
    %v1595 = vpop.f32.mrf.mxu0
    %v1596 = vadd.f32 %v1555, %v1595
    %v1597 = vpop.f32.mrf.mxu0
    %1598 = vdwg.mxu0
    %1599 = vmatprep.subr.bf16.mxu0 0
    %1600 = vmatpush1.bf16.msra.mxu0 %v1219
    %1601 = vmatprep.subr.bf16.mxu0 0
    %1602 = vmatpush1.bf16.msra.mxu0 %v1216
    %1603 = vmatprep.subr.bf16.mxu0 0
    %1604 = vmatpush1.bf16.msra.mxu0 %v1213
    %1605 = vmatprep.subr.bf16.mxu0 0
    %1606 = vmatpush1.bf16.msra.mxu0 %v1210
    %1607 = vmatprep.subr.bf16.mxu0 0
    %1608 = vmatpush1.bf16.msra.mxu0 %v1207
    %1609 = vmatprep.subr.bf16.mxu0 0
    %1610 = vmatpush1.bf16.msra.mxu0 %v1204
    %1611 = vmatprep.subr.bf16.mxu0 0
    %1612 = vmatpush1.bf16.msra.mxu0 %v1201
    %1613 = vmatprep.subr.bf16.mxu0 0
    %1614 = vmatpush1.bf16.msra.mxu0 %v1198
    %1615 = vmatprep.subr.bf16.mxu0 0
    %1616 = vmatpush2.bf16.msra.mxu0 %v1243
    %1617 = vmatprep.subr.bf16.mxu0 0
    %1618 = vmatpush2.bf16.msra.mxu0 %v1240
    %1619 = vmatprep.subr.bf16.mxu0 0
    %1620 = vmatpush2.bf16.msra.mxu0 %v1237
    %1621 = vmatprep.subr.bf16.mxu0 0
    %1622 = vmatpush2.bf16.msra.mxu0 %v1234
    %1623 = vmatprep.subr.bf16.mxu0 0
    %1624 = vmatpush2.bf16.msra.mxu0 %v1231
    %1625 = vmatprep.subr.bf16.mxu0 0
    %1626 = vmatpush2.bf16.msra.mxu0 %v1228
    %1627 = vmatprep.subr.bf16.mxu0 0
    %1628 = vmatpush2.bf16.msra.mxu0 %v1225
    %1629 = vmatprep.subr.bf16.mxu0 0
    %1630 = vmatpush2.bf16.msra.mxu0 %v1222
    %1631 = vmatprep.mubr.bf16.mxu0 %v180
    %1632 = vmatmul.mubr.bf16.gmra.mxu0 %v179
    %v1633 = vpop.f32.mrf.mxu0
    %v1634 = vadd.f32 %v1593, %v1633
    %v1635 = vpop.f32.mrf.mxu0
    %v1636 = vpop.f32.mrf.mxu0
    %v1637 = vadd.f32 %v1596, %v1636
    %v1638 = vpop.f32.mrf.mxu0
    %1639 = vdwg.mxu0
    %v1640 = vld [vmem:[#allocation7] sm:$0x7]
    %v1642 = vlaneseq
    %v1643 = vshrl.u32 %v1642, 7
    %v1644 = vsub.s32 0, %v1643
    %v1645 = vrot.slane %v1640, %v1644
    %v1646 = vlaneseq
    %v1647 = vshrl.u32 %v1646, 7
    %v1648 = vsub.s32 1, %v1647
    %v1649 = vrot.slane %v1640, %v1648
    %v1650 = vlaneseq
    %v1651 = vshrl.u32 %v1650, 7
    %v1652 = vsub.s32 2, %v1651
    %v1653 = vrot.slane %v1640, %v1652
    %v1657 = vadd.f32 %v1509, %v1645
    %v1658 = vadd.f32 %v1511, %v1649
    %v1659 = vadd.f32 %v1634, %v1653
    %v1660 = vadd.f32 %v1513, %v1645
    %v1661 = vadd.f32 %v1515, %v1649
    %v1662 = vadd.f32 %v1637, %v1653
    %1663 = vst [vmem:[#allocation17] sm:$0xff] %v1657
    %1664 = vst [vmem:[#allocation17 + $0x8] sm:$0xff] %v1658
    %1665 = vst [vmem:[#allocation17 + $0x10] sm:$0xff] %v1659
    %1666 = vst [vmem:[#allocation17 + $0x18] sm:$0xff] %v1660
    %1667 = vst [vmem:[#allocation17 + $0x20] sm:$0xff] %v1661
    %1668 = vst [vmem:[#allocation17 + $0x28] sm:$0xff] %v1662
    %v1669 = vpack.c.bf16 %v1660, %v1657
    %v1670 = vpack.c.bf16 %v1661, %v1658
    %v1671 = vpack.c.bf16 %v1662, %v1659
    %v1672 = vld [vmem:[#allocation8] sm:$0xff]
    %v1673 = vld [vmem:[#allocation8 + $0x8] sm:$0xff]
    %v1674 = vld [vmem:[#allocation8 + $0x10] sm:$0xff]
    %v1675 = vld [vmem:[#allocation8 + $0x18] sm:$0xff]
    %v1676 = vld [vmem:[#allocation8 + $0x20] sm:$0xff]
    %v1677 = vld [vmem:[#allocation8 + $0x28] sm:$0xff]
    %v1678 = vld [vmem:[#allocation8 + $0x30] sm:$0xff]
    %v1679 = vld [vmem:[#allocation8 + $0x38] sm:$0xff]
    %v1680 = vld [vmem:[#allocation8 + $0x40] sm:$0xff]
    %v1681 = vld [vmem:[#allocation8 + $0x48] sm:$0xff]
    %v1682 = vld [vmem:[#allocation8 + $0x50] sm:$0xff]
    %v1683 = vld [vmem:[#allocation8 + $0x58] sm:$0xff]
    %v1684 = vld [vmem:[#allocation8 + $0x60] sm:$0xff]
    %v1685 = vld [vmem:[#allocation8 + $0x68] sm:$0xff]
    %v1686 = vld [vmem:[#allocation8 + $0x70] sm:$0xff]
    %v1687 = vld [vmem:[#allocation8 + $0x78] sm:$0xff]
    %v1688 = vld [vmem:[#allocation8 + $0x80] sm:$0xff]
    %v1689 = vld [vmem:[#allocation8 + $0x88] sm:$0xff]
    %v1690 = vld [vmem:[#allocation8 + $0x90] sm:$0xff]
    %v1691 = vld [vmem:[#allocation8 + $0x98] sm:$0xff]
    %v1692 = vld [vmem:[#allocation8 + $0xa0] sm:$0xff]
    %v1693 = vld [vmem:[#allocation8 + $0xa8] sm:$0xff]
    %v1694 = vld [vmem:[#allocation8 + $0xb0] sm:$0xff]
    %v1695 = vld [vmem:[#allocation8 + $0xb8] sm:$0xff]
    %v1696 = vld [vmem:[#allocation8 + $0xc0] sm:$0xff]
    %v1697 = vld [vmem:[#allocation8 + $0xc8] sm:$0xff]
    %v1698 = vld [vmem:[#allocation8 + $0xd0] sm:$0xff]
    %v1699 = vld [vmem:[#allocation8 + $0xd8] sm:$0xff]
    %v1700 = vld [vmem:[#allocation8 + $0xe0] sm:$0xff]
    %v1701 = vld [vmem:[#allocation8 + $0xe8] sm:$0xff]
    %v1702 = vld [vmem:[#allocation8 + $0xf0] sm:$0xff]
    %v1703 = vld [vmem:[#allocation8 + $0xf8] sm:$0xff]
    %v1704 = vld [vmem:[#allocation8 + $0x100] sm:$0xff]
    %v1705 = vld [vmem:[#allocation8 + $0x108] sm:$0xff]
    %v1706 = vld [vmem:[#allocation8 + $0x110] sm:$0xff]
    %v1707 = vld [vmem:[#allocation8 + $0x118] sm:$0xff]
    %v1708 = vld [vmem:[#allocation8 + $0x120] sm:$0xff]
    %v1709 = vld [vmem:[#allocation8 + $0x128] sm:$0xff]
    %v1710 = vld [vmem:[#allocation8 + $0x130] sm:$0xff]
    %v1711 = vld [vmem:[#allocation8 + $0x138] sm:$0xff]
    %v1712 = vld [vmem:[#allocation8 + $0x140] sm:$0xff]
    %v1713 = vld [vmem:[#allocation8 + $0x148] sm:$0xff]
    %v1714 = vld [vmem:[#allocation8 + $0x150] sm:$0xff]
    %v1715 = vld [vmem:[#allocation8 + $0x158] sm:$0xff]
    %v1716 = vld [vmem:[#allocation8 + $0x160] sm:$0xff]
    %v1717 = vld [vmem:[#allocation8 + $0x168] sm:$0xff]
    %v1718 = vld [vmem:[#allocation8 + $0x170] sm:$0xff]
    %v1719 = vld [vmem:[#allocation8 + $0x178] sm:$0xff]
    %v1720 = vld [vmem:[#allocation8 + $0x180] sm:$0xff]
    %v1721 = vld [vmem:[#allocation8 + $0x188] sm:$0xff]
    %v1722 = vld [vmem:[#allocation8 + $0x190] sm:$0xff]
    %v1723 = vld [vmem:[#allocation8 + $0x198] sm:$0xff]
    %v1724 = vld [vmem:[#allocation8 + $0x1a0] sm:$0xff]
    %v1725 = vld [vmem:[#allocation8 + $0x1a8] sm:$0xff]
    %v1726 = vld [vmem:[#allocation8 + $0x1b0] sm:$0xff]
    %v1727 = vld [vmem:[#allocation8 + $0x1b8] sm:$0xff]
    %v1728 = vld [vmem:[#allocation8 + $0x1c0] sm:$0xff]
    %v1729 = vld [vmem:[#allocation8 + $0x1c8] sm:$0xff]
    %v1730 = vld [vmem:[#allocation8 + $0x1d0] sm:$0xff]
    %v1731 = vld [vmem:[#allocation8 + $0x1d8] sm:$0xff]
    %v1732 = vld [vmem:[#allocation8 + $0x1e0] sm:$0xff]
    %v1733 = vld [vmem:[#allocation8 + $0x1e8] sm:$0xff]
    %v1734 = vld [vmem:[#allocation8 + $0x1f0] sm:$0xff]
    %v1735 = vld [vmem:[#allocation8 + $0x1f8] sm:$0xff]
    %v1736 = vld [vmem:[#allocation8 + $0x200] sm:$0xff]
    %v1737 = vld [vmem:[#allocation8 + $0x208] sm:$0xff]
    %v1738 = vld [vmem:[#allocation8 + $0x210] sm:$0xff]
    %v1739 = vld [vmem:[#allocation8 + $0x218] sm:$0xff]
    %v1740 = vld [vmem:[#allocation8 + $0x220] sm:$0xff]
    %v1741 = vld [vmem:[#allocation8 + $0x228] sm:$0xff]
    %v1742 = vld [vmem:[#allocation8 + $0x230] sm:$0xff]
    %v1743 = vld [vmem:[#allocation8 + $0x238] sm:$0xff]
    %v1744 = vld [vmem:[#allocation8 + $0x240] sm:$0xff]
    %v1745 = vld [vmem:[#allocation8 + $0x248] sm:$0xff]
    %v1746 = vld [vmem:[#allocation8 + $0x250] sm:$0xff]
    %v1747 = vld [vmem:[#allocation8 + $0x258] sm:$0xff]
    %v1748 = vld [vmem:[#allocation8 + $0x260] sm:$0xff]
    %v1749 = vld [vmem:[#allocation8 + $0x268] sm:$0xff]
    %v1750 = vld [vmem:[#allocation8 + $0x270] sm:$0xff]
    %v1751 = vld [vmem:[#allocation8 + $0x278] sm:$0xff]
    %v1752 = vld [vmem:[#allocation8 + $0x280] sm:$0xff]
    %v1753 = vld [vmem:[#allocation8 + $0x288] sm:$0xff]
    %v1754 = vld [vmem:[#allocation8 + $0x290] sm:$0xff]
    %v1755 = vld [vmem:[#allocation8 + $0x298] sm:$0xff]
    %v1756 = vld [vmem:[#allocation8 + $0x2a0] sm:$0xff]
    %v1757 = vld [vmem:[#allocation8 + $0x2a8] sm:$0xff]
    %v1758 = vld [vmem:[#allocation8 + $0x2b0] sm:$0xff]
    %v1759 = vld [vmem:[#allocation8 + $0x2b8] sm:$0xff]
    %v1760 = vld [vmem:[#allocation8 + $0x2c0] sm:$0xff]
    %v1761 = vld [vmem:[#allocation8 + $0x2c8] sm:$0xff]
    %v1762 = vld [vmem:[#allocation8 + $0x2d0] sm:$0xff]
    %v1763 = vld [vmem:[#allocation8 + $0x2d8] sm:$0xff]
    %v1764 = vld [vmem:[#allocation8 + $0x2e0] sm:$0xff]
    %v1765 = vld [vmem:[#allocation8 + $0x2e8] sm:$0xff]
    %v1766 = vld [vmem:[#allocation8 + $0x2f0] sm:$0xff]
    %v1767 = vld [vmem:[#allocation8 + $0x2f8] sm:$0xff]
    %v1768 = vld [vmem:[#allocation10] sm:$0xff]
    %v1769 = vld [vmem:[#allocation10 + $0x8] sm:$0xff]
    %v1770 = vld [vmem:[#allocation10 + $0x10] sm:$0xff]
    %v1771 = vld [vmem:[#allocation10 + $0x18] sm:$0xff]
    %v1772 = vld [vmem:[#allocation10 + $0x20] sm:$0xff]
    %v1773 = vld [vmem:[#allocation10 + $0x28] sm:$0xff]
    %v1774 = vld [vmem:[#allocation10 + $0x30] sm:$0xff]
    %v1775 = vld [vmem:[#allocation10 + $0x38] sm:$0xff]
    %v1776 = vld [vmem:[#allocation10 + $0x40] sm:$0xff]
    %v1777 = vld [vmem:[#allocation10 + $0x48] sm:$0xff]
    %v1778 = vld [vmem:[#allocation10 + $0x50] sm:$0xff]
    %v1779 = vld [vmem:[#allocation10 + $0x58] sm:$0xff]
    %v1780 = vld [vmem:[#allocation10 + $0x60] sm:$0xff]
    %v1781 = vld [vmem:[#allocation10 + $0x68] sm:$0xff]
    %v1782 = vld [vmem:[#allocation10 + $0x70] sm:$0xff]
    %v1783 = vld [vmem:[#allocation10 + $0x78] sm:$0xff]
    %v1800 = vunpack.c.l.b16 %v1768
    %v1801 = vunpack.c.h.b16 %v1768
    %v1802 = vunpack.c.l.b16 %v1769
    %v1803 = vunpack.c.h.b16 %v1769
    %v1804 = vunpack.c.l.b16 %v1770
    %v1805 = vunpack.c.h.b16 %v1770
    %v1806 = vunpack.c.l.b16 %v1771
    %v1807 = vunpack.c.h.b16 %v1771
    %v1808 = vunpack.c.l.b16 %v1772
    %v1809 = vunpack.c.h.b16 %v1772
    %v1810 = vunpack.c.l.b16 %v1773
    %v1811 = vunpack.c.h.b16 %v1773
    %v1812 = vunpack.c.l.b16 %v1774
    %v1813 = vunpack.c.h.b16 %v1774
    %v1814 = vunpack.c.l.b16 %v1775
    %v1815 = vunpack.c.h.b16 %v1775
    %v1816 = vunpack.c.l.b16 %v1776
    %v1817 = vunpack.c.h.b16 %v1776
    %v1818 = vunpack.c.l.b16 %v1777
    %v1819 = vunpack.c.h.b16 %v1777
    %v1820 = vunpack.c.l.b16 %v1778
    %v1821 = vunpack.c.h.b16 %v1778
    %v1822 = vunpack.c.l.b16 %v1779
    %v1823 = vunpack.c.h.b16 %v1779
    %v1824 = vunpack.c.l.b16 %v1780
    %v1825 = vunpack.c.h.b16 %v1780
    %v1826 = vunpack.c.l.b16 %v1781
    %v1827 = vunpack.c.h.b16 %v1781
    %v1828 = vunpack.c.l.b16 %v1782
    %v1829 = vunpack.c.h.b16 %v1782
    %v1830 = vunpack.c.l.b16 %v1783
    %v1831 = vunpack.c.h.b16 %v1783
    %v1832 = vpack.c.b16 %v1802, %v1800
    %v1833 = vpack.c.b16 %v1803, %v1801
    %v1834 = vpack.c.b16 %v1806, %v1804
    %v1835 = vpack.c.b16 %v1807, %v1805
    %v1836 = vpack.c.b16 %v1810, %v1808
    %v1837 = vpack.c.b16 %v1811, %v1809
    %v1838 = vpack.c.b16 %v1814, %v1812
    %v1839 = vpack.c.b16 %v1815, %v1813
    %v1840 = vpack.c.b16 %v1818, %v1816
    %v1841 = vpack.c.b16 %v1819, %v1817
    %v1842 = vpack.c.b16 %v1822, %v1820
    %v1843 = vpack.c.b16 %v1823, %v1821
    %v1844 = vpack.c.b16 %v1826, %v1824
    %v1845 = vpack.c.b16 %v1827, %v1825
    %v1846 = vpack.c.b16 %v1830, %v1828
    %v1847 = vpack.c.b16 %v1831, %v1829
    %1864 = vmatprep.subr.bf16.mxu0 %v1847
    %1865 = vmatpush1.bf16.msra.mxu0 %v1846
    %1866 = vmatprep.subr.bf16.mxu0 %v1845
    %1867 = vmatpush1.bf16.msra.mxu0 %v1844
    %1868 = vmatprep.subr.bf16.mxu0 %v1843
    %1869 = vmatpush1.bf16.msra.mxu0 %v1842
    %1870 = vmatprep.subr.bf16.mxu0 %v1841
    %1871 = vmatpush1.bf16.msra.mxu0 %v1840
    %1872 = vmatprep.subr.bf16.mxu0 %v1839
    %1873 = vmatpush1.bf16.msra.mxu0 %v1838
    %1874 = vmatprep.subr.bf16.mxu0 %v1837
    %1875 = vmatpush1.bf16.msra.mxu0 %v1836
    %1876 = vmatprep.subr.bf16.mxu0 %v1835
    %1877 = vmatpush1.bf16.msra.mxu0 %v1834
    %1878 = vmatprep.subr.bf16.mxu0 %v1833
    %1879 = vmatpush1.bf16.msra.mxu0 %v1832
    %1880 = vmatprep.subr.bf16.mxu0 0
    %1881 = vmatpush2.bf16.msra.mxu0 0
    %1882 = vmatprep.subr.bf16.mxu0 0
    %1883 = vmatpush2.bf16.msra.mxu0 0
    %1884 = vmatprep.subr.bf16.mxu0 0
    %1885 = vmatpush2.bf16.msra.mxu0 0
    %1886 = vmatprep.subr.bf16.mxu0 0
    %1887 = vmatpush2.bf16.msra.mxu0 0
    %1888 = vmatprep.subr.bf16.mxu0 0
    %1889 = vmatpush2.bf16.msra.mxu0 0
    %1890 = vmatprep.subr.bf16.mxu0 0
    %1891 = vmatpush2.bf16.msra.mxu0 0
    %1892 = vmatprep.subr.bf16.mxu0 0
    %1893 = vmatpush2.bf16.msra.mxu0 0
    %1894 = vmatprep.subr.bf16.mxu0 0
    %1895 = vmatpush2.bf16.msra.mxu0 0
    %1896 = vmatprep.mubr.bf16.mxu0 0
    %1897 = vmatmul.mubr.bf16.gmra.mxu0 %v183
    %v1898 = vpop.f32.mrf.mxu0
    %v1899 = vadd.f32 0.0, %v1898
    %v1900 = vpop.f32.mrf.mxu0
    %v1901 = vadd.f32 0.0, %v1900
    %v1902 = vpop.f32.mrf.mxu0
    %v1903 = vadd.f32 0.0, %v1902
    %v1904 = vpop.f32.mrf.mxu0
    %v1905 = vadd.f32 0.0, %v1904
    %1906 = vdwg.mxu0
    %v2003 = vunpack.c.l.b16 %v1672
    %v2004 = vunpack.c.h.b16 %v1672
    %v2005 = vunpack.c.l.b16 %v1673
    %v2006 = vunpack.c.h.b16 %v1673
    %v2007 = vunpack.c.l.b16 %v1674
    %v2008 = vunpack.c.h.b16 %v1674
    %v2009 = vunpack.c.l.b16 %v1675
    %v2010 = vunpack.c.h.b16 %v1675
    %v2011 = vunpack.c.l.b16 %v1676
    %v2012 = vunpack.c.h.b16 %v1676
    %v2013 = vunpack.c.l.b16 %v1677
    %v2014 = vunpack.c.h.b16 %v1677
    %v2015 = vunpack.c.l.b16 %v1678
    %v2016 = vunpack.c.h.b16 %v1678
    %v2017 = vunpack.c.l.b16 %v1679
    %v2018 = vunpack.c.h.b16 %v1679
    %v2019 = vunpack.c.l.b16 %v1680
    %v2020 = vunpack.c.h.b16 %v1680
    %v2021 = vunpack.c.l.b16 %v1681
    %v2022 = vunpack.c.h.b16 %v1681
    %v2023 = vunpack.c.l.b16 %v1682
    %v2024 = vunpack.c.h.b16 %v1682
    %v2025 = vunpack.c.l.b16 %v1683
    %v2026 = vunpack.c.h.b16 %v1683
    %v2027 = vunpack.c.l.b16 %v1684
    %v2028 = vunpack.c.h.b16 %v1684
    %v2029 = vunpack.c.l.b16 %v1685
    %v2030 = vunpack.c.h.b16 %v1685
    %v2031 = vunpack.c.l.b16 %v1686
    %v2032 = vunpack.c.h.b16 %v1686
    %v2033 = vunpack.c.l.b16 %v1687
    %v2034 = vunpack.c.h.b16 %v1687
    %v2035 = vunpack.c.l.b16 %v1688
    %v2036 = vunpack.c.h.b16 %v1688
    %v2037 = vunpack.c.l.b16 %v1689
    %v2038 = vunpack.c.h.b16 %v1689
    %v2039 = vunpack.c.l.b16 %v1690
    %v2040 = vunpack.c.h.b16 %v1690
    %v2041 = vunpack.c.l.b16 %v1691
    %v2042 = vunpack.c.h.b16 %v1691
    %v2043 = vunpack.c.l.b16 %v1692
    %v2044 = vunpack.c.h.b16 %v1692
    %v2045 = vunpack.c.l.b16 %v1693
    %v2046 = vunpack.c.h.b16 %v1693
    %v2047 = vunpack.c.l.b16 %v1694
    %v2048 = vunpack.c.h.b16 %v1694
    %v2049 = vunpack.c.l.b16 %v1695
    %v2050 = vunpack.c.h.b16 %v1695
    %v2051 = vunpack.c.l.b16 %v1696
    %v2052 = vunpack.c.h.b16 %v1696
    %v2053 = vunpack.c.l.b16 %v1697
    %v2054 = vunpack.c.h.b16 %v1697
    %v2055 = vunpack.c.l.b16 %v1698
    %v2056 = vunpack.c.h.b16 %v1698
    %v2057 = vunpack.c.l.b16 %v1699
    %v2058 = vunpack.c.h.b16 %v1699
    %v2059 = vunpack.c.l.b16 %v1700
    %v2060 = vunpack.c.h.b16 %v1700
    %v2061 = vunpack.c.l.b16 %v1701
    %v2062 = vunpack.c.h.b16 %v1701
    %v2063 = vunpack.c.l.b16 %v1702
    %v2064 = vunpack.c.h.b16 %v1702
    %v2065 = vunpack.c.l.b16 %v1703
    %v2066 = vunpack.c.h.b16 %v1703
    %v2067 = vunpack.c.l.b16 %v1704
    %v2068 = vunpack.c.h.b16 %v1704
    %v2069 = vunpack.c.l.b16 %v1705
    %v2070 = vunpack.c.h.b16 %v1705
    %v2071 = vunpack.c.l.b16 %v1706
    %v2072 = vunpack.c.h.b16 %v1706
    %v2073 = vunpack.c.l.b16 %v1707
    %v2074 = vunpack.c.h.b16 %v1707
    %v2075 = vunpack.c.l.b16 %v1708
    %v2076 = vunpack.c.h.b16 %v1708
    %v2077 = vunpack.c.l.b16 %v1709
    %v2078 = vunpack.c.h.b16 %v1709
    %v2079 = vunpack.c.l.b16 %v1710
    %v2080 = vunpack.c.h.b16 %v1710
    %v2081 = vunpack.c.l.b16 %v1711
    %v2082 = vunpack.c.h.b16 %v1711
    %v2083 = vunpack.c.l.b16 %v1712
    %v2084 = vunpack.c.h.b16 %v1712
    %v2085 = vunpack.c.l.b16 %v1713
    %v2086 = vunpack.c.h.b16 %v1713
    %v2087 = vunpack.c.l.b16 %v1714
    %v2088 = vunpack.c.h.b16 %v1714
    %v2089 = vunpack.c.l.b16 %v1715
    %v2090 = vunpack.c.h.b16 %v1715
    %v2091 = vunpack.c.l.b16 %v1716
    %v2092 = vunpack.c.h.b16 %v1716
    %v2093 = vunpack.c.l.b16 %v1717
    %v2094 = vunpack.c.h.b16 %v1717
    %v2095 = vunpack.c.l.b16 %v1718
    %v2096 = vunpack.c.h.b16 %v1718
    %v2097 = vunpack.c.l.b16 %v1719
    %v2098 = vunpack.c.h.b16 %v1719
    %v2099 = vunpack.c.l.b16 %v1720
    %v2100 = vunpack.c.h.b16 %v1720
    %v2101 = vunpack.c.l.b16 %v1721
    %v2102 = vunpack.c.h.b16 %v1721
    %v2103 = vunpack.c.l.b16 %v1722
    %v2104 = vunpack.c.h.b16 %v1722
    %v2105 = vunpack.c.l.b16 %v1723
    %v2106 = vunpack.c.h.b16 %v1723
    %v2107 = vunpack.c.l.b16 %v1724
    %v2108 = vunpack.c.h.b16 %v1724
    %v2109 = vunpack.c.l.b16 %v1725
    %v2110 = vunpack.c.h.b16 %v1725
    %v2111 = vunpack.c.l.b16 %v1726
    %v2112 = vunpack.c.h.b16 %v1726
    %v2113 = vunpack.c.l.b16 %v1727
    %v2114 = vunpack.c.h.b16 %v1727
    %v2115 = vunpack.c.l.b16 %v1728
    %v2116 = vunpack.c.h.b16 %v1728
    %v2117 = vunpack.c.l.b16 %v1729
    %v2118 = vunpack.c.h.b16 %v1729
    %v2119 = vunpack.c.l.b16 %v1730
    %v2120 = vunpack.c.h.b16 %v1730
    %v2121 = vunpack.c.l.b16 %v1731
    %v2122 = vunpack.c.h.b16 %v1731
    %v2123 = vunpack.c.l.b16 %v1732
    %v2124 = vunpack.c.h.b16 %v1732
    %v2125 = vunpack.c.l.b16 %v1733
    %v2126 = vunpack.c.h.b16 %v1733
    %v2127 = vunpack.c.l.b16 %v1734
    %v2128 = vunpack.c.h.b16 %v1734
    %v2129 = vunpack.c.l.b16 %v1735
    %v2130 = vunpack.c.h.b16 %v1735
    %v2131 = vunpack.c.l.b16 %v1736
    %v2132 = vunpack.c.h.b16 %v1736
    %v2133 = vunpack.c.l.b16 %v1737
    %v2134 = vunpack.c.h.b16 %v1737
    %v2135 = vunpack.c.l.b16 %v1738
    %v2136 = vunpack.c.h.b16 %v1738
    %v2137 = vunpack.c.l.b16 %v1739
    %v2138 = vunpack.c.h.b16 %v1739
    %v2139 = vunpack.c.l.b16 %v1740
    %v2140 = vunpack.c.h.b16 %v1740
    %v2141 = vunpack.c.l.b16 %v1741
    %v2142 = vunpack.c.h.b16 %v1741
    %v2143 = vunpack.c.l.b16 %v1742
    %v2144 = vunpack.c.h.b16 %v1742
    %v2145 = vunpack.c.l.b16 %v1743
    %v2146 = vunpack.c.h.b16 %v1743
    %v2147 = vunpack.c.l.b16 %v1744
    %v2148 = vunpack.c.h.b16 %v1744
    %v2149 = vunpack.c.l.b16 %v1745
    %v2150 = vunpack.c.h.b16 %v1745
    %v2151 = vunpack.c.l.b16 %v1746
    %v2152 = vunpack.c.h.b16 %v1746
    %v2153 = vunpack.c.l.b16 %v1747
    %v2154 = vunpack.c.h.b16 %v1747
    %v2155 = vunpack.c.l.b16 %v1748
    %v2156 = vunpack.c.h.b16 %v1748
    %v2157 = vunpack.c.l.b16 %v1749
    %v2158 = vunpack.c.h.b16 %v1749
    %v2159 = vunpack.c.l.b16 %v1750
    %v2160 = vunpack.c.h.b16 %v1750
    %v2161 = vunpack.c.l.b16 %v1751
    %v2162 = vunpack.c.h.b16 %v1751
    %v2163 = vunpack.c.l.b16 %v1752
    %v2164 = vunpack.c.h.b16 %v1752
    %v2165 = vunpack.c.l.b16 %v1753
    %v2166 = vunpack.c.h.b16 %v1753
    %v2167 = vunpack.c.l.b16 %v1754
    %v2168 = vunpack.c.h.b16 %v1754
    %v2169 = vunpack.c.l.b16 %v1755
    %v2170 = vunpack.c.h.b16 %v1755
    %v2171 = vunpack.c.l.b16 %v1756
    %v2172 = vunpack.c.h.b16 %v1756
    %v2173 = vunpack.c.l.b16 %v1757
    %v2174 = vunpack.c.h.b16 %v1757
    %v2175 = vunpack.c.l.b16 %v1758
    %v2176 = vunpack.c.h.b16 %v1758
    %v2177 = vunpack.c.l.b16 %v1759
    %v2178 = vunpack.c.h.b16 %v1759
    %v2179 = vunpack.c.l.b16 %v1760
    %v2180 = vunpack.c.h.b16 %v1760
    %v2181 = vunpack.c.l.b16 %v1761
    %v2182 = vunpack.c.h.b16 %v1761
    %v2183 = vunpack.c.l.b16 %v1762
    %v2184 = vunpack.c.h.b16 %v1762
    %v2185 = vunpack.c.l.b16 %v1763
    %v2186 = vunpack.c.h.b16 %v1763
    %v2187 = vunpack.c.l.b16 %v1764
    %v2188 = vunpack.c.h.b16 %v1764
    %v2189 = vunpack.c.l.b16 %v1765
    %v2190 = vunpack.c.h.b16 %v1765
    %v2191 = vunpack.c.l.b16 %v1766
    %v2192 = vunpack.c.h.b16 %v1766
    %v2193 = vunpack.c.l.b16 %v1767
    %v2194 = vunpack.c.h.b16 %v1767
    %v2195 = vpack.c.b16 %v2005, %v2003
    %v2196 = vpack.c.b16 %v2006, %v2004
    %v2197 = vpack.c.b16 %v2009, %v2007
    %v2198 = vpack.c.b16 %v2010, %v2008
    %v2199 = vpack.c.b16 %v2013, %v2011
    %v2200 = vpack.c.b16 %v2014, %v2012
    %v2201 = vpack.c.b16 %v2017, %v2015
    %v2202 = vpack.c.b16 %v2018, %v2016
    %v2203 = vpack.c.b16 %v2021, %v2019
    %v2204 = vpack.c.b16 %v2022, %v2020
    %v2205 = vpack.c.b16 %v2025, %v2023
    %v2206 = vpack.c.b16 %v2026, %v2024
    %v2207 = vpack.c.b16 %v2029, %v2027
    %v2208 = vpack.c.b16 %v2030, %v2028
    %v2209 = vpack.c.b16 %v2033, %v2031
    %v2210 = vpack.c.b16 %v2034, %v2032
    %v2211 = vpack.c.b16 %v2037, %v2035
    %v2212 = vpack.c.b16 %v2038, %v2036
    %v2213 = vpack.c.b16 %v2041, %v2039
    %v2214 = vpack.c.b16 %v2042, %v2040
    %v2215 = vpack.c.b16 %v2045, %v2043
    %v2216 = vpack.c.b16 %v2046, %v2044
    %v2217 = vpack.c.b16 %v2049, %v2047
    %v2218 = vpack.c.b16 %v2050, %v2048
    %v2219 = vpack.c.b16 %v2053, %v2051
    %v2220 = vpack.c.b16 %v2054, %v2052
    %v2221 = vpack.c.b16 %v2057, %v2055
    %v2222 = vpack.c.b16 %v2058, %v2056
    %v2223 = vpack.c.b16 %v2061, %v2059
    %v2224 = vpack.c.b16 %v2062, %v2060
    %v2225 = vpack.c.b16 %v2065, %v2063
    %v2226 = vpack.c.b16 %v2066, %v2064
    %v2227 = vpack.c.b16 %v2069, %v2067
    %v2228 = vpack.c.b16 %v2070, %v2068
    %v2229 = vpack.c.b16 %v2073, %v2071
    %v2230 = vpack.c.b16 %v2074, %v2072
    %v2231 = vpack.c.b16 %v2077, %v2075
    %v2232 = vpack.c.b16 %v2078, %v2076
    %v2233 = vpack.c.b16 %v2081, %v2079
    %v2234 = vpack.c.b16 %v2082, %v2080
    %v2235 = vpack.c.b16 %v2085, %v2083
    %v2236 = vpack.c.b16 %v2086, %v2084
    %v2237 = vpack.c.b16 %v2089, %v2087
    %v2238 = vpack.c.b16 %v2090, %v2088
    %v2239 = vpack.c.b16 %v2093, %v2091
    %v2240 = vpack.c.b16 %v2094, %v2092
    %v2241 = vpack.c.b16 %v2097, %v2095
    %v2242 = vpack.c.b16 %v2098, %v2096
    %v2243 = vpack.c.b16 %v2101, %v2099
    %v2244 = vpack.c.b16 %v2102, %v2100
    %v2245 = vpack.c.b16 %v2105, %v2103
    %v2246 = vpack.c.b16 %v2106, %v2104
    %v2247 = vpack.c.b16 %v2109, %v2107
    %v2248 = vpack.c.b16 %v2110, %v2108
    %v2249 = vpack.c.b16 %v2113, %v2111
    %v2250 = vpack.c.b16 %v2114, %v2112
    %v2251 = vpack.c.b16 %v2117, %v2115
    %v2252 = vpack.c.b16 %v2118, %v2116
    %v2253 = vpack.c.b16 %v2121, %v2119
    %v2254 = vpack.c.b16 %v2122, %v2120
    %v2255 = vpack.c.b16 %v2125, %v2123
    %v2256 = vpack.c.b16 %v2126, %v2124
    %v2257 = vpack.c.b16 %v2129, %v2127
    %v2258 = vpack.c.b16 %v2130, %v2128
    %v2259 = vpack.c.b16 %v2133, %v2131
    %v2260 = vpack.c.b16 %v2134, %v2132
    %v2261 = vpack.c.b16 %v2137, %v2135
    %v2262 = vpack.c.b16 %v2138, %v2136
    %v2263 = vpack.c.b16 %v2141, %v2139
    %v2264 = vpack.c.b16 %v2142, %v2140
    %v2265 = vpack.c.b16 %v2145, %v2143
    %v2266 = vpack.c.b16 %v2146, %v2144
    %v2267 = vpack.c.b16 %v2149, %v2147
    %v2268 = vpack.c.b16 %v2150, %v2148
    %v2269 = vpack.c.b16 %v2153, %v2151
    %v2270 = vpack.c.b16 %v2154, %v2152
    %v2271 = vpack.c.b16 %v2157, %v2155
    %v2272 = vpack.c.b16 %v2158, %v2156
    %v2273 = vpack.c.b16 %v2161, %v2159
    %v2274 = vpack.c.b16 %v2162, %v2160
    %v2275 = vpack.c.b16 %v2165, %v2163
    %v2276 = vpack.c.b16 %v2166, %v2164
    %v2277 = vpack.c.b16 %v2169, %v2167
    %v2278 = vpack.c.b16 %v2170, %v2168
    %v2279 = vpack.c.b16 %v2173, %v2171
    %v2280 = vpack.c.b16 %v2174, %v2172
    %v2281 = vpack.c.b16 %v2177, %v2175
    %v2282 = vpack.c.b16 %v2178, %v2176
    %v2283 = vpack.c.b16 %v2181, %v2179
    %v2284 = vpack.c.b16 %v2182, %v2180
    %v2285 = vpack.c.b16 %v2185, %v2183
    %v2286 = vpack.c.b16 %v2186, %v2184
    %v2287 = vpack.c.b16 %v2189, %v2187
    %v2288 = vpack.c.b16 %v2190, %v2188
    %v2289 = vpack.c.b16 %v2193, %v2191
    %v2290 = vpack.c.b16 %v2194, %v2192
    %2387 = vmatprep.subr.bf16.mxu0 %v2210
    %2388 = vmatpush1.bf16.msra.mxu0 %v2209
    %2389 = vmatprep.subr.bf16.mxu0 %v2208
    %2390 = vmatpush1.bf16.msra.mxu0 %v2207
    %2391 = vmatprep.subr.bf16.mxu0 %v2206
    %2392 = vmatpush1.bf16.msra.mxu0 %v2205
    %2393 = vmatprep.subr.bf16.mxu0 %v2204
    %2394 = vmatpush1.bf16.msra.mxu0 %v2203
    %2395 = vmatprep.subr.bf16.mxu0 %v2202
    %2396 = vmatpush1.bf16.msra.mxu0 %v2201
    %2397 = vmatprep.subr.bf16.mxu0 %v2200
    %2398 = vmatpush1.bf16.msra.mxu0 %v2199
    %2399 = vmatprep.subr.bf16.mxu0 %v2198
    %2400 = vmatpush1.bf16.msra.mxu0 %v2197
    %2401 = vmatprep.subr.bf16.mxu0 %v2196
    %2402 = vmatpush1.bf16.msra.mxu0 %v2195
    %2403 = vmatprep.subr.bf16.mxu0 %v2226
    %2404 = vmatpush2.bf16.msra.mxu0 %v2225
    %2405 = vmatprep.subr.bf16.mxu0 %v2224
    %2406 = vmatpush2.bf16.msra.mxu0 %v2223
    %2407 = vmatprep.subr.bf16.mxu0 %v2222
    %2408 = vmatpush2.bf16.msra.mxu0 %v2221
    %2409 = vmatprep.subr.bf16.mxu0 %v2220
    %2410 = vmatpush2.bf16.msra.mxu0 %v2219
    %2411 = vmatprep.subr.bf16.mxu0 %v2218
    %2412 = vmatpush2.bf16.msra.mxu0 %v2217
    %2413 = vmatprep.subr.bf16.mxu0 %v2216
    %2414 = vmatpush2.bf16.msra.mxu0 %v2215
    %2415 = vmatprep.subr.bf16.mxu0 %v2214
    %2416 = vmatpush2.bf16.msra.mxu0 %v2213
    %2417 = vmatprep.subr.bf16.mxu0 %v2212
    %2418 = vmatpush2.bf16.msra.mxu0 %v2211
    %2419 = vmatprep.mubr.bf16.mxu0 %v176
    %2420 = vmatmul.mubr.bf16.gmra.mxu0 %v175
    %v2421 = vpop.f32.mrf.mxu0
    %v2422 = vadd.f32 %v1899, %v2421
    %v2423 = vpop.f32.mrf.mxu0
    %v2424 = vadd.f32 %v1901, %v2423
    %v2425 = vpop.f32.mrf.mxu0
    %v2426 = vadd.f32 %v1903, %v2425
    %v2427 = vpop.f32.mrf.mxu0
    %v2428 = vadd.f32 %v1905, %v2427
    %2429 = vdwg.mxu0
    %2430 = vmatprep.subr.bf16.mxu0 %v2242
    %2431 = vmatpush1.bf16.msra.mxu0 %v2241
    %2432 = vmatprep.subr.bf16.mxu0 %v2240
    %2433 = vmatpush1.bf16.msra.mxu0 %v2239
    %2434 = vmatprep.subr.bf16.mxu0 %v2238
    %2435 = vmatpush1.bf16.msra.mxu0 %v2237
    %2436 = vmatprep.subr.bf16.mxu0 %v2236
    %2437 = vmatpush1.bf16.msra.mxu0 %v2235
    %2438 = vmatprep.subr.bf16.mxu0 %v2234
    %2439 = vmatpush1.bf16.msra.mxu0 %v2233
    %2440 = vmatprep.subr.bf16.mxu0 %v2232
    %2441 = vmatpush1.bf16.msra.mxu0 %v2231
    %2442 = vmatprep.subr.bf16.mxu0 %v2230
    %2443 = vmatpush1.bf16.msra.mxu0 %v2229
    %2444 = vmatprep.subr.bf16.mxu0 %v2228
    %2445 = vmatpush1.bf16.msra.mxu0 %v2227
    %2446 = vmatprep.subr.bf16.mxu0 %v2258
    %2447 = vmatpush2.bf16.msra.mxu0 %v2257
    %2448 = vmatprep.subr.bf16.mxu0 %v2256
    %2449 = vmatpush2.bf16.msra.mxu0 %v2255
    %2450 = vmatprep.subr.bf16.mxu0 %v2254
    %2451 = vmatpush2.bf16.msra.mxu0 %v2253
    %2452 = vmatprep.subr.bf16.mxu0 %v2252
    %2453 = vmatpush2.bf16.msra.mxu0 %v2251
    %2454 = vmatprep.subr.bf16.mxu0 %v2250
    %2455 = vmatpush2.bf16.msra.mxu0 %v2249
    %2456 = vmatprep.subr.bf16.mxu0 %v2248
    %2457 = vmatpush2.bf16.msra.mxu0 %v2247
    %2458 = vmatprep.subr.bf16.mxu0 %v2246
    %2459 = vmatpush2.bf16.msra.mxu0 %v2245
    %2460 = vmatprep.subr.bf16.mxu0 %v2244
    %2461 = vmatpush2.bf16.msra.mxu0 %v2243
    %2462 = vmatprep.mubr.bf16.mxu0 %v178
    %2463 = vmatmul.mubr.bf16.gmra.mxu0 %v177
    %v2464 = vpop.f32.mrf.mxu0
    %v2465 = vadd.f32 %v2422, %v2464
    %v2466 = vpop.f32.mrf.mxu0
    %v2467 = vadd.f32 %v2424, %v2466
    %v2468 = vpop.f32.mrf.mxu0
    %v2469 = vadd.f32 %v2426, %v2468
    %v2470 = vpop.f32.mrf.mxu0
    %v2471 = vadd.f32 %v2428, %v2470
    %2472 = vdwg.mxu0
    %2473 = vmatprep.subr.bf16.mxu0 %v2274
    %2474 = vmatpush1.bf16.msra.mxu0 %v2273
    %2475 = vmatprep.subr.bf16.mxu0 %v2272
    %2476 = vmatpush1.bf16.msra.mxu0 %v2271
    %2477 = vmatprep.subr.bf16.mxu0 %v2270
    %2478 = vmatpush1.bf16.msra.mxu0 %v2269
    %2479 = vmatprep.subr.bf16.mxu0 %v2268
    %2480 = vmatpush1.bf16.msra.mxu0 %v2267
    %2481 = vmatprep.subr.bf16.mxu0 %v2266
    %2482 = vmatpush1.bf16.msra.mxu0 %v2265
    %2483 = vmatprep.subr.bf16.mxu0 %v2264
    %2484 = vmatpush1.bf16.msra.mxu0 %v2263
    %2485 = vmatprep.subr.bf16.mxu0 %v2262
    %2486 = vmatpush1.bf16.msra.mxu0 %v2261
    %2487 = vmatprep.subr.bf16.mxu0 %v2260
    %2488 = vmatpush1.bf16.msra.mxu0 %v2259
    %2489 = vmatprep.subr.bf16.mxu0 %v2290
    %2490 = vmatpush2.bf16.msra.mxu0 %v2289
    %2491 = vmatprep.subr.bf16.mxu0 %v2288
    %2492 = vmatpush2.bf16.msra.mxu0 %v2287
    %2493 = vmatprep.subr.bf16.mxu0 %v2286
    %2494 = vmatpush2.bf16.msra.mxu0 %v2285
    %2495 = vmatprep.subr.bf16.mxu0 %v2284
    %2496 = vmatpush2.bf16.msra.mxu0 %v2283
    %2497 = vmatprep.subr.bf16.mxu0 %v2282
    %2498 = vmatpush2.bf16.msra.mxu0 %v2281
    %2499 = vmatprep.subr.bf16.mxu0 %v2280
    %2500 = vmatpush2.bf16.msra.mxu0 %v2279
    %2501 = vmatprep.subr.bf16.mxu0 %v2278
    %2502 = vmatpush2.bf16.msra.mxu0 %v2277
    %2503 = vmatprep.subr.bf16.mxu0 %v2276
    %2504 = vmatpush2.bf16.msra.mxu0 %v2275
    %2505 = vmatprep.mubr.bf16.mxu0 %v180
    %2506 = vmatmul.mubr.bf16.gmra.mxu0 %v179
    %v2507 = vpop.f32.mrf.mxu0
    %v2508 = vadd.f32 %v2465, %v2507
    %v2509 = vpop.f32.mrf.mxu0
    %v2510 = vadd.f32 %v2467, %v2509
    %v2511 = vpop.f32.mrf.mxu0
    %v2512 = vadd.f32 %v2469, %v2511
    %v2513 = vpop.f32.mrf.mxu0
    %v2514 = vadd.f32 %v2471, %v2513
    %2515 = vdwg.mxu0
    %v2516 = vld [vmem:[#allocation11] sm:$0xff]
    %v2517 = vld [vmem:[#allocation11 + $0x8] sm:$0xff]
    %v2518 = vld [vmem:[#allocation11 + $0x10] sm:$0xff]
    %v2519 = vld [vmem:[#allocation11 + $0x18] sm:$0xff]
    %v2520 = vld [vmem:[#allocation11 + $0x20] sm:$0xff]
    %v2521 = vld [vmem:[#allocation11 + $0x28] sm:$0xff]
    %v2522 = vld [vmem:[#allocation11 + $0x30] sm:$0xff]
    %v2523 = vld [vmem:[#allocation11 + $0x38] sm:$0xff]
    %v2524 = vld [vmem:[#allocation11 + $0x40] sm:$0xff]
    %v2525 = vld [vmem:[#allocation11 + $0x48] sm:$0xff]
    %v2526 = vld [vmem:[#allocation11 + $0x50] sm:$0xff]
    %v2527 = vld [vmem:[#allocation11 + $0x58] sm:$0xff]
    %v2528 = vld [vmem:[#allocation11 + $0x60] sm:$0xff]
    %v2529 = vld [vmem:[#allocation11 + $0x68] sm:$0xff]
    %v2530 = vld [vmem:[#allocation11 + $0x70] sm:$0xff]
    %v2531 = vld [vmem:[#allocation11 + $0x78] sm:$0xff]
    %v2532 = vld [vmem:[#allocation11 + $0x80] sm:$0xff]
    %v2533 = vld [vmem:[#allocation11 + $0x88] sm:$0xff]
    %v2534 = vld [vmem:[#allocation11 + $0x90] sm:$0xff]
    %v2535 = vld [vmem:[#allocation11 + $0x98] sm:$0xff]
    %v2536 = vld [vmem:[#allocation11 + $0xa0] sm:$0xff]
    %v2537 = vld [vmem:[#allocation11 + $0xa8] sm:$0xff]
    %v2538 = vld [vmem:[#allocation11 + $0xb0] sm:$0xff]
    %v2539 = vld [vmem:[#allocation11 + $0xb8] sm:$0xff]
    %v2540 = vld [vmem:[#allocation11 + $0xc0] sm:$0xff]
    %v2541 = vld [vmem:[#allocation11 + $0xc8] sm:$0xff]
    %v2542 = vld [vmem:[#allocation11 + $0xd0] sm:$0xff]
    %v2543 = vld [vmem:[#allocation11 + $0xd8] sm:$0xff]
    %v2544 = vld [vmem:[#allocation11 + $0xe0] sm:$0xff]
    %v2545 = vld [vmem:[#allocation11 + $0xe8] sm:$0xff]
    %v2546 = vld [vmem:[#allocation11 + $0xf0] sm:$0xff]
    %v2547 = vld [vmem:[#allocation11 + $0xf8] sm:$0xff]
    %v2548 = vld [vmem:[#allocation11 + $0x100] sm:$0xff]
    %v2549 = vld [vmem:[#allocation11 + $0x108] sm:$0xff]
    %v2550 = vld [vmem:[#allocation11 + $0x110] sm:$0xff]
    %v2551 = vld [vmem:[#allocation11 + $0x118] sm:$0xff]
    %v2552 = vld [vmem:[#allocation11 + $0x120] sm:$0xff]
    %v2553 = vld [vmem:[#allocation11 + $0x128] sm:$0xff]
    %v2554 = vld [vmem:[#allocation11 + $0x130] sm:$0xff]
    %v2555 = vld [vmem:[#allocation11 + $0x138] sm:$0xff]
    %v2556 = vld [vmem:[#allocation11 + $0x140] sm:$0xff]
    %v2557 = vld [vmem:[#allocation11 + $0x148] sm:$0xff]
    %v2558 = vld [vmem:[#allocation11 + $0x150] sm:$0xff]
    %v2559 = vld [vmem:[#allocation11 + $0x158] sm:$0xff]
    %v2560 = vld [vmem:[#allocation11 + $0x160] sm:$0xff]
    %v2561 = vld [vmem:[#allocation11 + $0x168] sm:$0xff]
    %v2562 = vld [vmem:[#allocation11 + $0x170] sm:$0xff]
    %v2563 = vld [vmem:[#allocation11 + $0x178] sm:$0xff]
    %v2612 = vunpack.c.l.b16 %v2516
    %v2613 = vunpack.c.h.b16 %v2516
    %v2614 = vunpack.c.l.b16 %v2517
    %v2615 = vunpack.c.h.b16 %v2517
    %v2616 = vunpack.c.l.b16 %v2518
    %v2617 = vunpack.c.h.b16 %v2518
    %v2618 = vunpack.c.l.b16 %v2519
    %v2619 = vunpack.c.h.b16 %v2519
    %v2620 = vunpack.c.l.b16 %v2520
    %v2621 = vunpack.c.h.b16 %v2520
    %v2622 = vunpack.c.l.b16 %v2521
    %v2623 = vunpack.c.h.b16 %v2521
    %v2624 = vunpack.c.l.b16 %v2522
    %v2625 = vunpack.c.h.b16 %v2522
    %v2626 = vunpack.c.l.b16 %v2523
    %v2627 = vunpack.c.h.b16 %v2523
    %v2628 = vunpack.c.l.b16 %v2524
    %v2629 = vunpack.c.h.b16 %v2524
    %v2630 = vunpack.c.l.b16 %v2525
    %v2631 = vunpack.c.h.b16 %v2525
    %v2632 = vunpack.c.l.b16 %v2526
    %v2633 = vunpack.c.h.b16 %v2526
    %v2634 = vunpack.c.l.b16 %v2527
    %v2635 = vunpack.c.h.b16 %v2527
    %v2636 = vunpack.c.l.b16 %v2528
    %v2637 = vunpack.c.h.b16 %v2528
    %v2638 = vunpack.c.l.b16 %v2529
    %v2639 = vunpack.c.h.b16 %v2529
    %v2640 = vunpack.c.l.b16 %v2530
    %v2641 = vunpack.c.h.b16 %v2530
    %v2642 = vunpack.c.l.b16 %v2531
    %v2643 = vunpack.c.h.b16 %v2531
    %v2644 = vunpack.c.l.b16 %v2532
    %v2645 = vunpack.c.h.b16 %v2532
    %v2646 = vunpack.c.l.b16 %v2533
    %v2647 = vunpack.c.h.b16 %v2533
    %v2648 = vunpack.c.l.b16 %v2534
    %v2649 = vunpack.c.h.b16 %v2534
    %v2650 = vunpack.c.l.b16 %v2535
    %v2651 = vunpack.c.h.b16 %v2535
    %v2652 = vunpack.c.l.b16 %v2536
    %v2653 = vunpack.c.h.b16 %v2536
    %v2654 = vunpack.c.l.b16 %v2537
    %v2655 = vunpack.c.h.b16 %v2537
    %v2656 = vunpack.c.l.b16 %v2538
    %v2657 = vunpack.c.h.b16 %v2538
    %v2658 = vunpack.c.l.b16 %v2539
    %v2659 = vunpack.c.h.b16 %v2539
    %v2660 = vunpack.c.l.b16 %v2540
    %v2661 = vunpack.c.h.b16 %v2540
    %v2662 = vunpack.c.l.b16 %v2541
    %v2663 = vunpack.c.h.b16 %v2541
    %v2664 = vunpack.c.l.b16 %v2542
    %v2665 = vunpack.c.h.b16 %v2542
    %v2666 = vunpack.c.l.b16 %v2543
    %v2667 = vunpack.c.h.b16 %v2543
    %v2668 = vunpack.c.l.b16 %v2544
    %v2669 = vunpack.c.h.b16 %v2544
    %v2670 = vunpack.c.l.b16 %v2545
    %v2671 = vunpack.c.h.b16 %v2545
    %v2672 = vunpack.c.l.b16 %v2546
    %v2673 = vunpack.c.h.b16 %v2546
    %v2674 = vunpack.c.l.b16 %v2547
    %v2675 = vunpack.c.h.b16 %v2547
    %v2676 = vunpack.c.l.b16 %v2548
    %v2677 = vunpack.c.h.b16 %v2548
    %v2678 = vunpack.c.l.b16 %v2549
    %v2679 = vunpack.c.h.b16 %v2549
    %v2680 = vunpack.c.l.b16 %v2550
    %v2681 = vunpack.c.h.b16 %v2550
    %v2682 = vunpack.c.l.b16 %v2551
    %v2683 = vunpack.c.h.b16 %v2551
    %v2684 = vunpack.c.l.b16 %v2552
    %v2685 = vunpack.c.h.b16 %v2552
    %v2686 = vunpack.c.l.b16 %v2553
    %v2687 = vunpack.c.h.b16 %v2553
    %v2688 = vunpack.c.l.b16 %v2554
    %v2689 = vunpack.c.h.b16 %v2554
    %v2690 = vunpack.c.l.b16 %v2555
    %v2691 = vunpack.c.h.b16 %v2555
    %v2692 = vunpack.c.l.b16 %v2556
    %v2693 = vunpack.c.h.b16 %v2556
    %v2694 = vunpack.c.l.b16 %v2557
    %v2695 = vunpack.c.h.b16 %v2557
    %v2696 = vunpack.c.l.b16 %v2558
    %v2697 = vunpack.c.h.b16 %v2558
    %v2698 = vunpack.c.l.b16 %v2559
    %v2699 = vunpack.c.h.b16 %v2559
    %v2700 = vunpack.c.l.b16 %v2560
    %v2701 = vunpack.c.h.b16 %v2560
    %v2702 = vunpack.c.l.b16 %v2561
    %v2703 = vunpack.c.h.b16 %v2561
    %v2704 = vunpack.c.l.b16 %v2562
    %v2705 = vunpack.c.h.b16 %v2562
    %v2706 = vunpack.c.l.b16 %v2563
    %v2707 = vunpack.c.h.b16 %v2563
    %v2708 = vpack.c.b16 %v2614, %v2612
    %v2709 = vpack.c.b16 %v2615, %v2613
    %v2710 = vpack.c.b16 %v2618, %v2616
    %v2711 = vpack.c.b16 %v2619, %v2617
    %v2712 = vpack.c.b16 %v2622, %v2620
    %v2713 = vpack.c.b16 %v2623, %v2621
    %v2714 = vpack.c.b16 %v2626, %v2624
    %v2715 = vpack.c.b16 %v2627, %v2625
    %v2716 = vpack.c.b16 %v2630, %v2628
    %v2717 = vpack.c.b16 %v2631, %v2629
    %v2718 = vpack.c.b16 %v2634, %v2632
    %v2719 = vpack.c.b16 %v2635, %v2633
    %v2720 = vpack.c.b16 %v2638, %v2636
    %v2721 = vpack.c.b16 %v2639, %v2637
    %v2722 = vpack.c.b16 %v2642, %v2640
    %v2723 = vpack.c.b16 %v2643, %v2641
    %v2724 = vpack.c.b16 %v2646, %v2644
    %v2725 = vpack.c.b16 %v2647, %v2645
    %v2726 = vpack.c.b16 %v2650, %v2648
    %v2727 = vpack.c.b16 %v2651, %v2649
    %v2728 = vpack.c.b16 %v2654, %v2652
    %v2729 = vpack.c.b16 %v2655, %v2653
    %v2730 = vpack.c.b16 %v2658, %v2656
    %v2731 = vpack.c.b16 %v2659, %v2657
    %v2732 = vpack.c.b16 %v2662, %v2660
    %v2733 = vpack.c.b16 %v2663, %v2661
    %v2734 = vpack.c.b16 %v2666, %v2664
    %v2735 = vpack.c.b16 %v2667, %v2665
    %v2736 = vpack.c.b16 %v2670, %v2668
    %v2737 = vpack.c.b16 %v2671, %v2669
    %v2738 = vpack.c.b16 %v2674, %v2672
    %v2739 = vpack.c.b16 %v2675, %v2673
    %v2740 = vpack.c.b16 %v2678, %v2676
    %v2741 = vpack.c.b16 %v2679, %v2677
    %v2742 = vpack.c.b16 %v2682, %v2680
    %v2743 = vpack.c.b16 %v2683, %v2681
    %v2744 = vpack.c.b16 %v2686, %v2684
    %v2745 = vpack.c.b16 %v2687, %v2685
    %v2746 = vpack.c.b16 %v2690, %v2688
    %v2747 = vpack.c.b16 %v2691, %v2689
    %v2748 = vpack.c.b16 %v2694, %v2692
    %v2749 = vpack.c.b16 %v2695, %v2693
    %v2750 = vpack.c.b16 %v2698, %v2696
    %v2751 = vpack.c.b16 %v2699, %v2697
    %v2752 = vpack.c.b16 %v2702, %v2700
    %v2753 = vpack.c.b16 %v2703, %v2701
    %v2754 = vpack.c.b16 %v2706, %v2704
    %v2755 = vpack.c.b16 %v2707, %v2705
    %2804 = vmatprep.subr.bf16.mxu0 %v2723
    %2805 = vmatpush1.bf16.msra.mxu0 %v2722
    %2806 = vmatprep.subr.bf16.mxu0 %v2721
    %2807 = vmatpush1.bf16.msra.mxu0 %v2720
    %2808 = vmatprep.subr.bf16.mxu0 %v2719
    %2809 = vmatpush1.bf16.msra.mxu0 %v2718
    %2810 = vmatprep.subr.bf16.mxu0 %v2717
    %2811 = vmatpush1.bf16.msra.mxu0 %v2716
    %2812 = vmatprep.subr.bf16.mxu0 %v2715
    %2813 = vmatpush1.bf16.msra.mxu0 %v2714
    %2814 = vmatprep.subr.bf16.mxu0 %v2713
    %2815 = vmatpush1.bf16.msra.mxu0 %v2712
    %2816 = vmatprep.subr.bf16.mxu0 %v2711
    %2817 = vmatpush1.bf16.msra.mxu0 %v2710
    %2818 = vmatprep.subr.bf16.mxu0 %v2709
    %2819 = vmatpush1.bf16.msra.mxu0 %v2708
    %2820 = vmatprep.subr.bf16.mxu0 %v2739
    %2821 = vmatpush2.bf16.msra.mxu0 %v2738
    %2822 = vmatprep.subr.bf16.mxu0 %v2737
    %2823 = vmatpush2.bf16.msra.mxu0 %v2736
    %2824 = vmatprep.subr.bf16.mxu0 %v2735
    %2825 = vmatpush2.bf16.msra.mxu0 %v2734
    %2826 = vmatprep.subr.bf16.mxu0 %v2733
    %2827 = vmatpush2.bf16.msra.mxu0 %v2732
    %2828 = vmatprep.subr.bf16.mxu0 %v2731
    %2829 = vmatpush2.bf16.msra.mxu0 %v2730
    %2830 = vmatprep.subr.bf16.mxu0 %v2729
    %2831 = vmatpush2.bf16.msra.mxu0 %v2728
    %2832 = vmatprep.subr.bf16.mxu0 %v2727
    %2833 = vmatpush2.bf16.msra.mxu0 %v2726
    %2834 = vmatprep.subr.bf16.mxu0 %v2725
    %2835 = vmatpush2.bf16.msra.mxu0 %v2724
    %2836 = vmatprep.mubr.bf16.mxu0 %v1670
    %2837 = vmatmul.mubr.bf16.gmra.mxu0 %v1669
    %v2838 = vpop.f32.mrf.mxu0
    %v2839 = vadd.f32 0.0, %v2838
    %v2840 = vpop.f32.mrf.mxu0
    %v2841 = vadd.f32 0.0, %v2840
    %v2842 = vpop.f32.mrf.mxu0
    %v2843 = vadd.f32 0.0, %v2842
    %v2844 = vpop.f32.mrf.mxu0
    %v2845 = vadd.f32 0.0, %v2844
    %2846 = vdwg.mxu0
    %2847 = vmatprep.subr.bf16.mxu0 %v2755
    %2848 = vmatpush1.bf16.msra.mxu0 %v2754
    %2849 = vmatprep.subr.bf16.mxu0 %v2753
    %2850 = vmatpush1.bf16.msra.mxu0 %v2752
    %2851 = vmatprep.subr.bf16.mxu0 %v2751
    %2852 = vmatpush1.bf16.msra.mxu0 %v2750
    %2853 = vmatprep.subr.bf16.mxu0 %v2749
    %2854 = vmatpush1.bf16.msra.mxu0 %v2748
    %2855 = vmatprep.subr.bf16.mxu0 %v2747
    %2856 = vmatpush1.bf16.msra.mxu0 %v2746
    %2857 = vmatprep.subr.bf16.mxu0 %v2745
    %2858 = vmatpush1.bf16.msra.mxu0 %v2744
    %2859 = vmatprep.subr.bf16.mxu0 %v2743
    %2860 = vmatpush1.bf16.msra.mxu0 %v2742
    %2861 = vmatprep.subr.bf16.mxu0 %v2741
    %2862 = vmatpush1.bf16.msra.mxu0 %v2740
    %2863 = vmatprep.subr.bf16.mxu0 0
    %2864 = vmatpush2.bf16.msra.mxu0 0
    %2865 = vmatprep.subr.bf16.mxu0 0
    %2866 = vmatpush2.bf16.msra.mxu0 0
    %2867 = vmatprep.subr.bf16.mxu0 0
    %2868 = vmatpush2.bf16.msra.mxu0 0
    %2869 = vmatprep.subr.bf16.mxu0 0
    %2870 = vmatpush2.bf16.msra.mxu0 0
    %2871 = vmatprep.subr.bf16.mxu0 0
    %2872 = vmatpush2.bf16.msra.mxu0 0
    %2873 = vmatprep.subr.bf16.mxu0 0
    %2874 = vmatpush2.bf16.msra.mxu0 0
    %2875 = vmatprep.subr.bf16.mxu0 0
    %2876 = vmatpush2.bf16.msra.mxu0 0
    %2877 = vmatprep.subr.bf16.mxu0 0
    %2878 = vmatpush2.bf16.msra.mxu0 0
    %2879 = vmatprep.mubr.bf16.mxu0 0
    %2880 = vmatmul.mubr.bf16.gmra.mxu0 %v1671
    %v2881 = vpop.f32.mrf.mxu0
    %v2882 = vadd.f32 %v2839, %v2881
    %v2883 = vpop.f32.mrf.mxu0
    %v2884 = vadd.f32 %v2841, %v2883
    %v2885 = vpop.f32.mrf.mxu0
    %v2886 = vadd.f32 %v2843, %v2885
    %v2887 = vpop.f32.mrf.mxu0
    %v2888 = vadd.f32 %v2845, %v2887
    %2889 = vdwg.mxu0
    %v2890 = vadd.f32 %v2508, %v2882
    %v2891 = vadd.f32 %v2510, %v2884
    %v2892 = vadd.f32 %v2512, %v2886
    %v2893 = vadd.f32 %v2514, %v2888
    %v2894 = vld [vmem:[#allocation13] sm:$0x3]
    %v2896 = vlaneseq
    %v2897 = vshrl.u32 %v2896, 7
    %v2898 = vsub.s32 0, %v2897
    %v2899 = vrot.slane %v2894, %v2898
    %v2900 = vlaneseq
    %v2901 = vshrl.u32 %v2900, 7
    %v2902 = vsub.s32 1, %v2901
    %v2903 = vrot.slane %v2894, %v2902
    %v2906 = vadd.f32 %v2890, %v2899
    %v2907 = vadd.f32 %v2891, %v2903
    %v2908 = vadd.f32 %v2892, %v2899
    %v2909 = vadd.f32 %v2893, %v2903
    %v2910 = vpack.c.bf16 %v2908, %v2906
    %v2911 = vpack.c.bf16 %v2909, %v2907
    %v2913 = vunpack.c.l.b16 %v2910
    %v2914 = vunpack.c.h.b16 %v2910
    %v2915 = vpack.c.b16 %v2913, %v2913
    %v2916 = vpack.c.b16 %v2914, %v2914
    %2919 = vst [vmem:[%s12] sm:$0xf] %v2915
    %2920 = vst [vmem:[%s12 + $0x4] sm:$0xf] %v2916
    %v2922 = vunpack.c.l.b16 %v2911
    %v2923 = vunpack.c.h.b16 %v2911
    %v2924 = vpack.c.b16 %v2922, %v2922
    %v2925 = vpack.c.b16 %v2923, %v2923
    %2928 = vst [vmem:[%s13] sm:$0xf] %v2924
    %2929 = vst [vmem:[%s13 + $0x4] sm:$0xf] %v2925
    %v2930 = vld [vmem:[#allocation14] sm:$0xf]
    %v2931 = vld [vmem:[#allocation14 + $0x4] sm:$0xf]
    %v2932 = vld [vmem:[#allocation14 + $0x8] sm:$0xf]
    %v2933 = vld [vmem:[#allocation14 + $0xc] sm:$0xf]
    %v2934 = vld [vmem:[#allocation14 + $0x10] sm:$0xf]
    %v2935 = vld [vmem:[#allocation14 + $0x14] sm:$0xf]
    %v2936 = vld [vmem:[#allocation14 + $0x18] sm:$0xf]
    %v2937 = vld [vmem:[#allocation14 + $0x1c] sm:$0xf]
    %v2938 = vld [vmem:[#allocation14 + $0x20] sm:$0xf]
    %v2939 = vld [vmem:[#allocation14 + $0x24] sm:$0xf]
    %v2940 = vld [vmem:[#allocation14 + $0x28] sm:$0xf]
    %v2941 = vld [vmem:[#allocation14 + $0x2c] sm:$0xf]
    %v2942 = vld [vmem:[#allocation14 + $0x30] sm:$0xf]
    %v2943 = vld [vmem:[#allocation14 + $0x34] sm:$0xf]
    %v2944 = vld [vmem:[#allocation14 + $0x38] sm:$0xf]
    %v2945 = vld [vmem:[#allocation14 + $0x3c] sm:$0xf]
    %v2962 = vunpack.c.l.b16 %v2930
    %v2963 = vunpack.c.l.b16 %v2931
    %v2964 = vunpack.c.l.b16 %v2932
    %v2965 = vunpack.c.l.b16 %v2933
    %v2966 = vunpack.c.l.b16 %v2934
    %v2967 = vunpack.c.l.b16 %v2935
    %v2968 = vunpack.c.l.b16 %v2936
    %v2969 = vunpack.c.l.b16 %v2937
    %v2970 = vunpack.c.l.b16 %v2938
    %v2971 = vunpack.c.l.b16 %v2939
    %v2972 = vunpack.c.l.b16 %v2940
    %v2973 = vunpack.c.l.b16 %v2941
    %v2974 = vunpack.c.l.b16 %v2942
    %v2975 = vunpack.c.l.b16 %v2943
    %v2976 = vunpack.c.l.b16 %v2944
    %v2977 = vunpack.c.l.b16 %v2945
    %v2978 = vpack.c.b16 %v2963, %v2962
    %v2979 = vpack.c.b16 %v2965, %v2964
    %v2980 = vpack.c.b16 %v2967, %v2966
    %v2981 = vpack.c.b16 %v2969, %v2968
    %v2982 = vpack.c.b16 %v2971, %v2970
    %v2983 = vpack.c.b16 %v2973, %v2972
    %v2984 = vpack.c.b16 %v2975, %v2974
    %v2985 = vpack.c.b16 %v2977, %v2976
    %2994 = vmatprep.subr.bf16.mxu0 0
    %2995 = vmatpush1.bf16.msra.mxu0 %v2985
    %2996 = vmatprep.subr.bf16.mxu0 0
    %2997 = vmatpush1.bf16.msra.mxu0 %v2984
    %2998 = vmatprep.subr.bf16.mxu0 0
    %2999 = vmatpush1.bf16.msra.mxu0 %v2983
    %3000 = vmatprep.subr.bf16.mxu0 0
    %3001 = vmatpush1.bf16.msra.mxu0 %v2982
    %3002 = vmatprep.subr.bf16.mxu0 0
    %3003 = vmatpush1.bf16.msra.mxu0 %v2981
    %3004 = vmatprep.subr.bf16.mxu0 0
    %3005 = vmatpush1.bf16.msra.mxu0 %v2980
    %3006 = vmatprep.subr.bf16.mxu0 0
    %3007 = vmatpush1.bf16.msra.mxu0 %v2979
    %3008 = vmatprep.subr.bf16.mxu0 0
    %3009 = vmatpush1.bf16.msra.mxu0 %v2978
    %3010 = vmatprep.subr.bf16.mxu0 0
    %3011 = vmatpush2.bf16.msra.mxu0 0
    %3012 = vmatprep.subr.bf16.mxu0 0
    %3013 = vmatpush2.bf16.msra.mxu0 0
    %3014 = vmatprep.subr.bf16.mxu0 0
    %3015 = vmatpush2.bf16.msra.mxu0 0
    %3016 = vmatprep.subr.bf16.mxu0 0
    %3017 = vmatpush2.bf16.msra.mxu0 0
    %3018 = vmatprep.subr.bf16.mxu0 0
    %3019 = vmatpush2.bf16.msra.mxu0 0
    %3020 = vmatprep.subr.bf16.mxu0 0
    %3021 = vmatpush2.bf16.msra.mxu0 0
    %3022 = vmatprep.subr.bf16.mxu0 0
    %3023 = vmatpush2.bf16.msra.mxu0 0
    %3024 = vmatprep.subr.bf16.mxu0 0
    %3025 = vmatpush2.bf16.msra.mxu0 0
    %3026 = vmatprep.mubr.bf16.mxu0 0
    %3027 = vmatmul.mubr.bf16.gmra.mxu0 %v2910
    %v3028 = vpop.f32.mrf.mxu0
    %v3029 = vadd.f32 0.0, %v3028
    %v3030 = vpop.f32.mrf.mxu0
    %v3031 = vpop.f32.mrf.mxu0
    %v3032 = vadd.f32 0.0, %v3031
    %v3033 = vpop.f32.mrf.mxu0
    %3034 = vdwg.mxu0
    %3035 = vst [vmem:[%s14] sm:$0xff] %v3029
    %3036 = vst [vmem:[%s14 + $0x8] sm:$0xff] %v3032
    %v3037 = vld [vmem:[#allocation16] sm:$0xf]
    %v3038 = vld [vmem:[#allocation16 + $0x4] sm:$0xf]
    %v3039 = vld [vmem:[#allocation16 + $0x8] sm:$0xf]
    %v3040 = vld [vmem:[#allocation16 + $0xc] sm:$0xf]
    %v3041 = vld [vmem:[#allocation16 + $0x10] sm:$0xf]
    %v3042 = vld [vmem:[#allocation16 + $0x14] sm:$0xf]
    %v3043 = vld [vmem:[#allocation16 + $0x18] sm:$0xf]
    %v3044 = vld [vmem:[#allocation16 + $0x1c] sm:$0xf]
    %v3045 = vld [vmem:[#allocation16 + $0x20] sm:$0xf]
    %v3046 = vld [vmem:[#allocation16 + $0x24] sm:$0xf]
    %v3047 = vld [vmem:[#allocation16 + $0x28] sm:$0xf]
    %v3048 = vld [vmem:[#allocation16 + $0x2c] sm:$0xf]
    %v3049 = vld [vmem:[#allocation16 + $0x30] sm:$0xf]
    %v3050 = vld [vmem:[#allocation16 + $0x34] sm:$0xf]
    %v3051 = vld [vmem:[#allocation16 + $0x38] sm:$0xf]
    %v3052 = vld [vmem:[#allocation16 + $0x3c] sm:$0xf]
    %v3069 = vunpack.c.l.b16 %v3037
    %v3070 = vunpack.c.l.b16 %v3038
    %v3071 = vunpack.c.l.b16 %v3039
    %v3072 = vunpack.c.l.b16 %v3040
    %v3073 = vunpack.c.l.b16 %v3041
    %v3074 = vunpack.c.l.b16 %v3042
    %v3075 = vunpack.c.l.b16 %v3043
    %v3076 = vunpack.c.l.b16 %v3044
    %v3077 = vunpack.c.l.b16 %v3045
    %v3078 = vunpack.c.l.b16 %v3046
    %v3079 = vunpack.c.l.b16 %v3047
    %v3080 = vunpack.c.l.b16 %v3048
    %v3081 = vunpack.c.l.b16 %v3049
    %v3082 = vunpack.c.l.b16 %v3050
    %v3083 = vunpack.c.l.b16 %v3051
    %v3084 = vunpack.c.l.b16 %v3052
    %v3085 = vpack.c.b16 %v3070, %v3069
    %v3086 = vpack.c.b16 %v3072, %v3071
    %v3087 = vpack.c.b16 %v3074, %v3073
    %v3088 = vpack.c.b16 %v3076, %v3075
    %v3089 = vpack.c.b16 %v3078, %v3077
    %v3090 = vpack.c.b16 %v3080, %v3079
    %v3091 = vpack.c.b16 %v3082, %v3081
    %v3092 = vpack.c.b16 %v3084, %v3083
    %3101 = vmatprep.subr.bf16.mxu0 0
    %3102 = vmatpush1.bf16.msra.mxu0 %v3092
    %3103 = vmatprep.subr.bf16.mxu0 0
    %3104 = vmatpush1.bf16.msra.mxu0 %v3091
    %3105 = vmatprep.subr.bf16.mxu0 0
    %3106 = vmatpush1.bf16.msra.mxu0 %v3090
    %3107 = vmatprep.subr.bf16.mxu0 0
    %3108 = vmatpush1.bf16.msra.mxu0 %v3089
    %3109 = vmatprep.subr.bf16.mxu0 0
    %3110 = vmatpush1.bf16.msra.mxu0 %v3088
    %3111 = vmatprep.subr.bf16.mxu0 0
    %3112 = vmatpush1.bf16.msra.mxu0 %v3087
    %3113 = vmatprep.subr.bf16.mxu0 0
    %3114 = vmatpush1.bf16.msra.mxu0 %v3086
    %3115 = vmatprep.subr.bf16.mxu0 0
    %3116 = vmatpush1.bf16.msra.mxu0 %v3085
    %3117 = vmatprep.subr.bf16.mxu0 0
    %3118 = vmatpush2.bf16.msra.mxu0 0
    %3119 = vmatprep.subr.bf16.mxu0 0
    %3120 = vmatpush2.bf16.msra.mxu0 0
    %3121 = vmatprep.subr.bf16.mxu0 0
    %3122 = vmatpush2.bf16.msra.mxu0 0
    %3123 = vmatprep.subr.bf16.mxu0 0
    %3124 = vmatpush2.bf16.msra.mxu0 0
    %3125 = vmatprep.subr.bf16.mxu0 0
    %3126 = vmatpush2.bf16.msra.mxu0 0
    %3127 = vmatprep.subr.bf16.mxu0 0
    %3128 = vmatpush2.bf16.msra.mxu0 0
    %3129 = vmatprep.subr.bf16.mxu0 0
    %3130 = vmatpush2.bf16.msra.mxu0 0
    %3131 = vmatprep.subr.bf16.mxu0 0
    %3132 = vmatpush2.bf16.msra.mxu0 0
    %3133 = vmatprep.mubr.bf16.mxu0 0
    %3134 = vmatmul.mubr.bf16.gmra.mxu0 %v2911
    %v3135 = vpop.f32.mrf.mxu0
    %v3136 = vadd.f32 0.0, %v3135
    %v3137 = vpop.f32.mrf.mxu0
    %v3138 = vpop.f32.mrf.mxu0
    %v3139 = vadd.f32 0.0, %v3138
    %v3140 = vpop.f32.mrf.mxu0
    %3141 = vdwg.mxu0
    %3142 = vst [vmem:[%s15] sm:$0xff] %v3136
    %3143 = vst [vmem:[%s15 + $0x8] sm:$0xff] %v3139
    // Predicated region
    $region82: #{_pipeline_core.5} parent=1 // pred_check
      _
    $region83: #{_pipeline_core.5} parent=1 // pred_check_branch
      %3145 = sbr.rel (0) target = $region85
    $region84: #{_pipeline_core.5} parent=1 // pred_region
      %s3147 = ssub.s32 768, 768
      %3148 = vsyncadd [#allocation4], %s3147
      %s3149 = sshll.u32 [#allocation17], 4
      %s3150 = int_to_ptr.vmem [resolvable:$true] %s3149
      %3155 = dma.vmem_to_hbm [thread:$0]  %s3150, 768, %s11, [#allocation4], 384, 384, 24
    $region85: #{_pipeline_core.5} parent=1 // pred_fallthru
      _
    // Predicated region
    $region86: #{_pipeline_core.5} parent=1 // pred_check
      _
    $region87: #{_pipeline_core.5} parent=1 // pred_check_branch
      %3157 = sbr.rel (0) target = $region89
    $region88: #{_pipeline_core.5} parent=1 // pred_region
      _
    $region89: #{_pipeline_core.5} parent=1 // pred_fallthru
      _
    // Predicated region
    $region90: #{_pipeline_core.5} parent=1 // pred_check
      _
    $region91: #{_pipeline_core.5} parent=1 // pred_check_branch
      %3159 = sbr.rel (0) target = $region93
    $region92: #{_pipeline_core.5} parent=1 // pred_region
      _
    $region93: #{_pipeline_core.5} parent=1 // pred_fallthru
      _
    // Predicated region
    $region94: #{_pipeline_core.5} parent=1 // pred_check
      _
    $region95: #{_pipeline_core.5} parent=1 // pred_check_branch
      %3161 = sbr.rel (0) target = $region97
    $region96: #{_pipeline_core.5} parent=1 // pred_region
      _
    $region97: #{_pipeline_core.5} parent=1 // pred_fallthru
      _
    // Predicated region
    $region98: #{_pipeline_core.5} parent=1 // pred_check
      _
    $region99: #{_pipeline_core.5} parent=1 // pred_check_branch
      %3163 = sbr.rel (0) target = $region101
    $region100: #{_pipeline_core.5} parent=1 // pred_region
      _
    $region101: #{_pipeline_core.5} parent=1 // pred_fallthru
      _
    // Predicated region
    $region102: #{_pipeline_core.5} parent=1 // pred_check
      _
    $region103: #{_pipeline_core.5} parent=1 // pred_check_branch
      %3165 = sbr.rel (0) target = $region105
    $region104: #{_pipeline_core.5} parent=1 // pred_region
      %3166 = dma.done [#allocation4], 768
    $region105: #{_pipeline_core.5} parent=1 // pred_fallthru
      _
    // Predicated region
    $region106: #{_pipeline_core.5} parent=1 // pred_check
      _
    $region107: #{_pipeline_core.5} parent=1 // pred_check_branch
      %3168 = sbr.rel (0) target = $region109
    $region108: #{_pipeline_core.5} parent=1 // pred_region
      _
    $region109: #{_pipeline_core.5} parent=1 // pred_fallthru
      _
    // Predicated region
    $region110: #{_pipeline_core.5} parent=1 // pred_check
      _
    $region111: #{_pipeline_core.5} parent=1 // pred_check_branch
      %3170 = sbr.rel (0) target = $region113
    $region112: #{_pipeline_core.5} parent=1 // pred_region
      _
    $region113: #{_pipeline_core.5} parent=1 // pred_fallthru
      _
    // Predicated region
    $region114: #{_pipeline_core.5} parent=1 // pred_check
      _
    $region115: #{_pipeline_core.5} parent=1 // pred_check_branch
      %3172 = sbr.rel (0) target = $region117
    $region116: #{_pipeline_core.5} parent=1 // pred_region
      _
    $region117: #{_pipeline_core.5} parent=1 // pred_fallthru
      _
    // Predicated region
    $region118: #{_pipeline_core.5} parent=1 // pred_check
      _
    $region119: #{_pipeline_core.5} parent=1 // pred_check_branch
      %3174 = sbr.rel (0) target = $region121
    $region120: #{_pipeline_core.5} parent=1 // pred_region
      _
    $region121: #{_pipeline_core.5} parent=1 // pred_fallthru
      _
    %3175 = vsyncpa [#allocation3], 1
    %3176 = vsyncpa [#allocation6], 1
    %3177 = vsyncpa [#allocation9], 1
    %3178 = vsyncpa [#allocation12], 1
    %3179 = vsyncpa [#allocation15], 1
    %3180 = vsyncpa [#allocation4], 1

// kernel: _pipeline_core.7
$region0: #{_pipeline_core.7}
  #allocation0 [shape = 'u32[]', space=smem, size = 0x4, offset = 0x4, fixed_abs, tag = 'smem constant byte address 0x4 - core index']
  #allocation1 [shape = 'u32[144,128]{1,0:T(1,128)}', space=vmem, size = 0x12000, scoped, tag = 'internal scratch']
  %s0 = inlined_call_operand.vmem [shape: bf16[2048,128], index: 0, kind: input, shape index: {}]
  %s1 = inlined_call_operand.vmem [shape: bf16[16,128], index: 1, kind: input, shape index: {}]
  %s2 = inlined_call_operand.vmem [shape: f32[16,128], index: 2, kind: input, shape index: {}]
  %s3 = inlined_call_operand.vmem [shape: f32[16,128], index: 3, kind: input, shape index: {}]
  %s4 = inlined_call_operand.vmem [shape: f32[1,128], index: 4, kind: input, shape index: {}]
  %s5 = inlined_call_operand.hbm [shape: f32[16,16,128], index: 5, kind: output, shape index: {}]
  %s6 = sld [smem:[#allocation0]]
  $region53: #{_pipeline_core.7} parent=0
    _
  %s8 = ssub.s32 1, %s6
  %s9 = scalar_select 0, %s8, %s6
  $region1: #{_pipeline_core.7} parent=0
    #allocation2 [shape = 'u8[131072]{0}', space=vmem, size = 0x20000, scoped, tag = 'output window, operand 0']
    #allocation3 [shape = 's32[2]{0}', space=sflag, size = 0x8, scoped, tag = 'scoped memory for _pipeline_core.7']
    %10 = vsyncpa [#allocation3], 0
    %s11 = scalar_lea.sflag [#allocation3], 1
    %12 = vsyncpa %s11, 0
    loop: start=0, step=1, limit=4
    $region2: #{_pipeline_core.7} parent=1 // loop_pre_header
      _
    $region3: #{_pipeline_core.7} parent=1 // loop_header
      %s14 = sphi 0, %s18
      %p15 = scmp.ge.s32.totalorder %s14, 4
      %s24 = sphi 0, %s26
      %s27 = sphi 0, %s24
      %s28 = sphi 0, %s27
      %s44 = sphi 0, %s28
      %s48 = sphi 0, %s48
      %s50 = sphi 0, %s48
      %s51 = sphi 0, %s50
      %s65 = sphi 0, %s51
      %s71 = sphi 0, %s73
      %s74 = sphi 0, %s71
      %s75 = sphi 0, %s74
      %s91 = sphi 0, %s75
      %s95 = sphi 0, %s95
      %s97 = sphi 0, %s95
      %s98 = sphi 0, %s97
      %s112 = sphi 0, %s98
      %s116 = sphi 0, %s116
      %s118 = sphi 0, %s116
      %s119 = sphi 0, %s118
      %s133 = sphi 0, %s119
      %s139 = sphi 0, %s141
      %s142 = sphi 0, %s139
      %s143 = sphi 0, %s142
      %s159 = sphi 0, %s143
    $region4: #{_pipeline_core.7} parent=1 // loop_header_branch
      %17 = sbr.rel (%p15) target = $region8
    $region5: #{_pipeline_core.7} parent=1 // loop_body
      %s19 = ssub.s32 %s14, 1
      %s20 = ssub.s32 %s14, 2
      %s21 = sadd.s32 %s14, 1
      %s22 = ssub.s32 %s14, %s21
      %p23 = scmp.eq.s32.totalorder %s22, 0
      %s25 = sadd.s32 %s24, 1
      %s26 = scalar_select %p23, %s24, %s25
      %p29 = pneg %p23
      %p30 = scmp.eq.s32.totalorder %s14, 1
      %p31 = por %p29, %p30
      %p32 = scmp.ne.s32.totalorder %s24, %s27
      %p33 = scmp.eq.s32.totalorder %s14, 0
      %p34 = por %p32, %p33
      %p35 = scmp.ne.s32.totalorder %s24, %s27
      %p36 = scmp.eq.s32.totalorder %s19, 1
      %p37 = por %p35, %p36
      %p38 = scmp.ne.s32.totalorder %s27, %s28
      %p39 = scmp.eq.s32.totalorder %s19, 0
      %p40 = por %p38, %p39
      %p41 = scmp.ne.s32.totalorder %s27, %s28
      %p42 = scmp.eq.s32.totalorder %s20, 1
      %p43 = por %p41, %p42
      %p45 = scmp.ne.s32.totalorder %s28, %s44
      %p46 = scmp.eq.s32.totalorder %s20, 0
      %p47 = por %p45, %p46
      %s49 = sadd.s32 %s48, 1
      %p52 = scmp.eq.s32.totalorder %s14, 1
      %p53 = scmp.ne.s32.totalorder %s48, %s50
      %p54 = scmp.eq.s32.totalorder %s14, 0
      %p55 = por %p53, %p54
      %p56 = scmp.ne.s32.totalorder %s48, %s50
      %p57 = scmp.eq.s32.totalorder %s19, 1
      %p58 = por %p56, %p57
      %p59 = scmp.ne.s32.totalorder %s50, %s51
      %p60 = scmp.eq.s32.totalorder %s19, 0
      %p61 = por %p59, %p60
      %p62 = scmp.ne.s32.totalorder %s50, %s51
      %p63 = scmp.eq.s32.totalorder %s20, 1
      %p64 = por %p62, %p63
      %p66 = scmp.ne.s32.totalorder %s51, %s65
      %p67 = scmp.eq.s32.totalorder %s20, 0
      %p68 = por %p66, %p67
      %s69 = ssub.s32 %s14, %s21
      %p70 = scmp.eq.s32.totalorder %s69, 0
      %s72 = sadd.s32 %s71, 1
      %s73 = scalar_select %p70, %s71, %s72
      %p76 = pneg %p70
      %p77 = scmp.eq.s32.totalorder %s14, 1
      %p78 = por %p76, %p77
      %p79 = scmp.ne.s32.totalorder %s71, %s74
      %p80 = scmp.eq.s32.totalorder %s14, 0
      %p81 = por %p79, %p80
      %p82 = scmp.ne.s32.totalorder %s71, %s74
      %p83 = scmp.eq.s32.totalorder %s19, 1
      %p84 = por %p82, %p83
      %p85 = scmp.ne.s32.totalorder %s74, %s75
      %p86 = scmp.eq.s32.totalorder %s19, 0
      %p87 = por %p85, %p86
      %p88 = scmp.ne.s32.totalorder %s74, %s75
      %p89 = scmp.eq.s32.totalorder %s20, 1
      %p90 = por %p88, %p89
      %p92 = scmp.ne.s32.totalorder %s75, %s91
      %p93 = scmp.eq.s32.totalorder %s20, 0
      %p94 = por %p92, %p93
      %s96 = sadd.s32 %s95, 1
      %p99 = scmp.eq.s32.totalorder %s14, 1
      %p100 = scmp.ne.s32.totalorder %s95, %s97
      %p101 = scmp.eq.s32.totalorder %s14, 0
      %p102 = por %p100, %p101
      %p103 = scmp.ne.s32.totalorder %s95, %s97
      %p104 = scmp.eq.s32.totalorder %s19, 1
      %p105 = por %p103, %p104
      %p106 = scmp.ne.s32.totalorder %s97, %s98
      %p107 = scmp.eq.s32.totalorder %s19, 0
      %p108 = por %p106, %p107
      %p109 = scmp.ne.s32.totalorder %s97, %s98
      %p110 = scmp.eq.s32.totalorder %s20, 1
      %p111 = por %p109, %p110
      %p113 = scmp.ne.s32.totalorder %s98, %s112
      %p114 = scmp.eq.s32.totalorder %s20, 0
      %p115 = por %p113, %p114
      %s117 = sadd.s32 %s116, 1
      %p120 = scmp.eq.s32.totalorder %s14, 1
      %p121 = scmp.ne.s32.totalorder %s116, %s118
      %p122 = scmp.eq.s32.totalorder %s14, 0
      %p123 = por %p121, %p122
      %p124 = scmp.ne.s32.totalorder %s116, %s118
      %p125 = scmp.eq.s32.totalorder %s19, 1
      %p126 = por %p124, %p125
      %p127 = scmp.ne.s32.totalorder %s118, %s119
      %p128 = scmp.eq.s32.totalorder %s19, 0
      %p129 = por %p127, %p128
      %p130 = scmp.ne.s32.totalorder %s118, %s119
      %p131 = scmp.eq.s32.totalorder %s20, 1
      %p132 = por %p130, %p131
      %p134 = scmp.ne.s32.totalorder %s119, %s133
      %p135 = scmp.eq.s32.totalorder %s20, 0
      %p136 = por %p134, %p135
      %s137 = ssub.s32 %s14, %s21
      %p138 = scmp.eq.s32.totalorder %s137, 0
      %s140 = sadd.s32 %s139, 1
      %s141 = scalar_select %p138, %s139, %s140
      %p144 = pneg %p138
      %p145 = scmp.eq.s32.totalorder %s14, 1
      %p146 = por %p144, %p145
      %p147 = scmp.ne.s32.totalorder %s139, %s142
      %p148 = scmp.eq.s32.totalorder %s14, 0
      %p149 = por %p147, %p148
      %p150 = scmp.ne.s32.totalorder %s139, %s142
      %p151 = scmp.eq.s32.totalorder %s19, 1
      %p152 = por %p150, %p151
      %p153 = scmp.ne.s32.totalorder %s142, %s143
      %p154 = scmp.eq.s32.totalorder %s19, 0
      %p155 = por %p153, %p154
      %p156 = scmp.ne.s32.totalorder %s142, %s143
      %p157 = scmp.eq.s32.totalorder %s20, 1
      %p158 = por %p156, %p157
      %p160 = scmp.ne.s32.totalorder %s143, %s159
      %p161 = scmp.eq.s32.totalorder %s20, 0
      %p162 = por %p160, %p161
      %p163 = scmp.le.s32.totalorder 1, %s14
      %p164 = scmp.lt.s32.totalorder %s14, 3
      %p165 = pnand %p163, %p164
      %p166 = pneg %p165
      // Predicated region
      $region9: #{_pipeline_core.7} parent=5 // pred_check
        _
      $region10: #{_pipeline_core.7} parent=5 // pred_check_branch
        %168 = sbr.rel (%p165) target = $region12
      $region11: #{_pipeline_core.7} parent=5 // pred_region
        %s169 = ssub.s32 %s14, 1
        // Predicated region
        $region13: #{_pipeline_core.7} parent=11 // pred_check
          %p170 = pneg %p61
        $region14: #{_pipeline_core.7} parent=11 // pred_check_branch
          %172 = sbr.rel (%p170) target = $region16
        $region15: #{_pipeline_core.7} parent=11 // pred_region
          _
        $region16: #{_pipeline_core.7} parent=11 // pred_fallthru
          _
        // Predicated region
        $region17: #{_pipeline_core.7} parent=11 // pred_check
          %p173 = pneg %p108
        $region18: #{_pipeline_core.7} parent=11 // pred_check_branch
          %175 = sbr.rel (%p173) target = $region20
        $region19: #{_pipeline_core.7} parent=11 // pred_region
          _
        $region20: #{_pipeline_core.7} parent=11 // pred_fallthru
          _
        // Predicated region
        $region21: #{_pipeline_core.7} parent=11 // pred_check
          %p176 = pneg %p129
        $region22: #{_pipeline_core.7} parent=11 // pred_check_branch
          %178 = sbr.rel (%p176) target = $region24
        $region23: #{_pipeline_core.7} parent=11 // pred_region
          _
        $region24: #{_pipeline_core.7} parent=11 // pred_fallthru
          _
      $region12: #{_pipeline_core.7} parent=5 // pred_fallthru
        _
      %p179 = scmp.lt.s32.totalorder %s14, 2
      // Predicated region
      $region25: #{_pipeline_core.7} parent=5 // pred_check
        %p180 = pneg %p179
      $region26: #{_pipeline_core.7} parent=5 // pred_check_branch
        %182 = sbr.rel (%p180) target = $region28
      $region27: #{_pipeline_core.7} parent=5 // pred_region
        // Predicated region
        $region29: #{_pipeline_core.7} parent=27 // pred_check
          %p183 = pneg %p34
        $region30: #{_pipeline_core.7} parent=27 // pred_check_branch
          %185 = sbr.rel (%p183) target = $region32
        $region31: #{_pipeline_core.7} parent=27 // pred_region
          %s186 = smul.u32 128, %s14
          %p187 = scmp.lt.s32.totalorder %s186, 255
          %s188 = scalar_select %p187, %s186, 255
          %s189 = smul.addr %s188, 4
          %s190 = scalar_lea.vmem %s0, %s189
          %s191 = smul.u32 128, %s14
        $region32: #{_pipeline_core.7} parent=27 // pred_fallthru
          _
        // Predicated region
        $region33: #{_pipeline_core.7} parent=27 // pred_check
          %p192 = pneg %p81
        $region34: #{_pipeline_core.7} parent=27 // pred_check_branch
          %194 = sbr.rel (%p192) target = $region36
        $region35: #{_pipeline_core.7} parent=27 // pred_region
          %p195 = scmp.lt.s32.totalorder %s14, 1
          %s196 = scalar_select %p195, %s14, 1
          %s197 = smul.addr %s196, 8
          %s198 = scalar_lea.vmem %s2, %s197
        $region36: #{_pipeline_core.7} parent=27 // pred_fallthru
          _
      $region28: #{_pipeline_core.7} parent=5 // pred_fallthru
        _
      %p199 = scmp.le.s32.totalorder 1, %s14
      %p200 = scmp.lt.s32.totalorder %s14, 3
      %p201 = pnand %p199, %p200
      %p202 = pneg %p201
      // Predicated region
      $region37: #{_pipeline_core.7} parent=5 // pred_check
        _
      $region38: #{_pipeline_core.7} parent=5 // pred_check_branch
        %204 = sbr.rel (%p201) target = $region40
      $region39: #{_pipeline_core.7} parent=5 // pred_region
        %s205 = ssub.s32 %s14, 1
        %s206 = smul.u32 128, %s19
        %p207 = scmp.lt.s32.totalorder %s206, 255
        %s208 = scalar_select %p207, %s206, 255
        %s209 = smul.addr %s208, 4
        %s210 = scalar_lea.vmem %s0, %s209
        %p211 = pneg %p40
        %p212 = pneg %p37
        %p213 = pneg %p61
        %p214 = pneg %p58
        %p215 = scmp.lt.s32.totalorder %s19, 1
        %s216 = scalar_select %p215, %s19, 1
        %s217 = smul.addr %s216, 8
        %s218 = scalar_lea.vmem %s2, %s217
        %p219 = pneg %p87
        %p220 = pneg %p84
        %p221 = pneg %p108
        %p222 = pneg %p105
        %p223 = pneg %p129
        %p224 = pneg %p126
        %p225 = pneg %p155
        %p226 = pneg %p152
        %s227 = sand.u32 %s142, 1
        %s228 = scalar_lea.sflag [#allocation3], %s227
        %s229 = sand.u32 %s142, 1
        %s230 = smul.addr %s229, 128
        %s231 = scalar_lea.vmem [#allocation2], %s230
        %s232 = smul.u32 128, %s19
        %p233 = scmp.lt.s32.totalorder %s232, 255
        %s234 = scalar_select %p233, %s232, 255
        %s235 = smul.addr %s234, 4
        %s236 = scalar_lea.vmem %s0, %s235
        %s237 = smul.u32 128, %s19
        %p238 = scmp.lt.s32.totalorder %s19, 1
        %s239 = scalar_select %p238, %s19, 1
        %s240 = smul.addr %s239, 8
        %s241 = scalar_lea.vmem %s2, %s240
        %s242 = smul.u32 8, %s19
        %v244 = vld [vmem:[%s1] sm:$0xf]
        %v245 = vld [vmem:[%s1 + $0x4] sm:$0xf]
        %v246 = vld [vmem:[%s3] sm:$0xff]
        %v247 = vld [vmem:[%s3 + $0x8] sm:$0xff]
        %v248 = vld [vmem:[%s4] sm:$0x1]
        %v249 = vld [vmem:[%s236] sm:$0xf]
        %v250 = vld [vmem:[%s236 + $0x4] sm:$0xf]
        %v251 = vld [vmem:[%s236 + $0x8] sm:$0xf]
        %v252 = vld [vmem:[%s236 + $0xc] sm:$0xf]
        %v253 = vld [vmem:[%s236 + $0x10] sm:$0xf]
        %v254 = vld [vmem:[%s236 + $0x14] sm:$0xf]
        %v255 = vld [vmem:[%s236 + $0x18] sm:$0xf]
        %v256 = vld [vmem:[%s236 + $0x1c] sm:$0xf]
        %v257 = vld [vmem:[%s236 + $0x20] sm:$0xf]
        %v258 = vld [vmem:[%s236 + $0x24] sm:$0xf]
        %v259 = vld [vmem:[%s236 + $0x28] sm:$0xf]
        %v260 = vld [vmem:[%s236 + $0x2c] sm:$0xf]
        %v261 = vld [vmem:[%s236 + $0x30] sm:$0xf]
        %v262 = vld [vmem:[%s236 + $0x34] sm:$0xf]
        %v263 = vld [vmem:[%s236 + $0x38] sm:$0xf]
        %v264 = vld [vmem:[%s236 + $0x3c] sm:$0xf]
        %v265 = vld [vmem:[%s241] sm:$0x1]
        %v266 = vlaneseq
        %v267 = vshrl.u32 %v266, 7
        %v268 = vsub.s32 0, %v267
        %v269 = vrot.slane %v265, %v268
        %v272 = vunpack.c.l.b16 %v244
        %v273 = vunpack.c.l.b16 %v245
        %v274 = vpack.c.b16 %v273, %v272
        %v292 = vunpack.c.l.b16 %v249
        %v293 = vunpack.c.l.b16 %v250
        %v294 = vunpack.c.l.b16 %v251
        %v295 = vunpack.c.l.b16 %v252
        %v296 = vunpack.c.l.b16 %v253
        %v297 = vunpack.c.l.b16 %v254
        %v298 = vunpack.c.l.b16 %v255
        %v299 = vunpack.c.l.b16 %v256
        %v300 = vunpack.c.l.b16 %v257
        %v301 = vunpack.c.l.b16 %v258
        %v302 = vunpack.c.l.b16 %v259
        %v303 = vunpack.c.l.b16 %v260
        %v304 = vunpack.c.l.b16 %v261
        %v305 = vunpack.c.l.b16 %v262
        %v306 = vunpack.c.l.b16 %v263
        %v307 = vunpack.c.l.b16 %v264
        %v308 = vpack.c.b16 %v293, %v292
        %v309 = vpack.c.b16 %v295, %v294
        %v310 = vpack.c.b16 %v297, %v296
        %v311 = vpack.c.b16 %v299, %v298
        %v312 = vpack.c.b16 %v301, %v300
        %v313 = vpack.c.b16 %v303, %v302
        %v314 = vpack.c.b16 %v305, %v304
        %v315 = vpack.c.b16 %v307, %v306
        %324 = vmatprep.subr.bf16.mxu0 0
        %325 = vmatpush1.bf16.msra.mxu0 %v315
        %326 = vmatprep.subr.bf16.mxu0 0
        %327 = vmatpush1.bf16.msra.mxu0 %v314
        %328 = vmatprep.subr.bf16.mxu0 0
        %329 = vmatpush1.bf16.msra.mxu0 %v313
        %330 = vmatprep.subr.bf16.mxu0 0
        %331 = vmatpush1.bf16.msra.mxu0 %v312
        %332 = vmatprep.subr.bf16.mxu0 0
        %333 = vmatpush1.bf16.msra.mxu0 %v311
        %334 = vmatprep.subr.bf16.mxu0 0
        %335 = vmatpush1.bf16.msra.mxu0 %v310
        %336 = vmatprep.subr.bf16.mxu0 0
        %337 = vmatpush1.bf16.msra.mxu0 %v309
        %338 = vmatprep.subr.bf16.mxu0 0
        %339 = vmatpush1.bf16.msra.mxu0 %v308
        %340 = vmatprep.subr.bf16.mxu0 0
        %341 = vmatpush2.bf16.msra.mxu0 0
        %342 = vmatprep.subr.bf16.mxu0 0
        %343 = vmatpush2.bf16.msra.mxu0 0
        %344 = vmatprep.subr.bf16.mxu0 0
        %345 = vmatpush2.bf16.msra.mxu0 0
        %346 = vmatprep.subr.bf16.mxu0 0
        %347 = vmatpush2.bf16.msra.mxu0 0
        %348 = vmatprep.subr.bf16.mxu0 0
        %349 = vmatpush2.bf16.msra.mxu0 0
        %350 = vmatprep.subr.bf16.mxu0 0
        %351 = vmatpush2.bf16.msra.mxu0 0
        %352 = vmatprep.subr.bf16.mxu0 0
        %353 = vmatpush2.bf16.msra.mxu0 0
        %354 = vmatprep.subr.bf16.mxu0 0
        %355 = vmatpush2.bf16.msra.mxu0 0
        %356 = vmatprep.mubr.bf16.mxu0 0
        %357 = vmatmul.mubr.bf16.gmra.mxu0 %v274
        %v358 = vpop.f32.mrf.mxu0
        %v359 = vadd.f32 %v269, %v358
        %v360 = vpop.f32.mrf.mxu0
        %v361 = vpop.f32.mrf.mxu0
        %v362 = vadd.f32 %v269, %v361
        %v363 = vpop.f32.mrf.mxu0
        %364 = vdwg.mxu0
        %v365 = vadd.f32 %v359, %v246
        %v366 = vadd.f32 %v362, %v247
        %v368 = vlaneseq
        %v369 = vshrl.u32 %v368, 7
        %v370 = vsub.s32 0, %v369
        %v371 = vrot.slane %v248, %v370
        %v373 = vadd.f32 %v365, %v371
        %v374 = vadd.f32 %v366, %v371
        %375 = vst [vmem:[%s231] sm:$0xff] %v373
        %376 = vst [vmem:[%s231 + $0x8] sm:$0xff] %v374
        %v377 = vld [vmem:[%s236 + $0x40] sm:$0xf]
        %v378 = vld [vmem:[%s236 + $0x44] sm:$0xf]
        %v379 = vld [vmem:[%s236 + $0x48] sm:$0xf]
        %v380 = vld [vmem:[%s236 + $0x4c] sm:$0xf]
        %v381 = vld [vmem:[%s236 + $0x50] sm:$0xf]
        %v382 = vld [vmem:[%s236 + $0x54] sm:$0xf]
        %v383 = vld [vmem:[%s236 + $0x58] sm:$0xf]
        %v384 = vld [vmem:[%s236 + $0x5c] sm:$0xf]
        %v385 = vld [vmem:[%s236 + $0x60] sm:$0xf]
        %v386 = vld [vmem:[%s236 + $0x64] sm:$0xf]
        %v387 = vld [vmem:[%s236 + $0x68] sm:$0xf]
        %v388 = vld [vmem:[%s236 + $0x6c] sm:$0xf]
        %v389 = vld [vmem:[%s236 + $0x70] sm:$0xf]
        %v390 = vld [vmem:[%s236 + $0x74] sm:$0xf]
        %v391 = vld [vmem:[%s236 + $0x78] sm:$0xf]
        %v392 = vld [vmem:[%s236 + $0x7c] sm:$0xf]
        %v393 = vld [vmem:[%s241 + $0x1] sm:$0x1]
        %v394 = vlaneseq
        %v395 = vshrl.u32 %v394, 7
        %v396 = vsub.s32 0, %v395
        %v397 = vrot.slane %v393, %v396
        %v414 = vunpack.c.l.b16 %v377
        %v415 = vunpack.c.l.b16 %v378
        %v416 = vunpack.c.l.b16 %v379
        %v417 = vunpack.c.l.b16 %v380
        %v418 = vunpack.c.l.b16 %v381
        %v419 = vunpack.c.l.b16 %v382
        %v420 = vunpack.c.l.b16 %v383
        %v421 = vunpack.c.l.b16 %v384
        %v422 = vunpack.c.l.b16 %v385
        %v423 = vunpack.c.l.b16 %v386
        %v424 = vunpack.c.l.b16 %v387
        %v425 = vunpack.c.l.b16 %v388
        %v426 = vunpack.c.l.b16 %v389
        %v427 = vunpack.c.l.b16 %v390
        %v428 = vunpack.c.l.b16 %v391
        %v429 = vunpack.c.l.b16 %v392
        %v430 = vpack.c.b16 %v415, %v414
        %v431 = vpack.c.b16 %v417, %v416
        %v432 = vpack.c.b16 %v419, %v418
        %v433 = vpack.c.b16 %v421, %v420
        %v434 = vpack.c.b16 %v423, %v422
        %v435 = vpack.c.b16 %v425, %v424
        %v436 = vpack.c.b16 %v427, %v426
        %v437 = vpack.c.b16 %v429, %v428
        %446 = vmatprep.subr.bf16.mxu0 0
        %447 = vmatpush1.bf16.msra.mxu0 %v437
        %448 = vmatprep.subr.bf16.mxu0 0
        %449 = vmatpush1.bf16.msra.mxu0 %v436
        %450 = vmatprep.subr.bf16.mxu0 0
        %451 = vmatpush1.bf16.msra.mxu0 %v435
        %452 = vmatprep.subr.bf16.mxu0 0
        %453 = vmatpush1.bf16.msra.mxu0 %v434
        %454 = vmatprep.subr.bf16.mxu0 0
        %455 = vmatpush1.bf16.msra.mxu0 %v433
        %456 = vmatprep.subr.bf16.mxu0 0
        %457 = vmatpush1.bf16.msra.mxu0 %v432
        %458 = vmatprep.subr.bf16.mxu0 0
        %459 = vmatpush1.bf16.msra.mxu0 %v431
        %460 = vmatprep.subr.bf16.mxu0 0
        %461 = vmatpush1.bf16.msra.mxu0 %v430
        %462 = vmatprep.subr.bf16.mxu0 0
        %463 = vmatpush2.bf16.msra.mxu0 0
        %464 = vmatprep.subr.bf16.mxu0 0
        %465 = vmatpush2.bf16.msra.mxu0 0
        %466 = vmatprep.subr.bf16.mxu0 0
        %467 = vmatpush2.bf16.msra.mxu0 0
        %468 = vmatprep.subr.bf16.mxu0 0
        %469 = vmatpush2.bf16.msra.mxu0 0
        %470 = vmatprep.subr.bf16.mxu0 0
        %471 = vmatpush2.bf16.msra.mxu0 0
        %472 = vmatprep.subr.bf16.mxu0 0
        %473 = vmatpush2.bf16.msra.mxu0 0
        %474 = vmatprep.subr.bf16.mxu0 0
        %475 = vmatpush2.bf16.msra.mxu0 0
        %476 = vmatprep.subr.bf16.mxu0 0
        %477 = vmatpush2.bf16.msra.mxu0 0
        %478 = vmatprep.mubr.bf16.mxu0 0
        %479 = vmatmul.mubr.bf16.gmra.mxu0 %v274
        %v480 = vpop.f32.mrf.mxu0
        %v481 = vadd.f32 %v397, %v480
        %v482 = vpop.f32.mrf.mxu0
        %v483 = vpop.f32.mrf.mxu0
        %v484 = vadd.f32 %v397, %v483
        %v485 = vpop.f32.mrf.mxu0
        %486 = vdwg.mxu0
        %v487 = vadd.f32 %v481, %v246
        %v488 = vadd.f32 %v484, %v247
        %v489 = vadd.f32 %v487, %v371
        %v490 = vadd.f32 %v488, %v371
        %s491 = scalar_lea.vmem %s231, 16 [#allocation2]
        %492 = vst [vmem:[%s491] sm:$0xff] %v489
        %493 = vst [vmem:[%s491 + $0x8] sm:$0xff] %v490
        %v494 = vld [vmem:[%s236 + $0x80] sm:$0xf]
        %v495 = vld [vmem:[%s236 + $0x84] sm:$0xf]
        %v496 = vld [vmem:[%s236 + $0x88] sm:$0xf]
        %v497 = vld [vmem:[%s236 + $0x8c] sm:$0xf]
        %v498 = vld [vmem:[%s236 + $0x90] sm:$0xf]
        %v499 = vld [vmem:[%s236 + $0x94] sm:$0xf]
        %v500 = vld [vmem:[%s236 + $0x98] sm:$0xf]
        %v501 = vld [vmem:[%s236 + $0x9c] sm:$0xf]
        %v502 = vld [vmem:[%s236 + $0xa0] sm:$0xf]
        %v503 = vld [vmem:[%s236 + $0xa4] sm:$0xf]
        %v504 = vld [vmem:[%s236 + $0xa8] sm:$0xf]
        %v505 = vld [vmem:[%s236 + $0xac] sm:$0xf]
        %v506 = vld [vmem:[%s236 + $0xb0] sm:$0xf]
        %v507 = vld [vmem:[%s236 + $0xb4] sm:$0xf]
        %v508 = vld [vmem:[%s236 + $0xb8] sm:$0xf]
        %v509 = vld [vmem:[%s236 + $0xbc] sm:$0xf]
        %v510 = vld [vmem:[%s241 + $0x2] sm:$0x1]
        %v511 = vlaneseq
        %v512 = vshrl.u32 %v511, 7
        %v513 = vsub.s32 0, %v512
        %v514 = vrot.slane %v510, %v513
        %v531 = vunpack.c.l.b16 %v494
        %v532 = vunpack.c.l.b16 %v495
        %v533 = vunpack.c.l.b16 %v496
        %v534 = vunpack.c.l.b16 %v497
        %v535 = vunpack.c.l.b16 %v498
        %v536 = vunpack.c.l.b16 %v499
        %v537 = vunpack.c.l.b16 %v500
        %v538 = vunpack.c.l.b16 %v501
        %v539 = vunpack.c.l.b16 %v502
        %v540 = vunpack.c.l.b16 %v503
        %v541 = vunpack.c.l.b16 %v504
        %v542 = vunpack.c.l.b16 %v505
        %v543 = vunpack.c.l.b16 %v506
        %v544 = vunpack.c.l.b16 %v507
        %v545 = vunpack.c.l.b16 %v508
        %v546 = vunpack.c.l.b16 %v509
        %v547 = vpack.c.b16 %v532, %v531
        %v548 = vpack.c.b16 %v534, %v533
        %v549 = vpack.c.b16 %v536, %v535
        %v550 = vpack.c.b16 %v538, %v537
        %v551 = vpack.c.b16 %v540, %v539
        %v552 = vpack.c.b16 %v542, %v541
        %v553 = vpack.c.b16 %v544, %v543
        %v554 = vpack.c.b16 %v546, %v545
        %563 = vmatprep.subr.bf16.mxu0 0
        %564 = vmatpush1.bf16.msra.mxu0 %v554
        %565 = vmatprep.subr.bf16.mxu0 0
        %566 = vmatpush1.bf16.msra.mxu0 %v553
        %567 = vmatprep.subr.bf16.mxu0 0
        %568 = vmatpush1.bf16.msra.mxu0 %v552
        %569 = vmatprep.subr.bf16.mxu0 0
        %570 = vmatpush1.bf16.msra.mxu0 %v551
        %571 = vmatprep.subr.bf16.mxu0 0
        %572 = vmatpush1.bf16.msra.mxu0 %v550
        %573 = vmatprep.subr.bf16.mxu0 0
        %574 = vmatpush1.bf16.msra.mxu0 %v549
        %575 = vmatprep.subr.bf16.mxu0 0
        %576 = vmatpush1.bf16.msra.mxu0 %v548
        %577 = vmatprep.subr.bf16.mxu0 0
        %578 = vmatpush1.bf16.msra.mxu0 %v547
        %579 = vmatprep.subr.bf16.mxu0 0
        %580 = vmatpush2.bf16.msra.mxu0 0
        %581 = vmatprep.subr.bf16.mxu0 0
        %582 = vmatpush2.bf16.msra.mxu0 0
        %583 = vmatprep.subr.bf16.mxu0 0
        %584 = vmatpush2.bf16.msra.mxu0 0
        %585 = vmatprep.subr.bf16.mxu0 0
        %586 = vmatpush2.bf16.msra.mxu0 0
        %587 = vmatprep.subr.bf16.mxu0 0
        %588 = vmatpush2.bf16.msra.mxu0 0
        %589 = vmatprep.subr.bf16.mxu0 0
        %590 = vmatpush2.bf16.msra.mxu0 0
        %591 = vmatprep.subr.bf16.mxu0 0
        %592 = vmatpush2.bf16.msra.mxu0 0
        %593 = vmatprep.subr.bf16.mxu0 0
        %594 = vmatpush2.bf16.msra.mxu0 0
        %595 = vmatprep.mubr.bf16.mxu0 0
        %596 = vmatmul.mubr.bf16.gmra.mxu0 %v274
        %v597 = vpop.f32.mrf.mxu0
        %v598 = vadd.f32 %v514, %v597
        %v599 = vpop.f32.mrf.mxu0
        %v600 = vpop.f32.mrf.mxu0
        %v601 = vadd.f32 %v514, %v600
        %v602 = vpop.f32.mrf.mxu0
        %603 = vdwg.mxu0
        %v604 = vadd.f32 %v598, %v246
        %v605 = vadd.f32 %v601, %v247
        %v606 = vadd.f32 %v604, %v371
        %v607 = vadd.f32 %v605, %v371
        %s608 = scalar_lea.vmem %s231, 32 [#allocation2]
        %609 = vst [vmem:[%s608] sm:$0xff] %v606
        %610 = vst [vmem:[%s608 + $0x8] sm:$0xff] %v607
        %v611 = vld [vmem:[%s236 + $0xc0] sm:$0xf]
        %v612 = vld [vmem:[%s236 + $0xc4] sm:$0xf]
        %v613 = vld [vmem:[%s236 + $0xc8] sm:$0xf]
        %v614 = vld [vmem:[%s236 + $0xcc] sm:$0xf]
        %v615 = vld [vmem:[%s236 + $0xd0] sm:$0xf]
        %v616 = vld [vmem:[%s236 + $0xd4] sm:$0xf]
        %v617 = vld [vmem:[%s236 + $0xd8] sm:$0xf]
        %v618 = vld [vmem:[%s236 + $0xdc] sm:$0xf]
        %v619 = vld [vmem:[%s236 + $0xe0] sm:$0xf]
        %v620 = vld [vmem:[%s236 + $0xe4] sm:$0xf]
        %v621 = vld [vmem:[%s236 + $0xe8] sm:$0xf]
        %v622 = vld [vmem:[%s236 + $0xec] sm:$0xf]
        %v623 = vld [vmem:[%s236 + $0xf0] sm:$0xf]
        %v624 = vld [vmem:[%s236 + $0xf4] sm:$0xf]
        %v625 = vld [vmem:[%s236 + $0xf8] sm:$0xf]
        %v626 = vld [vmem:[%s236 + $0xfc] sm:$0xf]
        %v627 = vld [vmem:[%s241 + $0x3] sm:$0x1]
        %v628 = vlaneseq
        %v629 = vshrl.u32 %v628, 7
        %v630 = vsub.s32 0, %v629
        %v631 = vrot.slane %v627, %v630
        %v648 = vunpack.c.l.b16 %v611
        %v649 = vunpack.c.l.b16 %v612
        %v650 = vunpack.c.l.b16 %v613
        %v651 = vunpack.c.l.b16 %v614
        %v652 = vunpack.c.l.b16 %v615
        %v653 = vunpack.c.l.b16 %v616
        %v654 = vunpack.c.l.b16 %v617
        %v655 = vunpack.c.l.b16 %v618
        %v656 = vunpack.c.l.b16 %v619
        %v657 = vunpack.c.l.b16 %v620
        %v658 = vunpack.c.l.b16 %v621
        %v659 = vunpack.c.l.b16 %v622
        %v660 = vunpack.c.l.b16 %v623
        %v661 = vunpack.c.l.b16 %v624
        %v662 = vunpack.c.l.b16 %v625
        %v663 = vunpack.c.l.b16 %v626
        %v664 = vpack.c.b16 %v649, %v648
        %v665 = vpack.c.b16 %v651, %v650
        %v666 = vpack.c.b16 %v653, %v652
        %v667 = vpack.c.b16 %v655, %v654
        %v668 = vpack.c.b16 %v657, %v656
        %v669 = vpack.c.b16 %v659, %v658
        %v670 = vpack.c.b16 %v661, %v660
        %v671 = vpack.c.b16 %v663, %v662
        %680 = vmatprep.subr.bf16.mxu0 0
        %681 = vmatpush1.bf16.msra.mxu0 %v671
        %682 = vmatprep.subr.bf16.mxu0 0
        %683 = vmatpush1.bf16.msra.mxu0 %v670
        %684 = vmatprep.subr.bf16.mxu0 0
        %685 = vmatpush1.bf16.msra.mxu0 %v669
        %686 = vmatprep.subr.bf16.mxu0 0
        %687 = vmatpush1.bf16.msra.mxu0 %v668
        %688 = vmatprep.subr.bf16.mxu0 0
        %689 = vmatpush1.bf16.msra.mxu0 %v667
        %690 = vmatprep.subr.bf16.mxu0 0
        %691 = vmatpush1.bf16.msra.mxu0 %v666
        %692 = vmatprep.subr.bf16.mxu0 0
        %693 = vmatpush1.bf16.msra.mxu0 %v665
        %694 = vmatprep.subr.bf16.mxu0 0
        %695 = vmatpush1.bf16.msra.mxu0 %v664
        %696 = vmatprep.subr.bf16.mxu0 0
        %697 = vmatpush2.bf16.msra.mxu0 0
        %698 = vmatprep.subr.bf16.mxu0 0
        %699 = vmatpush2.bf16.msra.mxu0 0
        %700 = vmatprep.subr.bf16.mxu0 0
        %701 = vmatpush2.bf16.msra.mxu0 0
        %702 = vmatprep.subr.bf16.mxu0 0
        %703 = vmatpush2.bf16.msra.mxu0 0
        %704 = vmatprep.subr.bf16.mxu0 0
        %705 = vmatpush2.bf16.msra.mxu0 0
        %706 = vmatprep.subr.bf16.mxu0 0
        %707 = vmatpush2.bf16.msra.mxu0 0
        %708 = vmatprep.subr.bf16.mxu0 0
        %709 = vmatpush2.bf16.msra.mxu0 0
        %710 = vmatprep.subr.bf16.mxu0 0
        %711 = vmatpush2.bf16.msra.mxu0 0
        %712 = vmatprep.mubr.bf16.mxu0 0
        %713 = vmatmul.mubr.bf16.gmra.mxu0 %v274
        %v714 = vpop.f32.mrf.mxu0
        %v715 = vadd.f32 %v631, %v714
        %v716 = vpop.f32.mrf.mxu0
        %v717 = vpop.f32.mrf.mxu0
        %v718 = vadd.f32 %v631, %v717
        %v719 = vpop.f32.mrf.mxu0
        %720 = vdwg.mxu0
        %v721 = vadd.f32 %v715, %v246
        %v722 = vadd.f32 %v718, %v247
        %v723 = vadd.f32 %v721, %v371
        %v724 = vadd.f32 %v722, %v371
        %s725 = scalar_lea.vmem %s231, 48 [#allocation2]
        %726 = vst [vmem:[%s725] sm:$0xff] %v723
        %727 = vst [vmem:[%s725 + $0x8] sm:$0xff] %v724
        %v728 = vld [vmem:[%s236 + $0x100] sm:$0xf]
        %v729 = vld [vmem:[%s236 + $0x104] sm:$0xf]
        %v730 = vld [vmem:[%s236 + $0x108] sm:$0xf]
        %v731 = vld [vmem:[%s236 + $0x10c] sm:$0xf]
        %v732 = vld [vmem:[%s236 + $0x110] sm:$0xf]
        %v733 = vld [vmem:[%s236 + $0x114] sm:$0xf]
        %v734 = vld [vmem:[%s236 + $0x118] sm:$0xf]
        %v735 = vld [vmem:[%s236 + $0x11c] sm:$0xf]
        %v736 = vld [vmem:[%s236 + $0x120] sm:$0xf]
        %v737 = vld [vmem:[%s236 + $0x124] sm:$0xf]
        %v738 = vld [vmem:[%s236 + $0x128] sm:$0xf]
        %v739 = vld [vmem:[%s236 + $0x12c] sm:$0xf]
        %v740 = vld [vmem:[%s236 + $0x130] sm:$0xf]
        %v741 = vld [vmem:[%s236 + $0x134] sm:$0xf]
        %v742 = vld [vmem:[%s236 + $0x138] sm:$0xf]
        %v743 = vld [vmem:[%s236 + $0x13c] sm:$0xf]
        %v744 = vld [vmem:[%s241 + $0x4] sm:$0x1]
        %v745 = vlaneseq
        %v746 = vshrl.u32 %v745, 7
        %v747 = vsub.s32 0, %v746
        %v748 = vrot.slane %v744, %v747
        %v765 = vunpack.c.l.b16 %v728
        %v766 = vunpack.c.l.b16 %v729
        %v767 = vunpack.c.l.b16 %v730
        %v768 = vunpack.c.l.b16 %v731
        %v769 = vunpack.c.l.b16 %v732
        %v770 = vunpack.c.l.b16 %v733
        %v771 = vunpack.c.l.b16 %v734
        %v772 = vunpack.c.l.b16 %v735
        %v773 = vunpack.c.l.b16 %v736
        %v774 = vunpack.c.l.b16 %v737
        %v775 = vunpack.c.l.b16 %v738
        %v776 = vunpack.c.l.b16 %v739
        %v777 = vunpack.c.l.b16 %v740
        %v778 = vunpack.c.l.b16 %v741
        %v779 = vunpack.c.l.b16 %v742
        %v780 = vunpack.c.l.b16 %v743
        %v781 = vpack.c.b16 %v766, %v765
        %v782 = vpack.c.b16 %v768, %v767
        %v783 = vpack.c.b16 %v770, %v769
        %v784 = vpack.c.b16 %v772, %v771
        %v785 = vpack.c.b16 %v774, %v773
        %v786 = vpack.c.b16 %v776, %v775
        %v787 = vpack.c.b16 %v778, %v777
        %v788 = vpack.c.b16 %v780, %v779
        %797 = vmatprep.subr.bf16.mxu0 0
        %798 = vmatpush1.bf16.msra.mxu0 %v788
        %799 = vmatprep.subr.bf16.mxu0 0
        %800 = vmatpush1.bf16.msra.mxu0 %v787
        %801 = vmatprep.subr.bf16.mxu0 0
        %802 = vmatpush1.bf16.msra.mxu0 %v786
        %803 = vmatprep.subr.bf16.mxu0 0
        %804 = vmatpush1.bf16.msra.mxu0 %v785
        %805 = vmatprep.subr.bf16.mxu0 0
        %806 = vmatpush1.bf16.msra.mxu0 %v784
        %807 = vmatprep.subr.bf16.mxu0 0
        %808 = vmatpush1.bf16.msra.mxu0 %v783
        %809 = vmatprep.subr.bf16.mxu0 0
        %810 = vmatpush1.bf16.msra.mxu0 %v782
        %811 = vmatprep.subr.bf16.mxu0 0
        %812 = vmatpush1.bf16.msra.mxu0 %v781
        %813 = vmatprep.subr.bf16.mxu0 0
        %814 = vmatpush2.bf16.msra.mxu0 0
        %815 = vmatprep.subr.bf16.mxu0 0
        %816 = vmatpush2.bf16.msra.mxu0 0
        %817 = vmatprep.subr.bf16.mxu0 0
        %818 = vmatpush2.bf16.msra.mxu0 0
        %819 = vmatprep.subr.bf16.mxu0 0
        %820 = vmatpush2.bf16.msra.mxu0 0
        %821 = vmatprep.subr.bf16.mxu0 0
        %822 = vmatpush2.bf16.msra.mxu0 0
        %823 = vmatprep.subr.bf16.mxu0 0
        %824 = vmatpush2.bf16.msra.mxu0 0
        %825 = vmatprep.subr.bf16.mxu0 0
        %826 = vmatpush2.bf16.msra.mxu0 0
        %827 = vmatprep.subr.bf16.mxu0 0
        %828 = vmatpush2.bf16.msra.mxu0 0
        %829 = vmatprep.mubr.bf16.mxu0 0
        %830 = vmatmul.mubr.bf16.gmra.mxu0 %v274
        %v831 = vpop.f32.mrf.mxu0
        %v832 = vadd.f32 %v748, %v831
        %v833 = vpop.f32.mrf.mxu0
        %v834 = vpop.f32.mrf.mxu0
        %v835 = vadd.f32 %v748, %v834
        %v836 = vpop.f32.mrf.mxu0
        %837 = vdwg.mxu0
        %v838 = vadd.f32 %v832, %v246
        %v839 = vadd.f32 %v835, %v247
        %v840 = vadd.f32 %v838, %v371
        %v841 = vadd.f32 %v839, %v371
        %s842 = scalar_lea.vmem %s231, 64 [#allocation2]
        %843 = vst [vmem:[%s842] sm:$0xff] %v840
        %844 = vst [vmem:[%s842 + $0x8] sm:$0xff] %v841
        %v845 = vld [vmem:[%s236 + $0x140] sm:$0xf]
        %v846 = vld [vmem:[%s236 + $0x144] sm:$0xf]
        %v847 = vld [vmem:[%s236 + $0x148] sm:$0xf]
        %v848 = vld [vmem:[%s236 + $0x14c] sm:$0xf]
        %v849 = vld [vmem:[%s236 + $0x150] sm:$0xf]
        %v850 = vld [vmem:[%s236 + $0x154] sm:$0xf]
        %v851 = vld [vmem:[%s236 + $0x158] sm:$0xf]
        %v852 = vld [vmem:[%s236 + $0x15c] sm:$0xf]
        %v853 = vld [vmem:[%s236 + $0x160] sm:$0xf]
        %v854 = vld [vmem:[%s236 + $0x164] sm:$0xf]
        %v855 = vld [vmem:[%s236 + $0x168] sm:$0xf]
        %v856 = vld [vmem:[%s236 + $0x16c] sm:$0xf]
        %v857 = vld [vmem:[%s236 + $0x170] sm:$0xf]
        %v858 = vld [vmem:[%s236 + $0x174] sm:$0xf]
        %v859 = vld [vmem:[%s236 + $0x178] sm:$0xf]
        %v860 = vld [vmem:[%s236 + $0x17c] sm:$0xf]
        %v861 = vld [vmem:[%s241 + $0x5] sm:$0x1]
        %v862 = vlaneseq
        %v863 = vshrl.u32 %v862, 7
        %v864 = vsub.s32 0, %v863
        %v865 = vrot.slane %v861, %v864
        %v882 = vunpack.c.l.b16 %v845
        %v883 = vunpack.c.l.b16 %v846
        %v884 = vunpack.c.l.b16 %v847
        %v885 = vunpack.c.l.b16 %v848
        %v886 = vunpack.c.l.b16 %v849
        %v887 = vunpack.c.l.b16 %v850
        %v888 = vunpack.c.l.b16 %v851
        %v889 = vunpack.c.l.b16 %v852
        %v890 = vunpack.c.l.b16 %v853
        %v891 = vunpack.c.l.b16 %v854
        %v892 = vunpack.c.l.b16 %v855
        %v893 = vunpack.c.l.b16 %v856
        %v894 = vunpack.c.l.b16 %v857
        %v895 = vunpack.c.l.b16 %v858
        %v896 = vunpack.c.l.b16 %v859
        %v897 = vunpack.c.l.b16 %v860
        %v898 = vpack.c.b16 %v883, %v882
        %v899 = vpack.c.b16 %v885, %v884
        %v900 = vpack.c.b16 %v887, %v886
        %v901 = vpack.c.b16 %v889, %v888
        %v902 = vpack.c.b16 %v891, %v890
        %v903 = vpack.c.b16 %v893, %v892
        %v904 = vpack.c.b16 %v895, %v894
        %v905 = vpack.c.b16 %v897, %v896
        %914 = vmatprep.subr.bf16.mxu0 0
        %915 = vmatpush1.bf16.msra.mxu0 %v905
        %916 = vmatprep.subr.bf16.mxu0 0
        %917 = vmatpush1.bf16.msra.mxu0 %v904
        %918 = vmatprep.subr.bf16.mxu0 0
        %919 = vmatpush1.bf16.msra.mxu0 %v903
        %920 = vmatprep.subr.bf16.mxu0 0
        %921 = vmatpush1.bf16.msra.mxu0 %v902
        %922 = vmatprep.subr.bf16.mxu0 0
        %923 = vmatpush1.bf16.msra.mxu0 %v901
        %924 = vmatprep.subr.bf16.mxu0 0
        %925 = vmatpush1.bf16.msra.mxu0 %v900
        %926 = vmatprep.subr.bf16.mxu0 0
        %927 = vmatpush1.bf16.msra.mxu0 %v899
        %928 = vmatprep.subr.bf16.mxu0 0
        %929 = vmatpush1.bf16.msra.mxu0 %v898
        %930 = vmatprep.subr.bf16.mxu0 0
        %931 = vmatpush2.bf16.msra.mxu0 0
        %932 = vmatprep.subr.bf16.mxu0 0
        %933 = vmatpush2.bf16.msra.mxu0 0
        %934 = vmatprep.subr.bf16.mxu0 0
        %935 = vmatpush2.bf16.msra.mxu0 0
        %936 = vmatprep.subr.bf16.mxu0 0
        %937 = vmatpush2.bf16.msra.mxu0 0
        %938 = vmatprep.subr.bf16.mxu0 0
        %939 = vmatpush2.bf16.msra.mxu0 0
        %940 = vmatprep.subr.bf16.mxu0 0
        %941 = vmatpush2.bf16.msra.mxu0 0
        %942 = vmatprep.subr.bf16.mxu0 0
        %943 = vmatpush2.bf16.msra.mxu0 0
        %944 = vmatprep.subr.bf16.mxu0 0
        %945 = vmatpush2.bf16.msra.mxu0 0
        %946 = vmatprep.mubr.bf16.mxu0 0
        %947 = vmatmul.mubr.bf16.gmra.mxu0 %v274
        %v948 = vpop.f32.mrf.mxu0
        %v949 = vadd.f32 %v865, %v948
        %v950 = vpop.f32.mrf.mxu0
        %v951 = vpop.f32.mrf.mxu0
        %v952 = vadd.f32 %v865, %v951
        %v953 = vpop.f32.mrf.mxu0
        %954 = vdwg.mxu0
        %v955 = vadd.f32 %v949, %v246
        %v956 = vadd.f32 %v952, %v247
        %v957 = vadd.f32 %v955, %v371
        %v958 = vadd.f32 %v956, %v371
        %s959 = scalar_lea.vmem %s231, 80 [#allocation2]
        %960 = vst [vmem:[%s959] sm:$0xff] %v957
        %961 = vst [vmem:[%s959 + $0x8] sm:$0xff] %v958
        %v962 = vld [vmem:[%s236 + $0x180] sm:$0xf]
        %v963 = vld [vmem:[%s236 + $0x184] sm:$0xf]
        %v964 = vld [vmem:[%s236 + $0x188] sm:$0xf]
        %v965 = vld [vmem:[%s236 + $0x18c] sm:$0xf]
        %v966 = vld [vmem:[%s236 + $0x190] sm:$0xf]
        %v967 = vld [vmem:[%s236 + $0x194] sm:$0xf]
        %v968 = vld [vmem:[%s236 + $0x198] sm:$0xf]
        %v969 = vld [vmem:[%s236 + $0x19c] sm:$0xf]
        %v970 = vld [vmem:[%s236 + $0x1a0] sm:$0xf]
        %v971 = vld [vmem:[%s236 + $0x1a4] sm:$0xf]
        %v972 = vld [vmem:[%s236 + $0x1a8] sm:$0xf]
        %v973 = vld [vmem:[%s236 + $0x1ac] sm:$0xf]
        %v974 = vld [vmem:[%s236 + $0x1b0] sm:$0xf]
        %v975 = vld [vmem:[%s236 + $0x1b4] sm:$0xf]
        %v976 = vld [vmem:[%s236 + $0x1b8] sm:$0xf]
        %v977 = vld [vmem:[%s236 + $0x1bc] sm:$0xf]
        %v978 = vld [vmem:[%s241 + $0x6] sm:$0x1]
        %v979 = vlaneseq
        %v980 = vshrl.u32 %v979, 7
        %v981 = vsub.s32 0, %v980
        %v982 = vrot.slane %v978, %v981
        %v999 = vunpack.c.l.b16 %v962
        %v1000 = vunpack.c.l.b16 %v963
        %v1001 = vunpack.c.l.b16 %v964
        %v1002 = vunpack.c.l.b16 %v965
        %v1003 = vunpack.c.l.b16 %v966
        %v1004 = vunpack.c.l.b16 %v967
        %v1005 = vunpack.c.l.b16 %v968
        %v1006 = vunpack.c.l.b16 %v969
        %v1007 = vunpack.c.l.b16 %v970
        %v1008 = vunpack.c.l.b16 %v971
        %v1009 = vunpack.c.l.b16 %v972
        %v1010 = vunpack.c.l.b16 %v973
        %v1011 = vunpack.c.l.b16 %v974
        %v1012 = vunpack.c.l.b16 %v975
        %v1013 = vunpack.c.l.b16 %v976
        %v1014 = vunpack.c.l.b16 %v977
        %v1015 = vpack.c.b16 %v1000, %v999
        %v1016 = vpack.c.b16 %v1002, %v1001
        %v1017 = vpack.c.b16 %v1004, %v1003
        %v1018 = vpack.c.b16 %v1006, %v1005
        %v1019 = vpack.c.b16 %v1008, %v1007
        %v1020 = vpack.c.b16 %v1010, %v1009
        %v1021 = vpack.c.b16 %v1012, %v1011
        %v1022 = vpack.c.b16 %v1014, %v1013
        %1031 = vmatprep.subr.bf16.mxu0 0
        %1032 = vmatpush1.bf16.msra.mxu0 %v1022
        %1033 = vmatprep.subr.bf16.mxu0 0
        %1034 = vmatpush1.bf16.msra.mxu0 %v1021
        %1035 = vmatprep.subr.bf16.mxu0 0
        %1036 = vmatpush1.bf16.msra.mxu0 %v1020
        %1037 = vmatprep.subr.bf16.mxu0 0
        %1038 = vmatpush1.bf16.msra.mxu0 %v1019
        %1039 = vmatprep.subr.bf16.mxu0 0
        %1040 = vmatpush1.bf16.msra.mxu0 %v1018
        %1041 = vmatprep.subr.bf16.mxu0 0
        %1042 = vmatpush1.bf16.msra.mxu0 %v1017
        %1043 = vmatprep.subr.bf16.mxu0 0
        %1044 = vmatpush1.bf16.msra.mxu0 %v1016
        %1045 = vmatprep.subr.bf16.mxu0 0
        %1046 = vmatpush1.bf16.msra.mxu0 %v1015
        %1047 = vmatprep.subr.bf16.mxu0 0
        %1048 = vmatpush2.bf16.msra.mxu0 0
        %1049 = vmatprep.subr.bf16.mxu0 0
        %1050 = vmatpush2.bf16.msra.mxu0 0
        %1051 = vmatprep.subr.bf16.mxu0 0
        %1052 = vmatpush2.bf16.msra.mxu0 0
        %1053 = vmatprep.subr.bf16.mxu0 0
        %1054 = vmatpush2.bf16.msra.mxu0 0
        %1055 = vmatprep.subr.bf16.mxu0 0
        %1056 = vmatpush2.bf16.msra.mxu0 0
        %1057 = vmatprep.subr.bf16.mxu0 0
        %1058 = vmatpush2.bf16.msra.mxu0 0
        %1059 = vmatprep.subr.bf16.mxu0 0
        %1060 = vmatpush2.bf16.msra.mxu0 0
        %1061 = vmatprep.subr.bf16.mxu0 0
        %1062 = vmatpush2.bf16.msra.mxu0 0
        %1063 = vmatprep.mubr.bf16.mxu0 0
        %1064 = vmatmul.mubr.bf16.gmra.mxu0 %v274
        %v1065 = vpop.f32.mrf.mxu0
        %v1066 = vadd.f32 %v982, %v1065
        %v1067 = vpop.f32.mrf.mxu0
        %v1068 = vpop.f32.mrf.mxu0
        %v1069 = vadd.f32 %v982, %v1068
        %v1070 = vpop.f32.mrf.mxu0
        %1071 = vdwg.mxu0
        %v1072 = vadd.f32 %v1066, %v246
        %v1073 = vadd.f32 %v1069, %v247
        %v1074 = vadd.f32 %v1072, %v371
        %v1075 = vadd.f32 %v1073, %v371
        %s1076 = scalar_lea.vmem %s231, 96 [#allocation2]
        %1077 = vst [vmem:[%s1076] sm:$0xff] %v1074
        %1078 = vst [vmem:[%s1076 + $0x8] sm:$0xff] %v1075
        %v1079 = vld [vmem:[%s236 + $0x1c0] sm:$0xf]
        %v1080 = vld [vmem:[%s236 + $0x1c4] sm:$0xf]
        %v1081 = vld [vmem:[%s236 + $0x1c8] sm:$0xf]
        %v1082 = vld [vmem:[%s236 + $0x1cc] sm:$0xf]
        %v1083 = vld [vmem:[%s236 + $0x1d0] sm:$0xf]
        %v1084 = vld [vmem:[%s236 + $0x1d4] sm:$0xf]
        %v1085 = vld [vmem:[%s236 + $0x1d8] sm:$0xf]
        %v1086 = vld [vmem:[%s236 + $0x1dc] sm:$0xf]
        %v1087 = vld [vmem:[%s236 + $0x1e0] sm:$0xf]
        %v1088 = vld [vmem:[%s236 + $0x1e4] sm:$0xf]
        %v1089 = vld [vmem:[%s236 + $0x1e8] sm:$0xf]
        %v1090 = vld [vmem:[%s236 + $0x1ec] sm:$0xf]
        %v1091 = vld [vmem:[%s236 + $0x1f0] sm:$0xf]
        %v1092 = vld [vmem:[%s236 + $0x1f4] sm:$0xf]
        %v1093 = vld [vmem:[%s236 + $0x1f8] sm:$0xf]
        %v1094 = vld [vmem:[%s236 + $0x1fc] sm:$0xf]
        %v1095 = vld [vmem:[%s241 + $0x7] sm:$0x1]
        %v1096 = vlaneseq
        %v1097 = vshrl.u32 %v1096, 7
        %v1098 = vsub.s32 0, %v1097
        %v1099 = vrot.slane %v1095, %v1098
        %v1116 = vunpack.c.l.b16 %v1079
        %v1117 = vunpack.c.l.b16 %v1080
        %v1118 = vunpack.c.l.b16 %v1081
        %v1119 = vunpack.c.l.b16 %v1082
        %v1120 = vunpack.c.l.b16 %v1083
        %v1121 = vunpack.c.l.b16 %v1084
        %v1122 = vunpack.c.l.b16 %v1085
        %v1123 = vunpack.c.l.b16 %v1086
        %v1124 = vunpack.c.l.b16 %v1087
        %v1125 = vunpack.c.l.b16 %v1088
        %v1126 = vunpack.c.l.b16 %v1089
        %v1127 = vunpack.c.l.b16 %v1090
        %v1128 = vunpack.c.l.b16 %v1091
        %v1129 = vunpack.c.l.b16 %v1092
        %v1130 = vunpack.c.l.b16 %v1093
        %v1131 = vunpack.c.l.b16 %v1094
        %v1132 = vpack.c.b16 %v1117, %v1116
        %v1133 = vpack.c.b16 %v1119, %v1118
        %v1134 = vpack.c.b16 %v1121, %v1120
        %v1135 = vpack.c.b16 %v1123, %v1122
        %v1136 = vpack.c.b16 %v1125, %v1124
        %v1137 = vpack.c.b16 %v1127, %v1126
        %v1138 = vpack.c.b16 %v1129, %v1128
        %v1139 = vpack.c.b16 %v1131, %v1130
        %1148 = vmatprep.subr.bf16.mxu0 0
        %1149 = vmatpush1.bf16.msra.mxu0 %v1139
        %1150 = vmatprep.subr.bf16.mxu0 0
        %1151 = vmatpush1.bf16.msra.mxu0 %v1138
        %1152 = vmatprep.subr.bf16.mxu0 0
        %1153 = vmatpush1.bf16.msra.mxu0 %v1137
        %1154 = vmatprep.subr.bf16.mxu0 0
        %1155 = vmatpush1.bf16.msra.mxu0 %v1136
        %1156 = vmatprep.subr.bf16.mxu0 0
        %1157 = vmatpush1.bf16.msra.mxu0 %v1135
        %1158 = vmatprep.subr.bf16.mxu0 0
        %1159 = vmatpush1.bf16.msra.mxu0 %v1134
        %1160 = vmatprep.subr.bf16.mxu0 0
        %1161 = vmatpush1.bf16.msra.mxu0 %v1133
        %1162 = vmatprep.subr.bf16.mxu0 0
        %1163 = vmatpush1.bf16.msra.mxu0 %v1132
        %1164 = vmatprep.subr.bf16.mxu0 0
        %1165 = vmatpush2.bf16.msra.mxu0 0
        %1166 = vmatprep.subr.bf16.mxu0 0
        %1167 = vmatpush2.bf16.msra.mxu0 0
        %1168 = vmatprep.subr.bf16.mxu0 0
        %1169 = vmatpush2.bf16.msra.mxu0 0
        %1170 = vmatprep.subr.bf16.mxu0 0
        %1171 = vmatpush2.bf16.msra.mxu0 0
        %1172 = vmatprep.subr.bf16.mxu0 0
        %1173 = vmatpush2.bf16.msra.mxu0 0
        %1174 = vmatprep.subr.bf16.mxu0 0
        %1175 = vmatpush2.bf16.msra.mxu0 0
        %1176 = vmatprep.subr.bf16.mxu0 0
        %1177 = vmatpush2.bf16.msra.mxu0 0
        %1178 = vmatprep.subr.bf16.mxu0 0
        %1179 = vmatpush2.bf16.msra.mxu0 0
        %1180 = vmatprep.mubr.bf16.mxu0 0
        %1181 = vmatmul.mubr.bf16.gmra.mxu0 %v274
        %v1182 = vpop.f32.mrf.mxu0
        %v1183 = vadd.f32 %v1099, %v1182
        %v1184 = vpop.f32.mrf.mxu0
        %v1185 = vpop.f32.mrf.mxu0
        %v1186 = vadd.f32 %v1099, %v1185
        %v1187 = vpop.f32.mrf.mxu0
        %1188 = vdwg.mxu0
        %v1189 = vadd.f32 %v1183, %v246
        %v1190 = vadd.f32 %v1186, %v247
        %v1191 = vadd.f32 %v1189, %v371
        %v1192 = vadd.f32 %v1190, %v371
        %s1193 = scalar_lea.vmem %s231, 112 [#allocation2]
        %1194 = vst [vmem:[%s1193] sm:$0xff] %v1191
        %1195 = vst [vmem:[%s1193 + $0x8] sm:$0xff] %v1192
        %s1196 = sand.u32 %s142, 1
        %s1197 = scalar_lea.sflag [#allocation3], %s1196
        %s1198 = sand.u32 %s142, 1
        %s1199 = smul.addr %s1198, 128
        %s1200 = scalar_lea.vmem [#allocation2], %s1199
        // Predicated region
        $region41: #{_pipeline_core.7} parent=39 // pred_check
          %p1201 = pneg %p152
        $region42: #{_pipeline_core.7} parent=39 // pred_check_branch
          %1203 = sbr.rel (%p1201) target = $region44
        $region43: #{_pipeline_core.7} parent=39 // pred_region
          %s1204 = smul.u32 8, %s19
          %s1206 = ssub.s32 2048, 2048
          %1207 = vsyncadd %s1197, %s1206
          %s1208 = smul.addr %s1204, 2
          %s1209 = smul.addr %s1208, 128
          %s1210 = scalar_lea.hbm %s5, %s1209
          %s1211 = sshll.u32 %s1200, 4
          %s1212 = int_to_ptr.vmem [resolvable:$true] %s1211
          %1217 = dma.vmem_to_hbm [thread:$0]  %s1212, 2048, %s1210, %s1197, 128, 128, 8
        $region44: #{_pipeline_core.7} parent=39 // pred_fallthru
          _
      $region40: #{_pipeline_core.7} parent=5 // pred_fallthru
        _
      %p1218 = scmp.le.s32.totalorder 2, %s14
      // Predicated region
      $region45: #{_pipeline_core.7} parent=5 // pred_check
        %p1219 = pneg %p1218
      $region46: #{_pipeline_core.7} parent=5 // pred_check_branch
        %1221 = sbr.rel (%p1219) target = $region48
      $region47: #{_pipeline_core.7} parent=5 // pred_region
        %s1222 = ssub.s32 %s14, 2
        // Predicated region
        $region49: #{_pipeline_core.7} parent=47 // pred_check
          %p1223 = pneg %p158
        $region50: #{_pipeline_core.7} parent=47 // pred_check_branch
          %1225 = sbr.rel (%p1223) target = $region52
        $region51: #{_pipeline_core.7} parent=47 // pred_region
          %s1226 = sand.u32 %s143, 1
          %s1227 = scalar_lea.sflag [#allocation3], %s1226
          %s1228 = sand.u32 %s143, 1
          %s1229 = smul.addr %s1228, 128
          %s1230 = scalar_lea.vmem [#allocation2], %s1229
          %1231 = dma.done %s1227, 2048
        $region52: #{_pipeline_core.7} parent=47 // pred_fallthru
          _
      $region48: #{_pipeline_core.7} parent=5 // pred_fallthru
        _
    $region6: #{_pipeline_core.7} parent=1 // loop_footer
      %s18 = sadd.s32 1, %s14
    $region7: #{_pipeline_core.7} parent=1 // loop_footer_branch
      %13 = sbr.rel target = $region3
    $region8: #{_pipeline_core.7} parent=1 // loop_exit
      _
    %1232 = vsyncpa [#allocation3], 1
    %s1233 = scalar_lea.sflag [#allocation3], 1
    %1234 = vsyncpa %s1233, 1

// kernel: _pipeline_core.6
$region0: #{_pipeline_core.6}
  #allocation0 [shape = 'u32[]', space=smem, size = 0x4, offset = 0x4, fixed_abs, tag = 'smem constant byte address 0x4 - core index']
  #allocation1 [shape = 'u32[144,128]{1,0:T(1,128)}', space=vmem, size = 0x12000, scoped, tag = 'internal scratch']
  %s0 = inlined_call_operand.vmem [shape: bf16[16,128], index: 0, kind: input, shape index: {}]
  %s1 = inlined_call_operand.hbm [shape: bf16[128,16384], index: 1, kind: input, shape index: {}]
  %s2 = inlined_call_operand.vmem [shape: bf16[16,16384], index: 2, kind: output, shape index: {}]
  %s3 = sld [smem:[#allocation0]]
  $region64: #{_pipeline_core.6} parent=0
    _
  %s5 = ssub.s32 1, %s3
  %s6 = scalar_select 0, %s5, %s3
  $region1: #{_pipeline_core.6} parent=0
    #allocation2 [shape = 'u8[4194304]{0}', space=vmem, size = 0x400000, scoped, tag = 'input window, operand 1']
    #allocation3 [shape = 's32[2]{0}', space=sflag, size = 0x8, scoped, tag = 'scoped memory for _pipeline_core.6']
    #allocation4 [shape = 'u8[524288]{0}', space=vmem, size = 0x80000, scoped, tag = 'output window, operand 0']
    %7 = vsyncpa [#allocation3], 0
    %s8 = scalar_lea.sflag [#allocation3], 1
    %9 = vsyncpa %s8, 0
    loop: start=0, step=1, limit=4
    $region2: #{_pipeline_core.6} parent=1 // loop_pre_header
      _
    $region3: #{_pipeline_core.6} parent=1 // loop_header
      %s11 = sphi 0, %s15
      %p12 = scmp.ge.s32.totalorder %s11, 4
      %s19 = sphi 0, %s19
      %s21 = sphi 0, %s19
      %s22 = sphi 0, %s21
      %s36 = sphi 0, %s22
      %s42 = sphi 0, %s44
      %s45 = sphi 0, %s42
      %s46 = sphi 0, %s45
      %s62 = sphi 0, %s46
      %s68 = sphi 0, %s70
      %s71 = sphi 0, %s68
      %s72 = sphi 0, %s71
      %s88 = sphi 0, %s72
    $region4: #{_pipeline_core.6} parent=1 // loop_header_branch
      %14 = sbr.rel (%p12) target = $region8
    $region5: #{_pipeline_core.6} parent=1 // loop_body
      %s16 = ssub.s32 %s11, 1
      %s17 = ssub.s32 %s11, 2
      %s18 = sadd.s32 %s11, 1
      %s20 = sadd.s32 %s19, 1
      %p23 = scmp.eq.s32.totalorder %s11, 1
      %p24 = scmp.ne.s32.totalorder %s19, %s21
      %p25 = scmp.eq.s32.totalorder %s11, 0
      %p26 = por %p24, %p25
      %p27 = scmp.ne.s32.totalorder %s19, %s21
      %p28 = scmp.eq.s32.totalorder %s16, 1
      %p29 = por %p27, %p28
      %p30 = scmp.ne.s32.totalorder %s21, %s22
      %p31 = scmp.eq.s32.totalorder %s16, 0
      %p32 = por %p30, %p31
      %p33 = scmp.ne.s32.totalorder %s21, %s22
      %p34 = scmp.eq.s32.totalorder %s17, 1
      %p35 = por %p33, %p34
      %p37 = scmp.ne.s32.totalorder %s22, %s36
      %p38 = scmp.eq.s32.totalorder %s17, 0
      %p39 = por %p37, %p38
      %s40 = ssub.s32 %s11, %s18
      %p41 = scmp.eq.s32.totalorder %s40, 0
      %s43 = sadd.s32 %s42, 1
      %s44 = scalar_select %p41, %s42, %s43
      %p47 = pneg %p41
      %p48 = scmp.eq.s32.totalorder %s11, 1
      %p49 = por %p47, %p48
      %p50 = scmp.ne.s32.totalorder %s42, %s45
      %p51 = scmp.eq.s32.totalorder %s11, 0
      %p52 = por %p50, %p51
      %p53 = scmp.ne.s32.totalorder %s42, %s45
      %p54 = scmp.eq.s32.totalorder %s16, 1
      %p55 = por %p53, %p54
      %p56 = scmp.ne.s32.totalorder %s45, %s46
      %p57 = scmp.eq.s32.totalorder %s16, 0
      %p58 = por %p56, %p57
      %p59 = scmp.ne.s32.totalorder %s45, %s46
      %p60 = scmp.eq.s32.totalorder %s17, 1
      %p61 = por %p59, %p60
      %p63 = scmp.ne.s32.totalorder %s46, %s62
      %p64 = scmp.eq.s32.totalorder %s17, 0
      %p65 = por %p63, %p64
      %s66 = ssub.s32 %s11, %s18
      %p67 = scmp.eq.s32.totalorder %s66, 0
      %s69 = sadd.s32 %s68, 1
      %s70 = scalar_select %p67, %s68, %s69
      %p73 = pneg %p67
      %p74 = scmp.eq.s32.totalorder %s11, 1
      %p75 = por %p73, %p74
      %p76 = scmp.ne.s32.totalorder %s68, %s71
      %p77 = scmp.eq.s32.totalorder %s11, 0
      %p78 = por %p76, %p77
      %p79 = scmp.ne.s32.totalorder %s68, %s71
      %p80 = scmp.eq.s32.totalorder %s16, 1
      %p81 = por %p79, %p80
      %p82 = scmp.ne.s32.totalorder %s71, %s72
      %p83 = scmp.eq.s32.totalorder %s16, 0
      %p84 = por %p82, %p83
      %p85 = scmp.ne.s32.totalorder %s71, %s72
      %p86 = scmp.eq.s32.totalorder %s17, 1
      %p87 = por %p85, %p86
      %p89 = scmp.ne.s32.totalorder %s72, %s88
      %p90 = scmp.eq.s32.totalorder %s17, 0
      %p91 = por %p89, %p90
      %p92 = scmp.le.s32.totalorder 1, %s11
      %p93 = scmp.lt.s32.totalorder %s11, 3
      %p94 = pnand %p92, %p93
      %p95 = pneg %p94
      // Predicated region
      $region9: #{_pipeline_core.6} parent=5 // pred_check
        _
      $region10: #{_pipeline_core.6} parent=5 // pred_check_branch
        %97 = sbr.rel (%p94) target = $region12
      $region11: #{_pipeline_core.6} parent=5 // pred_region
        %s98 = ssub.s32 %s11, 1
        // Predicated region
        $region13: #{_pipeline_core.6} parent=11 // pred_check
          %p99 = pneg %p32
        $region14: #{_pipeline_core.6} parent=11 // pred_check_branch
          %101 = sbr.rel (%p99) target = $region16
        $region15: #{_pipeline_core.6} parent=11 // pred_region
          _
        $region16: #{_pipeline_core.6} parent=11 // pred_fallthru
          _
      $region12: #{_pipeline_core.6} parent=5 // pred_fallthru
        _
      %p102 = scmp.lt.s32.totalorder %s11, 2
      // Predicated region
      $region17: #{_pipeline_core.6} parent=5 // pred_check
        %p103 = pneg %p102
      $region18: #{_pipeline_core.6} parent=5 // pred_check_branch
        %105 = sbr.rel (%p103) target = $region20
      $region19: #{_pipeline_core.6} parent=5 // pred_region
        // Predicated region
        $region21: #{_pipeline_core.6} parent=19 // pred_check
          %p106 = pneg %p52
        $region22: #{_pipeline_core.6} parent=19 // pred_check_branch
          %108 = sbr.rel (%p106) target = $region24
        $region23: #{_pipeline_core.6} parent=19 // pred_region
          %s109 = sand.u32 %s42, 1
          %s110 = scalar_lea.sflag [#allocation3], %s109
          %s111 = sand.u32 %s42, 1
          %s112 = smul.addr %s111, 4096
          %s113 = scalar_lea.vmem [#allocation2], %s112
          %s114 = smul.u32 64, %s11
          %s116 = ssub.s32 65536, 65536
          %117 = vsyncadd %s110, %s116
          %s118 = smul.addr %s114, 64
          %s119 = scalar_lea.hbm %s1, %s118
          %s120 = sshll.u32 %s113, 4
          %s121 = int_to_ptr.vmem [resolvable:$true] %s120
          %126 = dma.hbm_to_vmem [thread:$0]  %s119, 65536, %s121, %s110, 8192, 4096, 256
        $region24: #{_pipeline_core.6} parent=19 // pred_fallthru
          _
      $region20: #{_pipeline_core.6} parent=5 // pred_fallthru
        _
      %p127 = scmp.le.s32.totalorder 1, %s11
      %p128 = scmp.lt.s32.totalorder %s11, 3
      %p129 = pnand %p127, %p128
      %p130 = pneg %p129
      // Predicated region
      $region25: #{_pipeline_core.6} parent=5 // pred_check
        _
      $region26: #{_pipeline_core.6} parent=5 // pred_check_branch
        %132 = sbr.rel (%p129) target = $region28
      $region27: #{_pipeline_core.6} parent=5 // pred_region
        %s133 = ssub.s32 %s11, 1
        %s134 = sand.u32 %s45, 1
        %s135 = scalar_lea.sflag [#allocation3], %s134
        %s136 = sand.u32 %s45, 1
        %s137 = smul.addr %s136, 4096
        %s138 = scalar_lea.vmem [#allocation2], %s137
        // Predicated region
        $region29: #{_pipeline_core.6} parent=27 // pred_check
          %p139 = pneg %p58
        $region30: #{_pipeline_core.6} parent=27 // pred_check_branch
          %141 = sbr.rel (%p139) target = $region32
        $region31: #{_pipeline_core.6} parent=27 // pred_region
          %142 = dma.done %s135, 65536
        $region32: #{_pipeline_core.6} parent=27 // pred_fallthru
          _
        %p143 = pneg %p32
        %p144 = pneg %p29
        %s145 = sand.u32 %s45, 1
        %s146 = scalar_lea.sflag [#allocation3], %s145
        %s147 = sand.u32 %s45, 1
        %s148 = smul.addr %s147, 4096
        %s149 = scalar_lea.vmem [#allocation2], %s148
        %p150 = pneg %p58
        %p151 = pneg %p55
        %p152 = pneg %p84
        %p153 = pneg %p81
        %s154 = sand.u32 %s71, 1
        %s155 = sand.u32 %s71, 1
        %s156 = smul.addr %s155, 512
        %s157 = scalar_lea.vmem [#allocation4], %s156
        %s158 = smul.u32 64, %s16
        %s159 = smul.u32 64, %s16
        %v161 = vld [vmem:[%s0] sm:$0xf]
        %v162 = vld [vmem:[%s0 + $0x4] sm:$0xf]
        %v163 = vld [vmem:[%s138] sm:$0xff]
        %v164 = vld [vmem:[%s138 + $0x8] sm:$0xff]
        %v165 = vld [vmem:[%s138 + $0x10] sm:$0xff]
        %v166 = vld [vmem:[%s138 + $0x18] sm:$0xff]
        %v167 = vld [vmem:[%s138 + $0x20] sm:$0xff]
        %v168 = vld [vmem:[%s138 + $0x28] sm:$0xff]
        %v169 = vld [vmem:[%s138 + $0x30] sm:$0xff]
        %v170 = vld [vmem:[%s138 + $0x38] sm:$0xff]
        %v171 = vld [vmem:[%s138 + $0x40] sm:$0xff]
        %v172 = vld [vmem:[%s138 + $0x48] sm:$0xff]
        %v173 = vld [vmem:[%s138 + $0x50] sm:$0xff]
        %v174 = vld [vmem:[%s138 + $0x58] sm:$0xff]
        %v175 = vld [vmem:[%s138 + $0x60] sm:$0xff]
        %v176 = vld [vmem:[%s138 + $0x68] sm:$0xff]
        %v177 = vld [vmem:[%s138 + $0x70] sm:$0xff]
        %v178 = vld [vmem:[%s138 + $0x78] sm:$0xff]
        %v179 = vld [vmem:[%s138 + $0x80] sm:$0xff]
        %v180 = vld [vmem:[%s138 + $0x88] sm:$0xff]
        %v181 = vld [vmem:[%s138 + $0x90] sm:$0xff]
        %v182 = vld [vmem:[%s138 + $0x98] sm:$0xff]
        %v183 = vld [vmem:[%s138 + $0xa0] sm:$0xff]
        %v184 = vld [vmem:[%s138 + $0xa8] sm:$0xff]
        %v185 = vld [vmem:[%s138 + $0xb0] sm:$0xff]
        %v186 = vld [vmem:[%s138 + $0xb8] sm:$0xff]
        %v187 = vld [vmem:[%s138 + $0xc0] sm:$0xff]
        %v188 = vld [vmem:[%s138 + $0xc8] sm:$0xff]
        %v189 = vld [vmem:[%s138 + $0xd0] sm:$0xff]
        %v190 = vld [vmem:[%s138 + $0xd8] sm:$0xff]
        %v191 = vld [vmem:[%s138 + $0xe0] sm:$0xff]
        %v192 = vld [vmem:[%s138 + $0xe8] sm:$0xff]
        %v193 = vld [vmem:[%s138 + $0xf0] sm:$0xff]
        %v194 = vld [vmem:[%s138 + $0xf8] sm:$0xff]
        %v195 = vld [vmem:[%s138 + $0x100] sm:$0xff]
        %v196 = vld [vmem:[%s138 + $0x108] sm:$0xff]
        %v197 = vld [vmem:[%s138 + $0x110] sm:$0xff]
        %v198 = vld [vmem:[%s138 + $0x118] sm:$0xff]
        %v199 = vld [vmem:[%s138 + $0x120] sm:$0xff]
        %v200 = vld [vmem:[%s138 + $0x128] sm:$0xff]
        %v201 = vld [vmem:[%s138 + $0x130] sm:$0xff]
        %v202 = vld [vmem:[%s138 + $0x138] sm:$0xff]
        %v203 = vld [vmem:[%s138 + $0x140] sm:$0xff]
        %v204 = vld [vmem:[%s138 + $0x148] sm:$0xff]
        %v205 = vld [vmem:[%s138 + $0x150] sm:$0xff]
        %v206 = vld [vmem:[%s138 + $0x158] sm:$0xff]
        %v207 = vld [vmem:[%s138 + $0x160] sm:$0xff]
        %v208 = vld [vmem:[%s138 + $0x168] sm:$0xff]
        %v209 = vld [vmem:[%s138 + $0x170] sm:$0xff]
        %v210 = vld [vmem:[%s138 + $0x178] sm:$0xff]
        %v211 = vld [vmem:[%s138 + $0x180] sm:$0xff]
        %v212 = vld [vmem:[%s138 + $0x188] sm:$0xff]
        %v213 = vld [vmem:[%s138 + $0x190] sm:$0xff]
        %v214 = vld [vmem:[%s138 + $0x198] sm:$0xff]
        %v215 = vld [vmem:[%s138 + $0x1a0] sm:$0xff]
        %v216 = vld [vmem:[%s138 + $0x1a8] sm:$0xff]
        %v217 = vld [vmem:[%s138 + $0x1b0] sm:$0xff]
        %v218 = vld [vmem:[%s138 + $0x1b8] sm:$0xff]
        %v219 = vld [vmem:[%s138 + $0x1c0] sm:$0xff]
        %v220 = vld [vmem:[%s138 + $0x1c8] sm:$0xff]
        %v221 = vld [vmem:[%s138 + $0x1d0] sm:$0xff]
        %v222 = vld [vmem:[%s138 + $0x1d8] sm:$0xff]
        %v223 = vld [vmem:[%s138 + $0x1e0] sm:$0xff]
        %v224 = vld [vmem:[%s138 + $0x1e8] sm:$0xff]
        %v225 = vld [vmem:[%s138 + $0x1f0] sm:$0xff]
        %v226 = vld [vmem:[%s138 + $0x1f8] sm:$0xff]
        %v227 = vld [vmem:[%s138 + $0x200] sm:$0xff]
        %v228 = vld [vmem:[%s138 + $0x208] sm:$0xff]
        %v229 = vld [vmem:[%s138 + $0x210] sm:$0xff]
        %v230 = vld [vmem:[%s138 + $0x218] sm:$0xff]
        %v231 = vld [vmem:[%s138 + $0x220] sm:$0xff]
        %v232 = vld [vmem:[%s138 + $0x228] sm:$0xff]
        %v233 = vld [vmem:[%s138 + $0x230] sm:$0xff]
        %v234 = vld [vmem:[%s138 + $0x238] sm:$0xff]
        %v235 = vld [vmem:[%s138 + $0x240] sm:$0xff]
        %v236 = vld [vmem:[%s138 + $0x248] sm:$0xff]
        %v237 = vld [vmem:[%s138 + $0x250] sm:$0xff]
        %v238 = vld [vmem:[%s138 + $0x258] sm:$0xff]
        %v239 = vld [vmem:[%s138 + $0x260] sm:$0xff]
        %v240 = vld [vmem:[%s138 + $0x268] sm:$0xff]
        %v241 = vld [vmem:[%s138 + $0x270] sm:$0xff]
        %v242 = vld [vmem:[%s138 + $0x278] sm:$0xff]
        %v243 = vld [vmem:[%s138 + $0x280] sm:$0xff]
        %v244 = vld [vmem:[%s138 + $0x288] sm:$0xff]
        %v245 = vld [vmem:[%s138 + $0x290] sm:$0xff]
        %v246 = vld [vmem:[%s138 + $0x298] sm:$0xff]
        %v247 = vld [vmem:[%s138 + $0x2a0] sm:$0xff]
        %v248 = vld [vmem:[%s138 + $0x2a8] sm:$0xff]
        %v249 = vld [vmem:[%s138 + $0x2b0] sm:$0xff]
        %v250 = vld [vmem:[%s138 + $0x2b8] sm:$0xff]
        %v251 = vld [vmem:[%s138 + $0x2c0] sm:$0xff]
        %v252 = vld [vmem:[%s138 + $0x2c8] sm:$0xff]
        %v253 = vld [vmem:[%s138 + $0x2d0] sm:$0xff]
        %v254 = vld [vmem:[%s138 + $0x2d8] sm:$0xff]
        %v255 = vld [vmem:[%s138 + $0x2e0] sm:$0xff]
        %v256 = vld [vmem:[%s138 + $0x2e8] sm:$0xff]
        %v257 = vld [vmem:[%s138 + $0x2f0] sm:$0xff]
        %v258 = vld [vmem:[%s138 + $0x2f8] sm:$0xff]
        %v259 = vld [vmem:[%s138 + $0x300] sm:$0xff]
        %v260 = vld [vmem:[%s138 + $0x308] sm:$0xff]
        %v261 = vld [vmem:[%s138 + $0x310] sm:$0xff]
        %v262 = vld [vmem:[%s138 + $0x318] sm:$0xff]
        %v263 = vld [vmem:[%s138 + $0x320] sm:$0xff]
        %v264 = vld [vmem:[%s138 + $0x328] sm:$0xff]
        %v265 = vld [vmem:[%s138 + $0x330] sm:$0xff]
        %v266 = vld [vmem:[%s138 + $0x338] sm:$0xff]
        %v267 = vld [vmem:[%s138 + $0x340] sm:$0xff]
        %v268 = vld [vmem:[%s138 + $0x348] sm:$0xff]
        %v269 = vld [vmem:[%s138 + $0x350] sm:$0xff]
        %v270 = vld [vmem:[%s138 + $0x358] sm:$0xff]
        %v271 = vld [vmem:[%s138 + $0x360] sm:$0xff]
        %v272 = vld [vmem:[%s138 + $0x368] sm:$0xff]
        %v273 = vld [vmem:[%s138 + $0x370] sm:$0xff]
        %v274 = vld [vmem:[%s138 + $0x378] sm:$0xff]
        %v275 = vld [vmem:[%s138 + $0x380] sm:$0xff]
        %v276 = vld [vmem:[%s138 + $0x388] sm:$0xff]
        %v277 = vld [vmem:[%s138 + $0x390] sm:$0xff]
        %v278 = vld [vmem:[%s138 + $0x398] sm:$0xff]
        %v279 = vld [vmem:[%s138 + $0x3a0] sm:$0xff]
        %v280 = vld [vmem:[%s138 + $0x3a8] sm:$0xff]
        %v281 = vld [vmem:[%s138 + $0x3b0] sm:$0xff]
        %v282 = vld [vmem:[%s138 + $0x3b8] sm:$0xff]
        %v283 = vld [vmem:[%s138 + $0x3c0] sm:$0xff]
        %v284 = vld [vmem:[%s138 + $0x3c8] sm:$0xff]
        %v285 = vld [vmem:[%s138 + $0x3d0] sm:$0xff]
        %v286 = vld [vmem:[%s138 + $0x3d8] sm:$0xff]
        %v287 = vld [vmem:[%s138 + $0x3e0] sm:$0xff]
        %v288 = vld [vmem:[%s138 + $0x3e8] sm:$0xff]
        %v289 = vld [vmem:[%s138 + $0x3f0] sm:$0xff]
        %v290 = vld [vmem:[%s138 + $0x3f8] sm:$0xff]
        %v291 = vld [vmem:[%s138 + $0x400] sm:$0xff]
        %v292 = vld [vmem:[%s138 + $0x408] sm:$0xff]
        %v293 = vld [vmem:[%s138 + $0x410] sm:$0xff]
        %v294 = vld [vmem:[%s138 + $0x418] sm:$0xff]
        %v295 = vld [vmem:[%s138 + $0x420] sm:$0xff]
        %v296 = vld [vmem:[%s138 + $0x428] sm:$0xff]
        %v297 = vld [vmem:[%s138 + $0x430] sm:$0xff]
        %v298 = vld [vmem:[%s138 + $0x438] sm:$0xff]
        %v299 = vld [vmem:[%s138 + $0x440] sm:$0xff]
        %v300 = vld [vmem:[%s138 + $0x448] sm:$0xff]
        %v301 = vld [vmem:[%s138 + $0x450] sm:$0xff]
        %v302 = vld [vmem:[%s138 + $0x458] sm:$0xff]
        %v303 = vld [vmem:[%s138 + $0x460] sm:$0xff]
        %v304 = vld [vmem:[%s138 + $0x468] sm:$0xff]
        %v305 = vld [vmem:[%s138 + $0x470] sm:$0xff]
        %v306 = vld [vmem:[%s138 + $0x478] sm:$0xff]
        %v307 = vld [vmem:[%s138 + $0x480] sm:$0xff]
        %v308 = vld [vmem:[%s138 + $0x488] sm:$0xff]
        %v309 = vld [vmem:[%s138 + $0x490] sm:$0xff]
        %v310 = vld [vmem:[%s138 + $0x498] sm:$0xff]
        %v311 = vld [vmem:[%s138 + $0x4a0] sm:$0xff]
        %v312 = vld [vmem:[%s138 + $0x4a8] sm:$0xff]
        %v313 = vld [vmem:[%s138 + $0x4b0] sm:$0xff]
        %v314 = vld [vmem:[%s138 + $0x4b8] sm:$0xff]
        %v315 = vld [vmem:[%s138 + $0x4c0] sm:$0xff]
        %v316 = vld [vmem:[%s138 + $0x4c8] sm:$0xff]
        %v317 = vld [vmem:[%s138 + $0x4d0] sm:$0xff]
        %v318 = vld [vmem:[%s138 + $0x4d8] sm:$0xff]
        %v319 = vld [vmem:[%s138 + $0x4e0] sm:$0xff]
        %v320 = vld [vmem:[%s138 + $0x4e8] sm:$0xff]
        %v321 = vld [vmem:[%s138 + $0x4f0] sm:$0xff]
        %v322 = vld [vmem:[%s138 + $0x4f8] sm:$0xff]
        %v323 = vld [vmem:[%s138 + $0x500] sm:$0xff]
        %v324 = vld [vmem:[%s138 + $0x508] sm:$0xff]
        %v325 = vld [vmem:[%s138 + $0x510] sm:$0xff]
        %v326 = vld [vmem:[%s138 + $0x518] sm:$0xff]
        %v327 = vld [vmem:[%s138 + $0x520] sm:$0xff]
        %v328 = vld [vmem:[%s138 + $0x528] sm:$0xff]
        %v329 = vld [vmem:[%s138 + $0x530] sm:$0xff]
        %v330 = vld [vmem:[%s138 + $0x538] sm:$0xff]
        %v331 = vld [vmem:[%s138 + $0x540] sm:$0xff]
        %v332 = vld [vmem:[%s138 + $0x548] sm:$0xff]
        %v333 = vld [vmem:[%s138 + $0x550] sm:$0xff]
        %v334 = vld [vmem:[%s138 + $0x558] sm:$0xff]
        %v335 = vld [vmem:[%s138 + $0x560] sm:$0xff]
        %v336 = vld [vmem:[%s138 + $0x568] sm:$0xff]
        %v337 = vld [vmem:[%s138 + $0x570] sm:$0xff]
        %v338 = vld [vmem:[%s138 + $0x578] sm:$0xff]
        %v339 = vld [vmem:[%s138 + $0x580] sm:$0xff]
        %v340 = vld [vmem:[%s138 + $0x588] sm:$0xff]
        %v341 = vld [vmem:[%s138 + $0x590] sm:$0xff]
        %v342 = vld [vmem:[%s138 + $0x598] sm:$0xff]
        %v343 = vld [vmem:[%s138 + $0x5a0] sm:$0xff]
        %v344 = vld [vmem:[%s138 + $0x5a8] sm:$0xff]
        %v345 = vld [vmem:[%s138 + $0x5b0] sm:$0xff]
        %v346 = vld [vmem:[%s138 + $0x5b8] sm:$0xff]
        %v347 = vld [vmem:[%s138 + $0x5c0] sm:$0xff]
        %v348 = vld [vmem:[%s138 + $0x5c8] sm:$0xff]
        %v349 = vld [vmem:[%s138 + $0x5d0] sm:$0xff]
        %v350 = vld [vmem:[%s138 + $0x5d8] sm:$0xff]
        %v351 = vld [vmem:[%s138 + $0x5e0] sm:$0xff]
        %v352 = vld [vmem:[%s138 + $0x5e8] sm:$0xff]
        %v353 = vld [vmem:[%s138 + $0x5f0] sm:$0xff]
        %v354 = vld [vmem:[%s138 + $0x5f8] sm:$0xff]
        %v355 = vld [vmem:[%s138 + $0x600] sm:$0xff]
        %v356 = vld [vmem:[%s138 + $0x608] sm:$0xff]
        %v357 = vld [vmem:[%s138 + $0x610] sm:$0xff]
        %v358 = vld [vmem:[%s138 + $0x618] sm:$0xff]
        %v359 = vld [vmem:[%s138 + $0x620] sm:$0xff]
        %v360 = vld [vmem:[%s138 + $0x628] sm:$0xff]
        %v361 = vld [vmem:[%s138 + $0x630] sm:$0xff]
        %v362 = vld [vmem:[%s138 + $0x638] sm:$0xff]
        %v363 = vld [vmem:[%s138 + $0x640] sm:$0xff]
        %v364 = vld [vmem:[%s138 + $0x648] sm:$0xff]
        %v365 = vld [vmem:[%s138 + $0x650] sm:$0xff]
        %v366 = vld [vmem:[%s138 + $0x658] sm:$0xff]
        %v367 = vld [vmem:[%s138 + $0x660] sm:$0xff]
        %v368 = vld [vmem:[%s138 + $0x668] sm:$0xff]
        %v369 = vld [vmem:[%s138 + $0x670] sm:$0xff]
        %v370 = vld [vmem:[%s138 + $0x678] sm:$0xff]
        %v371 = vld [vmem:[%s138 + $0x680] sm:$0xff]
        %v372 = vld [vmem:[%s138 + $0x688] sm:$0xff]
        %v373 = vld [vmem:[%s138 + $0x690] sm:$0xff]
        %v374 = vld [vmem:[%s138 + $0x698] sm:$0xff]
        %v375 = vld [vmem:[%s138 + $0x6a0] sm:$0xff]
        %v376 = vld [vmem:[%s138 + $0x6a8] sm:$0xff]
        %v377 = vld [vmem:[%s138 + $0x6b0] sm:$0xff]
        %v378 = vld [vmem:[%s138 + $0x6b8] sm:$0xff]
        %v379 = vld [vmem:[%s138 + $0x6c0] sm:$0xff]
        %v380 = vld [vmem:[%s138 + $0x6c8] sm:$0xff]
        %v381 = vld [vmem:[%s138 + $0x6d0] sm:$0xff]
        %v382 = vld [vmem:[%s138 + $0x6d8] sm:$0xff]
        %v383 = vld [vmem:[%s138 + $0x6e0] sm:$0xff]
        %v384 = vld [vmem:[%s138 + $0x6e8] sm:$0xff]
        %v385 = vld [vmem:[%s138 + $0x6f0] sm:$0xff]
        %v386 = vld [vmem:[%s138 + $0x6f8] sm:$0xff]
        %v387 = vld [vmem:[%s138 + $0x700] sm:$0xff]
        %v388 = vld [vmem:[%s138 + $0x708] sm:$0xff]
        %v389 = vld [vmem:[%s138 + $0x710] sm:$0xff]
        %v390 = vld [vmem:[%s138 + $0x718] sm:$0xff]
        %v391 = vld [vmem:[%s138 + $0x720] sm:$0xff]
        %v392 = vld [vmem:[%s138 + $0x728] sm:$0xff]
        %v393 = vld [vmem:[%s138 + $0x730] sm:$0xff]
        %v394 = vld [vmem:[%s138 + $0x738] sm:$0xff]
        %v395 = vld [vmem:[%s138 + $0x740] sm:$0xff]
        %v396 = vld [vmem:[%s138 + $0x748] sm:$0xff]
        %v397 = vld [vmem:[%s138 + $0x750] sm:$0xff]
        %v398 = vld [vmem:[%s138 + $0x758] sm:$0xff]
        %v399 = vld [vmem:[%s138 + $0x760] sm:$0xff]
        %v400 = vld [vmem:[%s138 + $0x768] sm:$0xff]
        %v401 = vld [vmem:[%s138 + $0x770] sm:$0xff]
        %v402 = vld [vmem:[%s138 + $0x778] sm:$0xff]
        %v403 = vld [vmem:[%s138 + $0x780] sm:$0xff]
        %v404 = vld [vmem:[%s138 + $0x788] sm:$0xff]
        %v405 = vld [vmem:[%s138 + $0x790] sm:$0xff]
        %v406 = vld [vmem:[%s138 + $0x798] sm:$0xff]
        %v407 = vld [vmem:[%s138 + $0x7a0] sm:$0xff]
        %v408 = vld [vmem:[%s138 + $0x7a8] sm:$0xff]
        %v409 = vld [vmem:[%s138 + $0x7b0] sm:$0xff]
        %v410 = vld [vmem:[%s138 + $0x7b8] sm:$0xff]
        %v411 = vld [vmem:[%s138 + $0x7c0] sm:$0xff]
        %v412 = vld [vmem:[%s138 + $0x7c8] sm:$0xff]
        %v413 = vld [vmem:[%s138 + $0x7d0] sm:$0xff]
        %v414 = vld [vmem:[%s138 + $0x7d8] sm:$0xff]
        %v415 = vld [vmem:[%s138 + $0x7e0] sm:$0xff]
        %v416 = vld [vmem:[%s138 + $0x7e8] sm:$0xff]
        %v417 = vld [vmem:[%s138 + $0x7f0] sm:$0xff]
        %v418 = vld [vmem:[%s138 + $0x7f8] sm:$0xff]
        %v419 = vld [vmem:[%s138 + $0x800] sm:$0xff]
        %v420 = vld [vmem:[%s138 + $0x808] sm:$0xff]
        %v421 = vld [vmem:[%s138 + $0x810] sm:$0xff]
        %v422 = vld [vmem:[%s138 + $0x818] sm:$0xff]
        %v423 = vld [vmem:[%s138 + $0x820] sm:$0xff]
        %v424 = vld [vmem:[%s138 + $0x828] sm:$0xff]
        %v425 = vld [vmem:[%s138 + $0x830] sm:$0xff]
        %v426 = vld [vmem:[%s138 + $0x838] sm:$0xff]
        %v427 = vld [vmem:[%s138 + $0x840] sm:$0xff]
        %v428 = vld [vmem:[%s138 + $0x848] sm:$0xff]
        %v429 = vld [vmem:[%s138 + $0x850] sm:$0xff]
        %v430 = vld [vmem:[%s138 + $0x858] sm:$0xff]
        %v431 = vld [vmem:[%s138 + $0x860] sm:$0xff]
        %v432 = vld [vmem:[%s138 + $0x868] sm:$0xff]
        %v433 = vld [vmem:[%s138 + $0x870] sm:$0xff]
        %v434 = vld [vmem:[%s138 + $0x878] sm:$0xff]
        %v435 = vld [vmem:[%s138 + $0x880] sm:$0xff]
        %v436 = vld [vmem:[%s138 + $0x888] sm:$0xff]
        %v437 = vld [vmem:[%s138 + $0x890] sm:$0xff]
        %v438 = vld [vmem:[%s138 + $0x898] sm:$0xff]
        %v439 = vld [vmem:[%s138 + $0x8a0] sm:$0xff]
        %v440 = vld [vmem:[%s138 + $0x8a8] sm:$0xff]
        %v441 = vld [vmem:[%s138 + $0x8b0] sm:$0xff]
        %v442 = vld [vmem:[%s138 + $0x8b8] sm:$0xff]
        %v443 = vld [vmem:[%s138 + $0x8c0] sm:$0xff]
        %v444 = vld [vmem:[%s138 + $0x8c8] sm:$0xff]
        %v445 = vld [vmem:[%s138 + $0x8d0] sm:$0xff]
        %v446 = vld [vmem:[%s138 + $0x8d8] sm:$0xff]
        %v447 = vld [vmem:[%s138 + $0x8e0] sm:$0xff]
        %v448 = vld [vmem:[%s138 + $0x8e8] sm:$0xff]
        %v449 = vld [vmem:[%s138 + $0x8f0] sm:$0xff]
        %v450 = vld [vmem:[%s138 + $0x8f8] sm:$0xff]
        %v451 = vld [vmem:[%s138 + $0x900] sm:$0xff]
        %v452 = vld [vmem:[%s138 + $0x908] sm:$0xff]
        %v453 = vld [vmem:[%s138 + $0x910] sm:$0xff]
        %v454 = vld [vmem:[%s138 + $0x918] sm:$0xff]
        %v455 = vld [vmem:[%s138 + $0x920] sm:$0xff]
        %v456 = vld [vmem:[%s138 + $0x928] sm:$0xff]
        %v457 = vld [vmem:[%s138 + $0x930] sm:$0xff]
        %v458 = vld [vmem:[%s138 + $0x938] sm:$0xff]
        %v459 = vld [vmem:[%s138 + $0x940] sm:$0xff]
        %v460 = vld [vmem:[%s138 + $0x948] sm:$0xff]
        %v461 = vld [vmem:[%s138 + $0x950] sm:$0xff]
        %v462 = vld [vmem:[%s138 + $0x958] sm:$0xff]
        %v463 = vld [vmem:[%s138 + $0x960] sm:$0xff]
        %v464 = vld [vmem:[%s138 + $0x968] sm:$0xff]
        %v465 = vld [vmem:[%s138 + $0x970] sm:$0xff]
        %v466 = vld [vmem:[%s138 + $0x978] sm:$0xff]
        %v467 = vld [vmem:[%s138 + $0x980] sm:$0xff]
        %v468 = vld [vmem:[%s138 + $0x988] sm:$0xff]
        %v469 = vld [vmem:[%s138 + $0x990] sm:$0xff]
        %v470 = vld [vmem:[%s138 + $0x998] sm:$0xff]
        %v471 = vld [vmem:[%s138 + $0x9a0] sm:$0xff]
        %v472 = vld [vmem:[%s138 + $0x9a8] sm:$0xff]
        %v473 = vld [vmem:[%s138 + $0x9b0] sm:$0xff]
        %v474 = vld [vmem:[%s138 + $0x9b8] sm:$0xff]
        %v475 = vld [vmem:[%s138 + $0x9c0] sm:$0xff]
        %v476 = vld [vmem:[%s138 + $0x9c8] sm:$0xff]
        %v477 = vld [vmem:[%s138 + $0x9d0] sm:$0xff]
        %v478 = vld [vmem:[%s138 + $0x9d8] sm:$0xff]
        %v479 = vld [vmem:[%s138 + $0x9e0] sm:$0xff]
        %v480 = vld [vmem:[%s138 + $0x9e8] sm:$0xff]
        %v481 = vld [vmem:[%s138 + $0x9f0] sm:$0xff]
        %v482 = vld [vmem:[%s138 + $0x9f8] sm:$0xff]
        %v483 = vld [vmem:[%s138 + $0xa00] sm:$0xff]
        %v484 = vld [vmem:[%s138 + $0xa08] sm:$0xff]
        %v485 = vld [vmem:[%s138 + $0xa10] sm:$0xff]
        %v486 = vld [vmem:[%s138 + $0xa18] sm:$0xff]
        %v487 = vld [vmem:[%s138 + $0xa20] sm:$0xff]
        %v488 = vld [vmem:[%s138 + $0xa28] sm:$0xff]
        %v489 = vld [vmem:[%s138 + $0xa30] sm:$0xff]
        %v490 = vld [vmem:[%s138 + $0xa38] sm:$0xff]
        %v491 = vld [vmem:[%s138 + $0xa40] sm:$0xff]
        %v492 = vld [vmem:[%s138 + $0xa48] sm:$0xff]
        %v493 = vld [vmem:[%s138 + $0xa50] sm:$0xff]
        %v494 = vld [vmem:[%s138 + $0xa58] sm:$0xff]
        %v495 = vld [vmem:[%s138 + $0xa60] sm:$0xff]
        %v496 = vld [vmem:[%s138 + $0xa68] sm:$0xff]
        %v497 = vld [vmem:[%s138 + $0xa70] sm:$0xff]
        %v498 = vld [vmem:[%s138 + $0xa78] sm:$0xff]
        %v499 = vld [vmem:[%s138 + $0xa80] sm:$0xff]
        %v500 = vld [vmem:[%s138 + $0xa88] sm:$0xff]
        %v501 = vld [vmem:[%s138 + $0xa90] sm:$0xff]
        %v502 = vld [vmem:[%s138 + $0xa98] sm:$0xff]
        %v503 = vld [vmem:[%s138 + $0xaa0] sm:$0xff]
        %v504 = vld [vmem:[%s138 + $0xaa8] sm:$0xff]
        %v505 = vld [vmem:[%s138 + $0xab0] sm:$0xff]
        %v506 = vld [vmem:[%s138 + $0xab8] sm:$0xff]
        %v507 = vld [vmem:[%s138 + $0xac0] sm:$0xff]
        %v508 = vld [vmem:[%s138 + $0xac8] sm:$0xff]
        %v509 = vld [vmem:[%s138 + $0xad0] sm:$0xff]
        %v510 = vld [vmem:[%s138 + $0xad8] sm:$0xff]
        %v511 = vld [vmem:[%s138 + $0xae0] sm:$0xff]
        %v512 = vld [vmem:[%s138 + $0xae8] sm:$0xff]
        %v513 = vld [vmem:[%s138 + $0xaf0] sm:$0xff]
        %v514 = vld [vmem:[%s138 + $0xaf8] sm:$0xff]
        %v515 = vld [vmem:[%s138 + $0xb00] sm:$0xff]
        %v516 = vld [vmem:[%s138 + $0xb08] sm:$0xff]
        %v517 = vld [vmem:[%s138 + $0xb10] sm:$0xff]
        %v518 = vld [vmem:[%s138 + $0xb18] sm:$0xff]
        %v519 = vld [vmem:[%s138 + $0xb20] sm:$0xff]
        %v520 = vld [vmem:[%s138 + $0xb28] sm:$0xff]
        %v521 = vld [vmem:[%s138 + $0xb30] sm:$0xff]
        %v522 = vld [vmem:[%s138 + $0xb38] sm:$0xff]
        %v523 = vld [vmem:[%s138 + $0xb40] sm:$0xff]
        %v524 = vld [vmem:[%s138 + $0xb48] sm:$0xff]
        %v525 = vld [vmem:[%s138 + $0xb50] sm:$0xff]
        %v526 = vld [vmem:[%s138 + $0xb58] sm:$0xff]
        %v527 = vld [vmem:[%s138 + $0xb60] sm:$0xff]
        %v528 = vld [vmem:[%s138 + $0xb68] sm:$0xff]
        %v529 = vld [vmem:[%s138 + $0xb70] sm:$0xff]
        %v530 = vld [vmem:[%s138 + $0xb78] sm:$0xff]
        %v531 = vld [vmem:[%s138 + $0xb80] sm:$0xff]
        %v532 = vld [vmem:[%s138 + $0xb88] sm:$0xff]
        %v533 = vld [vmem:[%s138 + $0xb90] sm:$0xff]
        %v534 = vld [vmem:[%s138 + $0xb98] sm:$0xff]
        %v535 = vld [vmem:[%s138 + $0xba0] sm:$0xff]
        %v536 = vld [vmem:[%s138 + $0xba8] sm:$0xff]
        %v537 = vld [vmem:[%s138 + $0xbb0] sm:$0xff]
        %v538 = vld [vmem:[%s138 + $0xbb8] sm:$0xff]
        %v539 = vld [vmem:[%s138 + $0xbc0] sm:$0xff]
        %v540 = vld [vmem:[%s138 + $0xbc8] sm:$0xff]
        %v541 = vld [vmem:[%s138 + $0xbd0] sm:$0xff]
        %v542 = vld [vmem:[%s138 + $0xbd8] sm:$0xff]
        %v543 = vld [vmem:[%s138 + $0xbe0] sm:$0xff]
        %v544 = vld [vmem:[%s138 + $0xbe8] sm:$0xff]
        %v545 = vld [vmem:[%s138 + $0xbf0] sm:$0xff]
        %v546 = vld [vmem:[%s138 + $0xbf8] sm:$0xff]
        %v547 = vld [vmem:[%s138 + $0xc00] sm:$0xff]
        %v548 = vld [vmem:[%s138 + $0xc08] sm:$0xff]
        %v549 = vld [vmem:[%s138 + $0xc10] sm:$0xff]
        %v550 = vld [vmem:[%s138 + $0xc18] sm:$0xff]
        %v551 = vld [vmem:[%s138 + $0xc20] sm:$0xff]
        %v552 = vld [vmem:[%s138 + $0xc28] sm:$0xff]
        %v553 = vld [vmem:[%s138 + $0xc30] sm:$0xff]
        %v554 = vld [vmem:[%s138 + $0xc38] sm:$0xff]
        %v555 = vld [vmem:[%s138 + $0xc40] sm:$0xff]
        %v556 = vld [vmem:[%s138 + $0xc48] sm:$0xff]
        %v557 = vld [vmem:[%s138 + $0xc50] sm:$0xff]
        %v558 = vld [vmem:[%s138 + $0xc58] sm:$0xff]
        %v559 = vld [vmem:[%s138 + $0xc60] sm:$0xff]
        %v560 = vld [vmem:[%s138 + $0xc68] sm:$0xff]
        %v561 = vld [vmem:[%s138 + $0xc70] sm:$0xff]
        %v562 = vld [vmem:[%s138 + $0xc78] sm:$0xff]
        %v563 = vld [vmem:[%s138 + $0xc80] sm:$0xff]
        %v564 = vld [vmem:[%s138 + $0xc88] sm:$0xff]
        %v565 = vld [vmem:[%s138 + $0xc90] sm:$0xff]
        %v566 = vld [vmem:[%s138 + $0xc98] sm:$0xff]
        %v567 = vld [vmem:[%s138 + $0xca0] sm:$0xff]
        %v568 = vld [vmem:[%s138 + $0xca8] sm:$0xff]
        %v569 = vld [vmem:[%s138 + $0xcb0] sm:$0xff]
        %v570 = vld [vmem:[%s138 + $0xcb8] sm:$0xff]
        %v571 = vld [vmem:[%s138 + $0xcc0] sm:$0xff]
        %v572 = vld [vmem:[%s138 + $0xcc8] sm:$0xff]
        %v573 = vld [vmem:[%s138 + $0xcd0] sm:$0xff]
        %v574 = vld [vmem:[%s138 + $0xcd8] sm:$0xff]
        %v575 = vld [vmem:[%s138 + $0xce0] sm:$0xff]
        %v576 = vld [vmem:[%s138 + $0xce8] sm:$0xff]
        %v577 = vld [vmem:[%s138 + $0xcf0] sm:$0xff]
        %v578 = vld [vmem:[%s138 + $0xcf8] sm:$0xff]
        %v579 = vld [vmem:[%s138 + $0xd00] sm:$0xff]
        %v580 = vld [vmem:[%s138 + $0xd08] sm:$0xff]
        %v581 = vld [vmem:[%s138 + $0xd10] sm:$0xff]
        %v582 = vld [vmem:[%s138 + $0xd18] sm:$0xff]
        %v583 = vld [vmem:[%s138 + $0xd20] sm:$0xff]
        %v584 = vld [vmem:[%s138 + $0xd28] sm:$0xff]
        %v585 = vld [vmem:[%s138 + $0xd30] sm:$0xff]
        %v586 = vld [vmem:[%s138 + $0xd38] sm:$0xff]
        %v587 = vld [vmem:[%s138 + $0xd40] sm:$0xff]
        %v588 = vld [vmem:[%s138 + $0xd48] sm:$0xff]
        %v589 = vld [vmem:[%s138 + $0xd50] sm:$0xff]
        %v590 = vld [vmem:[%s138 + $0xd58] sm:$0xff]
        %v591 = vld [vmem:[%s138 + $0xd60] sm:$0xff]
        %v592 = vld [vmem:[%s138 + $0xd68] sm:$0xff]
        %v593 = vld [vmem:[%s138 + $0xd70] sm:$0xff]
        %v594 = vld [vmem:[%s138 + $0xd78] sm:$0xff]
        %v595 = vld [vmem:[%s138 + $0xd80] sm:$0xff]
        %v596 = vld [vmem:[%s138 + $0xd88] sm:$0xff]
        %v597 = vld [vmem:[%s138 + $0xd90] sm:$0xff]
        %v598 = vld [vmem:[%s138 + $0xd98] sm:$0xff]
        %v599 = vld [vmem:[%s138 + $0xda0] sm:$0xff]
        %v600 = vld [vmem:[%s138 + $0xda8] sm:$0xff]
        %v601 = vld [vmem:[%s138 + $0xdb0] sm:$0xff]
        %v602 = vld [vmem:[%s138 + $0xdb8] sm:$0xff]
        %v603 = vld [vmem:[%s138 + $0xdc0] sm:$0xff]
        %v604 = vld [vmem:[%s138 + $0xdc8] sm:$0xff]
        %v605 = vld [vmem:[%s138 + $0xdd0] sm:$0xff]
        %v606 = vld [vmem:[%s138 + $0xdd8] sm:$0xff]
        %v607 = vld [vmem:[%s138 + $0xde0] sm:$0xff]
        %v608 = vld [vmem:[%s138 + $0xde8] sm:$0xff]
        %v609 = vld [vmem:[%s138 + $0xdf0] sm:$0xff]
        %v610 = vld [vmem:[%s138 + $0xdf8] sm:$0xff]
        %v611 = vld [vmem:[%s138 + $0xe00] sm:$0xff]
        %v612 = vld [vmem:[%s138 + $0xe08] sm:$0xff]
        %v613 = vld [vmem:[%s138 + $0xe10] sm:$0xff]
        %v614 = vld [vmem:[%s138 + $0xe18] sm:$0xff]
        %v615 = vld [vmem:[%s138 + $0xe20] sm:$0xff]
        %v616 = vld [vmem:[%s138 + $0xe28] sm:$0xff]
        %v617 = vld [vmem:[%s138 + $0xe30] sm:$0xff]
        %v618 = vld [vmem:[%s138 + $0xe38] sm:$0xff]
        %v619 = vld [vmem:[%s138 + $0xe40] sm:$0xff]
        %v620 = vld [vmem:[%s138 + $0xe48] sm:$0xff]
        %v621 = vld [vmem:[%s138 + $0xe50] sm:$0xff]
        %v622 = vld [vmem:[%s138 + $0xe58] sm:$0xff]
        %v623 = vld [vmem:[%s138 + $0xe60] sm:$0xff]
        %v624 = vld [vmem:[%s138 + $0xe68] sm:$0xff]
        %v625 = vld [vmem:[%s138 + $0xe70] sm:$0xff]
        %v626 = vld [vmem:[%s138 + $0xe78] sm:$0xff]
        %v627 = vld [vmem:[%s138 + $0xe80] sm:$0xff]
        %v628 = vld [vmem:[%s138 + $0xe88] sm:$0xff]
        %v629 = vld [vmem:[%s138 + $0xe90] sm:$0xff]
        %v630 = vld [vmem:[%s138 + $0xe98] sm:$0xff]
        %v631 = vld [vmem:[%s138 + $0xea0] sm:$0xff]
        %v632 = vld [vmem:[%s138 + $0xea8] sm:$0xff]
        %v633 = vld [vmem:[%s138 + $0xeb0] sm:$0xff]
        %v634 = vld [vmem:[%s138 + $0xeb8] sm:$0xff]
        %v635 = vld [vmem:[%s138 + $0xec0] sm:$0xff]
        %v636 = vld [vmem:[%s138 + $0xec8] sm:$0xff]
        %v637 = vld [vmem:[%s138 + $0xed0] sm:$0xff]
        %v638 = vld [vmem:[%s138 + $0xed8] sm:$0xff]
        %v639 = vld [vmem:[%s138 + $0xee0] sm:$0xff]
        %v640 = vld [vmem:[%s138 + $0xee8] sm:$0xff]
        %v641 = vld [vmem:[%s138 + $0xef0] sm:$0xff]
        %v642 = vld [vmem:[%s138 + $0xef8] sm:$0xff]
        %v643 = vld [vmem:[%s138 + $0xf00] sm:$0xff]
        %v644 = vld [vmem:[%s138 + $0xf08] sm:$0xff]
        %v645 = vld [vmem:[%s138 + $0xf10] sm:$0xff]
        %v646 = vld [vmem:[%s138 + $0xf18] sm:$0xff]
        %v647 = vld [vmem:[%s138 + $0xf20] sm:$0xff]
        %v648 = vld [vmem:[%s138 + $0xf28] sm:$0xff]
        %v649 = vld [vmem:[%s138 + $0xf30] sm:$0xff]
        %v650 = vld [vmem:[%s138 + $0xf38] sm:$0xff]
        %v651 = vld [vmem:[%s138 + $0xf40] sm:$0xff]
        %v652 = vld [vmem:[%s138 + $0xf48] sm:$0xff]
        %v653 = vld [vmem:[%s138 + $0xf50] sm:$0xff]
        %v654 = vld [vmem:[%s138 + $0xf58] sm:$0xff]
        %v655 = vld [vmem:[%s138 + $0xf60] sm:$0xff]
        %v656 = vld [vmem:[%s138 + $0xf68] sm:$0xff]
        %v657 = vld [vmem:[%s138 + $0xf70] sm:$0xff]
        %v658 = vld [vmem:[%s138 + $0xf78] sm:$0xff]
        %v659 = vld [vmem:[%s138 + $0xf80] sm:$0xff]
        %v660 = vld [vmem:[%s138 + $0xf88] sm:$0xff]
        %v661 = vld [vmem:[%s138 + $0xf90] sm:$0xff]
        %v662 = vld [vmem:[%s138 + $0xf98] sm:$0xff]
        %v663 = vld [vmem:[%s138 + $0xfa0] sm:$0xff]
        %v664 = vld [vmem:[%s138 + $0xfa8] sm:$0xff]
        %v665 = vld [vmem:[%s138 + $0xfb0] sm:$0xff]
        %v666 = vld [vmem:[%s138 + $0xfb8] sm:$0xff]
        %v667 = vld [vmem:[%s138 + $0xfc0] sm:$0xff]
        %v668 = vld [vmem:[%s138 + $0xfc8] sm:$0xff]
        %v669 = vld [vmem:[%s138 + $0xfd0] sm:$0xff]
        %v670 = vld [vmem:[%s138 + $0xfd8] sm:$0xff]
        %v671 = vld [vmem:[%s138 + $0xfe0] sm:$0xff]
        %v672 = vld [vmem:[%s138 + $0xfe8] sm:$0xff]
        %v673 = vld [vmem:[%s138 + $0xff0] sm:$0xff]
        %v674 = vld [vmem:[%s138 + $0xff8] sm:$0xff]
        %v677 = vunpack.c.l.b16 %v161
        %v678 = vunpack.c.l.b16 %v162
        %v679 = vpack.c.b16 %v678, %v677
        %v1193 = vunpack.c.l.b16 %v163
        %v1194 = vunpack.c.h.b16 %v163
        %v1195 = vunpack.c.l.b16 %v164
        %v1196 = vunpack.c.h.b16 %v164
        %v1197 = vunpack.c.l.b16 %v165
        %v1198 = vunpack.c.h.b16 %v165
        %v1199 = vunpack.c.l.b16 %v166
        %v1200 = vunpack.c.h.b16 %v166
        %v1201 = vunpack.c.l.b16 %v167
        %v1202 = vunpack.c.h.b16 %v167
        %v1203 = vunpack.c.l.b16 %v168
        %v1204 = vunpack.c.h.b16 %v168
        %v1205 = vunpack.c.l.b16 %v169
        %v1206 = vunpack.c.h.b16 %v169
        %v1207 = vunpack.c.l.b16 %v170
        %v1208 = vunpack.c.h.b16 %v170
        %v1209 = vunpack.c.l.b16 %v171
        %v1210 = vunpack.c.h.b16 %v171
        %v1211 = vunpack.c.l.b16 %v172
        %v1212 = vunpack.c.h.b16 %v172
        %v1213 = vunpack.c.l.b16 %v173
        %v1214 = vunpack.c.h.b16 %v173
        %v1215 = vunpack.c.l.b16 %v174
        %v1216 = vunpack.c.h.b16 %v174
        %v1217 = vunpack.c.l.b16 %v175
        %v1218 = vunpack.c.h.b16 %v175
        %v1219 = vunpack.c.l.b16 %v176
        %v1220 = vunpack.c.h.b16 %v176
        %v1221 = vunpack.c.l.b16 %v177
        %v1222 = vunpack.c.h.b16 %v177
        %v1223 = vunpack.c.l.b16 %v178
        %v1224 = vunpack.c.h.b16 %v178
        %v1225 = vunpack.c.l.b16 %v179
        %v1226 = vunpack.c.h.b16 %v179
        %v1227 = vunpack.c.l.b16 %v180
        %v1228 = vunpack.c.h.b16 %v180
        %v1229 = vunpack.c.l.b16 %v181
        %v1230 = vunpack.c.h.b16 %v181
        %v1231 = vunpack.c.l.b16 %v182
        %v1232 = vunpack.c.h.b16 %v182
        %v1233 = vunpack.c.l.b16 %v183
        %v1234 = vunpack.c.h.b16 %v183
        %v1235 = vunpack.c.l.b16 %v184
        %v1236 = vunpack.c.h.b16 %v184
        %v1237 = vunpack.c.l.b16 %v185
        %v1238 = vunpack.c.h.b16 %v185
        %v1239 = vunpack.c.l.b16 %v186
        %v1240 = vunpack.c.h.b16 %v186
        %v1241 = vunpack.c.l.b16 %v187
        %v1242 = vunpack.c.h.b16 %v187
        %v1243 = vunpack.c.l.b16 %v188
        %v1244 = vunpack.c.h.b16 %v188
        %v1245 = vunpack.c.l.b16 %v189
        %v1246 = vunpack.c.h.b16 %v189
        %v1247 = vunpack.c.l.b16 %v190
        %v1248 = vunpack.c.h.b16 %v190
        %v1249 = vunpack.c.l.b16 %v191
        %v1250 = vunpack.c.h.b16 %v191
        %v1251 = vunpack.c.l.b16 %v192
        %v1252 = vunpack.c.h.b16 %v192
        %v1253 = vunpack.c.l.b16 %v193
        %v1254 = vunpack.c.h.b16 %v193
        %v1255 = vunpack.c.l.b16 %v194
        %v1256 = vunpack.c.h.b16 %v194
        %v1257 = vunpack.c.l.b16 %v195
        %v1258 = vunpack.c.h.b16 %v195
        %v1259 = vunpack.c.l.b16 %v196
        %v1260 = vunpack.c.h.b16 %v196
        %v1261 = vunpack.c.l.b16 %v197
        %v1262 = vunpack.c.h.b16 %v197
        %v1263 = vunpack.c.l.b16 %v198
        %v1264 = vunpack.c.h.b16 %v198
        %v1265 = vunpack.c.l.b16 %v199
        %v1266 = vunpack.c.h.b16 %v199
        %v1267 = vunpack.c.l.b16 %v200
        %v1268 = vunpack.c.h.b16 %v200
        %v1269 = vunpack.c.l.b16 %v201
        %v1270 = vunpack.c.h.b16 %v201
        %v1271 = vunpack.c.l.b16 %v202
        %v1272 = vunpack.c.h.b16 %v202
        %v1273 = vunpack.c.l.b16 %v203
        %v1274 = vunpack.c.h.b16 %v203
        %v1275 = vunpack.c.l.b16 %v204
        %v1276 = vunpack.c.h.b16 %v204
        %v1277 = vunpack.c.l.b16 %v205
        %v1278 = vunpack.c.h.b16 %v205
        %v1279 = vunpack.c.l.b16 %v206
        %v1280 = vunpack.c.h.b16 %v206
        %v1281 = vunpack.c.l.b16 %v207
        %v1282 = vunpack.c.h.b16 %v207
        %v1283 = vunpack.c.l.b16 %v208
        %v1284 = vunpack.c.h.b16 %v208
        %v1285 = vunpack.c.l.b16 %v209
        %v1286 = vunpack.c.h.b16 %v209
        %v1287 = vunpack.c.l.b16 %v210
        %v1288 = vunpack.c.h.b16 %v210
        %v1289 = vunpack.c.l.b16 %v211
        %v1290 = vunpack.c.h.b16 %v211
        %v1291 = vunpack.c.l.b16 %v212
        %v1292 = vunpack.c.h.b16 %v212
        %v1293 = vunpack.c.l.b16 %v213
        %v1294 = vunpack.c.h.b16 %v213
        %v1295 = vunpack.c.l.b16 %v214
        %v1296 = vunpack.c.h.b16 %v214
        %v1297 = vunpack.c.l.b16 %v215
        %v1298 = vunpack.c.h.b16 %v215
        %v1299 = vunpack.c.l.b16 %v216
        %v1300 = vunpack.c.h.b16 %v216
        %v1301 = vunpack.c.l.b16 %v217
        %v1302 = vunpack.c.h.b16 %v217
        %v1303 = vunpack.c.l.b16 %v218
        %v1304 = vunpack.c.h.b16 %v218
        %v1305 = vunpack.c.l.b16 %v219
        %v1306 = vunpack.c.h.b16 %v219
        %v1307 = vunpack.c.l.b16 %v220
        %v1308 = vunpack.c.h.b16 %v220
        %v1309 = vunpack.c.l.b16 %v221
        %v1310 = vunpack.c.h.b16 %v221
        %v1311 = vunpack.c.l.b16 %v222
        %v1312 = vunpack.c.h.b16 %v222
        %v1313 = vunpack.c.l.b16 %v223
        %v1314 = vunpack.c.h.b16 %v223
        %v1315 = vunpack.c.l.b16 %v224
        %v1316 = vunpack.c.h.b16 %v224
        %v1317 = vunpack.c.l.b16 %v225
        %v1318 = vunpack.c.h.b16 %v225
        %v1319 = vunpack.c.l.b16 %v226
        %v1320 = vunpack.c.h.b16 %v226
        %v1321 = vunpack.c.l.b16 %v227
        %v1322 = vunpack.c.h.b16 %v227
        %v1323 = vunpack.c.l.b16 %v228
        %v1324 = vunpack.c.h.b16 %v228
        %v1325 = vunpack.c.l.b16 %v229
        %v1326 = vunpack.c.h.b16 %v229
        %v1327 = vunpack.c.l.b16 %v230
        %v1328 = vunpack.c.h.b16 %v230
        %v1329 = vunpack.c.l.b16 %v231
        %v1330 = vunpack.c.h.b16 %v231
        %v1331 = vunpack.c.l.b16 %v232
        %v1332 = vunpack.c.h.b16 %v232
        %v1333 = vunpack.c.l.b16 %v233
        %v1334 = vunpack.c.h.b16 %v233
        %v1335 = vunpack.c.l.b16 %v234
        %v1336 = vunpack.c.h.b16 %v234
        %v1337 = vunpack.c.l.b16 %v235
        %v1338 = vunpack.c.h.b16 %v235
        %v1339 = vunpack.c.l.b16 %v236
        %v1340 = vunpack.c.h.b16 %v236
        %v1341 = vunpack.c.l.b16 %v237
        %v1342 = vunpack.c.h.b16 %v237
        %v1343 = vunpack.c.l.b16 %v238
        %v1344 = vunpack.c.h.b16 %v238
        %v1345 = vunpack.c.l.b16 %v239
        %v1346 = vunpack.c.h.b16 %v239
        %v1347 = vunpack.c.l.b16 %v240
        %v1348 = vunpack.c.h.b16 %v240
        %v1349 = vunpack.c.l.b16 %v241
        %v1350 = vunpack.c.h.b16 %v241
        %v1351 = vunpack.c.l.b16 %v242
        %v1352 = vunpack.c.h.b16 %v242
        %v1353 = vunpack.c.l.b16 %v243
        %v1354 = vunpack.c.h.b16 %v243
        %v1355 = vunpack.c.l.b16 %v244
        %v1356 = vunpack.c.h.b16 %v244
        %v1357 = vunpack.c.l.b16 %v245
        %v1358 = vunpack.c.h.b16 %v245
        %v1359 = vunpack.c.l.b16 %v246
        %v1360 = vunpack.c.h.b16 %v246
        %v1361 = vunpack.c.l.b16 %v247
        %v1362 = vunpack.c.h.b16 %v247
        %v1363 = vunpack.c.l.b16 %v248
        %v1364 = vunpack.c.h.b16 %v248
        %v1365 = vunpack.c.l.b16 %v249
        %v1366 = vunpack.c.h.b16 %v249
        %v1367 = vunpack.c.l.b16 %v250
        %v1368 = vunpack.c.h.b16 %v250
        %v1369 = vunpack.c.l.b16 %v251
        %v1370 = vunpack.c.h.b16 %v251
        %v1371 = vunpack.c.l.b16 %v252
        %v1372 = vunpack.c.h.b16 %v252
        %v1373 = vunpack.c.l.b16 %v253
        %v1374 = vunpack.c.h.b16 %v253
        %v1375 = vunpack.c.l.b16 %v254
        %v1376 = vunpack.c.h.b16 %v254
        %v1377 = vunpack.c.l.b16 %v255
        %v1378 = vunpack.c.h.b16 %v255
        %v1379 = vunpack.c.l.b16 %v256
        %v1380 = vunpack.c.h.b16 %v256
        %v1381 = vunpack.c.l.b16 %v257
        %v1382 = vunpack.c.h.b16 %v257
        %v1383 = vunpack.c.l.b16 %v258
        %v1384 = vunpack.c.h.b16 %v258
        %v1385 = vunpack.c.l.b16 %v259
        %v1386 = vunpack.c.h.b16 %v259
        %v1387 = vunpack.c.l.b16 %v260
        %v1388 = vunpack.c.h.b16 %v260
        %v1389 = vunpack.c.l.b16 %v261
        %v1390 = vunpack.c.h.b16 %v261
        %v1391 = vunpack.c.l.b16 %v262
        %v1392 = vunpack.c.h.b16 %v262
        %v1393 = vunpack.c.l.b16 %v263
        %v1394 = vunpack.c.h.b16 %v263
        %v1395 = vunpack.c.l.b16 %v264
        %v1396 = vunpack.c.h.b16 %v264
        %v1397 = vunpack.c.l.b16 %v265
        %v1398 = vunpack.c.h.b16 %v265
        %v1399 = vunpack.c.l.b16 %v266
        %v1400 = vunpack.c.h.b16 %v266
        %v1401 = vunpack.c.l.b16 %v267
        %v1402 = vunpack.c.h.b16 %v267
        %v1403 = vunpack.c.l.b16 %v268
        %v1404 = vunpack.c.h.b16 %v268
        %v1405 = vunpack.c.l.b16 %v269
        %v1406 = vunpack.c.h.b16 %v269
        %v1407 = vunpack.c.l.b16 %v270
        %v1408 = vunpack.c.h.b16 %v270
        %v1409 = vunpack.c.l.b16 %v271
        %v1410 = vunpack.c.h.b16 %v271
        %v1411 = vunpack.c.l.b16 %v272
        %v1412 = vunpack.c.h.b16 %v272
        %v1413 = vunpack.c.l.b16 %v273
        %v1414 = vunpack.c.h.b16 %v273
        %v1415 = vunpack.c.l.b16 %v274
        %v1416 = vunpack.c.h.b16 %v274
        %v1417 = vunpack.c.l.b16 %v275
        %v1418 = vunpack.c.h.b16 %v275
        %v1419 = vunpack.c.l.b16 %v276
        %v1420 = vunpack.c.h.b16 %v276
        %v1421 = vunpack.c.l.b16 %v277
        %v1422 = vunpack.c.h.b16 %v277
        %v1423 = vunpack.c.l.b16 %v278
        %v1424 = vunpack.c.h.b16 %v278
        %v1425 = vunpack.c.l.b16 %v279
        %v1426 = vunpack.c.h.b16 %v279
        %v1427 = vunpack.c.l.b16 %v280
        %v1428 = vunpack.c.h.b16 %v280
        %v1429 = vunpack.c.l.b16 %v281
        %v1430 = vunpack.c.h.b16 %v281
        %v1431 = vunpack.c.l.b16 %v282
        %v1432 = vunpack.c.h.b16 %v282
        %v1433 = vunpack.c.l.b16 %v283
        %v1434 = vunpack.c.h.b16 %v283
        %v1435 = vunpack.c.l.b16 %v284
        %v1436 = vunpack.c.h.b16 %v284
        %v1437 = vunpack.c.l.b16 %v285
        %v1438 = vunpack.c.h.b16 %v285
        %v1439 = vunpack.c.l.b16 %v286
        %v1440 = vunpack.c.h.b16 %v286
        %v1441 = vunpack.c.l.b16 %v287
        %v1442 = vunpack.c.h.b16 %v287
        %v1443 = vunpack.c.l.b16 %v288
        %v1444 = vunpack.c.h.b16 %v288
        %v1445 = vunpack.c.l.b16 %v289
        %v1446 = vunpack.c.h.b16 %v289
        %v1447 = vunpack.c.l.b16 %v290
        %v1448 = vunpack.c.h.b16 %v290
        %v1449 = vunpack.c.l.b16 %v291
        %v1450 = vunpack.c.h.b16 %v291
        %v1451 = vunpack.c.l.b16 %v292
        %v1452 = vunpack.c.h.b16 %v292
        %v1453 = vunpack.c.l.b16 %v293
        %v1454 = vunpack.c.h.b16 %v293
        %v1455 = vunpack.c.l.b16 %v294
        %v1456 = vunpack.c.h.b16 %v294
        %v1457 = vunpack.c.l.b16 %v295
        %v1458 = vunpack.c.h.b16 %v295
        %v1459 = vunpack.c.l.b16 %v296
        %v1460 = vunpack.c.h.b16 %v296
        %v1461 = vunpack.c.l.b16 %v297
        %v1462 = vunpack.c.h.b16 %v297
        %v1463 = vunpack.c.l.b16 %v298
        %v1464 = vunpack.c.h.b16 %v298
        %v1465 = vunpack.c.l.b16 %v299
        %v1466 = vunpack.c.h.b16 %v299
        %v1467 = vunpack.c.l.b16 %v300
        %v1468 = vunpack.c.h.b16 %v300
        %v1469 = vunpack.c.l.b16 %v301
        %v1470 = vunpack.c.h.b16 %v301
        %v1471 = vunpack.c.l.b16 %v302
        %v1472 = vunpack.c.h.b16 %v302
        %v1473 = vunpack.c.l.b16 %v303
        %v1474 = vunpack.c.h.b16 %v303
        %v1475 = vunpack.c.l.b16 %v304
        %v1476 = vunpack.c.h.b16 %v304
        %v1477 = vunpack.c.l.b16 %v305
        %v1478 = vunpack.c.h.b16 %v305
        %v1479 = vunpack.c.l.b16 %v306
        %v1480 = vunpack.c.h.b16 %v306
        %v1481 = vunpack.c.l.b16 %v307
        %v1482 = vunpack.c.h.b16 %v307
        %v1483 = vunpack.c.l.b16 %v308
        %v1484 = vunpack.c.h.b16 %v308
        %v1485 = vunpack.c.l.b16 %v309
        %v1486 = vunpack.c.h.b16 %v309
        %v1487 = vunpack.c.l.b16 %v310
        %v1488 = vunpack.c.h.b16 %v310
        %v1489 = vunpack.c.l.b16 %v311
        %v1490 = vunpack.c.h.b16 %v311
        %v1491 = vunpack.c.l.b16 %v312
        %v1492 = vunpack.c.h.b16 %v312
        %v1493 = vunpack.c.l.b16 %v313
        %v1494 = vunpack.c.h.b16 %v313
        %v1495 = vunpack.c.l.b16 %v314
        %v1496 = vunpack.c.h.b16 %v314
        %v1497 = vunpack.c.l.b16 %v315
        %v1498 = vunpack.c.h.b16 %v315
        %v1499 = vunpack.c.l.b16 %v316
        %v1500 = vunpack.c.h.b16 %v316
        %v1501 = vunpack.c.l.b16 %v317
        %v1502 = vunpack.c.h.b16 %v317
        %v1503 = vunpack.c.l.b16 %v318
        %v1504 = vunpack.c.h.b16 %v318
        %v1505 = vunpack.c.l.b16 %v319
        %v1506 = vunpack.c.h.b16 %v319
        %v1507 = vunpack.c.l.b16 %v320
        %v1508 = vunpack.c.h.b16 %v320
        %v1509 = vunpack.c.l.b16 %v321
        %v1510 = vunpack.c.h.b16 %v321
        %v1511 = vunpack.c.l.b16 %v322
        %v1512 = vunpack.c.h.b16 %v322
        %v1513 = vunpack.c.l.b16 %v323
        %v1514 = vunpack.c.h.b16 %v323
        %v1515 = vunpack.c.l.b16 %v324
        %v1516 = vunpack.c.h.b16 %v324
        %v1517 = vunpack.c.l.b16 %v325
        %v1518 = vunpack.c.h.b16 %v325
        %v1519 = vunpack.c.l.b16 %v326
        %v1520 = vunpack.c.h.b16 %v326
        %v1521 = vunpack.c.l.b16 %v327
        %v1522 = vunpack.c.h.b16 %v327
        %v1523 = vunpack.c.l.b16 %v328
        %v1524 = vunpack.c.h.b16 %v328
        %v1525 = vunpack.c.l.b16 %v329
        %v1526 = vunpack.c.h.b16 %v329
        %v1527 = vunpack.c.l.b16 %v330
        %v1528 = vunpack.c.h.b16 %v330
        %v1529 = vunpack.c.l.b16 %v331
        %v1530 = vunpack.c.h.b16 %v331
        %v1531 = vunpack.c.l.b16 %v332
        %v1532 = vunpack.c.h.b16 %v332
        %v1533 = vunpack.c.l.b16 %v333
        %v1534 = vunpack.c.h.b16 %v333
        %v1535 = vunpack.c.l.b16 %v334
        %v1536 = vunpack.c.h.b16 %v334
        %v1537 = vunpack.c.l.b16 %v335
        %v1538 = vunpack.c.h.b16 %v335
        %v1539 = vunpack.c.l.b16 %v336
        %v1540 = vunpack.c.h.b16 %v336
        %v1541 = vunpack.c.l.b16 %v337
        %v1542 = vunpack.c.h.b16 %v337
        %v1543 = vunpack.c.l.b16 %v338
        %v1544 = vunpack.c.h.b16 %v338
        %v1545 = vunpack.c.l.b16 %v339
        %v1546 = vunpack.c.h.b16 %v339
        %v1547 = vunpack.c.l.b16 %v340
        %v1548 = vunpack.c.h.b16 %v340
        %v1549 = vunpack.c.l.b16 %v341
        %v1550 = vunpack.c.h.b16 %v341
        %v1551 = vunpack.c.l.b16 %v342
        %v1552 = vunpack.c.h.b16 %v342
        %v1553 = vunpack.c.l.b16 %v343
        %v1554 = vunpack.c.h.b16 %v343
        %v1555 = vunpack.c.l.b16 %v344
        %v1556 = vunpack.c.h.b16 %v344
        %v1557 = vunpack.c.l.b16 %v345
        %v1558 = vunpack.c.h.b16 %v345
        %v1559 = vunpack.c.l.b16 %v346
        %v1560 = vunpack.c.h.b16 %v346
        %v1561 = vunpack.c.l.b16 %v347
        %v1562 = vunpack.c.h.b16 %v347
        %v1563 = vunpack.c.l.b16 %v348
        %v1564 = vunpack.c.h.b16 %v348
        %v1565 = vunpack.c.l.b16 %v349
        %v1566 = vunpack.c.h.b16 %v349
        %v1567 = vunpack.c.l.b16 %v350
        %v1568 = vunpack.c.h.b16 %v350
        %v1569 = vunpack.c.l.b16 %v351
        %v1570 = vunpack.c.h.b16 %v351
        %v1571 = vunpack.c.l.b16 %v352
        %v1572 = vunpack.c.h.b16 %v352
        %v1573 = vunpack.c.l.b16 %v353
        %v1574 = vunpack.c.h.b16 %v353
        %v1575 = vunpack.c.l.b16 %v354
        %v1576 = vunpack.c.h.b16 %v354
        %v1577 = vunpack.c.l.b16 %v355
        %v1578 = vunpack.c.h.b16 %v355
        %v1579 = vunpack.c.l.b16 %v356
        %v1580 = vunpack.c.h.b16 %v356
        %v1581 = vunpack.c.l.b16 %v357
        %v1582 = vunpack.c.h.b16 %v357
        %v1583 = vunpack.c.l.b16 %v358
        %v1584 = vunpack.c.h.b16 %v358
        %v1585 = vunpack.c.l.b16 %v359
        %v1586 = vunpack.c.h.b16 %v359
        %v1587 = vunpack.c.l.b16 %v360
        %v1588 = vunpack.c.h.b16 %v360
        %v1589 = vunpack.c.l.b16 %v361
        %v1590 = vunpack.c.h.b16 %v361
        %v1591 = vunpack.c.l.b16 %v362
        %v1592 = vunpack.c.h.b16 %v362
        %v1593 = vunpack.c.l.b16 %v363
        %v1594 = vunpack.c.h.b16 %v363
        %v1595 = vunpack.c.l.b16 %v364
        %v1596 = vunpack.c.h.b16 %v364
        %v1597 = vunpack.c.l.b16 %v365
        %v1598 = vunpack.c.h.b16 %v365
        %v1599 = vunpack.c.l.b16 %v366
        %v1600 = vunpack.c.h.b16 %v366
        %v1601 = vunpack.c.l.b16 %v367
        %v1602 = vunpack.c.h.b16 %v367
        %v1603 = vunpack.c.l.b16 %v368
        %v1604 = vunpack.c.h.b16 %v368
        %v1605 = vunpack.c.l.b16 %v369
        %v1606 = vunpack.c.h.b16 %v369
        %v1607 = vunpack.c.l.b16 %v370
        %v1608 = vunpack.c.h.b16 %v370
        %v1609 = vunpack.c.l.b16 %v371
        %v1610 = vunpack.c.h.b16 %v371
        %v1611 = vunpack.c.l.b16 %v372
        %v1612 = vunpack.c.h.b16 %v372
        %v1613 = vunpack.c.l.b16 %v373
        %v1614 = vunpack.c.h.b16 %v373
        %v1615 = vunpack.c.l.b16 %v374
        %v1616 = vunpack.c.h.b16 %v374
        %v1617 = vunpack.c.l.b16 %v375
        %v1618 = vunpack.c.h.b16 %v375
        %v1619 = vunpack.c.l.b16 %v376
        %v1620 = vunpack.c.h.b16 %v376
        %v1621 = vunpack.c.l.b16 %v377
        %v1622 = vunpack.c.h.b16 %v377
        %v1623 = vunpack.c.l.b16 %v378
        %v1624 = vunpack.c.h.b16 %v378
        %v1625 = vunpack.c.l.b16 %v379
        %v1626 = vunpack.c.h.b16 %v379
        %v1627 = vunpack.c.l.b16 %v380
        %v1628 = vunpack.c.h.b16 %v380
        %v1629 = vunpack.c.l.b16 %v381
        %v1630 = vunpack.c.h.b16 %v381
        %v1631 = vunpack.c.l.b16 %v382
        %v1632 = vunpack.c.h.b16 %v382
        %v1633 = vunpack.c.l.b16 %v383
        %v1634 = vunpack.c.h.b16 %v383
        %v1635 = vunpack.c.l.b16 %v384
        %v1636 = vunpack.c.h.b16 %v384
        %v1637 = vunpack.c.l.b16 %v385
        %v1638 = vunpack.c.h.b16 %v385
        %v1639 = vunpack.c.l.b16 %v386
        %v1640 = vunpack.c.h.b16 %v386
        %v1641 = vunpack.c.l.b16 %v387
        %v1642 = vunpack.c.h.b16 %v387
        %v1643 = vunpack.c.l.b16 %v388
        %v1644 = vunpack.c.h.b16 %v388
        %v1645 = vunpack.c.l.b16 %v389
        %v1646 = vunpack.c.h.b16 %v389
        %v1647 = vunpack.c.l.b16 %v390
        %v1648 = vunpack.c.h.b16 %v390
        %v1649 = vunpack.c.l.b16 %v391
        %v1650 = vunpack.c.h.b16 %v391
        %v1651 = vunpack.c.l.b16 %v392
        %v1652 = vunpack.c.h.b16 %v392
        %v1653 = vunpack.c.l.b16 %v393
        %v1654 = vunpack.c.h.b16 %v393
        %v1655 = vunpack.c.l.b16 %v394
        %v1656 = vunpack.c.h.b16 %v394
        %v1657 = vunpack.c.l.b16 %v395
        %v1658 = vunpack.c.h.b16 %v395
        %v1659 = vunpack.c.l.b16 %v396
        %v1660 = vunpack.c.h.b16 %v396
        %v1661 = vunpack.c.l.b16 %v397
        %v1662 = vunpack.c.h.b16 %v397
        %v1663 = vunpack.c.l.b16 %v398
        %v1664 = vunpack.c.h.b16 %v398
        %v1665 = vunpack.c.l.b16 %v399
        %v1666 = vunpack.c.h.b16 %v399
        %v1667 = vunpack.c.l.b16 %v400
        %v1668 = vunpack.c.h.b16 %v400
        %v1669 = vunpack.c.l.b16 %v401
        %v1670 = vunpack.c.h.b16 %v401
        %v1671 = vunpack.c.l.b16 %v402
        %v1672 = vunpack.c.h.b16 %v402
        %v1673 = vunpack.c.l.b16 %v403
        %v1674 = vunpack.c.h.b16 %v403
        %v1675 = vunpack.c.l.b16 %v404
        %v1676 = vunpack.c.h.b16 %v404
        %v1677 = vunpack.c.l.b16 %v405
        %v1678 = vunpack.c.h.b16 %v405
        %v1679 = vunpack.c.l.b16 %v406
        %v1680 = vunpack.c.h.b16 %v406
        %v1681 = vunpack.c.l.b16 %v407
        %v1682 = vunpack.c.h.b16 %v407
        %v1683 = vunpack.c.l.b16 %v408
        %v1684 = vunpack.c.h.b16 %v408
        %v1685 = vunpack.c.l.b16 %v409
        %v1686 = vunpack.c.h.b16 %v409
        %v1687 = vunpack.c.l.b16 %v410
        %v1688 = vunpack.c.h.b16 %v410
        %v1689 = vunpack.c.l.b16 %v411
        %v1690 = vunpack.c.h.b16 %v411
        %v1691 = vunpack.c.l.b16 %v412
        %v1692 = vunpack.c.h.b16 %v412
        %v1693 = vunpack.c.l.b16 %v413
        %v1694 = vunpack.c.h.b16 %v413
        %v1695 = vunpack.c.l.b16 %v414
        %v1696 = vunpack.c.h.b16 %v414
        %v1697 = vunpack.c.l.b16 %v415
        %v1698 = vunpack.c.h.b16 %v415
        %v1699 = vunpack.c.l.b16 %v416
        %v1700 = vunpack.c.h.b16 %v416
        %v1701 = vunpack.c.l.b16 %v417
        %v1702 = vunpack.c.h.b16 %v417
        %v1703 = vunpack.c.l.b16 %v418
        %v1704 = vunpack.c.h.b16 %v418
        %v1705 = vunpack.c.l.b16 %v419
        %v1706 = vunpack.c.h.b16 %v419
        %v1707 = vunpack.c.l.b16 %v420
        %v1708 = vunpack.c.h.b16 %v420
        %v1709 = vunpack.c.l.b16 %v421
        %v1710 = vunpack.c.h.b16 %v421
        %v1711 = vunpack.c.l.b16 %v422
        %v1712 = vunpack.c.h.b16 %v422
        %v1713 = vunpack.c.l.b16 %v423
        %v1714 = vunpack.c.h.b16 %v423
        %v1715 = vunpack.c.l.b16 %v424
        %v1716 = vunpack.c.h.b16 %v424
        %v1717 = vunpack.c.l.b16 %v425
        %v1718 = vunpack.c.h.b16 %v425
        %v1719 = vunpack.c.l.b16 %v426
        %v1720 = vunpack.c.h.b16 %v426
        %v1721 = vunpack.c.l.b16 %v427
        %v1722 = vunpack.c.h.b16 %v427
        %v1723 = vunpack.c.l.b16 %v428
        %v1724 = vunpack.c.h.b16 %v428
        %v1725 = vunpack.c.l.b16 %v429
        %v1726 = vunpack.c.h.b16 %v429
        %v1727 = vunpack.c.l.b16 %v430
        %v1728 = vunpack.c.h.b16 %v430
        %v1729 = vunpack.c.l.b16 %v431
        %v1730 = vunpack.c.h.b16 %v431
        %v1731 = vunpack.c.l.b16 %v432
        %v1732 = vunpack.c.h.b16 %v432
        %v1733 = vunpack.c.l.b16 %v433
        %v1734 = vunpack.c.h.b16 %v433
        %v1735 = vunpack.c.l.b16 %v434
        %v1736 = vunpack.c.h.b16 %v434
        %v1737 = vunpack.c.l.b16 %v435
        %v1738 = vunpack.c.h.b16 %v435
        %v1739 = vunpack.c.l.b16 %v436
        %v1740 = vunpack.c.h.b16 %v436
        %v1741 = vunpack.c.l.b16 %v437
        %v1742 = vunpack.c.h.b16 %v437
        %v1743 = vunpack.c.l.b16 %v438
        %v1744 = vunpack.c.h.b16 %v438
        %v1745 = vunpack.c.l.b16 %v439
        %v1746 = vunpack.c.h.b16 %v439
        %v1747 = vunpack.c.l.b16 %v440
        %v1748 = vunpack.c.h.b16 %v440
        %v1749 = vunpack.c.l.b16 %v441
        %v1750 = vunpack.c.h.b16 %v441
        %v1751 = vunpack.c.l.b16 %v442
        %v1752 = vunpack.c.h.b16 %v442
        %v1753 = vunpack.c.l.b16 %v443
        %v1754 = vunpack.c.h.b16 %v443
        %v1755 = vunpack.c.l.b16 %v444
        %v1756 = vunpack.c.h.b16 %v444
        %v1757 = vunpack.c.l.b16 %v445
        %v1758 = vunpack.c.h.b16 %v445
        %v1759 = vunpack.c.l.b16 %v446
        %v1760 = vunpack.c.h.b16 %v446
        %v1761 = vunpack.c.l.b16 %v447
        %v1762 = vunpack.c.h.b16 %v447
        %v1763 = vunpack.c.l.b16 %v448
        %v1764 = vunpack.c.h.b16 %v448
        %v1765 = vunpack.c.l.b16 %v449
        %v1766 = vunpack.c.h.b16 %v449
        %v1767 = vunpack.c.l.b16 %v450
        %v1768 = vunpack.c.h.b16 %v450
        %v1769 = vunpack.c.l.b16 %v451
        %v1770 = vunpack.c.h.b16 %v451
        %v1771 = vunpack.c.l.b16 %v452
        %v1772 = vunpack.c.h.b16 %v452
        %v1773 = vunpack.c.l.b16 %v453
        %v1774 = vunpack.c.h.b16 %v453
        %v1775 = vunpack.c.l.b16 %v454
        %v1776 = vunpack.c.h.b16 %v454
        %v1777 = vunpack.c.l.b16 %v455
        %v1778 = vunpack.c.h.b16 %v455
        %v1779 = vunpack.c.l.b16 %v456
        %v1780 = vunpack.c.h.b16 %v456
        %v1781 = vunpack.c.l.b16 %v457
        %v1782 = vunpack.c.h.b16 %v457
        %v1783 = vunpack.c.l.b16 %v458
        %v1784 = vunpack.c.h.b16 %v458
        %v1785 = vunpack.c.l.b16 %v459
        %v1786 = vunpack.c.h.b16 %v459
        %v1787 = vunpack.c.l.b16 %v460
        %v1788 = vunpack.c.h.b16 %v460
        %v1789 = vunpack.c.l.b16 %v461
        %v1790 = vunpack.c.h.b16 %v461
        %v1791 = vunpack.c.l.b16 %v462
        %v1792 = vunpack.c.h.b16 %v462
        %v1793 = vunpack.c.l.b16 %v463
        %v1794 = vunpack.c.h.b16 %v463
        %v1795 = vunpack.c.l.b16 %v464
        %v1796 = vunpack.c.h.b16 %v464
        %v1797 = vunpack.c.l.b16 %v465
        %v1798 = vunpack.c.h.b16 %v465
        %v1799 = vunpack.c.l.b16 %v466
        %v1800 = vunpack.c.h.b16 %v466
        %v1801 = vunpack.c.l.b16 %v467
        %v1802 = vunpack.c.h.b16 %v467
        %v1803 = vunpack.c.l.b16 %v468
        %v1804 = vunpack.c.h.b16 %v468
        %v1805 = vunpack.c.l.b16 %v469
        %v1806 = vunpack.c.h.b16 %v469
        %v1807 = vunpack.c.l.b16 %v470
        %v1808 = vunpack.c.h.b16 %v470
        %v1809 = vunpack.c.l.b16 %v471
        %v1810 = vunpack.c.h.b16 %v471
        %v1811 = vunpack.c.l.b16 %v472
        %v1812 = vunpack.c.h.b16 %v472
        %v1813 = vunpack.c.l.b16 %v473
        %v1814 = vunpack.c.h.b16 %v473
        %v1815 = vunpack.c.l.b16 %v474
        %v1816 = vunpack.c.h.b16 %v474
        %v1817 = vunpack.c.l.b16 %v475
        %v1818 = vunpack.c.h.b16 %v475
        %v1819 = vunpack.c.l.b16 %v476
        %v1820 = vunpack.c.h.b16 %v476
        %v1821 = vunpack.c.l.b16 %v477
        %v1822 = vunpack.c.h.b16 %v477
        %v1823 = vunpack.c.l.b16 %v478
        %v1824 = vunpack.c.h.b16 %v478
        %v1825 = vunpack.c.l.b16 %v479
        %v1826 = vunpack.c.h.b16 %v479
        %v1827 = vunpack.c.l.b16 %v480
        %v1828 = vunpack.c.h.b16 %v480
        %v1829 = vunpack.c.l.b16 %v481
        %v1830 = vunpack.c.h.b16 %v481
        %v1831 = vunpack.c.l.b16 %v482
        %v1832 = vunpack.c.h.b16 %v482
        %v1833 = vunpack.c.l.b16 %v483
        %v1834 = vunpack.c.h.b16 %v483
        %v1835 = vunpack.c.l.b16 %v484
        %v1836 = vunpack.c.h.b16 %v484
        %v1837 = vunpack.c.l.b16 %v485
        %v1838 = vunpack.c.h.b16 %v485
        %v1839 = vunpack.c.l.b16 %v486
        %v1840 = vunpack.c.h.b16 %v486
        %v1841 = vunpack.c.l.b16 %v487
        %v1842 = vunpack.c.h.b16 %v487
        %v1843 = vunpack.c.l.b16 %v488
        %v1844 = vunpack.c.h.b16 %v488
        %v1845 = vunpack.c.l.b16 %v489
        %v1846 = vunpack.c.h.b16 %v489
        %v1847 = vunpack.c.l.b16 %v490
        %v1848 = vunpack.c.h.b16 %v490
        %v1849 = vunpack.c.l.b16 %v491
        %v1850 = vunpack.c.h.b16 %v491
        %v1851 = vunpack.c.l.b16 %v492
        %v1852 = vunpack.c.h.b16 %v492
        %v1853 = vunpack.c.l.b16 %v493
        %v1854 = vunpack.c.h.b16 %v493
        %v1855 = vunpack.c.l.b16 %v494
        %v1856 = vunpack.c.h.b16 %v494
        %v1857 = vunpack.c.l.b16 %v495
        %v1858 = vunpack.c.h.b16 %v495
        %v1859 = vunpack.c.l.b16 %v496
        %v1860 = vunpack.c.h.b16 %v496
        %v1861 = vunpack.c.l.b16 %v497
        %v1862 = vunpack.c.h.b16 %v497
        %v1863 = vunpack.c.l.b16 %v498
        %v1864 = vunpack.c.h.b16 %v498
        %v1865 = vunpack.c.l.b16 %v499
        %v1866 = vunpack.c.h.b16 %v499
        %v1867 = vunpack.c.l.b16 %v500
        %v1868 = vunpack.c.h.b16 %v500
        %v1869 = vunpack.c.l.b16 %v501
        %v1870 = vunpack.c.h.b16 %v501
        %v1871 = vunpack.c.l.b16 %v502
        %v1872 = vunpack.c.h.b16 %v502
        %v1873 = vunpack.c.l.b16 %v503
        %v1874 = vunpack.c.h.b16 %v503
        %v1875 = vunpack.c.l.b16 %v504
        %v1876 = vunpack.c.h.b16 %v504
        %v1877 = vunpack.c.l.b16 %v505
        %v1878 = vunpack.c.h.b16 %v505
        %v1879 = vunpack.c.l.b16 %v506
        %v1880 = vunpack.c.h.b16 %v506
        %v1881 = vunpack.c.l.b16 %v507
        %v1882 = vunpack.c.h.b16 %v507
        %v1883 = vunpack.c.l.b16 %v508
        %v1884 = vunpack.c.h.b16 %v508
        %v1885 = vunpack.c.l.b16 %v509
        %v1886 = vunpack.c.h.b16 %v509
        %v1887 = vunpack.c.l.b16 %v510
        %v1888 = vunpack.c.h.b16 %v510
        %v1889 = vunpack.c.l.b16 %v511
        %v1890 = vunpack.c.h.b16 %v511
        %v1891 = vunpack.c.l.b16 %v512
        %v1892 = vunpack.c.h.b16 %v512
        %v1893 = vunpack.c.l.b16 %v513
        %v1894 = vunpack.c.h.b16 %v513
        %v1895 = vunpack.c.l.b16 %v514
        %v1896 = vunpack.c.h.b16 %v514
        %v1897 = vunpack.c.l.b16 %v515
        %v1898 = vunpack.c.h.b16 %v515
        %v1899 = vunpack.c.l.b16 %v516
        %v1900 = vunpack.c.h.b16 %v516
        %v1901 = vunpack.c.l.b16 %v517
        %v1902 = vunpack.c.h.b16 %v517
        %v1903 = vunpack.c.l.b16 %v518
        %v1904 = vunpack.c.h.b16 %v518
        %v1905 = vunpack.c.l.b16 %v519
        %v1906 = vunpack.c.h.b16 %v519
        %v1907 = vunpack.c.l.b16 %v520
        %v1908 = vunpack.c.h.b16 %v520
        %v1909 = vunpack.c.l.b16 %v521
        %v1910 = vunpack.c.h.b16 %v521
        %v1911 = vunpack.c.l.b16 %v522
        %v1912 = vunpack.c.h.b16 %v522
        %v1913 = vunpack.c.l.b16 %v523
        %v1914 = vunpack.c.h.b16 %v523
        %v1915 = vunpack.c.l.b16 %v524
        %v1916 = vunpack.c.h.b16 %v524
        %v1917 = vunpack.c.l.b16 %v525
        %v1918 = vunpack.c.h.b16 %v525
        %v1919 = vunpack.c.l.b16 %v526
        %v1920 = vunpack.c.h.b16 %v526
        %v1921 = vunpack.c.l.b16 %v527
        %v1922 = vunpack.c.h.b16 %v527
        %v1923 = vunpack.c.l.b16 %v528
        %v1924 = vunpack.c.h.b16 %v528
        %v1925 = vunpack.c.l.b16 %v529
        %v1926 = vunpack.c.h.b16 %v529
        %v1927 = vunpack.c.l.b16 %v530
        %v1928 = vunpack.c.h.b16 %v530
        %v1929 = vunpack.c.l.b16 %v531
        %v1930 = vunpack.c.h.b16 %v531
        %v1931 = vunpack.c.l.b16 %v532
        %v1932 = vunpack.c.h.b16 %v532
        %v1933 = vunpack.c.l.b16 %v533
        %v1934 = vunpack.c.h.b16 %v533
        %v1935 = vunpack.c.l.b16 %v534
        %v1936 = vunpack.c.h.b16 %v534
        %v1937 = vunpack.c.l.b16 %v535
        %v1938 = vunpack.c.h.b16 %v535
        %v1939 = vunpack.c.l.b16 %v536
        %v1940 = vunpack.c.h.b16 %v536
        %v1941 = vunpack.c.l.b16 %v537
        %v1942 = vunpack.c.h.b16 %v537
        %v1943 = vunpack.c.l.b16 %v538
        %v1944 = vunpack.c.h.b16 %v538
        %v1945 = vunpack.c.l.b16 %v539
        %v1946 = vunpack.c.h.b16 %v539
        %v1947 = vunpack.c.l.b16 %v540
        %v1948 = vunpack.c.h.b16 %v540
        %v1949 = vunpack.c.l.b16 %v541
        %v1950 = vunpack.c.h.b16 %v541
        %v1951 = vunpack.c.l.b16 %v542
        %v1952 = vunpack.c.h.b16 %v542
        %v1953 = vunpack.c.l.b16 %v543
        %v1954 = vunpack.c.h.b16 %v543
        %v1955 = vunpack.c.l.b16 %v544
        %v1956 = vunpack.c.h.b16 %v544
        %v1957 = vunpack.c.l.b16 %v545
        %v1958 = vunpack.c.h.b16 %v545
        %v1959 = vunpack.c.l.b16 %v546
        %v1960 = vunpack.c.h.b16 %v546
        %v1961 = vunpack.c.l.b16 %v547
        %v1962 = vunpack.c.h.b16 %v547
        %v1963 = vunpack.c.l.b16 %v548
        %v1964 = vunpack.c.h.b16 %v548
        %v1965 = vunpack.c.l.b16 %v549
        %v1966 = vunpack.c.h.b16 %v549
        %v1967 = vunpack.c.l.b16 %v550
        %v1968 = vunpack.c.h.b16 %v550
        %v1969 = vunpack.c.l.b16 %v551
        %v1970 = vunpack.c.h.b16 %v551
        %v1971 = vunpack.c.l.b16 %v552
        %v1972 = vunpack.c.h.b16 %v552
        %v1973 = vunpack.c.l.b16 %v553
        %v1974 = vunpack.c.h.b16 %v553
        %v1975 = vunpack.c.l.b16 %v554
        %v1976 = vunpack.c.h.b16 %v554
        %v1977 = vunpack.c.l.b16 %v555
        %v1978 = vunpack.c.h.b16 %v555
        %v1979 = vunpack.c.l.b16 %v556
        %v1980 = vunpack.c.h.b16 %v556
        %v1981 = vunpack.c.l.b16 %v557
        %v1982 = vunpack.c.h.b16 %v557
        %v1983 = vunpack.c.l.b16 %v558
        %v1984 = vunpack.c.h.b16 %v558
        %v1985 = vunpack.c.l.b16 %v559
        %v1986 = vunpack.c.h.b16 %v559
        %v1987 = vunpack.c.l.b16 %v560
        %v1988 = vunpack.c.h.b16 %v560
        %v1989 = vunpack.c.l.b16 %v561
        %v1990 = vunpack.c.h.b16 %v561
        %v1991 = vunpack.c.l.b16 %v562
        %v1992 = vunpack.c.h.b16 %v562
        %v1993 = vunpack.c.l.b16 %v563
        %v1994 = vunpack.c.h.b16 %v563
        %v1995 = vunpack.c.l.b16 %v564
        %v1996 = vunpack.c.h.b16 %v564
        %v1997 = vunpack.c.l.b16 %v565
        %v1998 = vunpack.c.h.b16 %v565
        %v1999 = vunpack.c.l.b16 %v566
        %v2000 = vunpack.c.h.b16 %v566
        %v2001 = vunpack.c.l.b16 %v567
        %v2002 = vunpack.c.h.b16 %v567
        %v2003 = vunpack.c.l.b16 %v568
        %v2004 = vunpack.c.h.b16 %v568
        %v2005 = vunpack.c.l.b16 %v569
        %v2006 = vunpack.c.h.b16 %v569
        %v2007 = vunpack.c.l.b16 %v570
        %v2008 = vunpack.c.h.b16 %v570
        %v2009 = vunpack.c.l.b16 %v571
        %v2010 = vunpack.c.h.b16 %v571
        %v2011 = vunpack.c.l.b16 %v572
        %v2012 = vunpack.c.h.b16 %v572
        %v2013 = vunpack.c.l.b16 %v573
        %v2014 = vunpack.c.h.b16 %v573
        %v2015 = vunpack.c.l.b16 %v574
        %v2016 = vunpack.c.h.b16 %v574
        %v2017 = vunpack.c.l.b16 %v575
        %v2018 = vunpack.c.h.b16 %v575
        %v2019 = vunpack.c.l.b16 %v576
        %v2020 = vunpack.c.h.b16 %v576
        %v2021 = vunpack.c.l.b16 %v577
        %v2022 = vunpack.c.h.b16 %v577
        %v2023 = vunpack.c.l.b16 %v578
        %v2024 = vunpack.c.h.b16 %v578
        %v2025 = vunpack.c.l.b16 %v579
        %v2026 = vunpack.c.h.b16 %v579
        %v2027 = vunpack.c.l.b16 %v580
        %v2028 = vunpack.c.h.b16 %v580
        %v2029 = vunpack.c.l.b16 %v581
        %v2030 = vunpack.c.h.b16 %v581
        %v2031 = vunpack.c.l.b16 %v582
        %v2032 = vunpack.c.h.b16 %v582
        %v2033 = vunpack.c.l.b16 %v583
        %v2034 = vunpack.c.h.b16 %v583
        %v2035 = vunpack.c.l.b16 %v584
        %v2036 = vunpack.c.h.b16 %v584
        %v2037 = vunpack.c.l.b16 %v585
        %v2038 = vunpack.c.h.b16 %v585
        %v2039 = vunpack.c.l.b16 %v586
        %v2040 = vunpack.c.h.b16 %v586
        %v2041 = vunpack.c.l.b16 %v587
        %v2042 = vunpack.c.h.b16 %v587
        %v2043 = vunpack.c.l.b16 %v588
        %v2044 = vunpack.c.h.b16 %v588
        %v2045 = vunpack.c.l.b16 %v589
        %v2046 = vunpack.c.h.b16 %v589
        %v2047 = vunpack.c.l.b16 %v590
        %v2048 = vunpack.c.h.b16 %v590
        %v2049 = vunpack.c.l.b16 %v591
        %v2050 = vunpack.c.h.b16 %v591
        %v2051 = vunpack.c.l.b16 %v592
        %v2052 = vunpack.c.h.b16 %v592
        %v2053 = vunpack.c.l.b16 %v593
        %v2054 = vunpack.c.h.b16 %v593
        %v2055 = vunpack.c.l.b16 %v594
        %v2056 = vunpack.c.h.b16 %v594
        %v2057 = vunpack.c.l.b16 %v595
        %v2058 = vunpack.c.h.b16 %v595
        %v2059 = vunpack.c.l.b16 %v596
        %v2060 = vunpack.c.h.b16 %v596
        %v2061 = vunpack.c.l.b16 %v597
        %v2062 = vunpack.c.h.b16 %v597
        %v2063 = vunpack.c.l.b16 %v598
        %v2064 = vunpack.c.h.b16 %v598
        %v2065 = vunpack.c.l.b16 %v599
        %v2066 = vunpack.c.h.b16 %v599
        %v2067 = vunpack.c.l.b16 %v600
        %v2068 = vunpack.c.h.b16 %v600
        %v2069 = vunpack.c.l.b16 %v601
        %v2070 = vunpack.c.h.b16 %v601
        %v2071 = vunpack.c.l.b16 %v602
        %v2072 = vunpack.c.h.b16 %v602
        %v2073 = vunpack.c.l.b16 %v603
        %v2074 = vunpack.c.h.b16 %v603
        %v2075 = vunpack.c.l.b16 %v604
        %v2076 = vunpack.c.h.b16 %v604
        %v2077 = vunpack.c.l.b16 %v605
        %v2078 = vunpack.c.h.b16 %v605
        %v2079 = vunpack.c.l.b16 %v606
        %v2080 = vunpack.c.h.b16 %v606
        %v2081 = vunpack.c.l.b16 %v607
        %v2082 = vunpack.c.h.b16 %v607
        %v2083 = vunpack.c.l.b16 %v608
        %v2084 = vunpack.c.h.b16 %v608
        %v2085 = vunpack.c.l.b16 %v609
        %v2086 = vunpack.c.h.b16 %v609
        %v2087 = vunpack.c.l.b16 %v610
        %v2088 = vunpack.c.h.b16 %v610
        %v2089 = vunpack.c.l.b16 %v611
        %v2090 = vunpack.c.h.b16 %v611
        %v2091 = vunpack.c.l.b16 %v612
        %v2092 = vunpack.c.h.b16 %v612
        %v2093 = vunpack.c.l.b16 %v613
        %v2094 = vunpack.c.h.b16 %v613
        %v2095 = vunpack.c.l.b16 %v614
        %v2096 = vunpack.c.h.b16 %v614
        %v2097 = vunpack.c.l.b16 %v615
        %v2098 = vunpack.c.h.b16 %v615
        %v2099 = vunpack.c.l.b16 %v616
        %v2100 = vunpack.c.h.b16 %v616
        %v2101 = vunpack.c.l.b16 %v617
        %v2102 = vunpack.c.h.b16 %v617
        %v2103 = vunpack.c.l.b16 %v618
        %v2104 = vunpack.c.h.b16 %v618
        %v2105 = vunpack.c.l.b16 %v619
        %v2106 = vunpack.c.h.b16 %v619
        %v2107 = vunpack.c.l.b16 %v620
        %v2108 = vunpack.c.h.b16 %v620
        %v2109 = vunpack.c.l.b16 %v621
        %v2110 = vunpack.c.h.b16 %v621
        %v2111 = vunpack.c.l.b16 %v622
        %v2112 = vunpack.c.h.b16 %v622
        %v2113 = vunpack.c.l.b16 %v623
        %v2114 = vunpack.c.h.b16 %v623
        %v2115 = vunpack.c.l.b16 %v624
        %v2116 = vunpack.c.h.b16 %v624
        %v2117 = vunpack.c.l.b16 %v625
        %v2118 = vunpack.c.h.b16 %v625
        %v2119 = vunpack.c.l.b16 %v626
        %v2120 = vunpack.c.h.b16 %v626
        %v2121 = vunpack.c.l.b16 %v627
        %v2122 = vunpack.c.h.b16 %v627
        %v2123 = vunpack.c.l.b16 %v628
        %v2124 = vunpack.c.h.b16 %v628
        %v2125 = vunpack.c.l.b16 %v629
        %v2126 = vunpack.c.h.b16 %v629
        %v2127 = vunpack.c.l.b16 %v630
        %v2128 = vunpack.c.h.b16 %v630
        %v2129 = vunpack.c.l.b16 %v631
        %v2130 = vunpack.c.h.b16 %v631
        %v2131 = vunpack.c.l.b16 %v632
        %v2132 = vunpack.c.h.b16 %v632
        %v2133 = vunpack.c.l.b16 %v633
        %v2134 = vunpack.c.h.b16 %v633
        %v2135 = vunpack.c.l.b16 %v634
        %v2136 = vunpack.c.h.b16 %v634
        %v2137 = vunpack.c.l.b16 %v635
        %v2138 = vunpack.c.h.b16 %v635
        %v2139 = vunpack.c.l.b16 %v636
        %v2140 = vunpack.c.h.b16 %v636
        %v2141 = vunpack.c.l.b16 %v637
        %v2142 = vunpack.c.h.b16 %v637
        %v2143 = vunpack.c.l.b16 %v638
        %v2144 = vunpack.c.h.b16 %v638
        %v2145 = vunpack.c.l.b16 %v639
        %v2146 = vunpack.c.h.b16 %v639
        %v2147 = vunpack.c.l.b16 %v640
        %v2148 = vunpack.c.h.b16 %v640
        %v2149 = vunpack.c.l.b16 %v641
        %v2150 = vunpack.c.h.b16 %v641
        %v2151 = vunpack.c.l.b16 %v642
        %v2152 = vunpack.c.h.b16 %v642
        %v2153 = vunpack.c.l.b16 %v643
        %v2154 = vunpack.c.h.b16 %v643
        %v2155 = vunpack.c.l.b16 %v644
        %v2156 = vunpack.c.h.b16 %v644
        %v2157 = vunpack.c.l.b16 %v645
        %v2158 = vunpack.c.h.b16 %v645
        %v2159 = vunpack.c.l.b16 %v646
        %v2160 = vunpack.c.h.b16 %v646
        %v2161 = vunpack.c.l.b16 %v647
        %v2162 = vunpack.c.h.b16 %v647
        %v2163 = vunpack.c.l.b16 %v648
        %v2164 = vunpack.c.h.b16 %v648
        %v2165 = vunpack.c.l.b16 %v649
        %v2166 = vunpack.c.h.b16 %v649
        %v2167 = vunpack.c.l.b16 %v650
        %v2168 = vunpack.c.h.b16 %v650
        %v2169 = vunpack.c.l.b16 %v651
        %v2170 = vunpack.c.h.b16 %v651
        %v2171 = vunpack.c.l.b16 %v652
        %v2172 = vunpack.c.h.b16 %v652
        %v2173 = vunpack.c.l.b16 %v653
        %v2174 = vunpack.c.h.b16 %v653
        %v2175 = vunpack.c.l.b16 %v654
        %v2176 = vunpack.c.h.b16 %v654
        %v2177 = vunpack.c.l.b16 %v655
        %v2178 = vunpack.c.h.b16 %v655
        %v2179 = vunpack.c.l.b16 %v656
        %v2180 = vunpack.c.h.b16 %v656
        %v2181 = vunpack.c.l.b16 %v657
        %v2182 = vunpack.c.h.b16 %v657
        %v2183 = vunpack.c.l.b16 %v658
        %v2184 = vunpack.c.h.b16 %v658
        %v2185 = vunpack.c.l.b16 %v659
        %v2186 = vunpack.c.h.b16 %v659
        %v2187 = vunpack.c.l.b16 %v660
        %v2188 = vunpack.c.h.b16 %v660
        %v2189 = vunpack.c.l.b16 %v661
        %v2190 = vunpack.c.h.b16 %v661
        %v2191 = vunpack.c.l.b16 %v662
        %v2192 = vunpack.c.h.b16 %v662
        %v2193 = vunpack.c.l.b16 %v663
        %v2194 = vunpack.c.h.b16 %v663
        %v2195 = vunpack.c.l.b16 %v664
        %v2196 = vunpack.c.h.b16 %v664
        %v2197 = vunpack.c.l.b16 %v665
        %v2198 = vunpack.c.h.b16 %v665
        %v2199 = vunpack.c.l.b16 %v666
        %v2200 = vunpack.c.h.b16 %v666
        %v2201 = vunpack.c.l.b16 %v667
        %v2202 = vunpack.c.h.b16 %v667
        %v2203 = vunpack.c.l.b16 %v668
        %v2204 = vunpack.c.h.b16 %v668
        %v2205 = vunpack.c.l.b16 %v669
        %v2206 = vunpack.c.h.b16 %v669
        %v2207 = vunpack.c.l.b16 %v670
        %v2208 = vunpack.c.h.b16 %v670
        %v2209 = vunpack.c.l.b16 %v671
        %v2210 = vunpack.c.h.b16 %v671
        %v2211 = vunpack.c.l.b16 %v672
        %v2212 = vunpack.c.h.b16 %v672
        %v2213 = vunpack.c.l.b16 %v673
        %v2214 = vunpack.c.h.b16 %v673
        %v2215 = vunpack.c.l.b16 %v674
        %v2216 = vunpack.c.h.b16 %v674
        %v2217 = vpack.c.b16 %v1257, %v1193
        %v2218 = vpack.c.b16 %v1258, %v1194
        %v2219 = vpack.c.b16 %v1259, %v1195
        %v2220 = vpack.c.b16 %v1260, %v1196
        %v2221 = vpack.c.b16 %v1261, %v1197
        %v2222 = vpack.c.b16 %v1262, %v1198
        %v2223 = vpack.c.b16 %v1263, %v1199
        %v2224 = vpack.c.b16 %v1264, %v1200
        %v2225 = vpack.c.b16 %v1265, %v1201
        %v2226 = vpack.c.b16 %v1266, %v1202
        %v2227 = vpack.c.b16 %v1267, %v1203
        %v2228 = vpack.c.b16 %v1268, %v1204
        %v2229 = vpack.c.b16 %v1269, %v1205
        %v2230 = vpack.c.b16 %v1270, %v1206
        %v2231 = vpack.c.b16 %v1271, %v1207
        %v2232 = vpack.c.b16 %v1272, %v1208
        %v2233 = vpack.c.b16 %v1273, %v1209
        %v2234 = vpack.c.b16 %v1274, %v1210
        %v2235 = vpack.c.b16 %v1275, %v1211
        %v2236 = vpack.c.b16 %v1276, %v1212
        %v2237 = vpack.c.b16 %v1277, %v1213
        %v2238 = vpack.c.b16 %v1278, %v1214
        %v2239 = vpack.c.b16 %v1279, %v1215
        %v2240 = vpack.c.b16 %v1280, %v1216
        %v2241 = vpack.c.b16 %v1281, %v1217
        %v2242 = vpack.c.b16 %v1282, %v1218
        %v2243 = vpack.c.b16 %v1283, %v1219
        %v2244 = vpack.c.b16 %v1284, %v1220
        %v2245 = vpack.c.b16 %v1285, %v1221
        %v2246 = vpack.c.b16 %v1286, %v1222
        %v2247 = vpack.c.b16 %v1287, %v1223
        %v2248 = vpack.c.b16 %v1288, %v1224
        %v2249 = vpack.c.b16 %v1289, %v1225
        %v2250 = vpack.c.b16 %v1290, %v1226
        %v2251 = vpack.c.b16 %v1291, %v1227
        %v2252 = vpack.c.b16 %v1292, %v1228
        %v2253 = vpack.c.b16 %v1293, %v1229
        %v2254 = vpack.c.b16 %v1294, %v1230
        %v2255 = vpack.c.b16 %v1295, %v1231
        %v2256 = vpack.c.b16 %v1296, %v1232
        %v2257 = vpack.c.b16 %v1297, %v1233
        %v2258 = vpack.c.b16 %v1298, %v1234
        %v2259 = vpack.c.b16 %v1299, %v1235
        %v2260 = vpack.c.b16 %v1300, %v1236
        %v2261 = vpack.c.b16 %v1301, %v1237
        %v2262 = vpack.c.b16 %v1302, %v1238
        %v2263 = vpack.c.b16 %v1303, %v1239
        %v2264 = vpack.c.b16 %v1304, %v1240
        %v2265 = vpack.c.b16 %v1305, %v1241
        %v2266 = vpack.c.b16 %v1306, %v1242
        %v2267 = vpack.c.b16 %v1307, %v1243
        %v2268 = vpack.c.b16 %v1308, %v1244
        %v2269 = vpack.c.b16 %v1309, %v1245
        %v2270 = vpack.c.b16 %v1310, %v1246
        %v2271 = vpack.c.b16 %v1311, %v1247
        %v2272 = vpack.c.b16 %v1312, %v1248
        %v2273 = vpack.c.b16 %v1313, %v1249
        %v2274 = vpack.c.b16 %v1314, %v1250
        %v2275 = vpack.c.b16 %v1315, %v1251
        %v2276 = vpack.c.b16 %v1316, %v1252
        %v2277 = vpack.c.b16 %v1317, %v1253
        %v2278 = vpack.c.b16 %v1318, %v1254
        %v2279 = vpack.c.b16 %v1319, %v1255
        %v2280 = vpack.c.b16 %v1320, %v1256
        %v2281 = vpack.c.b16 %v1385, %v1321
        %v2282 = vpack.c.b16 %v1386, %v1322
        %v2283 = vpack.c.b16 %v1387, %v1323
        %v2284 = vpack.c.b16 %v1388, %v1324
        %v2285 = vpack.c.b16 %v1389, %v1325
        %v2286 = vpack.c.b16 %v1390, %v1326
        %v2287 = vpack.c.b16 %v1391, %v1327
        %v2288 = vpack.c.b16 %v1392, %v1328
        %v2289 = vpack.c.b16 %v1393, %v1329
        %v2290 = vpack.c.b16 %v1394, %v1330
        %v2291 = vpack.c.b16 %v1395, %v1331
        %v2292 = vpack.c.b16 %v1396, %v1332
        %v2293 = vpack.c.b16 %v1397, %v1333
        %v2294 = vpack.c.b16 %v1398, %v1334
        %v2295 = vpack.c.b16 %v1399, %v1335
        %v2296 = vpack.c.b16 %v1400, %v1336
        %v2297 = vpack.c.b16 %v1401, %v1337
        %v2298 = vpack.c.b16 %v1402, %v1338
        %v2299 = vpack.c.b16 %v1403, %v1339
        %v2300 = vpack.c.b16 %v1404, %v1340
        %v2301 = vpack.c.b16 %v1405, %v1341
        %v2302 = vpack.c.b16 %v1406, %v1342
        %v2303 = vpack.c.b16 %v1407, %v1343
        %v2304 = vpack.c.b16 %v1408, %v1344
        %v2305 = vpack.c.b16 %v1409, %v1345
        %v2306 = vpack.c.b16 %v1410, %v1346
        %v2307 = vpack.c.b16 %v1411, %v1347
        %v2308 = vpack.c.b16 %v1412, %v1348
        %v2309 = vpack.c.b16 %v1413, %v1349
        %v2310 = vpack.c.b16 %v1414, %v1350
        %v2311 = vpack.c.b16 %v1415, %v1351
        %v2312 = vpack.c.b16 %v1416, %v1352
        %v2313 = vpack.c.b16 %v1417, %v1353
        %v2314 = vpack.c.b16 %v1418, %v1354
        %v2315 = vpack.c.b16 %v1419, %v1355
        %v2316 = vpack.c.b16 %v1420, %v1356
        %v2317 = vpack.c.b16 %v1421, %v1357
        %v2318 = vpack.c.b16 %v1422, %v1358
        %v2319 = vpack.c.b16 %v1423, %v1359
        %v2320 = vpack.c.b16 %v1424, %v1360
        %v2321 = vpack.c.b16 %v1425, %v1361
        %v2322 = vpack.c.b16 %v1426, %v1362
        %v2323 = vpack.c.b16 %v1427, %v1363
        %v2324 = vpack.c.b16 %v1428, %v1364
        %v2325 = vpack.c.b16 %v1429, %v1365
        %v2326 = vpack.c.b16 %v1430, %v1366
        %v2327 = vpack.c.b16 %v1431, %v1367
        %v2328 = vpack.c.b16 %v1432, %v1368
        %v2329 = vpack.c.b16 %v1433, %v1369
        %v2330 = vpack.c.b16 %v1434, %v1370
        %v2331 = vpack.c.b16 %v1435, %v1371
        %v2332 = vpack.c.b16 %v1436, %v1372
        %v2333 = vpack.c.b16 %v1437, %v1373
        %v2334 = vpack.c.b16 %v1438, %v1374
        %v2335 = vpack.c.b16 %v1439, %v1375
        %v2336 = vpack.c.b16 %v1440, %v1376
        %v2337 = vpack.c.b16 %v1441, %v1377
        %v2338 = vpack.c.b16 %v1442, %v1378
        %v2339 = vpack.c.b16 %v1443, %v1379
        %v2340 = vpack.c.b16 %v1444, %v1380
        %v2341 = vpack.c.b16 %v1445, %v1381
        %v2342 = vpack.c.b16 %v1446, %v1382
        %v2343 = vpack.c.b16 %v1447, %v1383
        %v2344 = vpack.c.b16 %v1448, %v1384
        %v2345 = vpack.c.b16 %v1513, %v1449
        %v2346 = vpack.c.b16 %v1514, %v1450
        %v2347 = vpack.c.b16 %v1515, %v1451
        %v2348 = vpack.c.b16 %v1516, %v1452
        %v2349 = vpack.c.b16 %v1517, %v1453
        %v2350 = vpack.c.b16 %v1518, %v1454
        %v2351 = vpack.c.b16 %v1519, %v1455
        %v2352 = vpack.c.b16 %v1520, %v1456
        %v2353 = vpack.c.b16 %v1521, %v1457
        %v2354 = vpack.c.b16 %v1522, %v1458
        %v2355 = vpack.c.b16 %v1523, %v1459
        %v2356 = vpack.c.b16 %v1524, %v1460
        %v2357 = vpack.c.b16 %v1525, %v1461
        %v2358 = vpack.c.b16 %v1526, %v1462
        %v2359 = vpack.c.b16 %v1527, %v1463
        %v2360 = vpack.c.b16 %v1528, %v1464
        %v2361 = vpack.c.b16 %v1529, %v1465
        %v2362 = vpack.c.b16 %v1530, %v1466
        %v2363 = vpack.c.b16 %v1531, %v1467
        %v2364 = vpack.c.b16 %v1532, %v1468
        %v2365 = vpack.c.b16 %v1533, %v1469
        %v2366 = vpack.c.b16 %v1534, %v1470
        %v2367 = vpack.c.b16 %v1535, %v1471
        %v2368 = vpack.c.b16 %v1536, %v1472
        %v2369 = vpack.c.b16 %v1537, %v1473
        %v2370 = vpack.c.b16 %v1538, %v1474
        %v2371 = vpack.c.b16 %v1539, %v1475
        %v2372 = vpack.c.b16 %v1540, %v1476
        %v2373 = vpack.c.b16 %v1541, %v1477
        %v2374 = vpack.c.b16 %v1542, %v1478
        %v2375 = vpack.c.b16 %v1543, %v1479
        %v2376 = vpack.c.b16 %v1544, %v1480
        %v2377 = vpack.c.b16 %v1545, %v1481
        %v2378 = vpack.c.b16 %v1546, %v1482
        %v2379 = vpack.c.b16 %v1547, %v1483
        %v2380 = vpack.c.b16 %v1548, %v1484
        %v2381 = vpack.c.b16 %v1549, %v1485
        %v2382 = vpack.c.b16 %v1550, %v1486
        %v2383 = vpack.c.b16 %v1551, %v1487
        %v2384 = vpack.c.b16 %v1552, %v1488
        %v2385 = vpack.c.b16 %v1553, %v1489
        %v2386 = vpack.c.b16 %v1554, %v1490
        %v2387 = vpack.c.b16 %v1555, %v1491
        %v2388 = vpack.c.b16 %v1556, %v1492
        %v2389 = vpack.c.b16 %v1557, %v1493
        %v2390 = vpack.c.b16 %v1558, %v1494
        %v2391 = vpack.c.b16 %v1559, %v1495
        %v2392 = vpack.c.b16 %v1560, %v1496
        %v2393 = vpack.c.b16 %v1561, %v1497
        %v2394 = vpack.c.b16 %v1562, %v1498
        %v2395 = vpack.c.b16 %v1563, %v1499
        %v2396 = vpack.c.b16 %v1564, %v1500
        %v2397 = vpack.c.b16 %v1565, %v1501
        %v2398 = vpack.c.b16 %v1566, %v1502
        %v2399 = vpack.c.b16 %v1567, %v1503
        %v2400 = vpack.c.b16 %v1568, %v1504
        %v2401 = vpack.c.b16 %v1569, %v1505
        %v2402 = vpack.c.b16 %v1570, %v1506
        %v2403 = vpack.c.b16 %v1571, %v1507
        %v2404 = vpack.c.b16 %v1572, %v1508
        %v2405 = vpack.c.b16 %v1573, %v1509
        %v2406 = vpack.c.b16 %v1574, %v1510
        %v2407 = vpack.c.b16 %v1575, %v1511
        %v2408 = vpack.c.b16 %v1576, %v1512
        %v2409 = vpack.c.b16 %v1641, %v1577
        %v2410 = vpack.c.b16 %v1642, %v1578
        %v2411 = vpack.c.b16 %v1643, %v1579
        %v2412 = vpack.c.b16 %v1644, %v1580
        %v2413 = vpack.c.b16 %v1645, %v1581
        %v2414 = vpack.c.b16 %v1646, %v1582
        %v2415 = vpack.c.b16 %v1647, %v1583
        %v2416 = vpack.c.b16 %v1648, %v1584
        %v2417 = vpack.c.b16 %v1649, %v1585
        %v2418 = vpack.c.b16 %v1650, %v1586
        %v2419 = vpack.c.b16 %v1651, %v1587
        %v2420 = vpack.c.b16 %v1652, %v1588
        %v2421 = vpack.c.b16 %v1653, %v1589
        %v2422 = vpack.c.b16 %v1654, %v1590
        %v2423 = vpack.c.b16 %v1655, %v1591
        %v2424 = vpack.c.b16 %v1656, %v1592
        %v2425 = vpack.c.b16 %v1657, %v1593
        %v2426 = vpack.c.b16 %v1658, %v1594
        %v2427 = vpack.c.b16 %v1659, %v1595
        %v2428 = vpack.c.b16 %v1660, %v1596
        %v2429 = vpack.c.b16 %v1661, %v1597
        %v2430 = vpack.c.b16 %v1662, %v1598
        %v2431 = vpack.c.b16 %v1663, %v1599
        %v2432 = vpack.c.b16 %v1664, %v1600
        %v2433 = vpack.c.b16 %v1665, %v1601
        %v2434 = vpack.c.b16 %v1666, %v1602
        %v2435 = vpack.c.b16 %v1667, %v1603
        %v2436 = vpack.c.b16 %v1668, %v1604
        %v2437 = vpack.c.b16 %v1669, %v1605
        %v2438 = vpack.c.b16 %v1670, %v1606
        %v2439 = vpack.c.b16 %v1671, %v1607
        %v2440 = vpack.c.b16 %v1672, %v1608
        %v2441 = vpack.c.b16 %v1673, %v1609
        %v2442 = vpack.c.b16 %v1674, %v1610
        %v2443 = vpack.c.b16 %v1675, %v1611
        %v2444 = vpack.c.b16 %v1676, %v1612
        %v2445 = vpack.c.b16 %v1677, %v1613
        %v2446 = vpack.c.b16 %v1678, %v1614
        %v2447 = vpack.c.b16 %v1679, %v1615
        %v2448 = vpack.c.b16 %v1680, %v1616
        %v2449 = vpack.c.b16 %v1681, %v1617
        %v2450 = vpack.c.b16 %v1682, %v1618
        %v2451 = vpack.c.b16 %v1683, %v1619
        %v2452 = vpack.c.b16 %v1684, %v1620
        %v2453 = vpack.c.b16 %v1685, %v1621
        %v2454 = vpack.c.b16 %v1686, %v1622
        %v2455 = vpack.c.b16 %v1687, %v1623
        %v2456 = vpack.c.b16 %v1688, %v1624
        %v2457 = vpack.c.b16 %v1689, %v1625
        %v2458 = vpack.c.b16 %v1690, %v1626
        %v2459 = vpack.c.b16 %v1691, %v1627
        %v2460 = vpack.c.b16 %v1692, %v1628
        %v2461 = vpack.c.b16 %v1693, %v1629
        %v2462 = vpack.c.b16 %v1694, %v1630
        %v2463 = vpack.c.b16 %v1695, %v1631
        %v2464 = vpack.c.b16 %v1696, %v1632
        %v2465 = vpack.c.b16 %v1697, %v1633
        %v2466 = vpack.c.b16 %v1698, %v1634
        %v2467 = vpack.c.b16 %v1699, %v1635
        %v2468 = vpack.c.b16 %v1700, %v1636
        %v2469 = vpack.c.b16 %v1701, %v1637
        %v2470 = vpack.c.b16 %v1702, %v1638
        %v2471 = vpack.c.b16 %v1703, %v1639
        %v2472 = vpack.c.b16 %v1704, %v1640
        %v2473 = vpack.c.b16 %v1769, %v1705
        %v2474 = vpack.c.b16 %v1770, %v1706
        %v2475 = vpack.c.b16 %v1771, %v1707
        %v2476 = vpack.c.b16 %v1772, %v1708
        %v2477 = vpack.c.b16 %v1773, %v1709
        %v2478 = vpack.c.b16 %v1774, %v1710
        %v2479 = vpack.c.b16 %v1775, %v1711
        %v2480 = vpack.c.b16 %v1776, %v1712
        %v2481 = vpack.c.b16 %v1777, %v1713
        %v2482 = vpack.c.b16 %v1778, %v1714
        %v2483 = vpack.c.b16 %v1779, %v1715
        %v2484 = vpack.c.b16 %v1780, %v1716
        %v2485 = vpack.c.b16 %v1781, %v1717
        %v2486 = vpack.c.b16 %v1782, %v1718
        %v2487 = vpack.c.b16 %v1783, %v1719
        %v2488 = vpack.c.b16 %v1784, %v1720
        %v2489 = vpack.c.b16 %v1785, %v1721
        %v2490 = vpack.c.b16 %v1786, %v1722
        %v2491 = vpack.c.b16 %v1787, %v1723
        %v2492 = vpack.c.b16 %v1788, %v1724
        %v2493 = vpack.c.b16 %v1789, %v1725
        %v2494 = vpack.c.b16 %v1790, %v1726
        %v2495 = vpack.c.b16 %v1791, %v1727
        %v2496 = vpack.c.b16 %v1792, %v1728
        %v2497 = vpack.c.b16 %v1793, %v1729
        %v2498 = vpack.c.b16 %v1794, %v1730
        %v2499 = vpack.c.b16 %v1795, %v1731
        %v2500 = vpack.c.b16 %v1796, %v1732
        %v2501 = vpack.c.b16 %v1797, %v1733
        %v2502 = vpack.c.b16 %v1798, %v1734
        %v2503 = vpack.c.b16 %v1799, %v1735
        %v2504 = vpack.c.b16 %v1800, %v1736
        %v2505 = vpack.c.b16 %v1801, %v1737
        %v2506 = vpack.c.b16 %v1802, %v1738
        %v2507 = vpack.c.b16 %v1803, %v1739
        %v2508 = vpack.c.b16 %v1804, %v1740
        %v2509 = vpack.c.b16 %v1805, %v1741
        %v2510 = vpack.c.b16 %v1806, %v1742
        %v2511 = vpack.c.b16 %v1807, %v1743
        %v2512 = vpack.c.b16 %v1808, %v1744
        %v2513 = vpack.c.b16 %v1809, %v1745
        %v2514 = vpack.c.b16 %v1810, %v1746
        %v2515 = vpack.c.b16 %v1811, %v1747
        %v2516 = vpack.c.b16 %v1812, %v1748
        %v2517 = vpack.c.b16 %v1813, %v1749
        %v2518 = vpack.c.b16 %v1814, %v1750
        %v2519 = vpack.c.b16 %v1815, %v1751
        %v2520 = vpack.c.b16 %v1816, %v1752
        %v2521 = vpack.c.b16 %v1817, %v1753
        %v2522 = vpack.c.b16 %v1818, %v1754
        %v2523 = vpack.c.b16 %v1819, %v1755
        %v2524 = vpack.c.b16 %v1820, %v1756
        %v2525 = vpack.c.b16 %v1821, %v1757
        %v2526 = vpack.c.b16 %v1822, %v1758
        %v2527 = vpack.c.b16 %v1823, %v1759
        %v2528 = vpack.c.b16 %v1824, %v1760
        %v2529 = vpack.c.b16 %v1825, %v1761
        %v2530 = vpack.c.b16 %v1826, %v1762
        %v2531 = vpack.c.b16 %v1827, %v1763
        %v2532 = vpack.c.b16 %v1828, %v1764
        %v2533 = vpack.c.b16 %v1829, %v1765
        %v2534 = vpack.c.b16 %v1830, %v1766
        %v2535 = vpack.c.b16 %v1831, %v1767
        %v2536 = vpack.c.b16 %v1832, %v1768
        %v2537 = vpack.c.b16 %v1897, %v1833
        %v2538 = vpack.c.b16 %v1898, %v1834
        %v2539 = vpack.c.b16 %v1899, %v1835
        %v2540 = vpack.c.b16 %v1900, %v1836
        %v2541 = vpack.c.b16 %v1901, %v1837
        %v2542 = vpack.c.b16 %v1902, %v1838
        %v2543 = vpack.c.b16 %v1903, %v1839
        %v2544 = vpack.c.b16 %v1904, %v1840
        %v2545 = vpack.c.b16 %v1905, %v1841
        %v2546 = vpack.c.b16 %v1906, %v1842
        %v2547 = vpack.c.b16 %v1907, %v1843
        %v2548 = vpack.c.b16 %v1908, %v1844
        %v2549 = vpack.c.b16 %v1909, %v1845
        %v2550 = vpack.c.b16 %v1910, %v1846
        %v2551 = vpack.c.b16 %v1911, %v1847
        %v2552 = vpack.c.b16 %v1912, %v1848
        %v2553 = vpack.c.b16 %v1913, %v1849
        %v2554 = vpack.c.b16 %v1914, %v1850
        %v2555 = vpack.c.b16 %v1915, %v1851
        %v2556 = vpack.c.b16 %v1916, %v1852
        %v2557 = vpack.c.b16 %v1917, %v1853
        %v2558 = vpack.c.b16 %v1918, %v1854
        %v2559 = vpack.c.b16 %v1919, %v1855
        %v2560 = vpack.c.b16 %v1920, %v1856
        %v2561 = vpack.c.b16 %v1921, %v1857
        %v2562 = vpack.c.b16 %v1922, %v1858
        %v2563 = vpack.c.b16 %v1923, %v1859
        %v2564 = vpack.c.b16 %v1924, %v1860
        %v2565 = vpack.c.b16 %v1925, %v1861
        %v2566 = vpack.c.b16 %v1926, %v1862
        %v2567 = vpack.c.b16 %v1927, %v1863
        %v2568 = vpack.c.b16 %v1928, %v1864
        %v2569 = vpack.c.b16 %v1929, %v1865
        %v2570 = vpack.c.b16 %v1930, %v1866
        %v2571 = vpack.c.b16 %v1931, %v1867
        %v2572 = vpack.c.b16 %v1932, %v1868
        %v2573 = vpack.c.b16 %v1933, %v1869
        %v2574 = vpack.c.b16 %v1934, %v1870
        %v2575 = vpack.c.b16 %v1935, %v1871
        %v2576 = vpack.c.b16 %v1936, %v1872
        %v2577 = vpack.c.b16 %v1937, %v1873
        %v2578 = vpack.c.b16 %v1938, %v1874
        %v2579 = vpack.c.b16 %v1939, %v1875
        %v2580 = vpack.c.b16 %v1940, %v1876
        %v2581 = vpack.c.b16 %v1941, %v1877
        %v2582 = vpack.c.b16 %v1942, %v1878
        %v2583 = vpack.c.b16 %v1943, %v1879
        %v2584 = vpack.c.b16 %v1944, %v1880
        %v2585 = vpack.c.b16 %v1945, %v1881
        %v2586 = vpack.c.b16 %v1946, %v1882
        %v2587 = vpack.c.b16 %v1947, %v1883
        %v2588 = vpack.c.b16 %v1948, %v1884
        %v2589 = vpack.c.b16 %v1949, %v1885
        %v2590 = vpack.c.b16 %v1950, %v1886
        %v2591 = vpack.c.b16 %v1951, %v1887
        %v2592 = vpack.c.b16 %v1952, %v1888
        %v2593 = vpack.c.b16 %v1953, %v1889
        %v2594 = vpack.c.b16 %v1954, %v1890
        %v2595 = vpack.c.b16 %v1955, %v1891
        %v2596 = vpack.c.b16 %v1956, %v1892
        %v2597 = vpack.c.b16 %v1957, %v1893
        %v2598 = vpack.c.b16 %v1958, %v1894
        %v2599 = vpack.c.b16 %v1959, %v1895
        %v2600 = vpack.c.b16 %v1960, %v1896
        %v2601 = vpack.c.b16 %v2025, %v1961
        %v2602 = vpack.c.b16 %v2026, %v1962
        %v2603 = vpack.c.b16 %v2027, %v1963
        %v2604 = vpack.c.b16 %v2028, %v1964
        %v2605 = vpack.c.b16 %v2029, %v1965
        %v2606 = vpack.c.b16 %v2030, %v1966
        %v2607 = vpack.c.b16 %v2031, %v1967
        %v2608 = vpack.c.b16 %v2032, %v1968
        %v2609 = vpack.c.b16 %v2033, %v1969
        %v2610 = vpack.c.b16 %v2034, %v1970
        %v2611 = vpack.c.b16 %v2035, %v1971
        %v2612 = vpack.c.b16 %v2036, %v1972
        %v2613 = vpack.c.b16 %v2037, %v1973
        %v2614 = vpack.c.b16 %v2038, %v1974
        %v2615 = vpack.c.b16 %v2039, %v1975
        %v2616 = vpack.c.b16 %v2040, %v1976
        %v2617 = vpack.c.b16 %v2041, %v1977
        %v2618 = vpack.c.b16 %v2042, %v1978
        %v2619 = vpack.c.b16 %v2043, %v1979
        %v2620 = vpack.c.b16 %v2044, %v1980
        %v2621 = vpack.c.b16 %v2045, %v1981
        %v2622 = vpack.c.b16 %v2046, %v1982
        %v2623 = vpack.c.b16 %v2047, %v1983
        %v2624 = vpack.c.b16 %v2048, %v1984
        %v2625 = vpack.c.b16 %v2049, %v1985
        %v2626 = vpack.c.b16 %v2050, %v1986
        %v2627 = vpack.c.b16 %v2051, %v1987
        %v2628 = vpack.c.b16 %v2052, %v1988
        %v2629 = vpack.c.b16 %v2053, %v1989
        %v2630 = vpack.c.b16 %v2054, %v1990
        %v2631 = vpack.c.b16 %v2055, %v1991
        %v2632 = vpack.c.b16 %v2056, %v1992
        %v2633 = vpack.c.b16 %v2057, %v1993
        %v2634 = vpack.c.b16 %v2058, %v1994
        %v2635 = vpack.c.b16 %v2059, %v1995
        %v2636 = vpack.c.b16 %v2060, %v1996
        %v2637 = vpack.c.b16 %v2061, %v1997
        %v2638 = vpack.c.b16 %v2062, %v1998
        %v2639 = vpack.c.b16 %v2063, %v1999
        %v2640 = vpack.c.b16 %v2064, %v2000
        %v2641 = vpack.c.b16 %v2065, %v2001
        %v2642 = vpack.c.b16 %v2066, %v2002
        %v2643 = vpack.c.b16 %v2067, %v2003
        %v2644 = vpack.c.b16 %v2068, %v2004
        %v2645 = vpack.c.b16 %v2069, %v2005
        %v2646 = vpack.c.b16 %v2070, %v2006
        %v2647 = vpack.c.b16 %v2071, %v2007
        %v2648 = vpack.c.b16 %v2072, %v2008
        %v2649 = vpack.c.b16 %v2073, %v2009
        %v2650 = vpack.c.b16 %v2074, %v2010
        %v2651 = vpack.c.b16 %v2075, %v2011
        %v2652 = vpack.c.b16 %v2076, %v2012
        %v2653 = vpack.c.b16 %v2077, %v2013
        %v2654 = vpack.c.b16 %v2078, %v2014
        %v2655 = vpack.c.b16 %v2079, %v2015
        %v2656 = vpack.c.b16 %v2080, %v2016
        %v2657 = vpack.c.b16 %v2081, %v2017
        %v2658 = vpack.c.b16 %v2082, %v2018
        %v2659 = vpack.c.b16 %v2083, %v2019
        %v2660 = vpack.c.b16 %v2084, %v2020
        %v2661 = vpack.c.b16 %v2085, %v2021
        %v2662 = vpack.c.b16 %v2086, %v2022
        %v2663 = vpack.c.b16 %v2087, %v2023
        %v2664 = vpack.c.b16 %v2088, %v2024
        %v2665 = vpack.c.b16 %v2153, %v2089
        %v2666 = vpack.c.b16 %v2154, %v2090
        %v2667 = vpack.c.b16 %v2155, %v2091
        %v2668 = vpack.c.b16 %v2156, %v2092
        %v2669 = vpack.c.b16 %v2157, %v2093
        %v2670 = vpack.c.b16 %v2158, %v2094
        %v2671 = vpack.c.b16 %v2159, %v2095
        %v2672 = vpack.c.b16 %v2160, %v2096
        %v2673 = vpack.c.b16 %v2161, %v2097
        %v2674 = vpack.c.b16 %v2162, %v2098
        %v2675 = vpack.c.b16 %v2163, %v2099
        %v2676 = vpack.c.b16 %v2164, %v2100
        %v2677 = vpack.c.b16 %v2165, %v2101
        %v2678 = vpack.c.b16 %v2166, %v2102
        %v2679 = vpack.c.b16 %v2167, %v2103
        %v2680 = vpack.c.b16 %v2168, %v2104
        %v2681 = vpack.c.b16 %v2169, %v2105
        %v2682 = vpack.c.b16 %v2170, %v2106
        %v2683 = vpack.c.b16 %v2171, %v2107
        %v2684 = vpack.c.b16 %v2172, %v2108
        %v2685 = vpack.c.b16 %v2173, %v2109
        %v2686 = vpack.c.b16 %v2174, %v2110
        %v2687 = vpack.c.b16 %v2175, %v2111
        %v2688 = vpack.c.b16 %v2176, %v2112
        %v2689 = vpack.c.b16 %v2177, %v2113
        %v2690 = vpack.c.b16 %v2178, %v2114
        %v2691 = vpack.c.b16 %v2179, %v2115
        %v2692 = vpack.c.b16 %v2180, %v2116
        %v2693 = vpack.c.b16 %v2181, %v2117
        %v2694 = vpack.c.b16 %v2182, %v2118
        %v2695 = vpack.c.b16 %v2183, %v2119
        %v2696 = vpack.c.b16 %v2184, %v2120
        %v2697 = vpack.c.b16 %v2185, %v2121
        %v2698 = vpack.c.b16 %v2186, %v2122
        %v2699 = vpack.c.b16 %v2187, %v2123
        %v2700 = vpack.c.b16 %v2188, %v2124
        %v2701 = vpack.c.b16 %v2189, %v2125
        %v2702 = vpack.c.b16 %v2190, %v2126
        %v2703 = vpack.c.b16 %v2191, %v2127
        %v2704 = vpack.c.b16 %v2192, %v2128
        %v2705 = vpack.c.b16 %v2193, %v2129
        %v2706 = vpack.c.b16 %v2194, %v2130
        %v2707 = vpack.c.b16 %v2195, %v2131
        %v2708 = vpack.c.b16 %v2196, %v2132
        %v2709 = vpack.c.b16 %v2197, %v2133
        %v2710 = vpack.c.b16 %v2198, %v2134
        %v2711 = vpack.c.b16 %v2199, %v2135
        %v2712 = vpack.c.b16 %v2200, %v2136
        %v2713 = vpack.c.b16 %v2201, %v2137
        %v2714 = vpack.c.b16 %v2202, %v2138
        %v2715 = vpack.c.b16 %v2203, %v2139
        %v2716 = vpack.c.b16 %v2204, %v2140
        %v2717 = vpack.c.b16 %v2205, %v2141
        %v2718 = vpack.c.b16 %v2206, %v2142
        %v2719 = vpack.c.b16 %v2207, %v2143
        %v2720 = vpack.c.b16 %v2208, %v2144
        %v2721 = vpack.c.b16 %v2209, %v2145
        %v2722 = vpack.c.b16 %v2210, %v2146
        %v2723 = vpack.c.b16 %v2211, %v2147
        %v2724 = vpack.c.b16 %v2212, %v2148
        %v2725 = vpack.c.b16 %v2213, %v2149
        %v2726 = vpack.c.b16 %v2214, %v2150
        %v2727 = vpack.c.b16 %v2215, %v2151
        %v2728 = vpack.c.b16 %v2216, %v2152
        %3241 = vmatprep.subr.bf16.mxu0 %v2666
        %3242 = vmatpush1.bf16.msra.mxu0 %v2665
        %3243 = vmatprep.subr.bf16.mxu0 %v2602
        %3244 = vmatpush1.bf16.msra.mxu0 %v2601
        %3245 = vmatprep.subr.bf16.mxu0 %v2538
        %3246 = vmatpush1.bf16.msra.mxu0 %v2537
        %3247 = vmatprep.subr.bf16.mxu0 %v2474
        %3248 = vmatpush1.bf16.msra.mxu0 %v2473
        %3249 = vmatprep.subr.bf16.mxu0 %v2410
        %3250 = vmatpush1.bf16.msra.mxu0 %v2409
        %3251 = vmatprep.subr.bf16.mxu0 %v2346
        %3252 = vmatpush1.bf16.msra.mxu0 %v2345
        %3253 = vmatprep.subr.bf16.mxu0 %v2282
        %3254 = vmatpush1.bf16.msra.mxu0 %v2281
        %3255 = vmatprep.subr.bf16.mxu0 %v2218
        %3256 = vmatpush1.bf16.msra.mxu0 %v2217
        %3257 = vmatprep.subr.bf16.mxu0 0
        %3258 = vmatpush2.bf16.msra.mxu0 0
        %3259 = vmatprep.subr.bf16.mxu0 0
        %3260 = vmatpush2.bf16.msra.mxu0 0
        %3261 = vmatprep.subr.bf16.mxu0 0
        %3262 = vmatpush2.bf16.msra.mxu0 0
        %3263 = vmatprep.subr.bf16.mxu0 0
        %3264 = vmatpush2.bf16.msra.mxu0 0
        %3265 = vmatprep.subr.bf16.mxu0 0
        %3266 = vmatpush2.bf16.msra.mxu0 0
        %3267 = vmatprep.subr.bf16.mxu0 0
        %3268 = vmatpush2.bf16.msra.mxu0 0
        %3269 = vmatprep.subr.bf16.mxu0 0
        %3270 = vmatpush2.bf16.msra.mxu0 0
        %3271 = vmatprep.subr.bf16.mxu0 0
        %3272 = vmatpush2.bf16.msra.mxu0 0
        %3273 = vmatprep.mubr.bf16.mxu0 0
        %3274 = vmatmul.mubr.bf16.gmra.mxu0 %v679
        %v3275 = vpop.f32.mrf.mxu0
        %v3276 = vadd.f32 0.0, %v3275
        %v3277 = vpop.f32.mrf.mxu0
        %v3278 = vadd.f32 0.0, %v3277
        %v3279 = vpop.f32.mrf.mxu0
        %v3280 = vadd.f32 0.0, %v3279
        %v3281 = vpop.f32.mrf.mxu0
        %v3282 = vadd.f32 0.0, %v3281
        %3283 = vdwg.mxu0
        %3284 = vmatprep.subr.bf16.mxu0 %v2668
        %3285 = vmatpush1.bf16.msra.mxu0 %v2667
        %3286 = vmatprep.subr.bf16.mxu0 %v2604
        %3287 = vmatpush1.bf16.msra.mxu0 %v2603
        %3288 = vmatprep.subr.bf16.mxu0 %v2540
        %3289 = vmatpush1.bf16.msra.mxu0 %v2539
        %3290 = vmatprep.subr.bf16.mxu0 %v2476
        %3291 = vmatpush1.bf16.msra.mxu0 %v2475
        %3292 = vmatprep.subr.bf16.mxu0 %v2412
        %3293 = vmatpush1.bf16.msra.mxu0 %v2411
        %3294 = vmatprep.subr.bf16.mxu0 %v2348
        %3295 = vmatpush1.bf16.msra.mxu0 %v2347
        %3296 = vmatprep.subr.bf16.mxu0 %v2284
        %3297 = vmatpush1.bf16.msra.mxu0 %v2283
        %3298 = vmatprep.subr.bf16.mxu0 %v2220
        %3299 = vmatpush1.bf16.msra.mxu0 %v2219
        %3300 = vmatprep.subr.bf16.mxu0 0
        %3301 = vmatpush2.bf16.msra.mxu0 0
        %3302 = vmatprep.subr.bf16.mxu0 0
        %3303 = vmatpush2.bf16.msra.mxu0 0
        %3304 = vmatprep.subr.bf16.mxu0 0
        %3305 = vmatpush2.bf16.msra.mxu0 0
        %3306 = vmatprep.subr.bf16.mxu0 0
        %3307 = vmatpush2.bf16.msra.mxu0 0
        %3308 = vmatprep.subr.bf16.mxu0 0
        %3309 = vmatpush2.bf16.msra.mxu0 0
        %3310 = vmatprep.subr.bf16.mxu0 0
        %3311 = vmatpush2.bf16.msra.mxu0 0
        %3312 = vmatprep.subr.bf16.mxu0 0
        %3313 = vmatpush2.bf16.msra.mxu0 0
        %3314 = vmatprep.subr.bf16.mxu0 0
        %3315 = vmatpush2.bf16.msra.mxu0 0
        %3316 = vmatprep.mubr.bf16.mxu0 0
        %3317 = vmatmul.mubr.bf16.gmra.mxu0 %v679
        %v3318 = vpop.f32.mrf.mxu0
        %v3319 = vadd.f32 0.0, %v3318
        %v3320 = vpop.f32.mrf.mxu0
        %v3321 = vadd.f32 0.0, %v3320
        %v3322 = vpop.f32.mrf.mxu0
        %v3323 = vadd.f32 0.0, %v3322
        %v3324 = vpop.f32.mrf.mxu0
        %v3325 = vadd.f32 0.0, %v3324
        %3326 = vdwg.mxu0
        %3327 = vmatprep.subr.bf16.mxu0 %v2670
        %3328 = vmatpush1.bf16.msra.mxu0 %v2669
        %3329 = vmatprep.subr.bf16.mxu0 %v2606
        %3330 = vmatpush1.bf16.msra.mxu0 %v2605
        %3331 = vmatprep.subr.bf16.mxu0 %v2542
        %3332 = vmatpush1.bf16.msra.mxu0 %v2541
        %3333 = vmatprep.subr.bf16.mxu0 %v2478
        %3334 = vmatpush1.bf16.msra.mxu0 %v2477
        %3335 = vmatprep.subr.bf16.mxu0 %v2414
        %3336 = vmatpush1.bf16.msra.mxu0 %v2413
        %3337 = vmatprep.subr.bf16.mxu0 %v2350
        %3338 = vmatpush1.bf16.msra.mxu0 %v2349
        %3339 = vmatprep.subr.bf16.mxu0 %v2286
        %3340 = vmatpush1.bf16.msra.mxu0 %v2285
        %3341 = vmatprep.subr.bf16.mxu0 %v2222
        %3342 = vmatpush1.bf16.msra.mxu0 %v2221
        %3343 = vmatprep.subr.bf16.mxu0 0
        %3344 = vmatpush2.bf16.msra.mxu0 0
        %3345 = vmatprep.subr.bf16.mxu0 0
        %3346 = vmatpush2.bf16.msra.mxu0 0
        %3347 = vmatprep.subr.bf16.mxu0 0
        %3348 = vmatpush2.bf16.msra.mxu0 0
        %3349 = vmatprep.subr.bf16.mxu0 0
        %3350 = vmatpush2.bf16.msra.mxu0 0
        %3351 = vmatprep.subr.bf16.mxu0 0
        %3352 = vmatpush2.bf16.msra.mxu0 0
        %3353 = vmatprep.subr.bf16.mxu0 0
        %3354 = vmatpush2.bf16.msra.mxu0 0
        %3355 = vmatprep.subr.bf16.mxu0 0
        %3356 = vmatpush2.bf16.msra.mxu0 0
        %3357 = vmatprep.subr.bf16.mxu0 0
        %3358 = vmatpush2.bf16.msra.mxu0 0
        %3359 = vmatprep.mubr.bf16.mxu0 0
        %3360 = vmatmul.mubr.bf16.gmra.mxu0 %v679
        %v3361 = vpop.f32.mrf.mxu0
        %v3362 = vadd.f32 0.0, %v3361
        %v3363 = vpop.f32.mrf.mxu0
        %v3364 = vadd.f32 0.0, %v3363
        %v3365 = vpop.f32.mrf.mxu0
        %v3366 = vadd.f32 0.0, %v3365
        %v3367 = vpop.f32.mrf.mxu0
        %v3368 = vadd.f32 0.0, %v3367
        %3369 = vdwg.mxu0
        %3370 = vmatprep.subr.bf16.mxu0 %v2672
        %3371 = vmatpush1.bf16.msra.mxu0 %v2671
        %3372 = vmatprep.subr.bf16.mxu0 %v2608
        %3373 = vmatpush1.bf16.msra.mxu0 %v2607
        %3374 = vmatprep.subr.bf16.mxu0 %v2544
        %3375 = vmatpush1.bf16.msra.mxu0 %v2543
        %3376 = vmatprep.subr.bf16.mxu0 %v2480
        %3377 = vmatpush1.bf16.msra.mxu0 %v2479
        %3378 = vmatprep.subr.bf16.mxu0 %v2416
        %3379 = vmatpush1.bf16.msra.mxu0 %v2415
        %3380 = vmatprep.subr.bf16.mxu0 %v2352
        %3381 = vmatpush1.bf16.msra.mxu0 %v2351
        %3382 = vmatprep.subr.bf16.mxu0 %v2288
        %3383 = vmatpush1.bf16.msra.mxu0 %v2287
        %3384 = vmatprep.subr.bf16.mxu0 %v2224
        %3385 = vmatpush1.bf16.msra.mxu0 %v2223
        %3386 = vmatprep.subr.bf16.mxu0 0
        %3387 = vmatpush2.bf16.msra.mxu0 0
        %3388 = vmatprep.subr.bf16.mxu0 0
        %3389 = vmatpush2.bf16.msra.mxu0 0
        %3390 = vmatprep.subr.bf16.mxu0 0
        %3391 = vmatpush2.bf16.msra.mxu0 0
        %3392 = vmatprep.subr.bf16.mxu0 0
        %3393 = vmatpush2.bf16.msra.mxu0 0
        %3394 = vmatprep.subr.bf16.mxu0 0
        %3395 = vmatpush2.bf16.msra.mxu0 0
        %3396 = vmatprep.subr.bf16.mxu0 0
        %3397 = vmatpush2.bf16.msra.mxu0 0
        %3398 = vmatprep.subr.bf16.mxu0 0
        %3399 = vmatpush2.bf16.msra.mxu0 0
        %3400 = vmatprep.subr.bf16.mxu0 0
        %3401 = vmatpush2.bf16.msra.mxu0 0
        %3402 = vmatprep.mubr.bf16.mxu0 0
        %3403 = vmatmul.mubr.bf16.gmra.mxu0 %v679
        %v3404 = vpop.f32.mrf.mxu0
        %v3405 = vadd.f32 0.0, %v3404
        %v3406 = vpop.f32.mrf.mxu0
        %v3407 = vadd.f32 0.0, %v3406
        %v3408 = vpop.f32.mrf.mxu0
        %v3409 = vadd.f32 0.0, %v3408
        %v3410 = vpop.f32.mrf.mxu0
        %v3411 = vadd.f32 0.0, %v3410
        %3412 = vdwg.mxu0
        %3413 = vmatprep.subr.bf16.mxu0 %v2674
        %3414 = vmatpush1.bf16.msra.mxu0 %v2673
        %3415 = vmatprep.subr.bf16.mxu0 %v2610
        %3416 = vmatpush1.bf16.msra.mxu0 %v2609
        %3417 = vmatprep.subr.bf16.mxu0 %v2546
        %3418 = vmatpush1.bf16.msra.mxu0 %v2545
        %3419 = vmatprep.subr.bf16.mxu0 %v2482
        %3420 = vmatpush1.bf16.msra.mxu0 %v2481
        %3421 = vmatprep.subr.bf16.mxu0 %v2418
        %3422 = vmatpush1.bf16.msra.mxu0 %v2417
        %3423 = vmatprep.subr.bf16.mxu0 %v2354
        %3424 = vmatpush1.bf16.msra.mxu0 %v2353
        %3425 = vmatprep.subr.bf16.mxu0 %v2290
        %3426 = vmatpush1.bf16.msra.mxu0 %v2289
        %3427 = vmatprep.subr.bf16.mxu0 %v2226
        %3428 = vmatpush1.bf16.msra.mxu0 %v2225
        %3429 = vmatprep.subr.bf16.mxu0 0
        %3430 = vmatpush2.bf16.msra.mxu0 0
        %3431 = vmatprep.subr.bf16.mxu0 0
        %3432 = vmatpush2.bf16.msra.mxu0 0
        %3433 = vmatprep.subr.bf16.mxu0 0
        %3434 = vmatpush2.bf16.msra.mxu0 0
        %3435 = vmatprep.subr.bf16.mxu0 0
        %3436 = vmatpush2.bf16.msra.mxu0 0
        %3437 = vmatprep.subr.bf16.mxu0 0
        %3438 = vmatpush2.bf16.msra.mxu0 0
        %3439 = vmatprep.subr.bf16.mxu0 0
        %3440 = vmatpush2.bf16.msra.mxu0 0
        %3441 = vmatprep.subr.bf16.mxu0 0
        %3442 = vmatpush2.bf16.msra.mxu0 0
        %3443 = vmatprep.subr.bf16.mxu0 0
        %3444 = vmatpush2.bf16.msra.mxu0 0
        %3445 = vmatprep.mubr.bf16.mxu0 0
        %3446 = vmatmul.mubr.bf16.gmra.mxu0 %v679
        %v3447 = vpop.f32.mrf.mxu0
        %v3448 = vadd.f32 0.0, %v3447
        %v3449 = vpop.f32.mrf.mxu0
        %v3450 = vadd.f32 0.0, %v3449
        %v3451 = vpop.f32.mrf.mxu0
        %v3452 = vadd.f32 0.0, %v3451
        %v3453 = vpop.f32.mrf.mxu0
        %v3454 = vadd.f32 0.0, %v3453
        %3455 = vdwg.mxu0
        %3456 = vmatprep.subr.bf16.mxu0 %v2676
        %3457 = vmatpush1.bf16.msra.mxu0 %v2675
        %3458 = vmatprep.subr.bf16.mxu0 %v2612
        %3459 = vmatpush1.bf16.msra.mxu0 %v2611
        %3460 = vmatprep.subr.bf16.mxu0 %v2548
        %3461 = vmatpush1.bf16.msra.mxu0 %v2547
        %3462 = vmatprep.subr.bf16.mxu0 %v2484
        %3463 = vmatpush1.bf16.msra.mxu0 %v2483
        %3464 = vmatprep.subr.bf16.mxu0 %v2420
        %3465 = vmatpush1.bf16.msra.mxu0 %v2419
        %3466 = vmatprep.subr.bf16.mxu0 %v2356
        %3467 = vmatpush1.bf16.msra.mxu0 %v2355
        %3468 = vmatprep.subr.bf16.mxu0 %v2292
        %3469 = vmatpush1.bf16.msra.mxu0 %v2291
        %3470 = vmatprep.subr.bf16.mxu0 %v2228
        %3471 = vmatpush1.bf16.msra.mxu0 %v2227
        %3472 = vmatprep.subr.bf16.mxu0 0
        %3473 = vmatpush2.bf16.msra.mxu0 0
        %3474 = vmatprep.subr.bf16.mxu0 0
        %3475 = vmatpush2.bf16.msra.mxu0 0
        %3476 = vmatprep.subr.bf16.mxu0 0
        %3477 = vmatpush2.bf16.msra.mxu0 0
        %3478 = vmatprep.subr.bf16.mxu0 0
        %3479 = vmatpush2.bf16.msra.mxu0 0
        %3480 = vmatprep.subr.bf16.mxu0 0
        %3481 = vmatpush2.bf16.msra.mxu0 0
        %3482 = vmatprep.subr.bf16.mxu0 0
        %3483 = vmatpush2.bf16.msra.mxu0 0
        %3484 = vmatprep.subr.bf16.mxu0 0
        %3485 = vmatpush2.bf16.msra.mxu0 0
        %3486 = vmatprep.subr.bf16.mxu0 0
        %3487 = vmatpush2.bf16.msra.mxu0 0
        %3488 = vmatprep.mubr.bf16.mxu0 0
        %3489 = vmatmul.mubr.bf16.gmra.mxu0 %v679
        %v3490 = vpop.f32.mrf.mxu0
        %v3491 = vadd.f32 0.0, %v3490
        %v3492 = vpop.f32.mrf.mxu0
        %v3493 = vadd.f32 0.0, %v3492
        %v3494 = vpop.f32.mrf.mxu0
        %v3495 = vadd.f32 0.0, %v3494
        %v3496 = vpop.f32.mrf.mxu0
        %v3497 = vadd.f32 0.0, %v3496
        %3498 = vdwg.mxu0
        %3499 = vmatprep.subr.bf16.mxu0 %v2678
        %3500 = vmatpush1.bf16.msra.mxu0 %v2677
        %3501 = vmatprep.subr.bf16.mxu0 %v2614
        %3502 = vmatpush1.bf16.msra.mxu0 %v2613
        %3503 = vmatprep.subr.bf16.mxu0 %v2550
        %3504 = vmatpush1.bf16.msra.mxu0 %v2549
        %3505 = vmatprep.subr.bf16.mxu0 %v2486
        %3506 = vmatpush1.bf16.msra.mxu0 %v2485
        %3507 = vmatprep.subr.bf16.mxu0 %v2422
        %3508 = vmatpush1.bf16.msra.mxu0 %v2421
        %3509 = vmatprep.subr.bf16.mxu0 %v2358
        %3510 = vmatpush1.bf16.msra.mxu0 %v2357
        %3511 = vmatprep.subr.bf16.mxu0 %v2294
        %3512 = vmatpush1.bf16.msra.mxu0 %v2293
        %3513 = vmatprep.subr.bf16.mxu0 %v2230
        %3514 = vmatpush1.bf16.msra.mxu0 %v2229
        %3515 = vmatprep.subr.bf16.mxu0 0
        %3516 = vmatpush2.bf16.msra.mxu0 0
        %3517 = vmatprep.subr.bf16.mxu0 0
        %3518 = vmatpush2.bf16.msra.mxu0 0
        %3519 = vmatprep.subr.bf16.mxu0 0
        %3520 = vmatpush2.bf16.msra.mxu0 0
        %3521 = vmatprep.subr.bf16.mxu0 0
        %3522 = vmatpush2.bf16.msra.mxu0 0
        %3523 = vmatprep.subr.bf16.mxu0 0
        %3524 = vmatpush2.bf16.msra.mxu0 0
        %3525 = vmatprep.subr.bf16.mxu0 0
        %3526 = vmatpush2.bf16.msra.mxu0 0
        %3527 = vmatprep.subr.bf16.mxu0 0
        %3528 = vmatpush2.bf16.msra.mxu0 0
        %3529 = vmatprep.subr.bf16.mxu0 0
        %3530 = vmatpush2.bf16.msra.mxu0 0
        %3531 = vmatprep.mubr.bf16.mxu0 0
        %3532 = vmatmul.mubr.bf16.gmra.mxu0 %v679
        %v3533 = vpop.f32.mrf.mxu0
        %v3534 = vadd.f32 0.0, %v3533
        %v3535 = vpop.f32.mrf.mxu0
        %v3536 = vadd.f32 0.0, %v3535
        %v3537 = vpop.f32.mrf.mxu0
        %v3538 = vadd.f32 0.0, %v3537
        %v3539 = vpop.f32.mrf.mxu0
        %v3540 = vadd.f32 0.0, %v3539
        %3541 = vdwg.mxu0
        %3542 = vmatprep.subr.bf16.mxu0 %v2680
        %3543 = vmatpush1.bf16.msra.mxu0 %v2679
        %3544 = vmatprep.subr.bf16.mxu0 %v2616
        %3545 = vmatpush1.bf16.msra.mxu0 %v2615
        %3546 = vmatprep.subr.bf16.mxu0 %v2552
        %3547 = vmatpush1.bf16.msra.mxu0 %v2551
        %3548 = vmatprep.subr.bf16.mxu0 %v2488
        %3549 = vmatpush1.bf16.msra.mxu0 %v2487
        %3550 = vmatprep.subr.bf16.mxu0 %v2424
        %3551 = vmatpush1.bf16.msra.mxu0 %v2423
        %3552 = vmatprep.subr.bf16.mxu0 %v2360
        %3553 = vmatpush1.bf16.msra.mxu0 %v2359
        %3554 = vmatprep.subr.bf16.mxu0 %v2296
        %3555 = vmatpush1.bf16.msra.mxu0 %v2295
        %3556 = vmatprep.subr.bf16.mxu0 %v2232
        %3557 = vmatpush1.bf16.msra.mxu0 %v2231
        %3558 = vmatprep.subr.bf16.mxu0 0
        %3559 = vmatpush2.bf16.msra.mxu0 0
        %3560 = vmatprep.subr.bf16.mxu0 0
        %3561 = vmatpush2.bf16.msra.mxu0 0
        %3562 = vmatprep.subr.bf16.mxu0 0
        %3563 = vmatpush2.bf16.msra.mxu0 0
        %3564 = vmatprep.subr.bf16.mxu0 0
        %3565 = vmatpush2.bf16.msra.mxu0 0
        %3566 = vmatprep.subr.bf16.mxu0 0
        %3567 = vmatpush2.bf16.msra.mxu0 0
        %3568 = vmatprep.subr.bf16.mxu0 0
        %3569 = vmatpush2.bf16.msra.mxu0 0
        %3570 = vmatprep.subr.bf16.mxu0 0
        %3571 = vmatpush2.bf16.msra.mxu0 0
        %3572 = vmatprep.subr.bf16.mxu0 0
        %3573 = vmatpush2.bf16.msra.mxu0 0
        %3574 = vmatprep.mubr.bf16.mxu0 0
        %3575 = vmatmul.mubr.bf16.gmra.mxu0 %v679
        %v3576 = vpop.f32.mrf.mxu0
        %v3577 = vadd.f32 0.0, %v3576
        %v3578 = vpop.f32.mrf.mxu0
        %v3579 = vadd.f32 0.0, %v3578
        %v3580 = vpop.f32.mrf.mxu0
        %v3581 = vadd.f32 0.0, %v3580
        %v3582 = vpop.f32.mrf.mxu0
        %v3583 = vadd.f32 0.0, %v3582
        %3584 = vdwg.mxu0
        %3585 = vmatprep.subr.bf16.mxu0 %v2682
        %3586 = vmatpush1.bf16.msra.mxu0 %v2681
        %3587 = vmatprep.subr.bf16.mxu0 %v2618
        %3588 = vmatpush1.bf16.msra.mxu0 %v2617
        %3589 = vmatprep.subr.bf16.mxu0 %v2554
        %3590 = vmatpush1.bf16.msra.mxu0 %v2553
        %3591 = vmatprep.subr.bf16.mxu0 %v2490
        %3592 = vmatpush1.bf16.msra.mxu0 %v2489
        %3593 = vmatprep.subr.bf16.mxu0 %v2426
        %3594 = vmatpush1.bf16.msra.mxu0 %v2425
        %3595 = vmatprep.subr.bf16.mxu0 %v2362
        %3596 = vmatpush1.bf16.msra.mxu0 %v2361
        %3597 = vmatprep.subr.bf16.mxu0 %v2298
        %3598 = vmatpush1.bf16.msra.mxu0 %v2297
        %3599 = vmatprep.subr.bf16.mxu0 %v2234
        %3600 = vmatpush1.bf16.msra.mxu0 %v2233
        %3601 = vmatprep.subr.bf16.mxu0 0
        %3602 = vmatpush2.bf16.msra.mxu0 0
        %3603 = vmatprep.subr.bf16.mxu0 0
        %3604 = vmatpush2.bf16.msra.mxu0 0
        %3605 = vmatprep.subr.bf16.mxu0 0
        %3606 = vmatpush2.bf16.msra.mxu0 0
        %3607 = vmatprep.subr.bf16.mxu0 0
        %3608 = vmatpush2.bf16.msra.mxu0 0
        %3609 = vmatprep.subr.bf16.mxu0 0
        %3610 = vmatpush2.bf16.msra.mxu0 0
        %3611 = vmatprep.subr.bf16.mxu0 0
        %3612 = vmatpush2.bf16.msra.mxu0 0
        %3613 = vmatprep.subr.bf16.mxu0 0
        %3614 = vmatpush2.bf16.msra.mxu0 0
        %3615 = vmatprep.subr.bf16.mxu0 0
        %3616 = vmatpush2.bf16.msra.mxu0 0
        %3617 = vmatprep.mubr.bf16.mxu0 0
        %3618 = vmatmul.mubr.bf16.gmra.mxu0 %v679
        %v3619 = vpop.f32.mrf.mxu0
        %v3620 = vadd.f32 0.0, %v3619
        %v3621 = vpop.f32.mrf.mxu0
        %v3622 = vadd.f32 0.0, %v3621
        %v3623 = vpop.f32.mrf.mxu0
        %v3624 = vadd.f32 0.0, %v3623
        %v3625 = vpop.f32.mrf.mxu0
        %v3626 = vadd.f32 0.0, %v3625
        %3627 = vdwg.mxu0
        %3628 = vmatprep.subr.bf16.mxu0 %v2684
        %3629 = vmatpush1.bf16.msra.mxu0 %v2683
        %3630 = vmatprep.subr.bf16.mxu0 %v2620
        %3631 = vmatpush1.bf16.msra.mxu0 %v2619
        %3632 = vmatprep.subr.bf16.mxu0 %v2556
        %3633 = vmatpush1.bf16.msra.mxu0 %v2555
        %3634 = vmatprep.subr.bf16.mxu0 %v2492
        %3635 = vmatpush1.bf16.msra.mxu0 %v2491
        %3636 = vmatprep.subr.bf16.mxu0 %v2428
        %3637 = vmatpush1.bf16.msra.mxu0 %v2427
        %3638 = vmatprep.subr.bf16.mxu0 %v2364
        %3639 = vmatpush1.bf16.msra.mxu0 %v2363
        %3640 = vmatprep.subr.bf16.mxu0 %v2300
        %3641 = vmatpush1.bf16.msra.mxu0 %v2299
        %3642 = vmatprep.subr.bf16.mxu0 %v2236
        %3643 = vmatpush1.bf16.msra.mxu0 %v2235
        %3644 = vmatprep.subr.bf16.mxu0 0
        %3645 = vmatpush2.bf16.msra.mxu0 0
        %3646 = vmatprep.subr.bf16.mxu0 0
        %3647 = vmatpush2.bf16.msra.mxu0 0
        %3648 = vmatprep.subr.bf16.mxu0 0
        %3649 = vmatpush2.bf16.msra.mxu0 0
        %3650 = vmatprep.subr.bf16.mxu0 0
        %3651 = vmatpush2.bf16.msra.mxu0 0
        %3652 = vmatprep.subr.bf16.mxu0 0
        %3653 = vmatpush2.bf16.msra.mxu0 0
        %3654 = vmatprep.subr.bf16.mxu0 0
        %3655 = vmatpush2.bf16.msra.mxu0 0
        %3656 = vmatprep.subr.bf16.mxu0 0
        %3657 = vmatpush2.bf16.msra.mxu0 0
        %3658 = vmatprep.subr.bf16.mxu0 0
        %3659 = vmatpush2.bf16.msra.mxu0 0
        %3660 = vmatprep.mubr.bf16.mxu0 0
        %3661 = vmatmul.mubr.bf16.gmra.mxu0 %v679
        %v3662 = vpop.f32.mrf.mxu0
        %v3663 = vadd.f32 0.0, %v3662
        %v3664 = vpop.f32.mrf.mxu0
        %v3665 = vadd.f32 0.0, %v3664
        %v3666 = vpop.f32.mrf.mxu0
        %v3667 = vadd.f32 0.0, %v3666
        %v3668 = vpop.f32.mrf.mxu0
        %v3669 = vadd.f32 0.0, %v3668
        %3670 = vdwg.mxu0
        %3671 = vmatprep.subr.bf16.mxu0 %v2686
        %3672 = vmatpush1.bf16.msra.mxu0 %v2685
        %3673 = vmatprep.subr.bf16.mxu0 %v2622
        %3674 = vmatpush1.bf16.msra.mxu0 %v2621
        %3675 = vmatprep.subr.bf16.mxu0 %v2558
        %3676 = vmatpush1.bf16.msra.mxu0 %v2557
        %3677 = vmatprep.subr.bf16.mxu0 %v2494
        %3678 = vmatpush1.bf16.msra.mxu0 %v2493
        %3679 = vmatprep.subr.bf16.mxu0 %v2430
        %3680 = vmatpush1.bf16.msra.mxu0 %v2429
        %3681 = vmatprep.subr.bf16.mxu0 %v2366
        %3682 = vmatpush1.bf16.msra.mxu0 %v2365
        %3683 = vmatprep.subr.bf16.mxu0 %v2302
        %3684 = vmatpush1.bf16.msra.mxu0 %v2301
        %3685 = vmatprep.subr.bf16.mxu0 %v2238
        %3686 = vmatpush1.bf16.msra.mxu0 %v2237
        %3687 = vmatprep.subr.bf16.mxu0 0
        %3688 = vmatpush2.bf16.msra.mxu0 0
        %3689 = vmatprep.subr.bf16.mxu0 0
        %3690 = vmatpush2.bf16.msra.mxu0 0
        %3691 = vmatprep.subr.bf16.mxu0 0
        %3692 = vmatpush2.bf16.msra.mxu0 0
        %3693 = vmatprep.subr.bf16.mxu0 0
        %3694 = vmatpush2.bf16.msra.mxu0 0
        %3695 = vmatprep.subr.bf16.mxu0 0
        %3696 = vmatpush2.bf16.msra.mxu0 0
        %3697 = vmatprep.subr.bf16.mxu0 0
        %3698 = vmatpush2.bf16.msra.mxu0 0
        %3699 = vmatprep.subr.bf16.mxu0 0
        %3700 = vmatpush2.bf16.msra.mxu0 0
        %3701 = vmatprep.subr.bf16.mxu0 0
        %3702 = vmatpush2.bf16.msra.mxu0 0
        %3703 = vmatprep.mubr.bf16.mxu0 0
        %3704 = vmatmul.mubr.bf16.gmra.mxu0 %v679
        %v3705 = vpop.f32.mrf.mxu0
        %v3706 = vadd.f32 0.0, %v3705
        %v3707 = vpop.f32.mrf.mxu0
        %v3708 = vadd.f32 0.0, %v3707
        %v3709 = vpop.f32.mrf.mxu0
        %v3710 = vadd.f32 0.0, %v3709
        %v3711 = vpop.f32.mrf.mxu0
        %v3712 = vadd.f32 0.0, %v3711
        %3713 = vdwg.mxu0
        %3714 = vmatprep.subr.bf16.mxu0 %v2688
        %3715 = vmatpush1.bf16.msra.mxu0 %v2687
        %3716 = vmatprep.subr.bf16.mxu0 %v2624
        %3717 = vmatpush1.bf16.msra.mxu0 %v2623
        %3718 = vmatprep.subr.bf16.mxu0 %v2560
        %3719 = vmatpush1.bf16.msra.mxu0 %v2559
        %3720 = vmatprep.subr.bf16.mxu0 %v2496
        %3721 = vmatpush1.bf16.msra.mxu0 %v2495
        %3722 = vmatprep.subr.bf16.mxu0 %v2432
        %3723 = vmatpush1.bf16.msra.mxu0 %v2431
        %3724 = vmatprep.subr.bf16.mxu0 %v2368
        %3725 = vmatpush1.bf16.msra.mxu0 %v2367
        %3726 = vmatprep.subr.bf16.mxu0 %v2304
        %3727 = vmatpush1.bf16.msra.mxu0 %v2303
        %3728 = vmatprep.subr.bf16.mxu0 %v2240
        %3729 = vmatpush1.bf16.msra.mxu0 %v2239
        %3730 = vmatprep.subr.bf16.mxu0 0
        %3731 = vmatpush2.bf16.msra.mxu0 0
        %3732 = vmatprep.subr.bf16.mxu0 0
        %3733 = vmatpush2.bf16.msra.mxu0 0
        %3734 = vmatprep.subr.bf16.mxu0 0
        %3735 = vmatpush2.bf16.msra.mxu0 0
        %3736 = vmatprep.subr.bf16.mxu0 0
        %3737 = vmatpush2.bf16.msra.mxu0 0
        %3738 = vmatprep.subr.bf16.mxu0 0
        %3739 = vmatpush2.bf16.msra.mxu0 0
        %3740 = vmatprep.subr.bf16.mxu0 0
        %3741 = vmatpush2.bf16.msra.mxu0 0
        %3742 = vmatprep.subr.bf16.mxu0 0
        %3743 = vmatpush2.bf16.msra.mxu0 0
        %3744 = vmatprep.subr.bf16.mxu0 0
        %3745 = vmatpush2.bf16.msra.mxu0 0
        %3746 = vmatprep.mubr.bf16.mxu0 0
        %3747 = vmatmul.mubr.bf16.gmra.mxu0 %v679
        %v3748 = vpop.f32.mrf.mxu0
        %v3749 = vadd.f32 0.0, %v3748
        %v3750 = vpop.f32.mrf.mxu0
        %v3751 = vadd.f32 0.0, %v3750
        %v3752 = vpop.f32.mrf.mxu0
        %v3753 = vadd.f32 0.0, %v3752
        %v3754 = vpop.f32.mrf.mxu0
        %v3755 = vadd.f32 0.0, %v3754
        %3756 = vdwg.mxu0
        %3757 = vmatprep.subr.bf16.mxu0 %v2690
        %3758 = vmatpush1.bf16.msra.mxu0 %v2689
        %3759 = vmatprep.subr.bf16.mxu0 %v2626
        %3760 = vmatpush1.bf16.msra.mxu0 %v2625
        %3761 = vmatprep.subr.bf16.mxu0 %v2562
        %3762 = vmatpush1.bf16.msra.mxu0 %v2561
        %3763 = vmatprep.subr.bf16.mxu0 %v2498
        %3764 = vmatpush1.bf16.msra.mxu0 %v2497
        %3765 = vmatprep.subr.bf16.mxu0 %v2434
        %3766 = vmatpush1.bf16.msra.mxu0 %v2433
        %3767 = vmatprep.subr.bf16.mxu0 %v2370
        %3768 = vmatpush1.bf16.msra.mxu0 %v2369
        %3769 = vmatprep.subr.bf16.mxu0 %v2306
        %3770 = vmatpush1.bf16.msra.mxu0 %v2305
        %3771 = vmatprep.subr.bf16.mxu0 %v2242
        %3772 = vmatpush1.bf16.msra.mxu0 %v2241
        %3773 = vmatprep.subr.bf16.mxu0 0
        %3774 = vmatpush2.bf16.msra.mxu0 0
        %3775 = vmatprep.subr.bf16.mxu0 0
        %3776 = vmatpush2.bf16.msra.mxu0 0
        %3777 = vmatprep.subr.bf16.mxu0 0
        %3778 = vmatpush2.bf16.msra.mxu0 0
        %3779 = vmatprep.subr.bf16.mxu0 0
        %3780 = vmatpush2.bf16.msra.mxu0 0
        %3781 = vmatprep.subr.bf16.mxu0 0
        %3782 = vmatpush2.bf16.msra.mxu0 0
        %3783 = vmatprep.subr.bf16.mxu0 0
        %3784 = vmatpush2.bf16.msra.mxu0 0
        %3785 = vmatprep.subr.bf16.mxu0 0
        %3786 = vmatpush2.bf16.msra.mxu0 0
        %3787 = vmatprep.subr.bf16.mxu0 0
        %3788 = vmatpush2.bf16.msra.mxu0 0
        %3789 = vmatprep.mubr.bf16.mxu0 0
        %3790 = vmatmul.mubr.bf16.gmra.mxu0 %v679
        %v3791 = vpop.f32.mrf.mxu0
        %v3792 = vadd.f32 0.0, %v3791
        %v3793 = vpop.f32.mrf.mxu0
        %v3794 = vadd.f32 0.0, %v3793
        %v3795 = vpop.f32.mrf.mxu0
        %v3796 = vadd.f32 0.0, %v3795
        %v3797 = vpop.f32.mrf.mxu0
        %v3798 = vadd.f32 0.0, %v3797
        %3799 = vdwg.mxu0
        %3800 = vmatprep.subr.bf16.mxu0 %v2692
        %3801 = vmatpush1.bf16.msra.mxu0 %v2691
        %3802 = vmatprep.subr.bf16.mxu0 %v2628
        %3803 = vmatpush1.bf16.msra.mxu0 %v2627
        %3804 = vmatprep.subr.bf16.mxu0 %v2564
        %3805 = vmatpush1.bf16.msra.mxu0 %v2563
        %3806 = vmatprep.subr.bf16.mxu0 %v2500
        %3807 = vmatpush1.bf16.msra.mxu0 %v2499
        %3808 = vmatprep.subr.bf16.mxu0 %v2436
        %3809 = vmatpush1.bf16.msra.mxu0 %v2435
        %3810 = vmatprep.subr.bf16.mxu0 %v2372
        %3811 = vmatpush1.bf16.msra.mxu0 %v2371
        %3812 = vmatprep.subr.bf16.mxu0 %v2308
        %3813 = vmatpush1.bf16.msra.mxu0 %v2307
        %3814 = vmatprep.subr.bf16.mxu0 %v2244
        %3815 = vmatpush1.bf16.msra.mxu0 %v2243
        %3816 = vmatprep.subr.bf16.mxu0 0
        %3817 = vmatpush2.bf16.msra.mxu0 0
        %3818 = vmatprep.subr.bf16.mxu0 0
        %3819 = vmatpush2.bf16.msra.mxu0 0
        %3820 = vmatprep.subr.bf16.mxu0 0
        %3821 = vmatpush2.bf16.msra.mxu0 0
        %3822 = vmatprep.subr.bf16.mxu0 0
        %3823 = vmatpush2.bf16.msra.mxu0 0
        %3824 = vmatprep.subr.bf16.mxu0 0
        %3825 = vmatpush2.bf16.msra.mxu0 0
        %3826 = vmatprep.subr.bf16.mxu0 0
        %3827 = vmatpush2.bf16.msra.mxu0 0
        %3828 = vmatprep.subr.bf16.mxu0 0
        %3829 = vmatpush2.bf16.msra.mxu0 0
        %3830 = vmatprep.subr.bf16.mxu0 0
        %3831 = vmatpush2.bf16.msra.mxu0 0
        %3832 = vmatprep.mubr.bf16.mxu0 0
        %3833 = vmatmul.mubr.bf16.gmra.mxu0 %v679
        %v3834 = vpop.f32.mrf.mxu0
        %v3835 = vadd.f32 0.0, %v3834
        %v3836 = vpop.f32.mrf.mxu0
        %v3837 = vadd.f32 0.0, %v3836
        %v3838 = vpop.f32.mrf.mxu0
        %v3839 = vadd.f32 0.0, %v3838
        %v3840 = vpop.f32.mrf.mxu0
        %v3841 = vadd.f32 0.0, %v3840
        %3842 = vdwg.mxu0
        %3843 = vmatprep.subr.bf16.mxu0 %v2694
        %3844 = vmatpush1.bf16.msra.mxu0 %v2693
        %3845 = vmatprep.subr.bf16.mxu0 %v2630
        %3846 = vmatpush1.bf16.msra.mxu0 %v2629
        %3847 = vmatprep.subr.bf16.mxu0 %v2566
        %3848 = vmatpush1.bf16.msra.mxu0 %v2565
        %3849 = vmatprep.subr.bf16.mxu0 %v2502
        %3850 = vmatpush1.bf16.msra.mxu0 %v2501
        %3851 = vmatprep.subr.bf16.mxu0 %v2438
        %3852 = vmatpush1.bf16.msra.mxu0 %v2437
        %3853 = vmatprep.subr.bf16.mxu0 %v2374
        %3854 = vmatpush1.bf16.msra.mxu0 %v2373
        %3855 = vmatprep.subr.bf16.mxu0 %v2310
        %3856 = vmatpush1.bf16.msra.mxu0 %v2309
        %3857 = vmatprep.subr.bf16.mxu0 %v2246
        %3858 = vmatpush1.bf16.msra.mxu0 %v2245
        %3859 = vmatprep.subr.bf16.mxu0 0
        %3860 = vmatpush2.bf16.msra.mxu0 0
        %3861 = vmatprep.subr.bf16.mxu0 0
        %3862 = vmatpush2.bf16.msra.mxu0 0
        %3863 = vmatprep.subr.bf16.mxu0 0
        %3864 = vmatpush2.bf16.msra.mxu0 0
        %3865 = vmatprep.subr.bf16.mxu0 0
        %3866 = vmatpush2.bf16.msra.mxu0 0
        %3867 = vmatprep.subr.bf16.mxu0 0
        %3868 = vmatpush2.bf16.msra.mxu0 0
        %3869 = vmatprep.subr.bf16.mxu0 0
        %3870 = vmatpush2.bf16.msra.mxu0 0
        %3871 = vmatprep.subr.bf16.mxu0 0
        %3872 = vmatpush2.bf16.msra.mxu0 0
        %3873 = vmatprep.subr.bf16.mxu0 0
        %3874 = vmatpush2.bf16.msra.mxu0 0
        %3875 = vmatprep.mubr.bf16.mxu0 0
        %3876 = vmatmul.mubr.bf16.gmra.mxu0 %v679
        %v3877 = vpop.f32.mrf.mxu0
        %v3878 = vadd.f32 0.0, %v3877
        %v3879 = vpop.f32.mrf.mxu0
        %v3880 = vadd.f32 0.0, %v3879
        %v3881 = vpop.f32.mrf.mxu0
        %v3882 = vadd.f32 0.0, %v3881
        %v3883 = vpop.f32.mrf.mxu0
        %v3884 = vadd.f32 0.0, %v3883
        %3885 = vdwg.mxu0
        %3886 = vmatprep.subr.bf16.mxu0 %v2696
        %3887 = vmatpush1.bf16.msra.mxu0 %v2695
        %3888 = vmatprep.subr.bf16.mxu0 %v2632
        %3889 = vmatpush1.bf16.msra.mxu0 %v2631
        %3890 = vmatprep.subr.bf16.mxu0 %v2568
        %3891 = vmatpush1.bf16.msra.mxu0 %v2567
        %3892 = vmatprep.subr.bf16.mxu0 %v2504
        %3893 = vmatpush1.bf16.msra.mxu0 %v2503
        %3894 = vmatprep.subr.bf16.mxu0 %v2440
        %3895 = vmatpush1.bf16.msra.mxu0 %v2439
        %3896 = vmatprep.subr.bf16.mxu0 %v2376
        %3897 = vmatpush1.bf16.msra.mxu0 %v2375
        %3898 = vmatprep.subr.bf16.mxu0 %v2312
        %3899 = vmatpush1.bf16.msra.mxu0 %v2311
        %3900 = vmatprep.subr.bf16.mxu0 %v2248
        %3901 = vmatpush1.bf16.msra.mxu0 %v2247
        %3902 = vmatprep.subr.bf16.mxu0 0
        %3903 = vmatpush2.bf16.msra.mxu0 0
        %3904 = vmatprep.subr.bf16.mxu0 0
        %3905 = vmatpush2.bf16.msra.mxu0 0
        %3906 = vmatprep.subr.bf16.mxu0 0
        %3907 = vmatpush2.bf16.msra.mxu0 0
        %3908 = vmatprep.subr.bf16.mxu0 0
        %3909 = vmatpush2.bf16.msra.mxu0 0
        %3910 = vmatprep.subr.bf16.mxu0 0
        %3911 = vmatpush2.bf16.msra.mxu0 0
        %3912 = vmatprep.subr.bf16.mxu0 0
        %3913 = vmatpush2.bf16.msra.mxu0 0
        %3914 = vmatprep.subr.bf16.mxu0 0
        %3915 = vmatpush2.bf16.msra.mxu0 0
        %3916 = vmatprep.subr.bf16.mxu0 0
        %3917 = vmatpush2.bf16.msra.mxu0 0
        %3918 = vmatprep.mubr.bf16.mxu0 0
        %3919 = vmatmul.mubr.bf16.gmra.mxu0 %v679
        %v3920 = vpop.f32.mrf.mxu0
        %v3921 = vadd.f32 0.0, %v3920
        %v3922 = vpop.f32.mrf.mxu0
        %v3923 = vadd.f32 0.0, %v3922
        %v3924 = vpop.f32.mrf.mxu0
        %v3925 = vadd.f32 0.0, %v3924
        %v3926 = vpop.f32.mrf.mxu0
        %v3927 = vadd.f32 0.0, %v3926
        %3928 = vdwg.mxu0
        %3929 = vmatprep.subr.bf16.mxu0 %v2698
        %3930 = vmatpush1.bf16.msra.mxu0 %v2697
        %3931 = vmatprep.subr.bf16.mxu0 %v2634
        %3932 = vmatpush1.bf16.msra.mxu0 %v2633
        %3933 = vmatprep.subr.bf16.mxu0 %v2570
        %3934 = vmatpush1.bf16.msra.mxu0 %v2569
        %3935 = vmatprep.subr.bf16.mxu0 %v2506
        %3936 = vmatpush1.bf16.msra.mxu0 %v2505
        %3937 = vmatprep.subr.bf16.mxu0 %v2442
        %3938 = vmatpush1.bf16.msra.mxu0 %v2441
        %3939 = vmatprep.subr.bf16.mxu0 %v2378
        %3940 = vmatpush1.bf16.msra.mxu0 %v2377
        %3941 = vmatprep.subr.bf16.mxu0 %v2314
        %3942 = vmatpush1.bf16.msra.mxu0 %v2313
        %3943 = vmatprep.subr.bf16.mxu0 %v2250
        %3944 = vmatpush1.bf16.msra.mxu0 %v2249
        %3945 = vmatprep.subr.bf16.mxu0 0
        %3946 = vmatpush2.bf16.msra.mxu0 0
        %3947 = vmatprep.subr.bf16.mxu0 0
        %3948 = vmatpush2.bf16.msra.mxu0 0
        %3949 = vmatprep.subr.bf16.mxu0 0
        %3950 = vmatpush2.bf16.msra.mxu0 0
        %3951 = vmatprep.subr.bf16.mxu0 0
        %3952 = vmatpush2.bf16.msra.mxu0 0
        %3953 = vmatprep.subr.bf16.mxu0 0
        %3954 = vmatpush2.bf16.msra.mxu0 0
        %3955 = vmatprep.subr.bf16.mxu0 0
        %3956 = vmatpush2.bf16.msra.mxu0 0
        %3957 = vmatprep.subr.bf16.mxu0 0
        %3958 = vmatpush2.bf16.msra.mxu0 0
        %3959 = vmatprep.subr.bf16.mxu0 0
        %3960 = vmatpush2.bf16.msra.mxu0 0
        %3961 = vmatprep.mubr.bf16.mxu0 0
        %3962 = vmatmul.mubr.bf16.gmra.mxu0 %v679
        %v3963 = vpop.f32.mrf.mxu0
        %v3964 = vadd.f32 0.0, %v3963
        %v3965 = vpop.f32.mrf.mxu0
        %v3966 = vadd.f32 0.0, %v3965
        %v3967 = vpop.f32.mrf.mxu0
        %v3968 = vadd.f32 0.0, %v3967
        %v3969 = vpop.f32.mrf.mxu0
        %v3970 = vadd.f32 0.0, %v3969
        %3971 = vdwg.mxu0
        %3972 = vmatprep.subr.bf16.mxu0 %v2700
        %3973 = vmatpush1.bf16.msra.mxu0 %v2699
        %3974 = vmatprep.subr.bf16.mxu0 %v2636
        %3975 = vmatpush1.bf16.msra.mxu0 %v2635
        %3976 = vmatprep.subr.bf16.mxu0 %v2572
        %3977 = vmatpush1.bf16.msra.mxu0 %v2571
        %3978 = vmatprep.subr.bf16.mxu0 %v2508
        %3979 = vmatpush1.bf16.msra.mxu0 %v2507
        %3980 = vmatprep.subr.bf16.mxu0 %v2444
        %3981 = vmatpush1.bf16.msra.mxu0 %v2443
        %3982 = vmatprep.subr.bf16.mxu0 %v2380
        %3983 = vmatpush1.bf16.msra.mxu0 %v2379
        %3984 = vmatprep.subr.bf16.mxu0 %v2316
        %3985 = vmatpush1.bf16.msra.mxu0 %v2315
        %3986 = vmatprep.subr.bf16.mxu0 %v2252
        %3987 = vmatpush1.bf16.msra.mxu0 %v2251
        %3988 = vmatprep.subr.bf16.mxu0 0
        %3989 = vmatpush2.bf16.msra.mxu0 0
        %3990 = vmatprep.subr.bf16.mxu0 0
        %3991 = vmatpush2.bf16.msra.mxu0 0
        %3992 = vmatprep.subr.bf16.mxu0 0
        %3993 = vmatpush2.bf16.msra.mxu0 0
        %3994 = vmatprep.subr.bf16.mxu0 0
        %3995 = vmatpush2.bf16.msra.mxu0 0
        %3996 = vmatprep.subr.bf16.mxu0 0
        %3997 = vmatpush2.bf16.msra.mxu0 0
        %3998 = vmatprep.subr.bf16.mxu0 0
        %3999 = vmatpush2.bf16.msra.mxu0 0
        %4000 = vmatprep.subr.bf16.mxu0 0
        %4001 = vmatpush2.bf16.msra.mxu0 0
        %4002 = vmatprep.subr.bf16.mxu0 0
        %4003 = vmatpush2.bf16.msra.mxu0 0
        %4004 = vmatprep.mubr.bf16.mxu0 0
        %4005 = vmatmul.mubr.bf16.gmra.mxu0 %v679
        %v4006 = vpop.f32.mrf.mxu0
        %v4007 = vadd.f32 0.0, %v4006
        %v4008 = vpop.f32.mrf.mxu0
        %v4009 = vadd.f32 0.0, %v4008
        %v4010 = vpop.f32.mrf.mxu0
        %v4011 = vadd.f32 0.0, %v4010
        %v4012 = vpop.f32.mrf.mxu0
        %v4013 = vadd.f32 0.0, %v4012
        %4014 = vdwg.mxu0
        %4015 = vmatprep.subr.bf16.mxu0 %v2702
        %4016 = vmatpush1.bf16.msra.mxu0 %v2701
        %4017 = vmatprep.subr.bf16.mxu0 %v2638
        %4018 = vmatpush1.bf16.msra.mxu0 %v2637
        %4019 = vmatprep.subr.bf16.mxu0 %v2574
        %4020 = vmatpush1.bf16.msra.mxu0 %v2573
        %4021 = vmatprep.subr.bf16.mxu0 %v2510
        %4022 = vmatpush1.bf16.msra.mxu0 %v2509
        %4023 = vmatprep.subr.bf16.mxu0 %v2446
        %4024 = vmatpush1.bf16.msra.mxu0 %v2445
        %4025 = vmatprep.subr.bf16.mxu0 %v2382
        %4026 = vmatpush1.bf16.msra.mxu0 %v2381
        %4027 = vmatprep.subr.bf16.mxu0 %v2318
        %4028 = vmatpush1.bf16.msra.mxu0 %v2317
        %4029 = vmatprep.subr.bf16.mxu0 %v2254
        %4030 = vmatpush1.bf16.msra.mxu0 %v2253
        %4031 = vmatprep.subr.bf16.mxu0 0
        %4032 = vmatpush2.bf16.msra.mxu0 0
        %4033 = vmatprep.subr.bf16.mxu0 0
        %4034 = vmatpush2.bf16.msra.mxu0 0
        %4035 = vmatprep.subr.bf16.mxu0 0
        %4036 = vmatpush2.bf16.msra.mxu0 0
        %4037 = vmatprep.subr.bf16.mxu0 0
        %4038 = vmatpush2.bf16.msra.mxu0 0
        %4039 = vmatprep.subr.bf16.mxu0 0
        %4040 = vmatpush2.bf16.msra.mxu0 0
        %4041 = vmatprep.subr.bf16.mxu0 0
        %4042 = vmatpush2.bf16.msra.mxu0 0
        %4043 = vmatprep.subr.bf16.mxu0 0
        %4044 = vmatpush2.bf16.msra.mxu0 0
        %4045 = vmatprep.subr.bf16.mxu0 0
        %4046 = vmatpush2.bf16.msra.mxu0 0
        %4047 = vmatprep.mubr.bf16.mxu0 0
        %4048 = vmatmul.mubr.bf16.gmra.mxu0 %v679
        %v4049 = vpop.f32.mrf.mxu0
        %v4050 = vadd.f32 0.0, %v4049
        %v4051 = vpop.f32.mrf.mxu0
        %v4052 = vadd.f32 0.0, %v4051
        %v4053 = vpop.f32.mrf.mxu0
        %v4054 = vadd.f32 0.0, %v4053
        %v4055 = vpop.f32.mrf.mxu0
        %v4056 = vadd.f32 0.0, %v4055
        %4057 = vdwg.mxu0
        %4058 = vmatprep.subr.bf16.mxu0 %v2704
        %4059 = vmatpush1.bf16.msra.mxu0 %v2703
        %4060 = vmatprep.subr.bf16.mxu0 %v2640
        %4061 = vmatpush1.bf16.msra.mxu0 %v2639
        %4062 = vmatprep.subr.bf16.mxu0 %v2576
        %4063 = vmatpush1.bf16.msra.mxu0 %v2575
        %4064 = vmatprep.subr.bf16.mxu0 %v2512
        %4065 = vmatpush1.bf16.msra.mxu0 %v2511
        %4066 = vmatprep.subr.bf16.mxu0 %v2448
        %4067 = vmatpush1.bf16.msra.mxu0 %v2447
        %4068 = vmatprep.subr.bf16.mxu0 %v2384
        %4069 = vmatpush1.bf16.msra.mxu0 %v2383
        %4070 = vmatprep.subr.bf16.mxu0 %v2320
        %4071 = vmatpush1.bf16.msra.mxu0 %v2319
        %4072 = vmatprep.subr.bf16.mxu0 %v2256
        %4073 = vmatpush1.bf16.msra.mxu0 %v2255
        %4074 = vmatprep.subr.bf16.mxu0 0
        %4075 = vmatpush2.bf16.msra.mxu0 0
        %4076 = vmatprep.subr.bf16.mxu0 0
        %4077 = vmatpush2.bf16.msra.mxu0 0
        %4078 = vmatprep.subr.bf16.mxu0 0
        %4079 = vmatpush2.bf16.msra.mxu0 0
        %4080 = vmatprep.subr.bf16.mxu0 0
        %4081 = vmatpush2.bf16.msra.mxu0 0
        %4082 = vmatprep.subr.bf16.mxu0 0
        %4083 = vmatpush2.bf16.msra.mxu0 0
        %4084 = vmatprep.subr.bf16.mxu0 0
        %4085 = vmatpush2.bf16.msra.mxu0 0
        %4086 = vmatprep.subr.bf16.mxu0 0
        %4087 = vmatpush2.bf16.msra.mxu0 0
        %4088 = vmatprep.subr.bf16.mxu0 0
        %4089 = vmatpush2.bf16.msra.mxu0 0
        %4090 = vmatprep.mubr.bf16.mxu0 0
        %4091 = vmatmul.mubr.bf16.gmra.mxu0 %v679
        %v4092 = vpop.f32.mrf.mxu0
        %v4093 = vadd.f32 0.0, %v4092
        %v4094 = vpop.f32.mrf.mxu0
        %v4095 = vadd.f32 0.0, %v4094
        %v4096 = vpop.f32.mrf.mxu0
        %v4097 = vadd.f32 0.0, %v4096
        %v4098 = vpop.f32.mrf.mxu0
        %v4099 = vadd.f32 0.0, %v4098
        %4100 = vdwg.mxu0
        %4101 = vmatprep.subr.bf16.mxu0 %v2706
        %4102 = vmatpush1.bf16.msra.mxu0 %v2705
        %4103 = vmatprep.subr.bf16.mxu0 %v2642
        %4104 = vmatpush1.bf16.msra.mxu0 %v2641
        %4105 = vmatprep.subr.bf16.mxu0 %v2578
        %4106 = vmatpush1.bf16.msra.mxu0 %v2577
        %4107 = vmatprep.subr.bf16.mxu0 %v2514
        %4108 = vmatpush1.bf16.msra.mxu0 %v2513
        %4109 = vmatprep.subr.bf16.mxu0 %v2450
        %4110 = vmatpush1.bf16.msra.mxu0 %v2449
        %4111 = vmatprep.subr.bf16.mxu0 %v2386
        %4112 = vmatpush1.bf16.msra.mxu0 %v2385
        %4113 = vmatprep.subr.bf16.mxu0 %v2322
        %4114 = vmatpush1.bf16.msra.mxu0 %v2321
        %4115 = vmatprep.subr.bf16.mxu0 %v2258
        %4116 = vmatpush1.bf16.msra.mxu0 %v2257
        %4117 = vmatprep.subr.bf16.mxu0 0
        %4118 = vmatpush2.bf16.msra.mxu0 0
        %4119 = vmatprep.subr.bf16.mxu0 0
        %4120 = vmatpush2.bf16.msra.mxu0 0
        %4121 = vmatprep.subr.bf16.mxu0 0
        %4122 = vmatpush2.bf16.msra.mxu0 0
        %4123 = vmatprep.subr.bf16.mxu0 0
        %4124 = vmatpush2.bf16.msra.mxu0 0
        %4125 = vmatprep.subr.bf16.mxu0 0
        %4126 = vmatpush2.bf16.msra.mxu0 0
        %4127 = vmatprep.subr.bf16.mxu0 0
        %4128 = vmatpush2.bf16.msra.mxu0 0
        %4129 = vmatprep.subr.bf16.mxu0 0
        %4130 = vmatpush2.bf16.msra.mxu0 0
        %4131 = vmatprep.subr.bf16.mxu0 0
        %4132 = vmatpush2.bf16.msra.mxu0 0
        %4133 = vmatprep.mubr.bf16.mxu0 0
        %4134 = vmatmul.mubr.bf16.gmra.mxu0 %v679
        %v4135 = vpop.f32.mrf.mxu0
        %v4136 = vadd.f32 0.0, %v4135
        %v4137 = vpop.f32.mrf.mxu0
        %v4138 = vadd.f32 0.0, %v4137
        %v4139 = vpop.f32.mrf.mxu0
        %v4140 = vadd.f32 0.0, %v4139
        %v4141 = vpop.f32.mrf.mxu0
        %v4142 = vadd.f32 0.0, %v4141
        %4143 = vdwg.mxu0
        %4144 = vmatprep.subr.bf16.mxu0 %v2708
        %4145 = vmatpush1.bf16.msra.mxu0 %v2707
        %4146 = vmatprep.subr.bf16.mxu0 %v2644
        %4147 = vmatpush1.bf16.msra.mxu0 %v2643
        %4148 = vmatprep.subr.bf16.mxu0 %v2580
        %4149 = vmatpush1.bf16.msra.mxu0 %v2579
        %4150 = vmatprep.subr.bf16.mxu0 %v2516
        %4151 = vmatpush1.bf16.msra.mxu0 %v2515
        %4152 = vmatprep.subr.bf16.mxu0 %v2452
        %4153 = vmatpush1.bf16.msra.mxu0 %v2451
        %4154 = vmatprep.subr.bf16.mxu0 %v2388
        %4155 = vmatpush1.bf16.msra.mxu0 %v2387
        %4156 = vmatprep.subr.bf16.mxu0 %v2324
        %4157 = vmatpush1.bf16.msra.mxu0 %v2323
        %4158 = vmatprep.subr.bf16.mxu0 %v2260
        %4159 = vmatpush1.bf16.msra.mxu0 %v2259
        %4160 = vmatprep.subr.bf16.mxu0 0
        %4161 = vmatpush2.bf16.msra.mxu0 0
        %4162 = vmatprep.subr.bf16.mxu0 0
        %4163 = vmatpush2.bf16.msra.mxu0 0
        %4164 = vmatprep.subr.bf16.mxu0 0
        %4165 = vmatpush2.bf16.msra.mxu0 0
        %4166 = vmatprep.subr.bf16.mxu0 0
        %4167 = vmatpush2.bf16.msra.mxu0 0
        %4168 = vmatprep.subr.bf16.mxu0 0
        %4169 = vmatpush2.bf16.msra.mxu0 0
        %4170 = vmatprep.subr.bf16.mxu0 0
        %4171 = vmatpush2.bf16.msra.mxu0 0
        %4172 = vmatprep.subr.bf16.mxu0 0
        %4173 = vmatpush2.bf16.msra.mxu0 0
        %4174 = vmatprep.subr.bf16.mxu0 0
        %4175 = vmatpush2.bf16.msra.mxu0 0
        %4176 = vmatprep.mubr.bf16.mxu0 0
        %4177 = vmatmul.mubr.bf16.gmra.mxu0 %v679
        %v4178 = vpop.f32.mrf.mxu0
        %v4179 = vadd.f32 0.0, %v4178
        %v4180 = vpop.f32.mrf.mxu0
        %v4181 = vadd.f32 0.0, %v4180
        %v4182 = vpop.f32.mrf.mxu0
        %v4183 = vadd.f32 0.0, %v4182
        %v4184 = vpop.f32.mrf.mxu0
        %v4185 = vadd.f32 0.0, %v4184
        %4186 = vdwg.mxu0
        %4187 = vmatprep.subr.bf16.mxu0 %v2710
        %4188 = vmatpush1.bf16.msra.mxu0 %v2709
        %4189 = vmatprep.subr.bf16.mxu0 %v2646
        %4190 = vmatpush1.bf16.msra.mxu0 %v2645
        %4191 = vmatprep.subr.bf16.mxu0 %v2582
        %4192 = vmatpush1.bf16.msra.mxu0 %v2581
        %4193 = vmatprep.subr.bf16.mxu0 %v2518
        %4194 = vmatpush1.bf16.msra.mxu0 %v2517
        %4195 = vmatprep.subr.bf16.mxu0 %v2454
        %4196 = vmatpush1.bf16.msra.mxu0 %v2453
        %4197 = vmatprep.subr.bf16.mxu0 %v2390
        %4198 = vmatpush1.bf16.msra.mxu0 %v2389
        %4199 = vmatprep.subr.bf16.mxu0 %v2326
        %4200 = vmatpush1.bf16.msra.mxu0 %v2325
        %4201 = vmatprep.subr.bf16.mxu0 %v2262
        %4202 = vmatpush1.bf16.msra.mxu0 %v2261
        %4203 = vmatprep.subr.bf16.mxu0 0
        %4204 = vmatpush2.bf16.msra.mxu0 0
        %4205 = vmatprep.subr.bf16.mxu0 0
        %4206 = vmatpush2.bf16.msra.mxu0 0
        %4207 = vmatprep.subr.bf16.mxu0 0
        %4208 = vmatpush2.bf16.msra.mxu0 0
        %4209 = vmatprep.subr.bf16.mxu0 0
        %4210 = vmatpush2.bf16.msra.mxu0 0
        %4211 = vmatprep.subr.bf16.mxu0 0
        %4212 = vmatpush2.bf16.msra.mxu0 0
        %4213 = vmatprep.subr.bf16.mxu0 0
        %4214 = vmatpush2.bf16.msra.mxu0 0
        %4215 = vmatprep.subr.bf16.mxu0 0
        %4216 = vmatpush2.bf16.msra.mxu0 0
        %4217 = vmatprep.subr.bf16.mxu0 0
        %4218 = vmatpush2.bf16.msra.mxu0 0
        %4219 = vmatprep.mubr.bf16.mxu0 0
        %4220 = vmatmul.mubr.bf16.gmra.mxu0 %v679
        %v4221 = vpop.f32.mrf.mxu0
        %v4222 = vadd.f32 0.0, %v4221
        %v4223 = vpop.f32.mrf.mxu0
        %v4224 = vadd.f32 0.0, %v4223
        %v4225 = vpop.f32.mrf.mxu0
        %v4226 = vadd.f32 0.0, %v4225
        %v4227 = vpop.f32.mrf.mxu0
        %v4228 = vadd.f32 0.0, %v4227
        %4229 = vdwg.mxu0
        %4230 = vmatprep.subr.bf16.mxu0 %v2712
        %4231 = vmatpush1.bf16.msra.mxu0 %v2711
        %4232 = vmatprep.subr.bf16.mxu0 %v2648
        %4233 = vmatpush1.bf16.msra.mxu0 %v2647
        %4234 = vmatprep.subr.bf16.mxu0 %v2584
        %4235 = vmatpush1.bf16.msra.mxu0 %v2583
        %4236 = vmatprep.subr.bf16.mxu0 %v2520
        %4237 = vmatpush1.bf16.msra.mxu0 %v2519
        %4238 = vmatprep.subr.bf16.mxu0 %v2456
        %4239 = vmatpush1.bf16.msra.mxu0 %v2455
        %4240 = vmatprep.subr.bf16.mxu0 %v2392
        %4241 = vmatpush1.bf16.msra.mxu0 %v2391
        %4242 = vmatprep.subr.bf16.mxu0 %v2328
        %4243 = vmatpush1.bf16.msra.mxu0 %v2327
        %4244 = vmatprep.subr.bf16.mxu0 %v2264
        %4245 = vmatpush1.bf16.msra.mxu0 %v2263
        %4246 = vmatprep.subr.bf16.mxu0 0
        %4247 = vmatpush2.bf16.msra.mxu0 0
        %4248 = vmatprep.subr.bf16.mxu0 0
        %4249 = vmatpush2.bf16.msra.mxu0 0
        %4250 = vmatprep.subr.bf16.mxu0 0
        %4251 = vmatpush2.bf16.msra.mxu0 0
        %4252 = vmatprep.subr.bf16.mxu0 0
        %4253 = vmatpush2.bf16.msra.mxu0 0
        %4254 = vmatprep.subr.bf16.mxu0 0
        %4255 = vmatpush2.bf16.msra.mxu0 0
        %4256 = vmatprep.subr.bf16.mxu0 0
        %4257 = vmatpush2.bf16.msra.mxu0 0
        %4258 = vmatprep.subr.bf16.mxu0 0
        %4259 = vmatpush2.bf16.msra.mxu0 0
        %4260 = vmatprep.subr.bf16.mxu0 0
        %4261 = vmatpush2.bf16.msra.mxu0 0
        %4262 = vmatprep.mubr.bf16.mxu0 0
        %4263 = vmatmul.mubr.bf16.gmra.mxu0 %v679
        %v4264 = vpop.f32.mrf.mxu0
        %v4265 = vadd.f32 0.0, %v4264
        %v4266 = vpop.f32.mrf.mxu0
        %v4267 = vadd.f32 0.0, %v4266
        %v4268 = vpop.f32.mrf.mxu0
        %v4269 = vadd.f32 0.0, %v4268
        %v4270 = vpop.f32.mrf.mxu0
        %v4271 = vadd.f32 0.0, %v4270
        %4272 = vdwg.mxu0
        %4273 = vmatprep.subr.bf16.mxu0 %v2714
        %4274 = vmatpush1.bf16.msra.mxu0 %v2713
        %4275 = vmatprep.subr.bf16.mxu0 %v2650
        %4276 = vmatpush1.bf16.msra.mxu0 %v2649
        %4277 = vmatprep.subr.bf16.mxu0 %v2586
        %4278 = vmatpush1.bf16.msra.mxu0 %v2585
        %4279 = vmatprep.subr.bf16.mxu0 %v2522
        %4280 = vmatpush1.bf16.msra.mxu0 %v2521
        %4281 = vmatprep.subr.bf16.mxu0 %v2458
        %4282 = vmatpush1.bf16.msra.mxu0 %v2457
        %4283 = vmatprep.subr.bf16.mxu0 %v2394
        %4284 = vmatpush1.bf16.msra.mxu0 %v2393
        %4285 = vmatprep.subr.bf16.mxu0 %v2330
        %4286 = vmatpush1.bf16.msra.mxu0 %v2329
        %4287 = vmatprep.subr.bf16.mxu0 %v2266
        %4288 = vmatpush1.bf16.msra.mxu0 %v2265
        %4289 = vmatprep.subr.bf16.mxu0 0
        %4290 = vmatpush2.bf16.msra.mxu0 0
        %4291 = vmatprep.subr.bf16.mxu0 0
        %4292 = vmatpush2.bf16.msra.mxu0 0
        %4293 = vmatprep.subr.bf16.mxu0 0
        %4294 = vmatpush2.bf16.msra.mxu0 0
        %4295 = vmatprep.subr.bf16.mxu0 0
        %4296 = vmatpush2.bf16.msra.mxu0 0
        %4297 = vmatprep.subr.bf16.mxu0 0
        %4298 = vmatpush2.bf16.msra.mxu0 0
        %4299 = vmatprep.subr.bf16.mxu0 0
        %4300 = vmatpush2.bf16.msra.mxu0 0
        %4301 = vmatprep.subr.bf16.mxu0 0
        %4302 = vmatpush2.bf16.msra.mxu0 0
        %4303 = vmatprep.subr.bf16.mxu0 0
        %4304 = vmatpush2.bf16.msra.mxu0 0
        %4305 = vmatprep.mubr.bf16.mxu0 0
        %4306 = vmatmul.mubr.bf16.gmra.mxu0 %v679
        %v4307 = vpop.f32.mrf.mxu0
        %v4308 = vadd.f32 0.0, %v4307
        %v4309 = vpop.f32.mrf.mxu0
        %v4310 = vadd.f32 0.0, %v4309
        %v4311 = vpop.f32.mrf.mxu0
        %v4312 = vadd.f32 0.0, %v4311
        %v4313 = vpop.f32.mrf.mxu0
        %v4314 = vadd.f32 0.0, %v4313
        %4315 = vdwg.mxu0
        %4316 = vmatprep.subr.bf16.mxu0 %v2716
        %4317 = vmatpush1.bf16.msra.mxu0 %v2715
        %4318 = vmatprep.subr.bf16.mxu0 %v2652
        %4319 = vmatpush1.bf16.msra.mxu0 %v2651
        %4320 = vmatprep.subr.bf16.mxu0 %v2588
        %4321 = vmatpush1.bf16.msra.mxu0 %v2587
        %4322 = vmatprep.subr.bf16.mxu0 %v2524
        %4323 = vmatpush1.bf16.msra.mxu0 %v2523
        %4324 = vmatprep.subr.bf16.mxu0 %v2460
        %4325 = vmatpush1.bf16.msra.mxu0 %v2459
        %4326 = vmatprep.subr.bf16.mxu0 %v2396
        %4327 = vmatpush1.bf16.msra.mxu0 %v2395
        %4328 = vmatprep.subr.bf16.mxu0 %v2332
        %4329 = vmatpush1.bf16.msra.mxu0 %v2331
        %4330 = vmatprep.subr.bf16.mxu0 %v2268
        %4331 = vmatpush1.bf16.msra.mxu0 %v2267
        %4332 = vmatprep.subr.bf16.mxu0 0
        %4333 = vmatpush2.bf16.msra.mxu0 0
        %4334 = vmatprep.subr.bf16.mxu0 0
        %4335 = vmatpush2.bf16.msra.mxu0 0
        %4336 = vmatprep.subr.bf16.mxu0 0
        %4337 = vmatpush2.bf16.msra.mxu0 0
        %4338 = vmatprep.subr.bf16.mxu0 0
        %4339 = vmatpush2.bf16.msra.mxu0 0
        %4340 = vmatprep.subr.bf16.mxu0 0
        %4341 = vmatpush2.bf16.msra.mxu0 0
        %4342 = vmatprep.subr.bf16.mxu0 0
        %4343 = vmatpush2.bf16.msra.mxu0 0
        %4344 = vmatprep.subr.bf16.mxu0 0
        %4345 = vmatpush2.bf16.msra.mxu0 0
        %4346 = vmatprep.subr.bf16.mxu0 0
        %4347 = vmatpush2.bf16.msra.mxu0 0
        %4348 = vmatprep.mubr.bf16.mxu0 0
        %4349 = vmatmul.mubr.bf16.gmra.mxu0 %v679
        %v4350 = vpop.f32.mrf.mxu0
        %v4351 = vadd.f32 0.0, %v4350
        %v4352 = vpop.f32.mrf.mxu0
        %v4353 = vadd.f32 0.0, %v4352
        %v4354 = vpop.f32.mrf.mxu0
        %v4355 = vadd.f32 0.0, %v4354
        %v4356 = vpop.f32.mrf.mxu0
        %v4357 = vadd.f32 0.0, %v4356
        %4358 = vdwg.mxu0
        %4359 = vmatprep.subr.bf16.mxu0 %v2718
        %4360 = vmatpush1.bf16.msra.mxu0 %v2717
        %4361 = vmatprep.subr.bf16.mxu0 %v2654
        %4362 = vmatpush1.bf16.msra.mxu0 %v2653
        %4363 = vmatprep.subr.bf16.mxu0 %v2590
        %4364 = vmatpush1.bf16.msra.mxu0 %v2589
        %4365 = vmatprep.subr.bf16.mxu0 %v2526
        %4366 = vmatpush1.bf16.msra.mxu0 %v2525
        %4367 = vmatprep.subr.bf16.mxu0 %v2462
        %4368 = vmatpush1.bf16.msra.mxu0 %v2461
        %4369 = vmatprep.subr.bf16.mxu0 %v2398
        %4370 = vmatpush1.bf16.msra.mxu0 %v2397
        %4371 = vmatprep.subr.bf16.mxu0 %v2334
        %4372 = vmatpush1.bf16.msra.mxu0 %v2333
        %4373 = vmatprep.subr.bf16.mxu0 %v2270
        %4374 = vmatpush1.bf16.msra.mxu0 %v2269
        %4375 = vmatprep.subr.bf16.mxu0 0
        %4376 = vmatpush2.bf16.msra.mxu0 0
        %4377 = vmatprep.subr.bf16.mxu0 0
        %4378 = vmatpush2.bf16.msra.mxu0 0
        %4379 = vmatprep.subr.bf16.mxu0 0
        %4380 = vmatpush2.bf16.msra.mxu0 0
        %4381 = vmatprep.subr.bf16.mxu0 0
        %4382 = vmatpush2.bf16.msra.mxu0 0
        %4383 = vmatprep.subr.bf16.mxu0 0
        %4384 = vmatpush2.bf16.msra.mxu0 0
        %4385 = vmatprep.subr.bf16.mxu0 0
        %4386 = vmatpush2.bf16.msra.mxu0 0
        %4387 = vmatprep.subr.bf16.mxu0 0
        %4388 = vmatpush2.bf16.msra.mxu0 0
        %4389 = vmatprep.subr.bf16.mxu0 0
        %4390 = vmatpush2.bf16.msra.mxu0 0
        %4391 = vmatprep.mubr.bf16.mxu0 0
        %4392 = vmatmul.mubr.bf16.gmra.mxu0 %v679
        %v4393 = vpop.f32.mrf.mxu0
        %v4394 = vadd.f32 0.0, %v4393
        %v4395 = vpop.f32.mrf.mxu0
        %v4396 = vadd.f32 0.0, %v4395
        %v4397 = vpop.f32.mrf.mxu0
        %v4398 = vadd.f32 0.0, %v4397
        %v4399 = vpop.f32.mrf.mxu0
        %v4400 = vadd.f32 0.0, %v4399
        %4401 = vdwg.mxu0
        %4402 = vmatprep.subr.bf16.mxu0 %v2720
        %4403 = vmatpush1.bf16.msra.mxu0 %v2719
        %4404 = vmatprep.subr.bf16.mxu0 %v2656
        %4405 = vmatpush1.bf16.msra.mxu0 %v2655
        %4406 = vmatprep.subr.bf16.mxu0 %v2592
        %4407 = vmatpush1.bf16.msra.mxu0 %v2591
        %4408 = vmatprep.subr.bf16.mxu0 %v2528
        %4409 = vmatpush1.bf16.msra.mxu0 %v2527
        %4410 = vmatprep.subr.bf16.mxu0 %v2464
        %4411 = vmatpush1.bf16.msra.mxu0 %v2463
        %4412 = vmatprep.subr.bf16.mxu0 %v2400
        %4413 = vmatpush1.bf16.msra.mxu0 %v2399
        %4414 = vmatprep.subr.bf16.mxu0 %v2336
        %4415 = vmatpush1.bf16.msra.mxu0 %v2335
        %4416 = vmatprep.subr.bf16.mxu0 %v2272
        %4417 = vmatpush1.bf16.msra.mxu0 %v2271
        %4418 = vmatprep.subr.bf16.mxu0 0
        %4419 = vmatpush2.bf16.msra.mxu0 0
        %4420 = vmatprep.subr.bf16.mxu0 0
        %4421 = vmatpush2.bf16.msra.mxu0 0
        %4422 = vmatprep.subr.bf16.mxu0 0
        %4423 = vmatpush2.bf16.msra.mxu0 0
        %4424 = vmatprep.subr.bf16.mxu0 0
        %4425 = vmatpush2.bf16.msra.mxu0 0
        %4426 = vmatprep.subr.bf16.mxu0 0
        %4427 = vmatpush2.bf16.msra.mxu0 0
        %4428 = vmatprep.subr.bf16.mxu0 0
        %4429 = vmatpush2.bf16.msra.mxu0 0
        %4430 = vmatprep.subr.bf16.mxu0 0
        %4431 = vmatpush2.bf16.msra.mxu0 0
        %4432 = vmatprep.subr.bf16.mxu0 0
        %4433 = vmatpush2.bf16.msra.mxu0 0
        %4434 = vmatprep.mubr.bf16.mxu0 0
        %4435 = vmatmul.mubr.bf16.gmra.mxu0 %v679
        %v4436 = vpop.f32.mrf.mxu0
        %v4437 = vadd.f32 0.0, %v4436
        %v4438 = vpop.f32.mrf.mxu0
        %v4439 = vadd.f32 0.0, %v4438
        %v4440 = vpop.f32.mrf.mxu0
        %v4441 = vadd.f32 0.0, %v4440
        %v4442 = vpop.f32.mrf.mxu0
        %v4443 = vadd.f32 0.0, %v4442
        %4444 = vdwg.mxu0
        %4445 = vmatprep.subr.bf16.mxu0 %v2722
        %4446 = vmatpush1.bf16.msra.mxu0 %v2721
        %4447 = vmatprep.subr.bf16.mxu0 %v2658
        %4448 = vmatpush1.bf16.msra.mxu0 %v2657
        %4449 = vmatprep.subr.bf16.mxu0 %v2594
        %4450 = vmatpush1.bf16.msra.mxu0 %v2593
        %4451 = vmatprep.subr.bf16.mxu0 %v2530
        %4452 = vmatpush1.bf16.msra.mxu0 %v2529
        %4453 = vmatprep.subr.bf16.mxu0 %v2466
        %4454 = vmatpush1.bf16.msra.mxu0 %v2465
        %4455 = vmatprep.subr.bf16.mxu0 %v2402
        %4456 = vmatpush1.bf16.msra.mxu0 %v2401
        %4457 = vmatprep.subr.bf16.mxu0 %v2338
        %4458 = vmatpush1.bf16.msra.mxu0 %v2337
        %4459 = vmatprep.subr.bf16.mxu0 %v2274
        %4460 = vmatpush1.bf16.msra.mxu0 %v2273
        %4461 = vmatprep.subr.bf16.mxu0 0
        %4462 = vmatpush2.bf16.msra.mxu0 0
        %4463 = vmatprep.subr.bf16.mxu0 0
        %4464 = vmatpush2.bf16.msra.mxu0 0
        %4465 = vmatprep.subr.bf16.mxu0 0
        %4466 = vmatpush2.bf16.msra.mxu0 0
        %4467 = vmatprep.subr.bf16.mxu0 0
        %4468 = vmatpush2.bf16.msra.mxu0 0
        %4469 = vmatprep.subr.bf16.mxu0 0
        %4470 = vmatpush2.bf16.msra.mxu0 0
        %4471 = vmatprep.subr.bf16.mxu0 0
        %4472 = vmatpush2.bf16.msra.mxu0 0
        %4473 = vmatprep.subr.bf16.mxu0 0
        %4474 = vmatpush2.bf16.msra.mxu0 0
        %4475 = vmatprep.subr.bf16.mxu0 0
        %4476 = vmatpush2.bf16.msra.mxu0 0
        %4477 = vmatprep.mubr.bf16.mxu0 0
        %4478 = vmatmul.mubr.bf16.gmra.mxu0 %v679
        %v4479 = vpop.f32.mrf.mxu0
        %v4480 = vadd.f32 0.0, %v4479
        %v4481 = vpop.f32.mrf.mxu0
        %v4482 = vadd.f32 0.0, %v4481
        %v4483 = vpop.f32.mrf.mxu0
        %v4484 = vadd.f32 0.0, %v4483
        %v4485 = vpop.f32.mrf.mxu0
        %v4486 = vadd.f32 0.0, %v4485
        %4487 = vdwg.mxu0
        %4488 = vmatprep.subr.bf16.mxu0 %v2724
        %4489 = vmatpush1.bf16.msra.mxu0 %v2723
        %4490 = vmatprep.subr.bf16.mxu0 %v2660
        %4491 = vmatpush1.bf16.msra.mxu0 %v2659
        %4492 = vmatprep.subr.bf16.mxu0 %v2596
        %4493 = vmatpush1.bf16.msra.mxu0 %v2595
        %4494 = vmatprep.subr.bf16.mxu0 %v2532
        %4495 = vmatpush1.bf16.msra.mxu0 %v2531
        %4496 = vmatprep.subr.bf16.mxu0 %v2468
        %4497 = vmatpush1.bf16.msra.mxu0 %v2467
        %4498 = vmatprep.subr.bf16.mxu0 %v2404
        %4499 = vmatpush1.bf16.msra.mxu0 %v2403
        %4500 = vmatprep.subr.bf16.mxu0 %v2340
        %4501 = vmatpush1.bf16.msra.mxu0 %v2339
        %4502 = vmatprep.subr.bf16.mxu0 %v2276
        %4503 = vmatpush1.bf16.msra.mxu0 %v2275
        %4504 = vmatprep.subr.bf16.mxu0 0
        %4505 = vmatpush2.bf16.msra.mxu0 0
        %4506 = vmatprep.subr.bf16.mxu0 0
        %4507 = vmatpush2.bf16.msra.mxu0 0
        %4508 = vmatprep.subr.bf16.mxu0 0
        %4509 = vmatpush2.bf16.msra.mxu0 0
        %4510 = vmatprep.subr.bf16.mxu0 0
        %4511 = vmatpush2.bf16.msra.mxu0 0
        %4512 = vmatprep.subr.bf16.mxu0 0
        %4513 = vmatpush2.bf16.msra.mxu0 0
        %4514 = vmatprep.subr.bf16.mxu0 0
        %4515 = vmatpush2.bf16.msra.mxu0 0
        %4516 = vmatprep.subr.bf16.mxu0 0
        %4517 = vmatpush2.bf16.msra.mxu0 0
        %4518 = vmatprep.subr.bf16.mxu0 0
        %4519 = vmatpush2.bf16.msra.mxu0 0
        %4520 = vmatprep.mubr.bf16.mxu0 0
        %4521 = vmatmul.mubr.bf16.gmra.mxu0 %v679
        %v4522 = vpop.f32.mrf.mxu0
        %v4523 = vadd.f32 0.0, %v4522
        %v4524 = vpop.f32.mrf.mxu0
        %v4525 = vadd.f32 0.0, %v4524
        %v4526 = vpop.f32.mrf.mxu0
        %v4527 = vadd.f32 0.0, %v4526
        %v4528 = vpop.f32.mrf.mxu0
        %v4529 = vadd.f32 0.0, %v4528
        %4530 = vdwg.mxu0
        %4531 = vmatprep.subr.bf16.mxu0 %v2726
        %4532 = vmatpush1.bf16.msra.mxu0 %v2725
        %4533 = vmatprep.subr.bf16.mxu0 %v2662
        %4534 = vmatpush1.bf16.msra.mxu0 %v2661
        %4535 = vmatprep.subr.bf16.mxu0 %v2598
        %4536 = vmatpush1.bf16.msra.mxu0 %v2597
        %4537 = vmatprep.subr.bf16.mxu0 %v2534
        %4538 = vmatpush1.bf16.msra.mxu0 %v2533
        %4539 = vmatprep.subr.bf16.mxu0 %v2470
        %4540 = vmatpush1.bf16.msra.mxu0 %v2469
        %4541 = vmatprep.subr.bf16.mxu0 %v2406
        %4542 = vmatpush1.bf16.msra.mxu0 %v2405
        %4543 = vmatprep.subr.bf16.mxu0 %v2342
        %4544 = vmatpush1.bf16.msra.mxu0 %v2341
        %4545 = vmatprep.subr.bf16.mxu0 %v2278
        %4546 = vmatpush1.bf16.msra.mxu0 %v2277
        %4547 = vmatprep.subr.bf16.mxu0 0
        %4548 = vmatpush2.bf16.msra.mxu0 0
        %4549 = vmatprep.subr.bf16.mxu0 0
        %4550 = vmatpush2.bf16.msra.mxu0 0
        %4551 = vmatprep.subr.bf16.mxu0 0
        %4552 = vmatpush2.bf16.msra.mxu0 0
        %4553 = vmatprep.subr.bf16.mxu0 0
        %4554 = vmatpush2.bf16.msra.mxu0 0
        %4555 = vmatprep.subr.bf16.mxu0 0
        %4556 = vmatpush2.bf16.msra.mxu0 0
        %4557 = vmatprep.subr.bf16.mxu0 0
        %4558 = vmatpush2.bf16.msra.mxu0 0
        %4559 = vmatprep.subr.bf16.mxu0 0
        %4560 = vmatpush2.bf16.msra.mxu0 0
        %4561 = vmatprep.subr.bf16.mxu0 0
        %4562 = vmatpush2.bf16.msra.mxu0 0
        %4563 = vmatprep.mubr.bf16.mxu0 0
        %4564 = vmatmul.mubr.bf16.gmra.mxu0 %v679
        %v4565 = vpop.f32.mrf.mxu0
        %v4566 = vadd.f32 0.0, %v4565
        %v4567 = vpop.f32.mrf.mxu0
        %v4568 = vadd.f32 0.0, %v4567
        %v4569 = vpop.f32.mrf.mxu0
        %v4570 = vadd.f32 0.0, %v4569
        %v4571 = vpop.f32.mrf.mxu0
        %v4572 = vadd.f32 0.0, %v4571
        %4573 = vdwg.mxu0
        %4574 = vmatprep.subr.bf16.mxu0 %v2728
        %4575 = vmatpush1.bf16.msra.mxu0 %v2727
        %4576 = vmatprep.subr.bf16.mxu0 %v2664
        %4577 = vmatpush1.bf16.msra.mxu0 %v2663
        %4578 = vmatprep.subr.bf16.mxu0 %v2600
        %4579 = vmatpush1.bf16.msra.mxu0 %v2599
        %4580 = vmatprep.subr.bf16.mxu0 %v2536
        %4581 = vmatpush1.bf16.msra.mxu0 %v2535
        %4582 = vmatprep.subr.bf16.mxu0 %v2472
        %4583 = vmatpush1.bf16.msra.mxu0 %v2471
        %4584 = vmatprep.subr.bf16.mxu0 %v2408
        %4585 = vmatpush1.bf16.msra.mxu0 %v2407
        %4586 = vmatprep.subr.bf16.mxu0 %v2344
        %4587 = vmatpush1.bf16.msra.mxu0 %v2343
        %4588 = vmatprep.subr.bf16.mxu0 %v2280
        %4589 = vmatpush1.bf16.msra.mxu0 %v2279
        %4590 = vmatprep.subr.bf16.mxu0 0
        %4591 = vmatpush2.bf16.msra.mxu0 0
        %4592 = vmatprep.subr.bf16.mxu0 0
        %4593 = vmatpush2.bf16.msra.mxu0 0
        %4594 = vmatprep.subr.bf16.mxu0 0
        %4595 = vmatpush2.bf16.msra.mxu0 0
        %4596 = vmatprep.subr.bf16.mxu0 0
        %4597 = vmatpush2.bf16.msra.mxu0 0
        %4598 = vmatprep.subr.bf16.mxu0 0
        %4599 = vmatpush2.bf16.msra.mxu0 0
        %4600 = vmatprep.subr.bf16.mxu0 0
        %4601 = vmatpush2.bf16.msra.mxu0 0
        %4602 = vmatprep.subr.bf16.mxu0 0
        %4603 = vmatpush2.bf16.msra.mxu0 0
        %4604 = vmatprep.subr.bf16.mxu0 0
        %4605 = vmatpush2.bf16.msra.mxu0 0
        %4606 = vmatprep.mubr.bf16.mxu0 0
        %4607 = vmatmul.mubr.bf16.gmra.mxu0 %v679
        %v4608 = vpop.f32.mrf.mxu0
        %v4609 = vadd.f32 0.0, %v4608
        %v4610 = vpop.f32.mrf.mxu0
        %v4611 = vadd.f32 0.0, %v4610
        %v4612 = vpop.f32.mrf.mxu0
        %v4613 = vadd.f32 0.0, %v4612
        %v4614 = vpop.f32.mrf.mxu0
        %v4615 = vadd.f32 0.0, %v4614
        %4616 = vdwg.mxu0
        %v4617 = vpack.c.bf16 %v3280, %v3276
        %v4618 = vpack.c.bf16 %v3282, %v3278
        %v4619 = vpack.c.bf16 %v3323, %v3319
        %v4620 = vpack.c.bf16 %v3325, %v3321
        %v4621 = vpack.c.bf16 %v3366, %v3362
        %v4622 = vpack.c.bf16 %v3368, %v3364
        %v4623 = vpack.c.bf16 %v3409, %v3405
        %v4624 = vpack.c.bf16 %v3411, %v3407
        %v4625 = vpack.c.bf16 %v3452, %v3448
        %v4626 = vpack.c.bf16 %v3454, %v3450
        %v4627 = vpack.c.bf16 %v3495, %v3491
        %v4628 = vpack.c.bf16 %v3497, %v3493
        %v4629 = vpack.c.bf16 %v3538, %v3534
        %v4630 = vpack.c.bf16 %v3540, %v3536
        %v4631 = vpack.c.bf16 %v3581, %v3577
        %v4632 = vpack.c.bf16 %v3583, %v3579
        %v4633 = vpack.c.bf16 %v3624, %v3620
        %v4634 = vpack.c.bf16 %v3626, %v3622
        %v4635 = vpack.c.bf16 %v3667, %v3663
        %v4636 = vpack.c.bf16 %v3669, %v3665
        %v4637 = vpack.c.bf16 %v3710, %v3706
        %v4638 = vpack.c.bf16 %v3712, %v3708
        %v4639 = vpack.c.bf16 %v3753, %v3749
        %v4640 = vpack.c.bf16 %v3755, %v3751
        %v4641 = vpack.c.bf16 %v3796, %v3792
        %v4642 = vpack.c.bf16 %v3798, %v3794
        %v4643 = vpack.c.bf16 %v3839, %v3835
        %v4644 = vpack.c.bf16 %v3841, %v3837
        %v4645 = vpack.c.bf16 %v3882, %v3878
        %v4646 = vpack.c.bf16 %v3884, %v3880
        %v4647 = vpack.c.bf16 %v3925, %v3921
        %v4648 = vpack.c.bf16 %v3927, %v3923
        %v4649 = vpack.c.bf16 %v3968, %v3964
        %v4650 = vpack.c.bf16 %v3970, %v3966
        %v4651 = vpack.c.bf16 %v4011, %v4007
        %v4652 = vpack.c.bf16 %v4013, %v4009
        %v4653 = vpack.c.bf16 %v4054, %v4050
        %v4654 = vpack.c.bf16 %v4056, %v4052
        %v4655 = vpack.c.bf16 %v4097, %v4093
        %v4656 = vpack.c.bf16 %v4099, %v4095
        %v4657 = vpack.c.bf16 %v4140, %v4136
        %v4658 = vpack.c.bf16 %v4142, %v4138
        %v4659 = vpack.c.bf16 %v4183, %v4179
        %v4660 = vpack.c.bf16 %v4185, %v4181
        %v4661 = vpack.c.bf16 %v4226, %v4222
        %v4662 = vpack.c.bf16 %v4228, %v4224
        %v4663 = vpack.c.bf16 %v4269, %v4265
        %v4664 = vpack.c.bf16 %v4271, %v4267
        %v4665 = vpack.c.bf16 %v4312, %v4308
        %v4666 = vpack.c.bf16 %v4314, %v4310
        %v4667 = vpack.c.bf16 %v4355, %v4351
        %v4668 = vpack.c.bf16 %v4357, %v4353
        %v4669 = vpack.c.bf16 %v4398, %v4394
        %v4670 = vpack.c.bf16 %v4400, %v4396
        %v4671 = vpack.c.bf16 %v4441, %v4437
        %v4672 = vpack.c.bf16 %v4443, %v4439
        %v4673 = vpack.c.bf16 %v4484, %v4480
        %v4674 = vpack.c.bf16 %v4486, %v4482
        %v4675 = vpack.c.bf16 %v4527, %v4523
        %v4676 = vpack.c.bf16 %v4529, %v4525
        %v4677 = vpack.c.bf16 %v4570, %v4566
        %v4678 = vpack.c.bf16 %v4572, %v4568
        %v4679 = vpack.c.bf16 %v4613, %v4609
        %v4680 = vpack.c.bf16 %v4615, %v4611
        %v4745 = vunpack.c.l.b16 %v4617
        %v4746 = vunpack.c.l.b16 %v4618
        %v4747 = vunpack.c.l.b16 %v4619
        %v4748 = vunpack.c.l.b16 %v4620
        %v4749 = vunpack.c.l.b16 %v4621
        %v4750 = vunpack.c.l.b16 %v4622
        %v4751 = vunpack.c.l.b16 %v4623
        %v4752 = vunpack.c.l.b16 %v4624
        %v4753 = vunpack.c.l.b16 %v4625
        %v4754 = vunpack.c.l.b16 %v4626
        %v4755 = vunpack.c.l.b16 %v4627
        %v4756 = vunpack.c.l.b16 %v4628
        %v4757 = vunpack.c.l.b16 %v4629
        %v4758 = vunpack.c.l.b16 %v4630
        %v4759 = vunpack.c.l.b16 %v4631
        %v4760 = vunpack.c.l.b16 %v4632
        %v4761 = vunpack.c.l.b16 %v4633
        %v4762 = vunpack.c.l.b16 %v4634
        %v4763 = vunpack.c.l.b16 %v4635
        %v4764 = vunpack.c.l.b16 %v4636
        %v4765 = vunpack.c.l.b16 %v4637
        %v4766 = vunpack.c.l.b16 %v4638
        %v4767 = vunpack.c.l.b16 %v4639
        %v4768 = vunpack.c.l.b16 %v4640
        %v4769 = vunpack.c.l.b16 %v4641
        %v4770 = vunpack.c.l.b16 %v4642
        %v4771 = vunpack.c.l.b16 %v4643
        %v4772 = vunpack.c.l.b16 %v4644
        %v4773 = vunpack.c.l.b16 %v4645
        %v4774 = vunpack.c.l.b16 %v4646
        %v4775 = vunpack.c.l.b16 %v4647
        %v4776 = vunpack.c.l.b16 %v4648
        %v4777 = vunpack.c.l.b16 %v4649
        %v4778 = vunpack.c.l.b16 %v4650
        %v4779 = vunpack.c.l.b16 %v4651
        %v4780 = vunpack.c.l.b16 %v4652
        %v4781 = vunpack.c.l.b16 %v4653
        %v4782 = vunpack.c.l.b16 %v4654
        %v4783 = vunpack.c.l.b16 %v4655
        %v4784 = vunpack.c.l.b16 %v4656
        %v4785 = vunpack.c.l.b16 %v4657
        %v4786 = vunpack.c.l.b16 %v4658
        %v4787 = vunpack.c.l.b16 %v4659
        %v4788 = vunpack.c.l.b16 %v4660
        %v4789 = vunpack.c.l.b16 %v4661
        %v4790 = vunpack.c.l.b16 %v4662
        %v4791 = vunpack.c.l.b16 %v4663
        %v4792 = vunpack.c.l.b16 %v4664
        %v4793 = vunpack.c.l.b16 %v4665
        %v4794 = vunpack.c.l.b16 %v4666
        %v4795 = vunpack.c.l.b16 %v4667
        %v4796 = vunpack.c.l.b16 %v4668
        %v4797 = vunpack.c.l.b16 %v4669
        %v4798 = vunpack.c.l.b16 %v4670
        %v4799 = vunpack.c.l.b16 %v4671
        %v4800 = vunpack.c.l.b16 %v4672
        %v4801 = vunpack.c.l.b16 %v4673
        %v4802 = vunpack.c.l.b16 %v4674
        %v4803 = vunpack.c.l.b16 %v4675
        %v4804 = vunpack.c.l.b16 %v4676
        %v4805 = vunpack.c.l.b16 %v4677
        %v4806 = vunpack.c.l.b16 %v4678
        %v4807 = vunpack.c.l.b16 %v4679
        %v4808 = vunpack.c.l.b16 %v4680
        %v4809 = vunpack.c.h.b16 %v4617
        %v4810 = vunpack.c.h.b16 %v4618
        %v4811 = vunpack.c.h.b16 %v4619
        %v4812 = vunpack.c.h.b16 %v4620
        %v4813 = vunpack.c.h.b16 %v4621
        %v4814 = vunpack.c.h.b16 %v4622
        %v4815 = vunpack.c.h.b16 %v4623
        %v4816 = vunpack.c.h.b16 %v4624
        %v4817 = vunpack.c.h.b16 %v4625
        %v4818 = vunpack.c.h.b16 %v4626
        %v4819 = vunpack.c.h.b16 %v4627
        %v4820 = vunpack.c.h.b16 %v4628
        %v4821 = vunpack.c.h.b16 %v4629
        %v4822 = vunpack.c.h.b16 %v4630
        %v4823 = vunpack.c.h.b16 %v4631
        %v4824 = vunpack.c.h.b16 %v4632
        %v4825 = vunpack.c.h.b16 %v4633
        %v4826 = vunpack.c.h.b16 %v4634
        %v4827 = vunpack.c.h.b16 %v4635
        %v4828 = vunpack.c.h.b16 %v4636
        %v4829 = vunpack.c.h.b16 %v4637
        %v4830 = vunpack.c.h.b16 %v4638
        %v4831 = vunpack.c.h.b16 %v4639
        %v4832 = vunpack.c.h.b16 %v4640
        %v4833 = vunpack.c.h.b16 %v4641
        %v4834 = vunpack.c.h.b16 %v4642
        %v4835 = vunpack.c.h.b16 %v4643
        %v4836 = vunpack.c.h.b16 %v4644
        %v4837 = vunpack.c.h.b16 %v4645
        %v4838 = vunpack.c.h.b16 %v4646
        %v4839 = vunpack.c.h.b16 %v4647
        %v4840 = vunpack.c.h.b16 %v4648
        %v4841 = vunpack.c.h.b16 %v4649
        %v4842 = vunpack.c.h.b16 %v4650
        %v4843 = vunpack.c.h.b16 %v4651
        %v4844 = vunpack.c.h.b16 %v4652
        %v4845 = vunpack.c.h.b16 %v4653
        %v4846 = vunpack.c.h.b16 %v4654
        %v4847 = vunpack.c.h.b16 %v4655
        %v4848 = vunpack.c.h.b16 %v4656
        %v4849 = vunpack.c.h.b16 %v4657
        %v4850 = vunpack.c.h.b16 %v4658
        %v4851 = vunpack.c.h.b16 %v4659
        %v4852 = vunpack.c.h.b16 %v4660
        %v4853 = vunpack.c.h.b16 %v4661
        %v4854 = vunpack.c.h.b16 %v4662
        %v4855 = vunpack.c.h.b16 %v4663
        %v4856 = vunpack.c.h.b16 %v4664
        %v4857 = vunpack.c.h.b16 %v4665
        %v4858 = vunpack.c.h.b16 %v4666
        %v4859 = vunpack.c.h.b16 %v4667
        %v4860 = vunpack.c.h.b16 %v4668
        %v4861 = vunpack.c.h.b16 %v4669
        %v4862 = vunpack.c.h.b16 %v4670
        %v4863 = vunpack.c.h.b16 %v4671
        %v4864 = vunpack.c.h.b16 %v4672
        %v4865 = vunpack.c.h.b16 %v4673
        %v4866 = vunpack.c.h.b16 %v4674
        %v4867 = vunpack.c.h.b16 %v4675
        %v4868 = vunpack.c.h.b16 %v4676
        %v4869 = vunpack.c.h.b16 %v4677
        %v4870 = vunpack.c.h.b16 %v4678
        %v4871 = vunpack.c.h.b16 %v4679
        %v4872 = vunpack.c.h.b16 %v4680
        %v4873 = vpack.c.b16 %v4746, %v4745
        %v4874 = vpack.c.b16 %v4748, %v4747
        %v4875 = vpack.c.b16 %v4750, %v4749
        %v4876 = vpack.c.b16 %v4752, %v4751
        %v4877 = vpack.c.b16 %v4754, %v4753
        %v4878 = vpack.c.b16 %v4756, %v4755
        %v4879 = vpack.c.b16 %v4758, %v4757
        %v4880 = vpack.c.b16 %v4760, %v4759
        %v4881 = vpack.c.b16 %v4762, %v4761
        %v4882 = vpack.c.b16 %v4764, %v4763
        %v4883 = vpack.c.b16 %v4766, %v4765
        %v4884 = vpack.c.b16 %v4768, %v4767
        %v4885 = vpack.c.b16 %v4770, %v4769
        %v4886 = vpack.c.b16 %v4772, %v4771
        %v4887 = vpack.c.b16 %v4774, %v4773
        %v4888 = vpack.c.b16 %v4776, %v4775
        %v4889 = vpack.c.b16 %v4778, %v4777
        %v4890 = vpack.c.b16 %v4780, %v4779
        %v4891 = vpack.c.b16 %v4782, %v4781
        %v4892 = vpack.c.b16 %v4784, %v4783
        %v4893 = vpack.c.b16 %v4786, %v4785
        %v4894 = vpack.c.b16 %v4788, %v4787
        %v4895 = vpack.c.b16 %v4790, %v4789
        %v4896 = vpack.c.b16 %v4792, %v4791
        %v4897 = vpack.c.b16 %v4794, %v4793
        %v4898 = vpack.c.b16 %v4796, %v4795
        %v4899 = vpack.c.b16 %v4798, %v4797
        %v4900 = vpack.c.b16 %v4800, %v4799
        %v4901 = vpack.c.b16 %v4802, %v4801
        %v4902 = vpack.c.b16 %v4804, %v4803
        %v4903 = vpack.c.b16 %v4806, %v4805
        %v4904 = vpack.c.b16 %v4808, %v4807
        %v4905 = vpack.c.b16 %v4810, %v4809
        %v4906 = vpack.c.b16 %v4812, %v4811
        %v4907 = vpack.c.b16 %v4814, %v4813
        %v4908 = vpack.c.b16 %v4816, %v4815
        %v4909 = vpack.c.b16 %v4818, %v4817
        %v4910 = vpack.c.b16 %v4820, %v4819
        %v4911 = vpack.c.b16 %v4822, %v4821
        %v4912 = vpack.c.b16 %v4824, %v4823
        %v4913 = vpack.c.b16 %v4826, %v4825
        %v4914 = vpack.c.b16 %v4828, %v4827
        %v4915 = vpack.c.b16 %v4830, %v4829
        %v4916 = vpack.c.b16 %v4832, %v4831
        %v4917 = vpack.c.b16 %v4834, %v4833
        %v4918 = vpack.c.b16 %v4836, %v4835
        %v4919 = vpack.c.b16 %v4838, %v4837
        %v4920 = vpack.c.b16 %v4840, %v4839
        %v4921 = vpack.c.b16 %v4842, %v4841
        %v4922 = vpack.c.b16 %v4844, %v4843
        %v4923 = vpack.c.b16 %v4846, %v4845
        %v4924 = vpack.c.b16 %v4848, %v4847
        %v4925 = vpack.c.b16 %v4850, %v4849
        %v4926 = vpack.c.b16 %v4852, %v4851
        %v4927 = vpack.c.b16 %v4854, %v4853
        %v4928 = vpack.c.b16 %v4856, %v4855
        %v4929 = vpack.c.b16 %v4858, %v4857
        %v4930 = vpack.c.b16 %v4860, %v4859
        %v4931 = vpack.c.b16 %v4862, %v4861
        %v4932 = vpack.c.b16 %v4864, %v4863
        %v4933 = vpack.c.b16 %v4866, %v4865
        %v4934 = vpack.c.b16 %v4868, %v4867
        %v4935 = vpack.c.b16 %v4870, %v4869
        %v4936 = vpack.c.b16 %v4872, %v4871
        %5001 = vst [vmem:[%s157] sm:$0xff] %v4873
        %5002 = vst [vmem:[%s157 + $0x8] sm:$0xff] %v4874
        %5003 = vst [vmem:[%s157 + $0x10] sm:$0xff] %v4875
        %5004 = vst [vmem:[%s157 + $0x18] sm:$0xff] %v4876
        %5005 = vst [vmem:[%s157 + $0x20] sm:$0xff] %v4877
        %5006 = vst [vmem:[%s157 + $0x28] sm:$0xff] %v4878
        %5007 = vst [vmem:[%s157 + $0x30] sm:$0xff] %v4879
        %5008 = vst [vmem:[%s157 + $0x38] sm:$0xff] %v4880
        %5009 = vst [vmem:[%s157 + $0x40] sm:$0xff] %v4881
        %5010 = vst [vmem:[%s157 + $0x48] sm:$0xff] %v4882
        %5011 = vst [vmem:[%s157 + $0x50] sm:$0xff] %v4883
        %5012 = vst [vmem:[%s157 + $0x58] sm:$0xff] %v4884
        %5013 = vst [vmem:[%s157 + $0x60] sm:$0xff] %v4885
        %5014 = vst [vmem:[%s157 + $0x68] sm:$0xff] %v4886
        %5015 = vst [vmem:[%s157 + $0x70] sm:$0xff] %v4887
        %5016 = vst [vmem:[%s157 + $0x78] sm:$0xff] %v4888
        %5017 = vst [vmem:[%s157 + $0x80] sm:$0xff] %v4889
        %5018 = vst [vmem:[%s157 + $0x88] sm:$0xff] %v4890
        %5019 = vst [vmem:[%s157 + $0x90] sm:$0xff] %v4891
        %5020 = vst [vmem:[%s157 + $0x98] sm:$0xff] %v4892
        %5021 = vst [vmem:[%s157 + $0xa0] sm:$0xff] %v4893
        %5022 = vst [vmem:[%s157 + $0xa8] sm:$0xff] %v4894
        %5023 = vst [vmem:[%s157 + $0xb0] sm:$0xff] %v4895
        %5024 = vst [vmem:[%s157 + $0xb8] sm:$0xff] %v4896
        %5025 = vst [vmem:[%s157 + $0xc0] sm:$0xff] %v4897
        %5026 = vst [vmem:[%s157 + $0xc8] sm:$0xff] %v4898
        %5027 = vst [vmem:[%s157 + $0xd0] sm:$0xff] %v4899
        %5028 = vst [vmem:[%s157 + $0xd8] sm:$0xff] %v4900
        %5029 = vst [vmem:[%s157 + $0xe0] sm:$0xff] %v4901
        %5030 = vst [vmem:[%s157 + $0xe8] sm:$0xff] %v4902
        %5031 = vst [vmem:[%s157 + $0xf0] sm:$0xff] %v4903
        %5032 = vst [vmem:[%s157 + $0xf8] sm:$0xff] %v4904
        %5033 = vst [vmem:[%s157 + $0x100] sm:$0xff] %v4905
        %5034 = vst [vmem:[%s157 + $0x108] sm:$0xff] %v4906
        %5035 = vst [vmem:[%s157 + $0x110] sm:$0xff] %v4907
        %5036 = vst [vmem:[%s157 + $0x118] sm:$0xff] %v4908
        %5037 = vst [vmem:[%s157 + $0x120] sm:$0xff] %v4909
        %5038 = vst [vmem:[%s157 + $0x128] sm:$0xff] %v4910
        %5039 = vst [vmem:[%s157 + $0x130] sm:$0xff] %v4911
        %5040 = vst [vmem:[%s157 + $0x138] sm:$0xff] %v4912
        %5041 = vst [vmem:[%s157 + $0x140] sm:$0xff] %v4913
        %5042 = vst [vmem:[%s157 + $0x148] sm:$0xff] %v4914
        %5043 = vst [vmem:[%s157 + $0x150] sm:$0xff] %v4915
        %5044 = vst [vmem:[%s157 + $0x158] sm:$0xff] %v4916
        %5045 = vst [vmem:[%s157 + $0x160] sm:$0xff] %v4917
        %5046 = vst [vmem:[%s157 + $0x168] sm:$0xff] %v4918
        %5047 = vst [vmem:[%s157 + $0x170] sm:$0xff] %v4919
        %5048 = vst [vmem:[%s157 + $0x178] sm:$0xff] %v4920
        %5049 = vst [vmem:[%s157 + $0x180] sm:$0xff] %v4921
        %5050 = vst [vmem:[%s157 + $0x188] sm:$0xff] %v4922
        %5051 = vst [vmem:[%s157 + $0x190] sm:$0xff] %v4923
        %5052 = vst [vmem:[%s157 + $0x198] sm:$0xff] %v4924
        %5053 = vst [vmem:[%s157 + $0x1a0] sm:$0xff] %v4925
        %5054 = vst [vmem:[%s157 + $0x1a8] sm:$0xff] %v4926
        %5055 = vst [vmem:[%s157 + $0x1b0] sm:$0xff] %v4927
        %5056 = vst [vmem:[%s157 + $0x1b8] sm:$0xff] %v4928
        %5057 = vst [vmem:[%s157 + $0x1c0] sm:$0xff] %v4929
        %5058 = vst [vmem:[%s157 + $0x1c8] sm:$0xff] %v4930
        %5059 = vst [vmem:[%s157 + $0x1d0] sm:$0xff] %v4931
        %5060 = vst [vmem:[%s157 + $0x1d8] sm:$0xff] %v4932
        %5061 = vst [vmem:[%s157 + $0x1e0] sm:$0xff] %v4933
        %5062 = vst [vmem:[%s157 + $0x1e8] sm:$0xff] %v4934
        %5063 = vst [vmem:[%s157 + $0x1f0] sm:$0xff] %v4935
        %5064 = vst [vmem:[%s157 + $0x1f8] sm:$0xff] %v4936
        %s5065 = sand.u32 %s71, 1
        %s5066 = sand.u32 %s71, 1
        %s5067 = smul.addr %s5066, 512
        %s5068 = scalar_lea.vmem [#allocation4], %s5067
        // Predicated region
        $region33: #{_pipeline_core.6} parent=27 // pred_check
          %p5069 = pneg %p81
        $region34: #{_pipeline_core.6} parent=27 // pred_check_branch
          %5071 = sbr.rel (%p5069) target = $region36
        $region35: #{_pipeline_core.6} parent=27 // pred_region
          %s5072 = smul.u32 64, %s16
          %s5073 = smul.addr %s5072, 4
          %s5074 = scalar_lea.vmem %s2, %s5073
          // Predicated region
          $region37: #{_pipeline_core.6} parent=35 // pred_check
            _
          $region38: #{_pipeline_core.6} parent=35 // pred_check_branch
            %5076 = sbr.rel (0) target = $region40
          $region39: #{_pipeline_core.6} parent=35 // pred_region
            // Predicated region
            $region41: #{_pipeline_core.6} parent=39 // pred_check
              _
            $region42: #{_pipeline_core.6} parent=39 // pred_check_branch
              %5078 = sbr.rel (0) target = $region44
            $region43: #{_pipeline_core.6} parent=39 // pred_region
              loop: start=0, step=1, limit=1
              $region45: #{_pipeline_core.6} parent=43 // loop_pre_header
                _
              $region46: #{_pipeline_core.6} parent=43 // loop_header
                %s5080 = sphi 0, %s5084
                %p5081 = scmp.ge.s32.totalorder %s5080, 1
                %s5085 = sphi %s5068, %s5068
                %s5086 = sphi %s5074, %s5074
              $region47: #{_pipeline_core.6} parent=43 // loop_header_branch
                %5083 = sbr.rel (%p5081) target = $region51
              $region48: #{_pipeline_core.6} parent=43 // loop_body
                %v5087 = vld [vmem:[%s5085] sm:$0xff]
                %5088 = vst [vmem:[%s5086] sm:$0xff] %v5087
                %v5089 = vld [vmem:[%s5085 + $0x8] sm:$0xff]
                %5090 = vst [vmem:[%s5086 + $0x8] sm:$0xff] %v5089
                %v5091 = vld [vmem:[%s5085 + $0x10] sm:$0xff]
                %5092 = vst [vmem:[%s5086 + $0x10] sm:$0xff] %v5091
                %v5093 = vld [vmem:[%s5085 + $0x18] sm:$0xff]
                %5094 = vst [vmem:[%s5086 + $0x18] sm:$0xff] %v5093
                %v5095 = vld [vmem:[%s5085 + $0x20] sm:$0xff]
                %5096 = vst [vmem:[%s5086 + $0x20] sm:$0xff] %v5095
                %v5097 = vld [vmem:[%s5085 + $0x28] sm:$0xff]
                %5098 = vst [vmem:[%s5086 + $0x28] sm:$0xff] %v5097
                %v5099 = vld [vmem:[%s5085 + $0x30] sm:$0xff]
                %5100 = vst [vmem:[%s5086 + $0x30] sm:$0xff] %v5099
                %v5101 = vld [vmem:[%s5085 + $0x38] sm:$0xff]
                %5102 = vst [vmem:[%s5086 + $0x38] sm:$0xff] %v5101
                %v5103 = vld [vmem:[%s5085 + $0x40] sm:$0xff]
                %5104 = vst [vmem:[%s5086 + $0x40] sm:$0xff] %v5103
                %v5105 = vld [vmem:[%s5085 + $0x48] sm:$0xff]
                %5106 = vst [vmem:[%s5086 + $0x48] sm:$0xff] %v5105
                %v5107 = vld [vmem:[%s5085 + $0x50] sm:$0xff]
                %5108 = vst [vmem:[%s5086 + $0x50] sm:$0xff] %v5107
                %v5109 = vld [vmem:[%s5085 + $0x58] sm:$0xff]
                %5110 = vst [vmem:[%s5086 + $0x58] sm:$0xff] %v5109
                %v5111 = vld [vmem:[%s5085 + $0x60] sm:$0xff]
                %5112 = vst [vmem:[%s5086 + $0x60] sm:$0xff] %v5111
                %v5113 = vld [vmem:[%s5085 + $0x68] sm:$0xff]
                %5114 = vst [vmem:[%s5086 + $0x68] sm:$0xff] %v5113
                %v5115 = vld [vmem:[%s5085 + $0x70] sm:$0xff]
                %5116 = vst [vmem:[%s5086 + $0x70] sm:$0xff] %v5115
                %v5117 = vld [vmem:[%s5085 + $0x78] sm:$0xff]
                %5118 = vst [vmem:[%s5086 + $0x78] sm:$0xff] %v5117
                %v5119 = vld [vmem:[%s5085 + $0x80] sm:$0xff]
                %5120 = vst [vmem:[%s5086 + $0x80] sm:$0xff] %v5119
                %v5121 = vld [vmem:[%s5085 + $0x88] sm:$0xff]
                %5122 = vst [vmem:[%s5086 + $0x88] sm:$0xff] %v5121
                %v5123 = vld [vmem:[%s5085 + $0x90] sm:$0xff]
                %5124 = vst [vmem:[%s5086 + $0x90] sm:$0xff] %v5123
                %v5125 = vld [vmem:[%s5085 + $0x98] sm:$0xff]
                %5126 = vst [vmem:[%s5086 + $0x98] sm:$0xff] %v5125
                %v5127 = vld [vmem:[%s5085 + $0xa0] sm:$0xff]
                %5128 = vst [vmem:[%s5086 + $0xa0] sm:$0xff] %v5127
                %v5129 = vld [vmem:[%s5085 + $0xa8] sm:$0xff]
                %5130 = vst [vmem:[%s5086 + $0xa8] sm:$0xff] %v5129
                %v5131 = vld [vmem:[%s5085 + $0xb0] sm:$0xff]
                %5132 = vst [vmem:[%s5086 + $0xb0] sm:$0xff] %v5131
                %v5133 = vld [vmem:[%s5085 + $0xb8] sm:$0xff]
                %5134 = vst [vmem:[%s5086 + $0xb8] sm:$0xff] %v5133
                %v5135 = vld [vmem:[%s5085 + $0xc0] sm:$0xff]
                %5136 = vst [vmem:[%s5086 + $0xc0] sm:$0xff] %v5135
                %v5137 = vld [vmem:[%s5085 + $0xc8] sm:$0xff]
                %5138 = vst [vmem:[%s5086 + $0xc8] sm:$0xff] %v5137
                %v5139 = vld [vmem:[%s5085 + $0xd0] sm:$0xff]
                %5140 = vst [vmem:[%s5086 + $0xd0] sm:$0xff] %v5139
                %v5141 = vld [vmem:[%s5085 + $0xd8] sm:$0xff]
                %5142 = vst [vmem:[%s5086 + $0xd8] sm:$0xff] %v5141
                %v5143 = vld [vmem:[%s5085 + $0xe0] sm:$0xff]
                %5144 = vst [vmem:[%s5086 + $0xe0] sm:$0xff] %v5143
                %v5145 = vld [vmem:[%s5085 + $0xe8] sm:$0xff]
                %5146 = vst [vmem:[%s5086 + $0xe8] sm:$0xff] %v5145
                %v5147 = vld [vmem:[%s5085 + $0xf0] sm:$0xff]
                %5148 = vst [vmem:[%s5086 + $0xf0] sm:$0xff] %v5147
                %v5149 = vld [vmem:[%s5085 + $0xf8] sm:$0xff]
                %5150 = vst [vmem:[%s5086 + $0xf8] sm:$0xff] %v5149
                %v5151 = vld [vmem:[%s5085 + $0x100] sm:$0xff]
                %5152 = vst [vmem:[%s5086 + $0x200] sm:$0xff] %v5151
                %v5153 = vld [vmem:[%s5085 + $0x108] sm:$0xff]
                %5154 = vst [vmem:[%s5086 + $0x208] sm:$0xff] %v5153
                %v5155 = vld [vmem:[%s5085 + $0x110] sm:$0xff]
                %5156 = vst [vmem:[%s5086 + $0x210] sm:$0xff] %v5155
                %v5157 = vld [vmem:[%s5085 + $0x118] sm:$0xff]
                %5158 = vst [vmem:[%s5086 + $0x218] sm:$0xff] %v5157
                %v5159 = vld [vmem:[%s5085 + $0x120] sm:$0xff]
                %5160 = vst [vmem:[%s5086 + $0x220] sm:$0xff] %v5159
                %v5161 = vld [vmem:[%s5085 + $0x128] sm:$0xff]
                %5162 = vst [vmem:[%s5086 + $0x228] sm:$0xff] %v5161
                %v5163 = vld [vmem:[%s5085 + $0x130] sm:$0xff]
                %5164 = vst [vmem:[%s5086 + $0x230] sm:$0xff] %v5163
                %v5165 = vld [vmem:[%s5085 + $0x138] sm:$0xff]
                %5166 = vst [vmem:[%s5086 + $0x238] sm:$0xff] %v5165
                %v5167 = vld [vmem:[%s5085 + $0x140] sm:$0xff]
                %5168 = vst [vmem:[%s5086 + $0x240] sm:$0xff] %v5167
                %v5169 = vld [vmem:[%s5085 + $0x148] sm:$0xff]
                %5170 = vst [vmem:[%s5086 + $0x248] sm:$0xff] %v5169
                %v5171 = vld [vmem:[%s5085 + $0x150] sm:$0xff]
                %5172 = vst [vmem:[%s5086 + $0x250] sm:$0xff] %v5171
                %v5173 = vld [vmem:[%s5085 + $0x158] sm:$0xff]
                %5174 = vst [vmem:[%s5086 + $0x258] sm:$0xff] %v5173
                %v5175 = vld [vmem:[%s5085 + $0x160] sm:$0xff]
                %5176 = vst [vmem:[%s5086 + $0x260] sm:$0xff] %v5175
                %v5177 = vld [vmem:[%s5085 + $0x168] sm:$0xff]
                %5178 = vst [vmem:[%s5086 + $0x268] sm:$0xff] %v5177
                %v5179 = vld [vmem:[%s5085 + $0x170] sm:$0xff]
                %5180 = vst [vmem:[%s5086 + $0x270] sm:$0xff] %v5179
                %v5181 = vld [vmem:[%s5085 + $0x178] sm:$0xff]
                %5182 = vst [vmem:[%s5086 + $0x278] sm:$0xff] %v5181
                %v5183 = vld [vmem:[%s5085 + $0x180] sm:$0xff]
                %5184 = vst [vmem:[%s5086 + $0x280] sm:$0xff] %v5183
                %v5185 = vld [vmem:[%s5085 + $0x188] sm:$0xff]
                %5186 = vst [vmem:[%s5086 + $0x288] sm:$0xff] %v5185
                %v5187 = vld [vmem:[%s5085 + $0x190] sm:$0xff]
                %5188 = vst [vmem:[%s5086 + $0x290] sm:$0xff] %v5187
                %v5189 = vld [vmem:[%s5085 + $0x198] sm:$0xff]
                %5190 = vst [vmem:[%s5086 + $0x298] sm:$0xff] %v5189
                %v5191 = vld [vmem:[%s5085 + $0x1a0] sm:$0xff]
                %5192 = vst [vmem:[%s5086 + $0x2a0] sm:$0xff] %v5191
                %v5193 = vld [vmem:[%s5085 + $0x1a8] sm:$0xff]
                %5194 = vst [vmem:[%s5086 + $0x2a8] sm:$0xff] %v5193
                %v5195 = vld [vmem:[%s5085 + $0x1b0] sm:$0xff]
                %5196 = vst [vmem:[%s5086 + $0x2b0] sm:$0xff] %v5195
                %v5197 = vld [vmem:[%s5085 + $0x1b8] sm:$0xff]
                %5198 = vst [vmem:[%s5086 + $0x2b8] sm:$0xff] %v5197
                %v5199 = vld [vmem:[%s5085 + $0x1c0] sm:$0xff]
                %5200 = vst [vmem:[%s5086 + $0x2c0] sm:$0xff] %v5199
                %v5201 = vld [vmem:[%s5085 + $0x1c8] sm:$0xff]
                %5202 = vst [vmem:[%s5086 + $0x2c8] sm:$0xff] %v5201
                %v5203 = vld [vmem:[%s5085 + $0x1d0] sm:$0xff]
                %5204 = vst [vmem:[%s5086 + $0x2d0] sm:$0xff] %v5203
                %v5205 = vld [vmem:[%s5085 + $0x1d8] sm:$0xff]
                %5206 = vst [vmem:[%s5086 + $0x2d8] sm:$0xff] %v5205
                %v5207 = vld [vmem:[%s5085 + $0x1e0] sm:$0xff]
                %5208 = vst [vmem:[%s5086 + $0x2e0] sm:$0xff] %v5207
                %v5209 = vld [vmem:[%s5085 + $0x1e8] sm:$0xff]
                %5210 = vst [vmem:[%s5086 + $0x2e8] sm:$0xff] %v5209
                %v5211 = vld [vmem:[%s5085 + $0x1f0] sm:$0xff]
                %5212 = vst [vmem:[%s5086 + $0x2f0] sm:$0xff] %v5211
                %v5213 = vld [vmem:[%s5085 + $0x1f8] sm:$0xff]
                %5214 = vst [vmem:[%s5086 + $0x2f8] sm:$0xff] %v5213
              $region49: #{_pipeline_core.6} parent=43 // loop_footer
                %s5084 = sadd.s32 1, %s5080
              $region50: #{_pipeline_core.6} parent=43 // loop_footer_branch
                %5079 = sbr.rel target = $region46
              $region51: #{_pipeline_core.6} parent=43 // loop_exit
                _
            $region44: #{_pipeline_core.6} parent=39 // pred_fallthru
              _
            // Predicated region
            $region52: #{_pipeline_core.6} parent=39 // pred_check
              _
            $region53: #{_pipeline_core.6} parent=39 // pred_check_branch
              %5216 = sbr.rel target = $region55
            $region54: #{_pipeline_core.6} parent=39 // pred_region
              _
            $region55: #{_pipeline_core.6} parent=39 // pred_fallthru
              _
          $region40: #{_pipeline_core.6} parent=35 // pred_fallthru
            _
          %5217 = vnop
        $region36: #{_pipeline_core.6} parent=27 // pred_fallthru
          _
      $region28: #{_pipeline_core.6} parent=5 // pred_fallthru
        _
      %p5218 = scmp.le.s32.totalorder 2, %s11
      // Predicated region
      $region56: #{_pipeline_core.6} parent=5 // pred_check
        %p5219 = pneg %p5218
      $region57: #{_pipeline_core.6} parent=5 // pred_check_branch
        %5221 = sbr.rel (%p5219) target = $region59
      $region58: #{_pipeline_core.6} parent=5 // pred_region
        %s5222 = ssub.s32 %s11, 2
        // Predicated region
        $region60: #{_pipeline_core.6} parent=58 // pred_check
          %p5223 = pneg %p87
        $region61: #{_pipeline_core.6} parent=58 // pred_check_branch
          %5225 = sbr.rel (%p5223) target = $region63
        $region62: #{_pipeline_core.6} parent=58 // pred_region
          %s5226 = sand.u32 %s72, 1
          %s5227 = sand.u32 %s72, 1
          %s5228 = smul.addr %s5227, 512
          %s5229 = scalar_lea.vmem [#allocation4], %s5228
        $region63: #{_pipeline_core.6} parent=58 // pred_fallthru
          _
      $region59: #{_pipeline_core.6} parent=5 // pred_fallthru
        _
    $region6: #{_pipeline_core.6} parent=1 // loop_footer
      %s15 = sadd.s32 1, %s11
    $region7: #{_pipeline_core.6} parent=1 // loop_footer_branch
      %10 = sbr.rel target = $region3
    $region8: #{_pipeline_core.6} parent=1 // loop_exit
      _
    %5230 = vsyncpa [#allocation3], 1
    %s5231 = scalar_lea.sflag [#allocation3], 1
    %5232 = vsyncpa %s5231, 1

</llo_original>
